<compile_context>
chip_gen: v7x
topology: tpu7x:2x2x1
jax: 0.10.0
libtpu: 0.0.40
codegen_flags: <defaults>
</compile_context>

<pallas_src>
import functools
import math

import jax
import jax.numpy as jnp
from jax.experimental import pallas as pl
from jax.experimental.pallas import tpu as pltpu


def _quick_gelu(v):
    # x * sigmoid(1.702 x); approx reciprocal keeps the divide on the EUP slot.
    return v * pl.reciprocal(1.0 + jnp.exp(-1.702 * v), approx=True)


def _block_kernel(x_ref, mask_ref, pbn1s_ref, pbn1b_ref, w1_ref,
                  pbn2s_ref, pbn2b_ref, w2_ref, bn1s_ref, bn1b_ref,
                  wkv_ref, qbd_ref, wo_ref, o_ref,
                  s_h, s_sc, s_v,
                  *, C, hd, nh, nq, D, L, MARG, ZW, offs):
    """IMG images per grid step, layout (channels, packed_padded_tokens): tokens on lanes."""
    f32 = jnp.float32
    bf16 = jnp.bfloat16
    nhq = nh * nq

    # Zero only the narrow halo strips the 3x3 taps can reach (interior lanes are fully
    # rewritten below).  Done every step so it is safe under megacore grid splitting.
    for ref in (s_h, s_sc, s_v):
        rows = ref.shape[0]
        ref[:, MARG - ZW:MARG] = jnp.zeros((rows, ZW), ref.dtype)
        ref[:, MARG + L:MARG + L + ZW] = jnp.zeros((rows, ZW), ref.dtype)

    x = x_ref[0]                                   # (C, L)  IMG zero-padded images
    mask = mask_ref[...]                           # (1, L)  1 at interior pixels, 0 on pad

    def taps(ref):
        # shifted window reads straight from VMEM scratch (in-VMEM im2col)
        return [ref[:, MARG + d:MARG + d + L] for d in offs]

    def sc_tap(d):
        return s_sc[:, MARG + d:MARG + d + L]

    def v_tap(d):
        return s_v[:, MARG + d:MARG + d + L]

    # ---------------- PreActBlock:  conv2(gelu(bn2(conv1(gelu(bn1(x)))))) + x --------
    h1 = _quick_gelu(x * pbn1s_ref[...] + pbn1b_ref[...]) * mask
    s_h[:, MARG:MARG + L] = h1.astype(bf16)
    cat1 = jnp.concatenate(taps(s_h), axis=0)                          # (9C, L) bf16
    c1 = jnp.dot(w1_ref[...], cat1, preferred_element_type=f32)        # (C, L)

    h2 = _quick_gelu(c1 * pbn2s_ref[...] + pbn2b_ref[...]) * mask
    s_h[:, MARG:MARG + L] = h2.astype(bf16)
    cat2 = jnp.concatenate(taps(s_h), axis=0)
    xp = jnp.dot(w2_ref[...], cat2, preferred_element_type=f32) + x    # (C, L)

    # ---------------- bn1 + fused K/V projection (project-then-gather) --------------
    y = ((xp * bn1s_ref[...] + bn1b_ref[...]) * mask).astype(bf16)
    kv = jnp.dot(wkv_ref[...], y, preferred_element_type=f32)          # (2*hd, L)
    s_v[:, MARG:MARG + L] = kv[hd:, :]                                 # V half, f32

    # Scores are linear in K -> compute them once on the un-shifted K and shift the
    # (nhq, L) score map, instead of gathering the (hd, L) K map nine times.
    s_sc[:, MARG:MARG + L] = jnp.dot(qbd_ref[...], kv[:hd, :].astype(bf16),
                                     preferred_element_type=f32)       # (nhq, L)

    # ---------------- local multi-head cross attention over the 3x3 window ----------
    # pass 1: running max over the 9 shifted score tiles
    m = sc_tap(offs[0])
    for d in offs[1:]:
        m = jnp.maximum(m, sc_tap(d))

    # pass 2: exp / denominator / weighted-V accumulate, one window offset at a time
    l = jnp.zeros((nhq, L), f32)
    accs = [jnp.zeros((D, L), f32) for _ in range(nhq)]
    for d in offs:
        p = jnp.exp(sc_tap(d) - m)                                     # (nhq, L)
        l = l + p
        vd = v_tap(d)                                                  # (hd, L)
        for h in range(nh):
            vh = vd[h * D:(h + 1) * D, :]
            for q in range(nq):
                r = h * nq + q
                accs[r] = accs[r] + p[r:r + 1, :] * vh

    inv_l = pl.reciprocal(l, approx=True)                              # (nhq, L)
    attn = jnp.concatenate(
        [accs[r] * inv_l[r:r + 1, :] for r in range(nhq)], axis=0).astype(bf16)

    # ---------------- output projection + outer residual ----------------------------
    o_ref[0] = jnp.dot(wo_ref[...], attn, preferred_element_type=f32) + xp


def residual_local_attention_block(x, params, *, num_heads, num_queries, head_dim,
                                   attn_window_size, images_per_step=None):
    # TODO(synk): only the 3x3 attention window (matching the 1-pixel conv padding ring)
    # is supported in the fused kernel; larger windows would need a wider halo.
    assert attn_window_size == 3

    B, C, H, W = x.shape
    Hp, Wp = H + 2, W + 2
    P = Hp * Wp
    hd = num_heads * head_dim
    nhq = num_heads * num_queries

    if images_per_step is None:
        # Pack images onto the lane axis to amortize per-step fixed cost, but keep
        # >= 2 grid steps when possible (megacore) and cap lane width for vreg pressure.
        divisors = [d for d in range(1, B + 1) if B % d == 0]
        cands = [d for d in divisors if B // d >= 2] or [B]
        capped = [d for d in cands if d <= 2] or [min(cands)]
        images_per_step = max(capped)
    IMG = images_per_step
    assert B % IMG == 0
    G = B // IMG
    L = IMG * P

    MARG = -(-(Wp + 1) // 128) * 128            # halo margin (aligned interior start)
    ZW = min(MARG, -(-(Wp + 1) // 32) * 32)     # zeroed strip width (covers tap reach)

    # NCHW is channels-major: pack IMG padded images contiguously on the lane axis.
    x_pad = jnp.pad(x, ((0, 0), (0, 0), (1, 1), (1, 1))).reshape(G, IMG, C, P)
    x_pack = jnp.transpose(x_pad, (0, 2, 1, 3)).reshape(G, C, L)
    mask = jnp.zeros((Hp, Wp), jnp.float32).at[1:H + 1, 1:W + 1].set(1.0).reshape(1, P)
    mask = jnp.tile(mask, (1, IMG))

    offs = tuple((dy - 1) * Wp + (dx - 1) for dy in range(3) for dx in range(3))

    kern = functools.partial(_block_kernel, C=C, hd=hd, nh=num_heads, nq=num_queries,
                             D=head_dim, L=L, MARG=MARG, ZW=ZW, offs=offs)

    def full(shape):
        return pl.BlockSpec(shape, lambda g, _n=len(shape): (0,) * _n)

    flops = 2 * G * L * (2 * 9 * C * C + 2 * hd * C + nhq * hd
                         + 9 * nhq * head_dim + C * nhq * head_dim)
    transcend = G * L * (2 * C + 9 * nhq)
    param_bytes = sum(int(v.size) * v.dtype.itemsize for v in params.values())
    bytes_accessed = 2 * G * C * L * 4 + G * param_bytes

    out = pl.pallas_call(
        kern,
        grid=(G,),
        in_specs=[
            pl.BlockSpec((1, C, L), lambda g: (g, 0, 0)),   # packed padded images
            full((1, L)),                                    # interior mask
            full((C, 1)), full((C, 1)),                      # PreAct bn1 scale/bias
            full((C, 9 * C)),                                # conv1 weight (Cout, 9*Cin)
            full((C, 1)), full((C, 1)),                      # PreAct bn2 scale/bias
            full((C, 9 * C)),                                # conv2 weight
            full((C, 1)), full((C, 1)),                      # outer bn1 scale/bias
            full((2 * hd, C)),                               # [wk; wv]^T
            full((nhq, hd)),                                 # block-diag queries (scaled)
            full((C, nhq * head_dim)),                       # wo^T
        ],
        out_specs=pl.BlockSpec((1, C, L), lambda g: (g, 0, 0)),
        out_shape=jax.ShapeDtypeStruct((G, C, L), jnp.float32),
        scratch_shapes=[pltpu.VMEM((C, L + 2 * MARG), jnp.bfloat16),     # PreAct halo
                        pltpu.VMEM((nhq, L + 2 * MARG), jnp.float32),    # score halo
                        pltpu.VMEM((hd, L + 2 * MARG), jnp.float32)],    # V halo
        compiler_params=pltpu.CompilerParams(dimension_semantics=("parallel",)),
        cost_estimate=pl.CostEstimate(flops=int(flops),
                                      transcendentals=int(transcend),
                                      bytes_accessed=int(bytes_accessed)),
    )(x_pack, mask,
      params['p_bn1_scale'], params['p_bn1_bias'], params['conv1_wt'],
      params['p_bn2_scale'], params['p_bn2_bias'], params['conv2_wt'],
      params['bn1_scale'], params['bn1_bias'],
      params['wkv_t'], params['qbd'], params['wo_t'])

    out = out.reshape(G, C, IMG, P).transpose(0, 2, 1, 3).reshape(B, C, Hp, Wp)
    return out[:, :, 1:H + 1, 1:W + 1]


def init_params(key, dim, num_heads, num_queries, head_dim):
    keys = iter(jax.random.split(key, 24))
    nxt = lambda: next(keys)
    C = dim
    hd = num_heads * head_dim

    def bn_params():
        gamma = 1.0 + 0.1 * jax.random.normal(nxt(), (C,), jnp.float32)
        beta = 0.1 * jax.random.normal(nxt(), (C,), jnp.float32)
        mean = 0.1 * jax.random.normal(nxt(), (C,), jnp.float32)
        var = 0.5 + jnp.abs(jax.random.normal(nxt(), (C,), jnp.float32))
        scale = gamma * jax.lax.rsqrt(var + 1e-5)
        bias = beta - mean * scale
        return scale.reshape(C, 1), bias.reshape(C, 1)

    def conv3x3():
        w = 0.1 * jax.random.normal(nxt(), (C, C, 3, 3), jnp.float32)   # torch (Cout,Cin,kh,kw)
        # columns ordered (kh, kw, Cin) to match the in-kernel window concatenation
        return jnp.transpose(w, (0, 2, 3, 1)).reshape(C, 9 * C).astype(jnp.bfloat16)

    p = {}
    p['p_bn1_scale'], p['p_bn1_bias'] = bn_params()
    p['conv1_wt'] = conv3x3()
    p['p_bn2_scale'], p['p_bn2_bias'] = bn_params()
    p['conv2_wt'] = conv3x3()
    p['bn1_scale'], p['bn1_bias'] = bn_params()

    wk = 0.1 * jax.random.normal(nxt(), (C, hd), jnp.float32)
    wv = 0.1 * jax.random.normal(nxt(), (C, hd), jnp.float32)
    p['wkv_t'] = jnp.concatenate([wk.T, wv.T], axis=0).astype(jnp.bfloat16)   # (2hd, C)

    queries = 0.2 * jax.random.normal(nxt(), (num_heads, num_queries, head_dim), jnp.float32)
    qbd = jnp.zeros((num_heads * num_queries, hd), jnp.float32)
    for h in range(num_heads):
        qbd = qbd.at[h * num_queries:(h + 1) * num_queries,
                     h * head_dim:(h + 1) * head_dim].set(queries[h])
    p['qbd'] = (qbd * (1.0 / math.sqrt(head_dim))).astype(jnp.bfloat16)       # (nh*nq, hd)

    wo = 0.1 * jax.random.normal(nxt(), (num_heads * num_queries * head_dim, C), jnp.float32)
    p['wo_t'] = wo.T.astype(jnp.bfloat16)                                      # (C, nh*nq*D)
    return p


if __name__ == "__main__":
    # small shapes consistent with the module
    B, dim, H, W = 4, 16, 16, 16
    num_heads, num_queries, head_dim, attn_window_size = 2, 4, 8, 3

    key = jax.random.PRNGKey(0)
    kx, kp = jax.random.split(key)
    x = jax.random.normal(kx, (B, dim, H, W), dtype=jnp.float32)
    params = init_params(kp, dim, num_heads, num_queries, head_dim)

    fwd = jax.jit(functools.partial(residual_local_attention_block,
                                    num_heads=num_heads, num_queries=num_queries,
                                    head_dim=head_dim,
                                    attn_window_size=attn_window_size))
    out = jax.block_until_ready(fwd(x, params))

    assert out.shape == x.shape
    assert bool(jnp.all(jnp.isfinite(out)))
    print("KERNEL_OK")
</pallas_src>

<mosaic_0001>
module attributes {stable_mosaic.version = 11 : i64} {
  func.func @_block_kernel(%arg0: i32, %arg1: memref<1x16x648xf32, #tpu.memory_space<vmem>>, %arg2: memref<1x648xf32, #tpu.memory_space<vmem>>, %arg3: memref<16x1xf32, #tpu.memory_space<vmem>>, %arg4: memref<16x1xf32, #tpu.memory_space<vmem>>, %arg5: memref<16x144xbf16, #tpu.memory_space<vmem>>, %arg6: memref<16x1xf32, #tpu.memory_space<vmem>>, %arg7: memref<16x1xf32, #tpu.memory_space<vmem>>, %arg8: memref<16x144xbf16, #tpu.memory_space<vmem>>, %arg9: memref<16x1xf32, #tpu.memory_space<vmem>>, %arg10: memref<16x1xf32, #tpu.memory_space<vmem>>, %arg11: memref<32x16xbf16, #tpu.memory_space<vmem>>, %arg12: memref<8x16xbf16, #tpu.memory_space<vmem>>, %arg13: memref<16x64xbf16, #tpu.memory_space<vmem>>, %arg14: memref<1x16x648xf32, #tpu.memory_space<vmem>>, %arg15: memref<16x904xbf16, #tpu.memory_space<vmem>>, %arg16: memref<8x904xf32, #tpu.memory_space<vmem>>, %arg17: memref<16x904xf32, #tpu.memory_space<vmem>>) attributes {dimension_semantics = [#tpu.dimension_semantics<parallel>], iteration_bounds = array<i64: 2>, scalar_prefetch = 0 : i64, scratch_operands = 3 : i64, tpu.core_type = #tpu.core_type<tc>, window_params = [{transform_indices = @transform_0, window_bounds = array<i64: 1, 16, 648>}, {pipeline_mode = #tpu.pipeline_mode<synchronous>, transform_indices = @transform_1, window_bounds = array<i64: 1, 648>}, {pipeline_mode = #tpu.pipeline_mode<synchronous>, transform_indices = @transform_2, window_bounds = array<i64: 16, 1>}, {pipeline_mode = #tpu.pipeline_mode<synchronous>, transform_indices = @transform_3, window_bounds = array<i64: 16, 1>}, {pipeline_mode = #tpu.pipeline_mode<synchronous>, transform_indices = @transform_4, window_bounds = array<i64: 16, 144>}, {pipeline_mode = #tpu.pipeline_mode<synchronous>, transform_indices = @transform_5, window_bounds = array<i64: 16, 1>}, {pipeline_mode = #tpu.pipeline_mode<synchronous>, transform_indices = @transform_6, window_bounds = array<i64: 16, 1>}, {pipeline_mode = #tpu.pipeline_mode<synchronous>, transform_indices = @transform_7, window_bounds = array<i64: 16, 144>}, {pipeline_mode = #tpu.pipeline_mode<synchronous>, transform_indices = @transform_8, window_bounds = array<i64: 16, 1>}, {pipeline_mode = #tpu.pipeline_mode<synchronous>, transform_indices = @transform_9, window_bounds = array<i64: 16, 1>}, {pipeline_mode = #tpu.pipeline_mode<synchronous>, transform_indices = @transform_10, window_bounds = array<i64: 32, 16>}, {pipeline_mode = #tpu.pipeline_mode<synchronous>, transform_indices = @transform_11, window_bounds = array<i64: 8, 16>}, {pipeline_mode = #tpu.pipeline_mode<synchronous>, transform_indices = @transform_12, window_bounds = array<i64: 16, 64>}, {transform_indices = @transform_13, window_bounds = array<i64: 1, 16, 648>}]} {
    %cst = arith.constant 0.000000e+00 : bf16
    %0 = vector.broadcast %cst : bf16 to vector<16x32xbf16>
    %c0 = arith.constant 0 : index
    %c96 = arith.constant 96 : index
    %1 = vector.load %arg15[%c0, %c96] : memref<16x904xbf16, #tpu.memory_space<vmem>>, vector<16x32xbf16>
    tpu.vector_store %arg15[%c0, %c96], %0 {strides = array<i32>} : memref<16x904xbf16, #tpu.memory_space<vmem>>, vector<16x32xbf16>,
    %cst_0 = arith.constant 0.000000e+00 : bf16
    %2 = vector.broadcast %cst_0 : bf16 to vector<16x32xbf16>
    %c0_1 = arith.constant 0 : index
    %c776 = arith.constant 776 : index
    %3 = vector.load %arg15[%c0_1, %c776] : memref<16x904xbf16, #tpu.memory_space<vmem>>, vector<16x32xbf16>
    tpu.vector_store %arg15[%c0_1, %c776], %2 {strides = array<i32>} : memref<16x904xbf16, #tpu.memory_space<vmem>>, vector<16x32xbf16>,
    %cst_2 = arith.constant 0.000000e+00 : f32
    %4 = vector.broadcast %cst_2 : f32 to vector<8x32xf32>
    %c0_3 = arith.constant 0 : index
    %c96_4 = arith.constant 96 : index
    %5 = vector.load %arg16[%c0_3, %c96_4] : memref<8x904xf32, #tpu.memory_space<vmem>>, vector<8x32xf32>
    tpu.vector_store %arg16[%c0_3, %c96_4], %4 {strides = array<i32>} : memref<8x904xf32, #tpu.memory_space<vmem>>, vector<8x32xf32>,
    %cst_5 = arith.constant 0.000000e+00 : f32
    %6 = vector.broadcast %cst_5 : f32 to vector<8x32xf32>
    %c0_6 = arith.constant 0 : index
    %c776_7 = arith.constant 776 : index
    %7 = vector.load %arg16[%c0_6, %c776_7] : memref<8x904xf32, #tpu.memory_space<vmem>>, vector<8x32xf32>
    tpu.vector_store %arg16[%c0_6, %c776_7], %6 {strides = array<i32>} : memref<8x904xf32, #tpu.memory_space<vmem>>, vector<8x32xf32>,
    %cst_8 = arith.constant 0.000000e+00 : f32
    %8 = vector.broadcast %cst_8 : f32 to vector<16x32xf32>
    %c0_9 = arith.constant 0 : index
    %c96_10 = arith.constant 96 : index
    %9 = vector.load %arg17[%c0_9, %c96_10] : memref<16x904xf32, #tpu.memory_space<vmem>>, vector<16x32xf32>
    tpu.vector_store %arg17[%c0_9, %c96_10], %8 {strides = array<i32>} : memref<16x904xf32, #tpu.memory_space<vmem>>, vector<16x32xf32>,
    %cst_11 = arith.constant 0.000000e+00 : f32
    %10 = vector.broadcast %cst_11 : f32 to vector<16x32xf32>
    %c0_12 = arith.constant 0 : index
    %c776_13 = arith.constant 776 : index
    %11 = vector.load %arg17[%c0_12, %c776_13] : memref<16x904xf32, #tpu.memory_space<vmem>>, vector<16x32xf32>
    tpu.vector_store %arg17[%c0_12, %c776_13], %10 {strides = array<i32>} : memref<16x904xf32, #tpu.memory_space<vmem>>, vector<16x32xf32>,
    %c0_14 = arith.constant 0 : index
    %c0_15 = arith.constant 0 : index
    %c0_16 = arith.constant 0 : index
    %12 = vector.load %arg1[%c0_14, %c0_15, %c0_16] : memref<1x16x648xf32, #tpu.memory_space<vmem>>, vector<1x16x648xf32>
    %13 = vector.shape_cast %12 : vector<1x16x648xf32> to vector<16x648xf32>
    %c0_17 = arith.constant 0 : index
    %c0_18 = arith.constant 0 : index
    %14 = vector.load %arg2[%c0_17, %c0_18] : memref<1x648xf32, #tpu.memory_space<vmem>>, vector<1x648xf32>
    %c0_19 = arith.constant 0 : index
    %c0_20 = arith.constant 0 : index
    %15 = vector.load %arg3[%c0_19, %c0_20] : memref<16x1xf32, #tpu.memory_space<vmem>>, vector<16x1xf32>
    %16 = vector.broadcast %15 : vector<16x1xf32> to vector<16x648xf32>
    %17 = arith.mulf %13, %16 : vector<16x648xf32>
    %c0_21 = arith.constant 0 : index
    %c0_22 = arith.constant 0 : index
    %18 = vector.load %arg4[%c0_21, %c0_22] : memref<16x1xf32, #tpu.memory_space<vmem>>, vector<16x1xf32>
    %19 = vector.broadcast %18 : vector<16x1xf32> to vector<16x648xf32>
    %20 = arith.addf %17, %19 : vector<16x648xf32>
    %cst_23 = arith.constant -1.702000e+00 : f32
    %21 = vector.broadcast %cst_23 : f32 to vector<16x648xf32>
    %22 = arith.mulf %21, %20 : vector<16x648xf32>
    %23 = math.exp %22 : vector<16x648xf32>
    %cst_24 = arith.constant 1.000000e+00 : f32
    %24 = vector.broadcast %cst_24 : f32 to vector<16x648xf32>
    %25 = arith.addf %24, %23 : vector<16x648xf32>
    %26 = tpu.reciprocal %25 {approx = true} : vector<16x648xf32> -> vector<16x648xf32>
    %27 = arith.mulf %20, %26 : vector<16x648xf32>
    %28 = vector.broadcast %14 : vector<1x648xf32> to vector<16x648xf32>
    %29 = arith.mulf %27, %28 : vector<16x648xf32>
    %30 = arith.truncf %29 : vector<16x648xf32> to vector<16x648xbf16>
    %c0_25 = arith.constant 0 : index
    %c128 = arith.constant 128 : index
    %31 = vector.load %arg15[%c0_25, %c128] : memref<16x904xbf16, #tpu.memory_space<vmem>>, vector<16x648xbf16>
    tpu.vector_store %arg15[%c0_25, %c128], %30 {strides = array<i32>} : memref<16x904xbf16, #tpu.memory_space<vmem>>, vector<16x648xbf16>,
    %c0_26 = arith.constant 0 : index
    %c109 = arith.constant 109 : index
    %32 = vector.load %arg15[%c0_26, %c109] : memref<16x904xbf16, #tpu.memory_space<vmem>>, vector<16x648xbf16>
    %c0_27 = arith.constant 0 : index
    %c110 = arith.constant 110 : index
    %33 = vector.load %arg15[%c0_27, %c110] : memref<16x904xbf16, #tpu.memory_space<vmem>>, vector<16x648xbf16>
    %c0_28 = arith.constant 0 : index
    %c111 = arith.constant 111 : index
    %34 = vector.load %arg15[%c0_28, %c111] : memref<16x904xbf16, #tpu.memory_space<vmem>>, vector<16x648xbf16>
    %c0_29 = arith.constant 0 : index
    %c127 = arith.constant 127 : index
    %35 = vector.load %arg15[%c0_29, %c127] : memref<16x904xbf16, #tpu.memory_space<vmem>>, vector<16x648xbf16>
    %c0_30 = arith.constant 0 : index
    %c128_31 = arith.constant 128 : index
    %36 = vector.load %arg15[%c0_30, %c128_31] : memref<16x904xbf16, #tpu.memory_space<vmem>>, vector<16x648xbf16>
    %c0_32 = arith.constant 0 : index
    %c129 = arith.constant 129 : index
    %37 = vector.load %arg15[%c0_32, %c129] : memref<16x904xbf16, #tpu.memory_space<vmem>>, vector<16x648xbf16>
    %c0_33 = arith.constant 0 : index
    %c145 = arith.constant 145 : index
    %38 = vector.load %arg15[%c0_33, %c145] : memref<16x904xbf16, #tpu.memory_space<vmem>>, vector<16x648xbf16>
    %c0_34 = arith.constant 0 : index
    %c146 = arith.constant 146 : index
    %39 = vector.load %arg15[%c0_34, %c146] : memref<16x904xbf16, #tpu.memory_space<vmem>>, vector<16x648xbf16>
    %c0_35 = arith.constant 0 : index
    %c147 = arith.constant 147 : index
    %40 = vector.load %arg15[%c0_35, %c147] : memref<16x904xbf16, #tpu.memory_space<vmem>>, vector<16x648xbf16>
    %41 = tpu.concatenate %32, %33, %34, %35, %36, %37, %38, %39, %40 in 0 : vector<16x648xbf16>, vector<16x648xbf16>, vector<16x648xbf16>, vector<16x648xbf16>, vector<16x648xbf16>, vector<16x648xbf16>, vector<16x648xbf16>, vector<16x648xbf16>, vector<16x648xbf16> -> vector<144x648xbf16>
    %c0_36 = arith.constant 0 : index
    %c0_37 = arith.constant 0 : index
    %42 = vector.load %arg5[%c0_36, %c0_37] : memref<16x144xbf16, #tpu.memory_space<vmem>>, vector<16x144xbf16>
    %cst_38 = arith.constant dense<0.000000e+00> : vector<16x648xf32>
    %43 = tpu.matmul %42, %41, %cst_38 {dimension_numbers = #tpu.dot_dimension_numbers<[1], [0], [0], [1], [0, 0, 1, 1], [], []>} : vector<16x144xbf16>, vector<144x648xbf16>, vector<16x648xf32> -> vector<16x648xf32>
    %c0_39 = arith.constant 0 : index
    %c0_40 = arith.constant 0 : index
    %44 = vector.load %arg6[%c0_39, %c0_40] : memref<16x1xf32, #tpu.memory_space<vmem>>, vector<16x1xf32>
    %45 = vector.broadcast %44 : vector<16x1xf32> to vector<16x648xf32>
    %46 = arith.mulf %43, %45 : vector<16x648xf32>
    %c0_41 = arith.constant 0 : index
    %c0_42 = arith.constant 0 : index
    %47 = vector.load %arg7[%c0_41, %c0_42] : memref<16x1xf32, #tpu.memory_space<vmem>>, vector<16x1xf32>
    %48 = vector.broadcast %47 : vector<16x1xf32> to vector<16x648xf32>
    %49 = arith.addf %46, %48 : vector<16x648xf32>
    %cst_43 = arith.constant -1.702000e+00 : f32
    %50 = vector.broadcast %cst_43 : f32 to vector<16x648xf32>
    %51 = arith.mulf %50, %49 : vector<16x648xf32>
    %52 = math.exp %51 : vector<16x648xf32>
    %cst_44 = arith.constant 1.000000e+00 : f32
    %53 = vector.broadcast %cst_44 : f32 to vector<16x648xf32>
    %54 = arith.addf %53, %52 : vector<16x648xf32>
    %55 = tpu.reciprocal %54 {approx = true} : vector<16x648xf32> -> vector<16x648xf32>
    %56 = arith.mulf %49, %55 : vector<16x648xf32>
    %57 = vector.broadcast %14 : vector<1x648xf32> to vector<16x648xf32>
    %58 = arith.mulf %56, %57 : vector<16x648xf32>
    %59 = arith.truncf %58 : vector<16x648xf32> to vector<16x648xbf16>
    %c0_45 = arith.constant 0 : index
    %c128_46 = arith.constant 128 : index
    %60 = vector.load %arg15[%c0_45, %c128_46] : memref<16x904xbf16, #tpu.memory_space<vmem>>, vector<16x648xbf16>
    tpu.vector_store %arg15[%c0_45, %c128_46], %59 {strides = array<i32>} : memref<16x904xbf16, #tpu.memory_space<vmem>>, vector<16x648xbf16>,
    %c0_47 = arith.constant 0 : index
    %c109_48 = arith.constant 109 : index
    %61 = vector.load %arg15[%c0_47, %c109_48] : memref<16x904xbf16, #tpu.memory_space<vmem>>, vector<16x648xbf16>
    %c0_49 = arith.constant 0 : index
    %c110_50 = arith.constant 110 : index
    %62 = vector.load %arg15[%c0_49, %c110_50] : memref<16x904xbf16, #tpu.memory_space<vmem>>, vector<16x648xbf16>
    %c0_51 = arith.constant 0 : index
    %c111_52 = arith.constant 111 : index
    %63 = vector.load %arg15[%c0_51, %c111_52] : memref<16x904xbf16, #tpu.memory_space<vmem>>, vector<16x648xbf16>
    %c0_53 = arith.constant 0 : index
    %c127_54 = arith.constant 127 : index
    %64 = vector.load %arg15[%c0_53, %c127_54] : memref<16x904xbf16, #tpu.memory_space<vmem>>, vector<16x648xbf16>
    %c0_55 = arith.constant 0 : index
    %c128_56 = arith.constant 128 : index
    %65 = vector.load %arg15[%c0_55, %c128_56] : memref<16x904xbf16, #tpu.memory_space<vmem>>, vector<16x648xbf16>
    %c0_57 = arith.constant 0 : index
    %c129_58 = arith.constant 129 : index
    %66 = vector.load %arg15[%c0_57, %c129_58] : memref<16x904xbf16, #tpu.memory_space<vmem>>, vector<16x648xbf16>
    %c0_59 = arith.constant 0 : index
    %c145_60 = arith.constant 145 : index
    %67 = vector.load %arg15[%c0_59, %c145_60] : memref<16x904xbf16, #tpu.memory_space<vmem>>, vector<16x648xbf16>
    %c0_61 = arith.constant 0 : index
    %c146_62 = arith.constant 146 : index
    %68 = vector.load %arg15[%c0_61, %c146_62] : memref<16x904xbf16, #tpu.memory_space<vmem>>, vector<16x648xbf16>
    %c0_63 = arith.constant 0 : index
    %c147_64 = arith.constant 147 : index
    %69 = vector.load %arg15[%c0_63, %c147_64] : memref<16x904xbf16, #tpu.memory_space<vmem>>, vector<16x648xbf16>
    %70 = tpu.concatenate %61, %62, %63, %64, %65, %66, %67, %68, %69 in 0 : vector<16x648xbf16>, vector<16x648xbf16>, vector<16x648xbf16>, vector<16x648xbf16>, vector<16x648xbf16>, vector<16x648xbf16>, vector<16x648xbf16>, vector<16x648xbf16>, vector<16x648xbf16> -> vector<144x648xbf16>
    %c0_65 = arith.constant 0 : index
    %c0_66 = arith.constant 0 : index
    %71 = vector.load %arg8[%c0_65, %c0_66] : memref<16x144xbf16, #tpu.memory_space<vmem>>, vector<16x144xbf16>
    %cst_67 = arith.constant dense<0.000000e+00> : vector<16x648xf32>
    %72 = tpu.matmul %71, %70, %cst_67 {dimension_numbers = #tpu.dot_dimension_numbers<[1], [0], [0], [1], [0, 0, 1, 1], [], []>} : vector<16x144xbf16>, vector<144x648xbf16>, vector<16x648xf32> -> vector<16x648xf32>
    %73 = arith.addf %72, %13 : vector<16x648xf32>
    %c0_68 = arith.constant 0 : index
    %c0_69 = arith.constant 0 : index
    %74 = vector.load %arg9[%c0_68, %c0_69] : memref<16x1xf32, #tpu.memory_space<vmem>>, vector<16x1xf32>
    %75 = vector.broadcast %74 : vector<16x1xf32> to vector<16x648xf32>
    %76 = arith.mulf %73, %75 : vector<16x648xf32>
    %c0_70 = arith.constant 0 : index
    %c0_71 = arith.constant 0 : index
    %77 = vector.load %arg10[%c0_70, %c0_71] : memref<16x1xf32, #tpu.memory_space<vmem>>, vector<16x1xf32>
    %78 = vector.broadcast %77 : vector<16x1xf32> to vector<16x648xf32>
    %79 = arith.addf %76, %78 : vector<16x648xf32>
    %80 = vector.broadcast %14 : vector<1x648xf32> to vector<16x648xf32>
    %81 = arith.mulf %79, %80 : vector<16x648xf32>
    %82 = arith.truncf %81 : vector<16x648xf32> to vector<16x648xbf16>
    %c0_72 = arith.constant 0 : index
    %c0_73 = arith.constant 0 : index
    %83 = vector.load %arg11[%c0_72, %c0_73] : memref<32x16xbf16, #tpu.memory_space<vmem>>, vector<32x16xbf16>
    %cst_74 = arith.constant dense<0.000000e+00> : vector<32x648xf32>
    %84 = tpu.matmul %83, %82, %cst_74 {dimension_numbers = #tpu.dot_dimension_numbers<[1], [0], [0], [1], [0, 0, 1, 1], [], []>} : vector<32x16xbf16>, vector<16x648xbf16>, vector<32x648xf32> -> vector<32x648xf32>
    %85 = vector.extract_strided_slice %84 {offsets = [16, 0], sizes = [16, 648], strides = [1, 1]} : vector<32x648xf32> to vector<16x648xf32>
    %c0_75 = arith.constant 0 : index
    %c128_76 = arith.constant 128 : index
    %86 = vector.load %arg17[%c0_75, %c128_76] : memref<16x904xf32, #tpu.memory_space<vmem>>, vector<16x648xf32>
    tpu.vector_store %arg17[%c0_75, %c128_76], %85 {strides = array<i32>} : memref<16x904xf32, #tpu.memory_space<vmem>>, vector<16x648xf32>,
    %c0_77 = arith.constant 0 : index
    %c0_78 = arith.constant 0 : index
    %87 = vector.load %arg12[%c0_77, %c0_78] : memref<8x16xbf16, #tpu.memory_space<vmem>>, vector<8x16xbf16>
    %88 = vector.extract_strided_slice %84 {offsets = [0, 0], sizes = [16, 648], strides = [1, 1]} : vector<32x648xf32> to vector<16x648xf32>
    %89 = arith.truncf %88 : vector<16x648xf32> to vector<16x648xbf16>
    %cst_79 = arith.constant dense<0.000000e+00> : vector<8x648xf32>
    %90 = tpu.matmul %87, %89, %cst_79 {dimension_numbers = #tpu.dot_dimension_numbers<[1], [0], [0], [1], [0, 0, 1, 1], [], []>} : vector<8x16xbf16>, vector<16x648xbf16>, vector<8x648xf32> -> vector<8x648xf32>
    %c0_80 = arith.constant 0 : index
    %c128_81 = arith.constant 128 : index
    %91 = vector.load %arg16[%c0_80, %c128_81] : memref<8x904xf32, #tpu.memory_space<vmem>>, vector<8x648xf32>
    tpu.vector_store %arg16[%c0_80, %c128_81], %90 {strides = array<i32>} : memref<8x904xf32, #tpu.memory_space<vmem>>, vector<8x648xf32>,
    %c0_82 = arith.constant 0 : index
    %c109_83 = arith.constant 109 : index
    %92 = vector.load %arg16[%c0_82, %c109_83] : memref<8x904xf32, #tpu.memory_space<vmem>>, vector<8x648xf32>
    %c0_84 = arith.constant 0 : index
    %c110_85 = arith.constant 110 : index
    %93 = vector.load %arg16[%c0_84, %c110_85] : memref<8x904xf32, #tpu.memory_space<vmem>>, vector<8x648xf32>
    %94 = arith.maximumf %92, %93 : vector<8x648xf32>
    %c0_86 = arith.constant 0 : index
    %c111_87 = arith.constant 111 : index
    %95 = vector.load %arg16[%c0_86, %c111_87] : memref<8x904xf32, #tpu.memory_space<vmem>>, vector<8x648xf32>
    %96 = arith.maximumf %94, %95 : vector<8x648xf32>
    %c0_88 = arith.constant 0 : index
    %c127_89 = arith.constant 127 : index
    %97 = vector.load %arg16[%c0_88, %c127_89] : memref<8x904xf32, #tpu.memory_space<vmem>>, vector<8x648xf32>
    %98 = arith.maximumf %96, %97 : vector<8x648xf32>
    %c0_90 = arith.constant 0 : index
    %c128_91 = arith.constant 128 : index
    %99 = vector.load %arg16[%c0_90, %c128_91] : memref<8x904xf32, #tpu.memory_space<vmem>>, vector<8x648xf32>
    %100 = arith.maximumf %98, %99 : vector<8x648xf32>
    %c0_92 = arith.constant 0 : index
    %c129_93 = arith.constant 129 : index
    %101 = vector.load %arg16[%c0_92, %c129_93] : memref<8x904xf32, #tpu.memory_space<vmem>>, vector<8x648xf32>
    %102 = arith.maximumf %100, %101 : vector<8x648xf32>
    %c0_94 = arith.constant 0 : index
    %c145_95 = arith.constant 145 : index
    %103 = vector.load %arg16[%c0_94, %c145_95] : memref<8x904xf32, #tpu.memory_space<vmem>>, vector<8x648xf32>
    %104 = arith.maximumf %102, %103 : vector<8x648xf32>
    %c0_96 = arith.constant 0 : index
    %c146_97 = arith.constant 146 : index
    %105 = vector.load %arg16[%c0_96, %c146_97] : memref<8x904xf32, #tpu.memory_space<vmem>>, vector<8x648xf32>
    %106 = arith.maximumf %104, %105 : vector<8x648xf32>
    %c0_98 = arith.constant 0 : index
    %c147_99 = arith.constant 147 : index
    %107 = vector.load %arg16[%c0_98, %c147_99] : memref<8x904xf32, #tpu.memory_space<vmem>>, vector<8x648xf32>
    %108 = arith.maximumf %106, %107 : vector<8x648xf32>
    %cst_100 = arith.constant 0.000000e+00 : f32
    %109 = vector.broadcast %cst_100 : f32 to vector<8x648xf32>
    %cst_101 = arith.constant 0.000000e+00 : f32
    %110 = vector.broadcast %cst_101 : f32 to vector<8x648xf32>
    %cst_102 = arith.constant 0.000000e+00 : f32
    %111 = vector.broadcast %cst_102 : f32 to vector<8x648xf32>
    %cst_103 = arith.constant 0.000000e+00 : f32
    %112 = vector.broadcast %cst_103 : f32 to vector<8x648xf32>
    %cst_104 = arith.constant 0.000000e+00 : f32
    %113 = vector.broadcast %cst_104 : f32 to vector<8x648xf32>
    %cst_105 = arith.constant 0.000000e+00 : f32
    %114 = vector.broadcast %cst_105 : f32 to vector<8x648xf32>
    %cst_106 = arith.constant 0.000000e+00 : f32
    %115 = vector.broadcast %cst_106 : f32 to vector<8x648xf32>
    %cst_107 = arith.constant 0.000000e+00 : f32
    %116 = vector.broadcast %cst_107 : f32 to vector<8x648xf32>
    %cst_108 = arith.constant 0.000000e+00 : f32
    %117 = vector.broadcast %cst_108 : f32 to vector<8x648xf32>
    %c0_109 = arith.constant 0 : index
    %c109_110 = arith.constant 109 : index
    %118 = vector.load %arg16[%c0_109, %c109_110] : memref<8x904xf32, #tpu.memory_space<vmem>>, vector<8x648xf32>
    %119 = arith.subf %118, %108 : vector<8x648xf32>
    %120 = math.exp %119 : vector<8x648xf32>
    %121 = arith.addf %109, %120 : vector<8x648xf32>
    %c0_111 = arith.constant 0 : index
    %c109_112 = arith.constant 109 : index
    %122 = vector.load %arg17[%c0_111, %c109_112] : memref<16x904xf32, #tpu.memory_space<vmem>>, vector<16x648xf32>
    %123 = vector.extract_strided_slice %122 {offsets = [0, 0], sizes = [8, 648], strides = [1, 1]} : vector<16x648xf32> to vector<8x648xf32>
    %124 = vector.extract_strided_slice %120 {offsets = [0, 0], sizes = [1, 648], strides = [1, 1]} : vector<8x648xf32> to vector<1x648xf32>
    %125 = vector.broadcast %124 : vector<1x648xf32> to vector<8x648xf32>
    %126 = arith.mulf %125, %123 : vector<8x648xf32>
    %127 = arith.addf %110, %126 : vector<8x648xf32>
    %128 = vector.extract_strided_slice %120 {offsets = [1, 0], sizes = [1, 648], strides = [1, 1]} : vector<8x648xf32> to vector<1x648xf32>
    %129 = vector.broadcast %128 : vector<1x648xf32> to vector<8x648xf32>
    %130 = arith.mulf %129, %123 : vector<8x648xf32>
    %131 = arith.addf %111, %130 : vector<8x648xf32>
    %132 = vector.extract_strided_slice %120 {offsets = [2, 0], sizes = [1, 648], strides = [1, 1]} : vector<8x648xf32> to vector<1x648xf32>
    %133 = vector.broadcast %132 : vector<1x648xf32> to vector<8x648xf32>
    %134 = arith.mulf %133, %123 : vector<8x648xf32>
    %135 = arith.addf %112, %134 : vector<8x648xf32>
    %136 = vector.extract_strided_slice %120 {offsets = [3, 0], sizes = [1, 648], strides = [1, 1]} : vector<8x648xf32> to vector<1x648xf32>
    %137 = vector.broadcast %136 : vector<1x648xf32> to vector<8x648xf32>
    %138 = arith.mulf %137, %123 : vector<8x648xf32>
    %139 = arith.addf %113, %138 : vector<8x648xf32>
    %140 = vector.extract_strided_slice %122 {offsets = [8, 0], sizes = [8, 648], strides = [1, 1]} : vector<16x648xf32> to vector<8x648xf32>
    %141 = vector.extract_strided_slice %120 {offsets = [4, 0], sizes = [1, 648], strides = [1, 1]} : vector<8x648xf32> to vector<1x648xf32>
    %142 = vector.broadcast %141 : vector<1x648xf32> to vector<8x648xf32>
    %143 = arith.mulf %142, %140 : vector<8x648xf32>
    %144 = arith.addf %114, %143 : vector<8x648xf32>
    %145 = vector.extract_strided_slice %120 {offsets = [5, 0], sizes = [1, 648], strides = [1, 1]} : vector<8x648xf32> to vector<1x648xf32>
    %146 = vector.broadcast %145 : vector<1x648xf32> to vector<8x648xf32>
    %147 = arith.mulf %146, %140 : vector<8x648xf32>
    %148 = arith.addf %115, %147 : vector<8x648xf32>
    %149 = vector.extract_strided_slice %120 {offsets = [6, 0], sizes = [1, 648], strides = [1, 1]} : vector<8x648xf32> to vector<1x648xf32>
    %150 = vector.broadcast %149 : vector<1x648xf32> to vector<8x648xf32>
    %151 = arith.mulf %150, %140 : vector<8x648xf32>
    %152 = arith.addf %116, %151 : vector<8x648xf32>
    %153 = vector.extract_strided_slice %120 {offsets = [7, 0], sizes = [1, 648], strides = [1, 1]} : vector<8x648xf32> to vector<1x648xf32>
    %154 = vector.broadcast %153 : vector<1x648xf32> to vector<8x648xf32>
    %155 = arith.mulf %154, %140 : vector<8x648xf32>
    %156 = arith.addf %117, %155 : vector<8x648xf32>
    %c0_113 = arith.constant 0 : index
    %c110_114 = arith.constant 110 : index
    %157 = vector.load %arg16[%c0_113, %c110_114] : memref<8x904xf32, #tpu.memory_space<vmem>>, vector<8x648xf32>
    %158 = arith.subf %157, %108 : vector<8x648xf32>
    %159 = math.exp %158 : vector<8x648xf32>
    %160 = arith.addf %121, %159 : vector<8x648xf32>
    %c0_115 = arith.constant 0 : index
    %c110_116 = arith.constant 110 : index
    %161 = vector.load %arg17[%c0_115, %c110_116] : memref<16x904xf32, #tpu.memory_space<vmem>>, vector<16x648xf32>
    %162 = vector.extract_strided_slice %161 {offsets = [0, 0], sizes = [8, 648], strides = [1, 1]} : vector<16x648xf32> to vector<8x648xf32>
    %163 = vector.extract_strided_slice %159 {offsets = [0, 0], sizes = [1, 648], strides = [1, 1]} : vector<8x648xf32> to vector<1x648xf32>
    %164 = vector.broadcast %163 : vector<1x648xf32> to vector<8x648xf32>
    %165 = arith.mulf %164, %162 : vector<8x648xf32>
    %166 = arith.addf %127, %165 : vector<8x648xf32>
    %167 = vector.extract_strided_slice %159 {offsets = [1, 0], sizes = [1, 648], strides = [1, 1]} : vector<8x648xf32> to vector<1x648xf32>
    %168 = vector.broadcast %167 : vector<1x648xf32> to vector<8x648xf32>
    %169 = arith.mulf %168, %162 : vector<8x648xf32>
    %170 = arith.addf %131, %169 : vector<8x648xf32>
    %171 = vector.extract_strided_slice %159 {offsets = [2, 0], sizes = [1, 648], strides = [1, 1]} : vector<8x648xf32> to vector<1x648xf32>
    %172 = vector.broadcast %171 : vector<1x648xf32> to vector<8x648xf32>
    %173 = arith.mulf %172, %162 : vector<8x648xf32>
    %174 = arith.addf %135, %173 : vector<8x648xf32>
    %175 = vector.extract_strided_slice %159 {offsets = [3, 0], sizes = [1, 648], strides = [1, 1]} : vector<8x648xf32> to vector<1x648xf32>
    %176 = vector.broadcast %175 : vector<1x648xf32> to vector<8x648xf32>
    %177 = arith.mulf %176, %162 : vector<8x648xf32>
    %178 = arith.addf %139, %177 : vector<8x648xf32>
    %179 = vector.extract_strided_slice %161 {offsets = [8, 0], sizes = [8, 648], strides = [1, 1]} : vector<16x648xf32> to vector<8x648xf32>
    %180 = vector.extract_strided_slice %159 {offsets = [4, 0], sizes = [1, 648], strides = [1, 1]} : vector<8x648xf32> to vector<1x648xf32>
    %181 = vector.broadcast %180 : vector<1x648xf32> to vector<8x648xf32>
    %182 = arith.mulf %181, %179 : vector<8x648xf32>
    %183 = arith.addf %144, %182 : vector<8x648xf32>
    %184 = vector.extract_strided_slice %159 {offsets = [5, 0], sizes = [1, 648], strides = [1, 1]} : vector<8x648xf32> to vector<1x648xf32>
    %185 = vector.broadcast %184 : vector<1x648xf32> to vector<8x648xf32>
    %186 = arith.mulf %185, %179 : vector<8x648xf32>
    %187 = arith.addf %148, %186 : vector<8x648xf32>
    %188 = vector.extract_strided_slice %159 {offsets = [6, 0], sizes = [1, 648], strides = [1, 1]} : vector<8x648xf32> to vector<1x648xf32>
    %189 = vector.broadcast %188 : vector<1x648xf32> to vector<8x648xf32>
    %190 = arith.mulf %189, %179 : vector<8x648xf32>
    %191 = arith.addf %152, %190 : vector<8x648xf32>
    %192 = vector.extract_strided_slice %159 {offsets = [7, 0], sizes = [1, 648], strides = [1, 1]} : vector<8x648xf32> to vector<1x648xf32>
    %193 = vector.broadcast %192 : vector<1x648xf32> to vector<8x648xf32>
    %194 = arith.mulf %193, %179 : vector<8x648xf32>
    %195 = arith.addf %156, %194 : vector<8x648xf32>
    %c0_117 = arith.constant 0 : index
    %c111_118 = arith.constant 111 : index
    %196 = vector.load %arg16[%c0_117, %c111_118] : memref<8x904xf32, #tpu.memory_space<vmem>>, vector<8x648xf32>
    %197 = arith.subf %196, %108 : vector<8x648xf32>
    %198 = math.exp %197 : vector<8x648xf32>
    %199 = arith.addf %160, %198 : vector<8x648xf32>
    %c0_119 = arith.constant 0 : index
    %c111_120 = arith.constant 111 : index
    %200 = vector.load %arg17[%c0_119, %c111_120] : memref<16x904xf32, #tpu.memory_space<vmem>>, vector<16x648xf32>
    %201 = vector.extract_strided_slice %200 {offsets = [0, 0], sizes = [8, 648], strides = [1, 1]} : vector<16x648xf32> to vector<8x648xf32>
    %202 = vector.extract_strided_slice %198 {offsets = [0, 0], sizes = [1, 648], strides = [1, 1]} : vector<8x648xf32> to vector<1x648xf32>
    %203 = vector.broadcast %202 : vector<1x648xf32> to vector<8x648xf32>
    %204 = arith.mulf %203, %201 : vector<8x648xf32>
    %205 = arith.addf %166, %204 : vector<8x648xf32>
    %206 = vector.extract_strided_slice %198 {offsets = [1, 0], sizes = [1, 648], strides = [1, 1]} : vector<8x648xf32> to vector<1x648xf32>
    %207 = vector.broadcast %206 : vector<1x648xf32> to vector<8x648xf32>
    %208 = arith.mulf %207, %201 : vector<8x648xf32>
    %209 = arith.addf %170, %208 : vector<8x648xf32>
    %210 = vector.extract_strided_slice %198 {offsets = [2, 0], sizes = [1, 648], strides = [1, 1]} : vector<8x648xf32> to vector<1x648xf32>
    %211 = vector.broadcast %210 : vector<1x648xf32> to vector<8x648xf32>
    %212 = arith.mulf %211, %201 : vector<8x648xf32>
    %213 = arith.addf %174, %212 : vector<8x648xf32>
    %214 = vector.extract_strided_slice %198 {offsets = [3, 0], sizes = [1, 648], strides = [1, 1]} : vector<8x648xf32> to vector<1x648xf32>
    %215 = vector.broadcast %214 : vector<1x648xf32> to vector<8x648xf32>
    %216 = arith.mulf %215, %201 : vector<8x648xf32>
    %217 = arith.addf %178, %216 : vector<8x648xf32>
    %218 = vector.extract_strided_slice %200 {offsets = [8, 0], sizes = [8, 648], strides = [1, 1]} : vector<16x648xf32> to vector<8x648xf32>
    %219 = vector.extract_strided_slice %198 {offsets = [4, 0], sizes = [1, 648], strides = [1, 1]} : vector<8x648xf32> to vector<1x648xf32>
    %220 = vector.broadcast %219 : vector<1x648xf32> to vector<8x648xf32>
    %221 = arith.mulf %220, %218 : vector<8x648xf32>
    %222 = arith.addf %183, %221 : vector<8x648xf32>
    %223 = vector.extract_strided_slice %198 {offsets = [5, 0], sizes = [1, 648], strides = [1, 1]} : vector<8x648xf32> to vector<1x648xf32>
    %224 = vector.broadcast %223 : vector<1x648xf32> to vector<8x648xf32>
    %225 = arith.mulf %224, %218 : vector<8x648xf32>
    %226 = arith.addf %187, %225 : vector<8x648xf32>
    %227 = vector.extract_strided_slice %198 {offsets = [6, 0], sizes = [1, 648], strides = [1, 1]} : vector<8x648xf32> to vector<1x648xf32>
    %228 = vector.broadcast %227 : vector<1x648xf32> to vector<8x648xf32>
    %229 = arith.mulf %228, %218 : vector<8x648xf32>
    %230 = arith.addf %191, %229 : vector<8x648xf32>
    %231 = vector.extract_strided_slice %198 {offsets = [7, 0], sizes = [1, 648], strides = [1, 1]} : vector<8x648xf32> to vector<1x648xf32>
    %232 = vector.broadcast %231 : vector<1x648xf32> to vector<8x648xf32>
    %233 = arith.mulf %232, %218 : vector<8x648xf32>
    %234 = arith.addf %195, %233 : vector<8x648xf32>
    %c0_121 = arith.constant 0 : index
    %c127_122 = arith.constant 127 : index
    %235 = vector.load %arg16[%c0_121, %c127_122] : memref<8x904xf32, #tpu.memory_space<vmem>>, vector<8x648xf32>
    %236 = arith.subf %235, %108 : vector<8x648xf32>
    %237 = math.exp %236 : vector<8x648xf32>
    %238 = arith.addf %199, %237 : vector<8x648xf32>
    %c0_123 = arith.constant 0 : index
    %c127_124 = arith.constant 127 : index
    %239 = vector.load %arg17[%c0_123, %c127_124] : memref<16x904xf32, #tpu.memory_space<vmem>>, vector<16x648xf32>
    %240 = vector.extract_strided_slice %239 {offsets = [0, 0], sizes = [8, 648], strides = [1, 1]} : vector<16x648xf32> to vector<8x648xf32>
    %241 = vector.extract_strided_slice %237 {offsets = [0, 0], sizes = [1, 648], strides = [1, 1]} : vector<8x648xf32> to vector<1x648xf32>
    %242 = vector.broadcast %241 : vector<1x648xf32> to vector<8x648xf32>
    %243 = arith.mulf %242, %240 : vector<8x648xf32>
    %244 = arith.addf %205, %243 : vector<8x648xf32>
    %245 = vector.extract_strided_slice %237 {offsets = [1, 0], sizes = [1, 648], strides = [1, 1]} : vector<8x648xf32> to vector<1x648xf32>
    %246 = vector.broadcast %245 : vector<1x648xf32> to vector<8x648xf32>
    %247 = arith.mulf %246, %240 : vector<8x648xf32>
    %248 = arith.addf %209, %247 : vector<8x648xf32>
    %249 = vector.extract_strided_slice %237 {offsets = [2, 0], sizes = [1, 648], strides = [1, 1]} : vector<8x648xf32> to vector<1x648xf32>
    %250 = vector.broadcast %249 : vector<1x648xf32> to vector<8x648xf32>
    %251 = arith.mulf %250, %240 : vector<8x648xf32>
    %252 = arith.addf %213, %251 : vector<8x648xf32>
    %253 = vector.extract_strided_slice %237 {offsets = [3, 0], sizes = [1, 648], strides = [1, 1]} : vector<8x648xf32> to vector<1x648xf32>
    %254 = vector.broadcast %253 : vector<1x648xf32> to vector<8x648xf32>
    %255 = arith.mulf %254, %240 : vector<8x648xf32>
    %256 = arith.addf %217, %255 : vector<8x648xf32>
    %257 = vector.extract_strided_slice %239 {offsets = [8, 0], sizes = [8, 648], strides = [1, 1]} : vector<16x648xf32> to vector<8x648xf32>
    %258 = vector.extract_strided_slice %237 {offsets = [4, 0], sizes = [1, 648], strides = [1, 1]} : vector<8x648xf32> to vector<1x648xf32>
    %259 = vector.broadcast %258 : vector<1x648xf32> to vector<8x648xf32>
    %260 = arith.mulf %259, %257 : vector<8x648xf32>
    %261 = arith.addf %222, %260 : vector<8x648xf32>
    %262 = vector.extract_strided_slice %237 {offsets = [5, 0], sizes = [1, 648], strides = [1, 1]} : vector<8x648xf32> to vector<1x648xf32>
    %263 = vector.broadcast %262 : vector<1x648xf32> to vector<8x648xf32>
    %264 = arith.mulf %263, %257 : vector<8x648xf32>
    %265 = arith.addf %226, %264 : vector<8x648xf32>
    %266 = vector.extract_strided_slice %237 {offsets = [6, 0], sizes = [1, 648], strides = [1, 1]} : vector<8x648xf32> to vector<1x648xf32>
    %267 = vector.broadcast %266 : vector<1x648xf32> to vector<8x648xf32>
    %268 = arith.mulf %267, %257 : vector<8x648xf32>
    %269 = arith.addf %230, %268 : vector<8x648xf32>
    %270 = vector.extract_strided_slice %237 {offsets = [7, 0], sizes = [1, 648], strides = [1, 1]} : vector<8x648xf32> to vector<1x648xf32>
    %271 = vector.broadcast %270 : vector<1x648xf32> to vector<8x648xf32>
    %272 = arith.mulf %271, %257 : vector<8x648xf32>
    %273 = arith.addf %234, %272 : vector<8x648xf32>
    %c0_125 = arith.constant 0 : index
    %c128_126 = arith.constant 128 : index
    %274 = vector.load %arg16[%c0_125, %c128_126] : memref<8x904xf32, #tpu.memory_space<vmem>>, vector<8x648xf32>
    %275 = arith.subf %274, %108 : vector<8x648xf32>
    %276 = math.exp %275 : vector<8x648xf32>
    %277 = arith.addf %238, %276 : vector<8x648xf32>
    %c0_127 = arith.constant 0 : index
    %c128_128 = arith.constant 128 : index
    %278 = vector.load %arg17[%c0_127, %c128_128] : memref<16x904xf32, #tpu.memory_space<vmem>>, vector<16x648xf32>
    %279 = vector.extract_strided_slice %278 {offsets = [0, 0], sizes = [8, 648], strides = [1, 1]} : vector<16x648xf32> to vector<8x648xf32>
    %280 = vector.extract_strided_slice %276 {offsets = [0, 0], sizes = [1, 648], strides = [1, 1]} : vector<8x648xf32> to vector<1x648xf32>
    %281 = vector.broadcast %280 : vector<1x648xf32> to vector<8x648xf32>
    %282 = arith.mulf %281, %279 : vector<8x648xf32>
    %283 = arith.addf %244, %282 : vector<8x648xf32>
    %284 = vector.extract_strided_slice %276 {offsets = [1, 0], sizes = [1, 648], strides = [1, 1]} : vector<8x648xf32> to vector<1x648xf32>
    %285 = vector.broadcast %284 : vector<1x648xf32> to vector<8x648xf32>
    %286 = arith.mulf %285, %279 : vector<8x648xf32>
    %287 = arith.addf %248, %286 : vector<8x648xf32>
    %288 = vector.extract_strided_slice %276 {offsets = [2, 0], sizes = [1, 648], strides = [1, 1]} : vector<8x648xf32> to vector<1x648xf32>
    %289 = vector.broadcast %288 : vector<1x648xf32> to vector<8x648xf32>
    %290 = arith.mulf %289, %279 : vector<8x648xf32>
    %291 = arith.addf %252, %290 : vector<8x648xf32>
    %292 = vector.extract_strided_slice %276 {offsets = [3, 0], sizes = [1, 648], strides = [1, 1]} : vector<8x648xf32> to vector<1x648xf32>
    %293 = vector.broadcast %292 : vector<1x648xf32> to vector<8x648xf32>
    %294 = arith.mulf %293, %279 : vector<8x648xf32>
    %295 = arith.addf %256, %294 : vector<8x648xf32>
    %296 = vector.extract_strided_slice %278 {offsets = [8, 0], sizes = [8, 648], strides = [1, 1]} : vector<16x648xf32> to vector<8x648xf32>
    %297 = vector.extract_strided_slice %276 {offsets = [4, 0], sizes = [1, 648], strides = [1, 1]} : vector<8x648xf32> to vector<1x648xf32>
    %298 = vector.broadcast %297 : vector<1x648xf32> to vector<8x648xf32>
    %299 = arith.mulf %298, %296 : vector<8x648xf32>
    %300 = arith.addf %261, %299 : vector<8x648xf32>
    %301 = vector.extract_strided_slice %276 {offsets = [5, 0], sizes = [1, 648], strides = [1, 1]} : vector<8x648xf32> to vector<1x648xf32>
    %302 = vector.broadcast %301 : vector<1x648xf32> to vector<8x648xf32>
    %303 = arith.mulf %302, %296 : vector<8x648xf32>
    %304 = arith.addf %265, %303 : vector<8x648xf32>
    %305 = vector.extract_strided_slice %276 {offsets = [6, 0], sizes = [1, 648], strides = [1, 1]} : vector<8x648xf32> to vector<1x648xf32>
    %306 = vector.broadcast %305 : vector<1x648xf32> to vector<8x648xf32>
    %307 = arith.mulf %306, %296 : vector<8x648xf32>
    %308 = arith.addf %269, %307 : vector<8x648xf32>
    %309 = vector.extract_strided_slice %276 {offsets = [7, 0], sizes = [1, 648], strides = [1, 1]} : vector<8x648xf32> to vector<1x648xf32>
    %310 = vector.broadcast %309 : vector<1x648xf32> to vector<8x648xf32>
    %311 = arith.mulf %310, %296 : vector<8x648xf32>
    %312 = arith.addf %273, %311 : vector<8x648xf32>
    %c0_129 = arith.constant 0 : index
    %c129_130 = arith.constant 129 : index
    %313 = vector.load %arg16[%c0_129, %c129_130] : memref<8x904xf32, #tpu.memory_space<vmem>>, vector<8x648xf32>
    %314 = arith.subf %313, %108 : vector<8x648xf32>
    %315 = math.exp %314 : vector<8x648xf32>
    %316 = arith.addf %277, %315 : vector<8x648xf32>
    %c0_131 = arith.constant 0 : index
    %c129_132 = arith.constant 129 : index
    %317 = vector.load %arg17[%c0_131, %c129_132] : memref<16x904xf32, #tpu.memory_space<vmem>>, vector<16x648xf32>
    %318 = vector.extract_strided_slice %317 {offsets = [0, 0], sizes = [8, 648], strides = [1, 1]} : vector<16x648xf32> to vector<8x648xf32>
    %319 = vector.extract_strided_slice %315 {offsets = [0, 0], sizes = [1, 648], strides = [1, 1]} : vector<8x648xf32> to vector<1x648xf32>
    %320 = vector.broadcast %319 : vector<1x648xf32> to vector<8x648xf32>
    %321 = arith.mulf %320, %318 : vector<8x648xf32>
    %322 = arith.addf %283, %321 : vector<8x648xf32>
    %323 = vector.extract_strided_slice %315 {offsets = [1, 0], sizes = [1, 648], strides = [1, 1]} : vector<8x648xf32> to vector<1x648xf32>
    %324 = vector.broadcast %323 : vector<1x648xf32> to vector<8x648xf32>
    %325 = arith.mulf %324, %318 : vector<8x648xf32>
    %326 = arith.addf %287, %325 : vector<8x648xf32>
    %327 = vector.extract_strided_slice %315 {offsets = [2, 0], sizes = [1, 648], strides = [1, 1]} : vector<8x648xf32> to vector<1x648xf32>
    %328 = vector.broadcast %327 : vector<1x648xf32> to vector<8x648xf32>
    %329 = arith.mulf %328, %318 : vector<8x648xf32>
    %330 = arith.addf %291, %329 : vector<8x648xf32>
    %331 = vector.extract_strided_slice %315 {offsets = [3, 0], sizes = [1, 648], strides = [1, 1]} : vector<8x648xf32> to vector<1x648xf32>
    %332 = vector.broadcast %331 : vector<1x648xf32> to vector<8x648xf32>
    %333 = arith.mulf %332, %318 : vector<8x648xf32>
    %334 = arith.addf %295, %333 : vector<8x648xf32>
    %335 = vector.extract_strided_slice %317 {offsets = [8, 0], sizes = [8, 648], strides = [1, 1]} : vector<16x648xf32> to vector<8x648xf32>
    %336 = vector.extract_strided_slice %315 {offsets = [4, 0], sizes = [1, 648], strides = [1, 1]} : vector<8x648xf32> to vector<1x648xf32>
    %337 = vector.broadcast %336 : vector<1x648xf32> to vector<8x648xf32>
    %338 = arith.mulf %337, %335 : vector<8x648xf32>
    %339 = arith.addf %300, %338 : vector<8x648xf32>
    %340 = vector.extract_strided_slice %315 {offsets = [5, 0], sizes = [1, 648], strides = [1, 1]} : vector<8x648xf32> to vector<1x648xf32>
    %341 = vector.broadcast %340 : vector<1x648xf32> to vector<8x648xf32>
    %342 = arith.mulf %341, %335 : vector<8x648xf32>
    %343 = arith.addf %304, %342 : vector<8x648xf32>
    %344 = vector.extract_strided_slice %315 {offsets = [6, 0], sizes = [1, 648], strides = [1, 1]} : vector<8x648xf32> to vector<1x648xf32>
    %345 = vector.broadcast %344 : vector<1x648xf32> to vector<8x648xf32>
    %346 = arith.mulf %345, %335 : vector<8x648xf32>
    %347 = arith.addf %308, %346 : vector<8x648xf32>
    %348 = vector.extract_strided_slice %315 {offsets = [7, 0], sizes = [1, 648], strides = [1, 1]} : vector<8x648xf32> to vector<1x648xf32>
    %349 = vector.broadcast %348 : vector<1x648xf32> to vector<8x648xf32>
    %350 = arith.mulf %349, %335 : vector<8x648xf32>
    %351 = arith.addf %312, %350 : vector<8x648xf32>
    %c0_133 = arith.constant 0 : index
    %c145_134 = arith.constant 145 : index
    %352 = vector.load %arg16[%c0_133, %c145_134] : memref<8x904xf32, #tpu.memory_space<vmem>>, vector<8x648xf32>
    %353 = arith.subf %352, %108 : vector<8x648xf32>
    %354 = math.exp %353 : vector<8x648xf32>
    %355 = arith.addf %316, %354 : vector<8x648xf32>
    %c0_135 = arith.constant 0 : index
    %c145_136 = arith.constant 145 : index
    %356 = vector.load %arg17[%c0_135, %c145_136] : memref<16x904xf32, #tpu.memory_space<vmem>>, vector<16x648xf32>
    %357 = vector.extract_strided_slice %356 {offsets = [0, 0], sizes = [8, 648], strides = [1, 1]} : vector<16x648xf32> to vector<8x648xf32>
    %358 = vector.extract_strided_slice %354 {offsets = [0, 0], sizes = [1, 648], strides = [1, 1]} : vector<8x648xf32> to vector<1x648xf32>
    %359 = vector.broadcast %358 : vector<1x648xf32> to vector<8x648xf32>
    %360 = arith.mulf %359, %357 : vector<8x648xf32>
    %361 = arith.addf %322, %360 : vector<8x648xf32>
    %362 = vector.extract_strided_slice %354 {offsets = [1, 0], sizes = [1, 648], strides = [1, 1]} : vector<8x648xf32> to vector<1x648xf32>
    %363 = vector.broadcast %362 : vector<1x648xf32> to vector<8x648xf32>
    %364 = arith.mulf %363, %357 : vector<8x648xf32>
    %365 = arith.addf %326, %364 : vector<8x648xf32>
    %366 = vector.extract_strided_slice %354 {offsets = [2, 0], sizes = [1, 648], strides = [1, 1]} : vector<8x648xf32> to vector<1x648xf32>
    %367 = vector.broadcast %366 : vector<1x648xf32> to vector<8x648xf32>
    %368 = arith.mulf %367, %357 : vector<8x648xf32>
    %369 = arith.addf %330, %368 : vector<8x648xf32>
    %370 = vector.extract_strided_slice %354 {offsets = [3, 0], sizes = [1, 648], strides = [1, 1]} : vector<8x648xf32> to vector<1x648xf32>
    %371 = vector.broadcast %370 : vector<1x648xf32> to vector<8x648xf32>
    %372 = arith.mulf %371, %357 : vector<8x648xf32>
    %373 = arith.addf %334, %372 : vector<8x648xf32>
    %374 = vector.extract_strided_slice %356 {offsets = [8, 0], sizes = [8, 648], strides = [1, 1]} : vector<16x648xf32> to vector<8x648xf32>
    %375 = vector.extract_strided_slice %354 {offsets = [4, 0], sizes = [1, 648], strides = [1, 1]} : vector<8x648xf32> to vector<1x648xf32>
    %376 = vector.broadcast %375 : vector<1x648xf32> to vector<8x648xf32>
    %377 = arith.mulf %376, %374 : vector<8x648xf32>
    %378 = arith.addf %339, %377 : vector<8x648xf32>
    %379 = vector.extract_strided_slice %354 {offsets = [5, 0], sizes = [1, 648], strides = [1, 1]} : vector<8x648xf32> to vector<1x648xf32>
    %380 = vector.broadcast %379 : vector<1x648xf32> to vector<8x648xf32>
    %381 = arith.mulf %380, %374 : vector<8x648xf32>
    %382 = arith.addf %343, %381 : vector<8x648xf32>
    %383 = vector.extract_strided_slice %354 {offsets = [6, 0], sizes = [1, 648], strides = [1, 1]} : vector<8x648xf32> to vector<1x648xf32>
    %384 = vector.broadcast %383 : vector<1x648xf32> to vector<8x648xf32>
    %385 = arith.mulf %384, %374 : vector<8x648xf32>
    %386 = arith.addf %347, %385 : vector<8x648xf32>
    %387 = vector.extract_strided_slice %354 {offsets = [7, 0], sizes = [1, 648], strides = [1, 1]} : vector<8x648xf32> to vector<1x648xf32>
    %388 = vector.broadcast %387 : vector<1x648xf32> to vector<8x648xf32>
    %389 = arith.mulf %388, %374 : vector<8x648xf32>
    %390 = arith.addf %351, %389 : vector<8x648xf32>
    %c0_137 = arith.constant 0 : index
    %c146_138 = arith.constant 146 : index
    %391 = vector.load %arg16[%c0_137, %c146_138] : memref<8x904xf32, #tpu.memory_space<vmem>>, vector<8x648xf32>
    %392 = arith.subf %391, %108 : vector<8x648xf32>
    %393 = math.exp %392 : vector<8x648xf32>
    %394 = arith.addf %355, %393 : vector<8x648xf32>
    %c0_139 = arith.constant 0 : index
    %c146_140 = arith.constant 146 : index
    %395 = vector.load %arg17[%c0_139, %c146_140] : memref<16x904xf32, #tpu.memory_space<vmem>>, vector<16x648xf32>
    %396 = vector.extract_strided_slice %395 {offsets = [0, 0], sizes = [8, 648], strides = [1, 1]} : vector<16x648xf32> to vector<8x648xf32>
    %397 = vector.extract_strided_slice %393 {offsets = [0, 0], sizes = [1, 648], strides = [1, 1]} : vector<8x648xf32> to vector<1x648xf32>
    %398 = vector.broadcast %397 : vector<1x648xf32> to vector<8x648xf32>
    %399 = arith.mulf %398, %396 : vector<8x648xf32>
    %400 = arith.addf %361, %399 : vector<8x648xf32>
    %401 = vector.extract_strided_slice %393 {offsets = [1, 0], sizes = [1, 648], strides = [1, 1]} : vector<8x648xf32> to vector<1x648xf32>
    %402 = vector.broadcast %401 : vector<1x648xf32> to vector<8x648xf32>
    %403 = arith.mulf %402, %396 : vector<8x648xf32>
    %404 = arith.addf %365, %403 : vector<8x648xf32>
    %405 = vector.extract_strided_slice %393 {offsets = [2, 0], sizes = [1, 648], strides = [1, 1]} : vector<8x648xf32> to vector<1x648xf32>
    %406 = vector.broadcast %405 : vector<1x648xf32> to vector<8x648xf32>
    %407 = arith.mulf %406, %396 : vector<8x648xf32>
    %408 = arith.addf %369, %407 : vector<8x648xf32>
    %409 = vector.extract_strided_slice %393 {offsets = [3, 0], sizes = [1, 648], strides = [1, 1]} : vector<8x648xf32> to vector<1x648xf32>
    %410 = vector.broadcast %409 : vector<1x648xf32> to vector<8x648xf32>
    %411 = arith.mulf %410, %396 : vector<8x648xf32>
    %412 = arith.addf %373, %411 : vector<8x648xf32>
    %413 = vector.extract_strided_slice %395 {offsets = [8, 0], sizes = [8, 648], strides = [1, 1]} : vector<16x648xf32> to vector<8x648xf32>
    %414 = vector.extract_strided_slice %393 {offsets = [4, 0], sizes = [1, 648], strides = [1, 1]} : vector<8x648xf32> to vector<1x648xf32>
    %415 = vector.broadcast %414 : vector<1x648xf32> to vector<8x648xf32>
    %416 = arith.mulf %415, %413 : vector<8x648xf32>
    %417 = arith.addf %378, %416 : vector<8x648xf32>
    %418 = vector.extract_strided_slice %393 {offsets = [5, 0], sizes = [1, 648], strides = [1, 1]} : vector<8x648xf32> to vector<1x648xf32>
    %419 = vector.broadcast %418 : vector<1x648xf32> to vector<8x648xf32>
    %420 = arith.mulf %419, %413 : vector<8x648xf32>
    %421 = arith.addf %382, %420 : vector<8x648xf32>
    %422 = vector.extract_strided_slice %393 {offsets = [6, 0], sizes = [1, 648], strides = [1, 1]} : vector<8x648xf32> to vector<1x648xf32>
    %423 = vector.broadcast %422 : vector<1x648xf32> to vector<8x648xf32>
    %424 = arith.mulf %423, %413 : vector<8x648xf32>
    %425 = arith.addf %386, %424 : vector<8x648xf32>
    %426 = vector.extract_strided_slice %393 {offsets = [7, 0], sizes = [1, 648], strides = [1, 1]} : vector<8x648xf32> to vector<1x648xf32>
    %427 = vector.broadcast %426 : vector<1x648xf32> to vector<8x648xf32>
    %428 = arith.mulf %427, %413 : vector<8x648xf32>
    %429 = arith.addf %390, %428 : vector<8x648xf32>
    %c0_141 = arith.constant 0 : index
    %c147_142 = arith.constant 147 : index
    %430 = vector.load %arg16[%c0_141, %c147_142] : memref<8x904xf32, #tpu.memory_space<vmem>>, vector<8x648xf32>
    %431 = arith.subf %430, %108 : vector<8x648xf32>
    %432 = math.exp %431 : vector<8x648xf32>
    %433 = arith.addf %394, %432 : vector<8x648xf32>
    %c0_143 = arith.constant 0 : index
    %c147_144 = arith.constant 147 : index
    %434 = vector.load %arg17[%c0_143, %c147_144] : memref<16x904xf32, #tpu.memory_space<vmem>>, vector<16x648xf32>
    %435 = vector.extract_strided_slice %434 {offsets = [0, 0], sizes = [8, 648], strides = [1, 1]} : vector<16x648xf32> to vector<8x648xf32>
    %436 = vector.extract_strided_slice %432 {offsets = [0, 0], sizes = [1, 648], strides = [1, 1]} : vector<8x648xf32> to vector<1x648xf32>
    %437 = vector.broadcast %436 : vector<1x648xf32> to vector<8x648xf32>
    %438 = arith.mulf %437, %435 : vector<8x648xf32>
    %439 = arith.addf %400, %438 : vector<8x648xf32>
    %440 = vector.extract_strided_slice %432 {offsets = [1, 0], sizes = [1, 648], strides = [1, 1]} : vector<8x648xf32> to vector<1x648xf32>
    %441 = vector.broadcast %440 : vector<1x648xf32> to vector<8x648xf32>
    %442 = arith.mulf %441, %435 : vector<8x648xf32>
    %443 = arith.addf %404, %442 : vector<8x648xf32>
    %444 = vector.extract_strided_slice %432 {offsets = [2, 0], sizes = [1, 648], strides = [1, 1]} : vector<8x648xf32> to vector<1x648xf32>
    %445 = vector.broadcast %444 : vector<1x648xf32> to vector<8x648xf32>
    %446 = arith.mulf %445, %435 : vector<8x648xf32>
    %447 = arith.addf %408, %446 : vector<8x648xf32>
    %448 = vector.extract_strided_slice %432 {offsets = [3, 0], sizes = [1, 648], strides = [1, 1]} : vector<8x648xf32> to vector<1x648xf32>
    %449 = vector.broadcast %448 : vector<1x648xf32> to vector<8x648xf32>
    %450 = arith.mulf %449, %435 : vector<8x648xf32>
    %451 = arith.addf %412, %450 : vector<8x648xf32>
    %452 = vector.extract_strided_slice %434 {offsets = [8, 0], sizes = [8, 648], strides = [1, 1]} : vector<16x648xf32> to vector<8x648xf32>
    %453 = vector.extract_strided_slice %432 {offsets = [4, 0], sizes = [1, 648], strides = [1, 1]} : vector<8x648xf32> to vector<1x648xf32>
    %454 = vector.broadcast %453 : vector<1x648xf32> to vector<8x648xf32>
    %455 = arith.mulf %454, %452 : vector<8x648xf32>
    %456 = arith.addf %417, %455 : vector<8x648xf32>
    %457 = vector.extract_strided_slice %432 {offsets = [5, 0], sizes = [1, 648], strides = [1, 1]} : vector<8x648xf32> to vector<1x648xf32>
    %458 = vector.broadcast %457 : vector<1x648xf32> to vector<8x648xf32>
    %459 = arith.mulf %458, %452 : vector<8x648xf32>
    %460 = arith.addf %421, %459 : vector<8x648xf32>
    %461 = vector.extract_strided_slice %432 {offsets = [6, 0], sizes = [1, 648], strides = [1, 1]} : vector<8x648xf32> to vector<1x648xf32>
    %462 = vector.broadcast %461 : vector<1x648xf32> to vector<8x648xf32>
    %463 = arith.mulf %462, %452 : vector<8x648xf32>
    %464 = arith.addf %425, %463 : vector<8x648xf32>
    %465 = vector.extract_strided_slice %432 {offsets = [7, 0], sizes = [1, 648], strides = [1, 1]} : vector<8x648xf32> to vector<1x648xf32>
    %466 = vector.broadcast %465 : vector<1x648xf32> to vector<8x648xf32>
    %467 = arith.mulf %466, %452 : vector<8x648xf32>
    %468 = arith.addf %429, %467 : vector<8x648xf32>
    %469 = tpu.reciprocal %433 {approx = true} : vector<8x648xf32> -> vector<8x648xf32>
    %470 = vector.extract_strided_slice %469 {offsets = [0, 0], sizes = [1, 648], strides = [1, 1]} : vector<8x648xf32> to vector<1x648xf32>
    %471 = vector.broadcast %470 : vector<1x648xf32> to vector<8x648xf32>
    %472 = arith.mulf %439, %471 : vector<8x648xf32>
    %473 = vector.extract_strided_slice %469 {offsets = [1, 0], sizes = [1, 648], strides = [1, 1]} : vector<8x648xf32> to vector<1x648xf32>
    %474 = vector.broadcast %473 : vector<1x648xf32> to vector<8x648xf32>
    %475 = arith.mulf %443, %474 : vector<8x648xf32>
    %476 = vector.extract_strided_slice %469 {offsets = [2, 0], sizes = [1, 648], strides = [1, 1]} : vector<8x648xf32> to vector<1x648xf32>
    %477 = vector.broadcast %476 : vector<1x648xf32> to vector<8x648xf32>
    %478 = arith.mulf %447, %477 : vector<8x648xf32>
    %479 = vector.extract_strided_slice %469 {offsets = [3, 0], sizes = [1, 648], strides = [1, 1]} : vector<8x648xf32> to vector<1x648xf32>
    %480 = vector.broadcast %479 : vector<1x648xf32> to vector<8x648xf32>
    %481 = arith.mulf %451, %480 : vector<8x648xf32>
    %482 = vector.extract_strided_slice %469 {offsets = [4, 0], sizes = [1, 648], strides = [1, 1]} : vector<8x648xf32> to vector<1x648xf32>
    %483 = vector.broadcast %482 : vector<1x648xf32> to vector<8x648xf32>
    %484 = arith.mulf %456, %483 : vector<8x648xf32>
    %485 = vector.extract_strided_slice %469 {offsets = [5, 0], sizes = [1, 648], strides = [1, 1]} : vector<8x648xf32> to vector<1x648xf32>
    %486 = vector.broadcast %485 : vector<1x648xf32> to vector<8x648xf32>
    %487 = arith.mulf %460, %486 : vector<8x648xf32>
    %488 = vector.extract_strided_slice %469 {offsets = [6, 0], sizes = [1, 648], strides = [1, 1]} : vector<8x648xf32> to vector<1x648xf32>
    %489 = vector.broadcast %488 : vector<1x648xf32> to vector<8x648xf32>
    %490 = arith.mulf %464, %489 : vector<8x648xf32>
    %491 = vector.extract_strided_slice %469 {offsets = [7, 0], sizes = [1, 648], strides = [1, 1]} : vector<8x648xf32> to vector<1x648xf32>
    %492 = vector.broadcast %491 : vector<1x648xf32> to vector<8x648xf32>
    %493 = arith.mulf %468, %492 : vector<8x648xf32>
    %494 = tpu.concatenate %472, %475, %478, %481, %484, %487, %490, %493 in 0 : vector<8x648xf32>, vector<8x648xf32>, vector<8x648xf32>, vector<8x648xf32>, vector<8x648xf32>, vector<8x648xf32>, vector<8x648xf32>, vector<8x648xf32> -> vector<64x648xf32>
    %495 = arith.truncf %494 : vector<64x648xf32> to vector<64x648xbf16>
    %c0_145 = arith.constant 0 : index
    %c0_146 = arith.constant 0 : index
    %496 = vector.load %arg13[%c0_145, %c0_146] : memref<16x64xbf16, #tpu.memory_space<vmem>>, vector<16x64xbf16>
    %cst_147 = arith.constant dense<0.000000e+00> : vector<16x648xf32>
    %497 = tpu.matmul %496, %495, %cst_147 {dimension_numbers = #tpu.dot_dimension_numbers<[1], [0], [0], [1], [0, 0, 1, 1], [], []>} : vector<16x64xbf16>, vector<64x648xbf16>, vector<16x648xf32> -> vector<16x648xf32>
    %498 = arith.addf %497, %73 : vector<16x648xf32>
    %c0_148 = arith.constant 0 : index
    %c0_149 = arith.constant 0 : index
    %c0_150 = arith.constant 0 : index
    %499 = vector.load %arg14[%c0_148, %c0_149, %c0_150] : memref<1x16x648xf32, #tpu.memory_space<vmem>>, vector<1x16x648xf32>
    %500 = vector.shape_cast %499 : vector<1x16x648xf32> to vector<16x648xf32>
    %501 = vector.shape_cast %498 : vector<16x648xf32> to vector<1x16x648xf32>
    tpu.vector_store %arg14[%c0_148, %c0_149, %c0_150], %501 {strides = array<i32>} : memref<1x16x648xf32, #tpu.memory_space<vmem>>, vector<1x16x648xf32>,
    return
  }
  func.func @transform_0(%arg0: i32) -> (i32, i32, i32) {
    %c0_i32 = arith.constant 0 : i32
    %c0_i32_0 = arith.constant 0 : i32
    %c0_i32_1 = arith.constant 0 : i32
    return %arg0, %c0_i32, %c0_i32_0 : i32, i32, i32
  }
  func.func @transform_1(%arg0: i32) -> (i32, i32) {
    %c0_i32 = arith.constant 0 : i32
    %c0_i32_0 = arith.constant 0 : i32
    %c0_i32_1 = arith.constant 0 : i32
    return %c0_i32, %c0_i32_0 : i32, i32
  }
  func.func @transform_2(%arg0: i32) -> (i32, i32) {
    %c0_i32 = arith.constant 0 : i32
    %c0_i32_0 = arith.constant 0 : i32
    %c0_i32_1 = arith.constant 0 : i32
    return %c0_i32, %c0_i32_0 : i32, i32
  }
  func.func @transform_3(%arg0: i32) -> (i32, i32) {
    %c0_i32 = arith.constant 0 : i32
    %c0_i32_0 = arith.constant 0 : i32
    %c0_i32_1 = arith.constant 0 : i32
    return %c0_i32, %c0_i32_0 : i32, i32
  }
  func.func @transform_4(%arg0: i32) -> (i32, i32) {
    %c0_i32 = arith.constant 0 : i32
    %c0_i32_0 = arith.constant 0 : i32
    %c0_i32_1 = arith.constant 0 : i32
    return %c0_i32, %c0_i32_0 : i32, i32
  }
  func.func @transform_5(%arg0: i32) -> (i32, i32) {
    %c0_i32 = arith.constant 0 : i32
    %c0_i32_0 = arith.constant 0 : i32
    %c0_i32_1 = arith.constant 0 : i32
    return %c0_i32, %c0_i32_0 : i32, i32
  }
  func.func @transform_6(%arg0: i32) -> (i32, i32) {
    %c0_i32 = arith.constant 0 : i32
    %c0_i32_0 = arith.constant 0 : i32
    %c0_i32_1 = arith.constant 0 : i32
    return %c0_i32, %c0_i32_0 : i32, i32
  }
  func.func @transform_7(%arg0: i32) -> (i32, i32) {
    %c0_i32 = arith.constant 0 : i32
    %c0_i32_0 = arith.constant 0 : i32
    %c0_i32_1 = arith.constant 0 : i32
    return %c0_i32, %c0_i32_0 : i32, i32
  }
  func.func @transform_8(%arg0: i32) -> (i32, i32) {
    %c0_i32 = arith.constant 0 : i32
    %c0_i32_0 = arith.constant 0 : i32
    %c0_i32_1 = arith.constant 0 : i32
    return %c0_i32, %c0_i32_0 : i32, i32
  }
  func.func @transform_9(%arg0: i32) -> (i32, i32) {
    %c0_i32 = arith.constant 0 : i32
    %c0_i32_0 = arith.constant 0 : i32
    %c0_i32_1 = arith.constant 0 : i32
    return %c0_i32, %c0_i32_0 : i32, i32
  }
  func.func @transform_10(%arg0: i32) -> (i32, i32) {
    %c0_i32 = arith.constant 0 : i32
    %c0_i32_0 = arith.constant 0 : i32
    %c0_i32_1 = arith.constant 0 : i32
    return %c0_i32, %c0_i32_0 : i32, i32
  }
  func.func @transform_11(%arg0: i32) -> (i32, i32) {
    %c0_i32 = arith.constant 0 : i32
    %c0_i32_0 = arith.constant 0 : i32
    %c0_i32_1 = arith.constant 0 : i32
    return %c0_i32, %c0_i32_0 : i32, i32
  }
  func.func @transform_12(%arg0: i32) -> (i32, i32) {
    %c0_i32 = arith.constant 0 : i32
    %c0_i32_0 = arith.constant 0 : i32
    %c0_i32_1 = arith.constant 0 : i32
    return %c0_i32, %c0_i32_0 : i32, i32
  }
  func.func @transform_13(%arg0: i32) -> (i32, i32, i32) {
    %c0_i32 = arith.constant 0 : i32
    %c0_i32_0 = arith.constant 0 : i32
    %c0_i32_1 = arith.constant 0 : i32
    return %arg0, %c0_i32, %c0_i32_0 : i32, i32, i32
  }
}

</mosaic_0001>

<llo_original>
// kernel: residual_local_attention_block.1
$region0: #{residual_local_attention_block.1}
  #allocation0 [shape = 'u32[]', space=smem, size = 0x4, offset = 0x4, fixed_abs, tag = 'smem constant byte address 0x4 - core index']
  #allocation1 [shape = 'u32[144,128]{1,0:T(1,128)}', space=vmem, size = 0x12000, scoped, tag = 'internal scratch']
  #allocation2 [shape = 'bf16[16,904]{1,0:T(16,128)(2,1)}', space=vmem, size = 0x8000, scoped, tag = 'scratch operand']
  #allocation3 [shape = 'f32[8,904]{1,0:T(8,128)}', space=vmem, size = 0x8000, scoped, tag = 'scratch operand']
  #allocation4 [shape = 'f32[16,904]{1,0:T(8,128)}', space=vmem, size = 0x10000, scoped, tag = 'scratch operand']
  %s0 = inlined_call_operand.vmem [shape: f32[2,16,648], index: 0, kind: input, shape index: {}]
  %s1 = inlined_call_operand.vmem [shape: f32[1,648], index: 1, kind: input, shape index: {}]
  %s2 = inlined_call_operand.vmem [shape: f32[16,1], index: 2, kind: input, shape index: {}]
  %s3 = inlined_call_operand.vmem [shape: f32[16,1], index: 3, kind: input, shape index: {}]
  %s4 = inlined_call_operand.vmem [shape: bf16[16,144], index: 4, kind: input, shape index: {}]
  %s5 = inlined_call_operand.vmem [shape: f32[16,1], index: 5, kind: input, shape index: {}]
  %s6 = inlined_call_operand.vmem [shape: f32[16,1], index: 6, kind: input, shape index: {}]
  %s7 = inlined_call_operand.vmem [shape: bf16[16,144], index: 7, kind: input, shape index: {}]
  %s8 = inlined_call_operand.vmem [shape: f32[16,1], index: 8, kind: input, shape index: {}]
  %s9 = inlined_call_operand.vmem [shape: f32[16,1], index: 9, kind: input, shape index: {}]
  %s10 = inlined_call_operand.vmem [shape: bf16[32,16], index: 10, kind: input, shape index: {}]
  %s11 = inlined_call_operand.vmem [shape: bf16[8,16], index: 11, kind: input, shape index: {}]
  %s12 = inlined_call_operand.vmem [shape: bf16[16,64], index: 12, kind: input, shape index: {}]
  %s13 = inlined_call_operand.vmem [shape: f32[2,16,648], index: 13, kind: output, shape index: {}]
  %s14 = sld [smem:[#allocation0]]
  $region85: #{residual_local_attention_block.1} parent=0
    _
  %s16 = ssub.s32 1, %s14
  %s17 = scalar_select 0, %s16, %s14
  loop: start=0, step=1, limit=4
  $region2: #{residual_local_attention_block.1} parent=0 // loop_pre_header
    _
  $region3: #{residual_local_attention_block.1} parent=0 // loop_header
    %s19 = sphi 0, %s23
    %p20 = scmp.ge.s32.totalorder %s19, 4
    %s29 = sphi 0, %s31
    %s32 = sphi 0, %s29
    %s33 = sphi 0, %s32
    %s49 = sphi 0, %s33
    %s53 = sphi 0, %s53
    %s55 = sphi 0, %s53
    %s56 = sphi 0, %s55
    %s70 = sphi 0, %s56
    %s74 = sphi 0, %s74
    %s76 = sphi 0, %s74
    %s77 = sphi 0, %s76
    %s91 = sphi 0, %s77
    %s95 = sphi 0, %s95
    %s97 = sphi 0, %s95
    %s98 = sphi 0, %s97
    %s112 = sphi 0, %s98
    %s116 = sphi 0, %s116
    %s118 = sphi 0, %s116
    %s119 = sphi 0, %s118
    %s133 = sphi 0, %s119
    %s137 = sphi 0, %s137
    %s139 = sphi 0, %s137
    %s140 = sphi 0, %s139
    %s154 = sphi 0, %s140
    %s158 = sphi 0, %s158
    %s160 = sphi 0, %s158
    %s161 = sphi 0, %s160
    %s175 = sphi 0, %s161
    %s179 = sphi 0, %s179
    %s181 = sphi 0, %s179
    %s182 = sphi 0, %s181
    %s196 = sphi 0, %s182
    %s200 = sphi 0, %s200
    %s202 = sphi 0, %s200
    %s203 = sphi 0, %s202
    %s217 = sphi 0, %s203
    %s221 = sphi 0, %s221
    %s223 = sphi 0, %s221
    %s224 = sphi 0, %s223
    %s238 = sphi 0, %s224
    %s242 = sphi 0, %s242
    %s244 = sphi 0, %s242
    %s245 = sphi 0, %s244
    %s259 = sphi 0, %s245
    %s263 = sphi 0, %s263
    %s265 = sphi 0, %s263
    %s266 = sphi 0, %s265
    %s280 = sphi 0, %s266
    %s284 = sphi 0, %s284
    %s286 = sphi 0, %s284
    %s287 = sphi 0, %s286
    %s301 = sphi 0, %s287
    %s307 = sphi 0, %s309
    %s310 = sphi 0, %s307
    %s311 = sphi 0, %s310
    %s327 = sphi 0, %s311
  $region4: #{residual_local_attention_block.1} parent=0 // loop_header_branch
    %22 = sbr.rel (%p20) target = $region8
  $region5: #{residual_local_attention_block.1} parent=0 // loop_body
    %s24 = ssub.s32 %s19, 1
    %s25 = ssub.s32 %s19, 2
    %s26 = sadd.s32 %s19, 1
    %s27 = ssub.s32 %s19, %s26
    %p28 = scmp.eq.s32.totalorder %s27, 0
    %s30 = sadd.s32 %s29, 1
    %s31 = scalar_select %p28, %s29, %s30
    %p34 = pneg %p28
    %p35 = scmp.eq.s32.totalorder %s19, 1
    %p36 = por %p34, %p35
    %p37 = scmp.ne.s32.totalorder %s29, %s32
    %p38 = scmp.eq.s32.totalorder %s19, 0
    %p39 = por %p37, %p38
    %p40 = scmp.ne.s32.totalorder %s29, %s32
    %p41 = scmp.eq.s32.totalorder %s24, 1
    %p42 = por %p40, %p41
    %p43 = scmp.ne.s32.totalorder %s32, %s33
    %p44 = scmp.eq.s32.totalorder %s24, 0
    %p45 = por %p43, %p44
    %p46 = scmp.ne.s32.totalorder %s32, %s33
    %p47 = scmp.eq.s32.totalorder %s25, 1
    %p48 = por %p46, %p47
    %p50 = scmp.ne.s32.totalorder %s33, %s49
    %p51 = scmp.eq.s32.totalorder %s25, 0
    %p52 = por %p50, %p51
    %s54 = sadd.s32 %s53, 1
    %p57 = scmp.eq.s32.totalorder %s19, 1
    %p58 = scmp.ne.s32.totalorder %s53, %s55
    %p59 = scmp.eq.s32.totalorder %s19, 0
    %p60 = por %p58, %p59
    %p61 = scmp.ne.s32.totalorder %s53, %s55
    %p62 = scmp.eq.s32.totalorder %s24, 1
    %p63 = por %p61, %p62
    %p64 = scmp.ne.s32.totalorder %s55, %s56
    %p65 = scmp.eq.s32.totalorder %s24, 0
    %p66 = por %p64, %p65
    %p67 = scmp.ne.s32.totalorder %s55, %s56
    %p68 = scmp.eq.s32.totalorder %s25, 1
    %p69 = por %p67, %p68
    %p71 = scmp.ne.s32.totalorder %s56, %s70
    %p72 = scmp.eq.s32.totalorder %s25, 0
    %p73 = por %p71, %p72
    %s75 = sadd.s32 %s74, 1
    %p78 = scmp.eq.s32.totalorder %s19, 1
    %p79 = scmp.ne.s32.totalorder %s74, %s76
    %p80 = scmp.eq.s32.totalorder %s19, 0
    %p81 = por %p79, %p80
    %p82 = scmp.ne.s32.totalorder %s74, %s76
    %p83 = scmp.eq.s32.totalorder %s24, 1
    %p84 = por %p82, %p83
    %p85 = scmp.ne.s32.totalorder %s76, %s77
    %p86 = scmp.eq.s32.totalorder %s24, 0
    %p87 = por %p85, %p86
    %p88 = scmp.ne.s32.totalorder %s76, %s77
    %p89 = scmp.eq.s32.totalorder %s25, 1
    %p90 = por %p88, %p89
    %p92 = scmp.ne.s32.totalorder %s77, %s91
    %p93 = scmp.eq.s32.totalorder %s25, 0
    %p94 = por %p92, %p93
    %s96 = sadd.s32 %s95, 1
    %p99 = scmp.eq.s32.totalorder %s19, 1
    %p100 = scmp.ne.s32.totalorder %s95, %s97
    %p101 = scmp.eq.s32.totalorder %s19, 0
    %p102 = por %p100, %p101
    %p103 = scmp.ne.s32.totalorder %s95, %s97
    %p104 = scmp.eq.s32.totalorder %s24, 1
    %p105 = por %p103, %p104
    %p106 = scmp.ne.s32.totalorder %s97, %s98
    %p107 = scmp.eq.s32.totalorder %s24, 0
    %p108 = por %p106, %p107
    %p109 = scmp.ne.s32.totalorder %s97, %s98
    %p110 = scmp.eq.s32.totalorder %s25, 1
    %p111 = por %p109, %p110
    %p113 = scmp.ne.s32.totalorder %s98, %s112
    %p114 = scmp.eq.s32.totalorder %s25, 0
    %p115 = por %p113, %p114
    %s117 = sadd.s32 %s116, 1
    %p120 = scmp.eq.s32.totalorder %s19, 1
    %p121 = scmp.ne.s32.totalorder %s116, %s118
    %p122 = scmp.eq.s32.totalorder %s19, 0
    %p123 = por %p121, %p122
    %p124 = scmp.ne.s32.totalorder %s116, %s118
    %p125 = scmp.eq.s32.totalorder %s24, 1
    %p126 = por %p124, %p125
    %p127 = scmp.ne.s32.totalorder %s118, %s119
    %p128 = scmp.eq.s32.totalorder %s24, 0
    %p129 = por %p127, %p128
    %p130 = scmp.ne.s32.totalorder %s118, %s119
    %p131 = scmp.eq.s32.totalorder %s25, 1
    %p132 = por %p130, %p131
    %p134 = scmp.ne.s32.totalorder %s119, %s133
    %p135 = scmp.eq.s32.totalorder %s25, 0
    %p136 = por %p134, %p135
    %s138 = sadd.s32 %s137, 1
    %p141 = scmp.eq.s32.totalorder %s19, 1
    %p142 = scmp.ne.s32.totalorder %s137, %s139
    %p143 = scmp.eq.s32.totalorder %s19, 0
    %p144 = por %p142, %p143
    %p145 = scmp.ne.s32.totalorder %s137, %s139
    %p146 = scmp.eq.s32.totalorder %s24, 1
    %p147 = por %p145, %p146
    %p148 = scmp.ne.s32.totalorder %s139, %s140
    %p149 = scmp.eq.s32.totalorder %s24, 0
    %p150 = por %p148, %p149
    %p151 = scmp.ne.s32.totalorder %s139, %s140
    %p152 = scmp.eq.s32.totalorder %s25, 1
    %p153 = por %p151, %p152
    %p155 = scmp.ne.s32.totalorder %s140, %s154
    %p156 = scmp.eq.s32.totalorder %s25, 0
    %p157 = por %p155, %p156
    %s159 = sadd.s32 %s158, 1
    %p162 = scmp.eq.s32.totalorder %s19, 1
    %p163 = scmp.ne.s32.totalorder %s158, %s160
    %p164 = scmp.eq.s32.totalorder %s19, 0
    %p165 = por %p163, %p164
    %p166 = scmp.ne.s32.totalorder %s158, %s160
    %p167 = scmp.eq.s32.totalorder %s24, 1
    %p168 = por %p166, %p167
    %p169 = scmp.ne.s32.totalorder %s160, %s161
    %p170 = scmp.eq.s32.totalorder %s24, 0
    %p171 = por %p169, %p170
    %p172 = scmp.ne.s32.totalorder %s160, %s161
    %p173 = scmp.eq.s32.totalorder %s25, 1
    %p174 = por %p172, %p173
    %p176 = scmp.ne.s32.totalorder %s161, %s175
    %p177 = scmp.eq.s32.totalorder %s25, 0
    %p178 = por %p176, %p177
    %s180 = sadd.s32 %s179, 1
    %p183 = scmp.eq.s32.totalorder %s19, 1
    %p184 = scmp.ne.s32.totalorder %s179, %s181
    %p185 = scmp.eq.s32.totalorder %s19, 0
    %p186 = por %p184, %p185
    %p187 = scmp.ne.s32.totalorder %s179, %s181
    %p188 = scmp.eq.s32.totalorder %s24, 1
    %p189 = por %p187, %p188
    %p190 = scmp.ne.s32.totalorder %s181, %s182
    %p191 = scmp.eq.s32.totalorder %s24, 0
    %p192 = por %p190, %p191
    %p193 = scmp.ne.s32.totalorder %s181, %s182
    %p194 = scmp.eq.s32.totalorder %s25, 1
    %p195 = por %p193, %p194
    %p197 = scmp.ne.s32.totalorder %s182, %s196
    %p198 = scmp.eq.s32.totalorder %s25, 0
    %p199 = por %p197, %p198
    %s201 = sadd.s32 %s200, 1
    %p204 = scmp.eq.s32.totalorder %s19, 1
    %p205 = scmp.ne.s32.totalorder %s200, %s202
    %p206 = scmp.eq.s32.totalorder %s19, 0
    %p207 = por %p205, %p206
    %p208 = scmp.ne.s32.totalorder %s200, %s202
    %p209 = scmp.eq.s32.totalorder %s24, 1
    %p210 = por %p208, %p209
    %p211 = scmp.ne.s32.totalorder %s202, %s203
    %p212 = scmp.eq.s32.totalorder %s24, 0
    %p213 = por %p211, %p212
    %p214 = scmp.ne.s32.totalorder %s202, %s203
    %p215 = scmp.eq.s32.totalorder %s25, 1
    %p216 = por %p214, %p215
    %p218 = scmp.ne.s32.totalorder %s203, %s217
    %p219 = scmp.eq.s32.totalorder %s25, 0
    %p220 = por %p218, %p219
    %s222 = sadd.s32 %s221, 1
    %p225 = scmp.eq.s32.totalorder %s19, 1
    %p226 = scmp.ne.s32.totalorder %s221, %s223
    %p227 = scmp.eq.s32.totalorder %s19, 0
    %p228 = por %p226, %p227
    %p229 = scmp.ne.s32.totalorder %s221, %s223
    %p230 = scmp.eq.s32.totalorder %s24, 1
    %p231 = por %p229, %p230
    %p232 = scmp.ne.s32.totalorder %s223, %s224
    %p233 = scmp.eq.s32.totalorder %s24, 0
    %p234 = por %p232, %p233
    %p235 = scmp.ne.s32.totalorder %s223, %s224
    %p236 = scmp.eq.s32.totalorder %s25, 1
    %p237 = por %p235, %p236
    %p239 = scmp.ne.s32.totalorder %s224, %s238
    %p240 = scmp.eq.s32.totalorder %s25, 0
    %p241 = por %p239, %p240
    %s243 = sadd.s32 %s242, 1
    %p246 = scmp.eq.s32.totalorder %s19, 1
    %p247 = scmp.ne.s32.totalorder %s242, %s244
    %p248 = scmp.eq.s32.totalorder %s19, 0
    %p249 = por %p247, %p248
    %p250 = scmp.ne.s32.totalorder %s242, %s244
    %p251 = scmp.eq.s32.totalorder %s24, 1
    %p252 = por %p250, %p251
    %p253 = scmp.ne.s32.totalorder %s244, %s245
    %p254 = scmp.eq.s32.totalorder %s24, 0
    %p255 = por %p253, %p254
    %p256 = scmp.ne.s32.totalorder %s244, %s245
    %p257 = scmp.eq.s32.totalorder %s25, 1
    %p258 = por %p256, %p257
    %p260 = scmp.ne.s32.totalorder %s245, %s259
    %p261 = scmp.eq.s32.totalorder %s25, 0
    %p262 = por %p260, %p261
    %s264 = sadd.s32 %s263, 1
    %p267 = scmp.eq.s32.totalorder %s19, 1
    %p268 = scmp.ne.s32.totalorder %s263, %s265
    %p269 = scmp.eq.s32.totalorder %s19, 0
    %p270 = por %p268, %p269
    %p271 = scmp.ne.s32.totalorder %s263, %s265
    %p272 = scmp.eq.s32.totalorder %s24, 1
    %p273 = por %p271, %p272
    %p274 = scmp.ne.s32.totalorder %s265, %s266
    %p275 = scmp.eq.s32.totalorder %s24, 0
    %p276 = por %p274, %p275
    %p277 = scmp.ne.s32.totalorder %s265, %s266
    %p278 = scmp.eq.s32.totalorder %s25, 1
    %p279 = por %p277, %p278
    %p281 = scmp.ne.s32.totalorder %s266, %s280
    %p282 = scmp.eq.s32.totalorder %s25, 0
    %p283 = por %p281, %p282
    %s285 = sadd.s32 %s284, 1
    %p288 = scmp.eq.s32.totalorder %s19, 1
    %p289 = scmp.ne.s32.totalorder %s284, %s286
    %p290 = scmp.eq.s32.totalorder %s19, 0
    %p291 = por %p289, %p290
    %p292 = scmp.ne.s32.totalorder %s284, %s286
    %p293 = scmp.eq.s32.totalorder %s24, 1
    %p294 = por %p292, %p293
    %p295 = scmp.ne.s32.totalorder %s286, %s287
    %p296 = scmp.eq.s32.totalorder %s24, 0
    %p297 = por %p295, %p296
    %p298 = scmp.ne.s32.totalorder %s286, %s287
    %p299 = scmp.eq.s32.totalorder %s25, 1
    %p300 = por %p298, %p299
    %p302 = scmp.ne.s32.totalorder %s287, %s301
    %p303 = scmp.eq.s32.totalorder %s25, 0
    %p304 = por %p302, %p303
    %s305 = ssub.s32 %s19, %s26
    %p306 = scmp.eq.s32.totalorder %s305, 0
    %s308 = sadd.s32 %s307, 1
    %s309 = scalar_select %p306, %s307, %s308
    %p312 = pneg %p306
    %p313 = scmp.eq.s32.totalorder %s19, 1
    %p314 = por %p312, %p313
    %p315 = scmp.ne.s32.totalorder %s307, %s310
    %p316 = scmp.eq.s32.totalorder %s19, 0
    %p317 = por %p315, %p316
    %p318 = scmp.ne.s32.totalorder %s307, %s310
    %p319 = scmp.eq.s32.totalorder %s24, 1
    %p320 = por %p318, %p319
    %p321 = scmp.ne.s32.totalorder %s310, %s311
    %p322 = scmp.eq.s32.totalorder %s24, 0
    %p323 = por %p321, %p322
    %p324 = scmp.ne.s32.totalorder %s310, %s311
    %p325 = scmp.eq.s32.totalorder %s25, 1
    %p326 = por %p324, %p325
    %p328 = scmp.ne.s32.totalorder %s311, %s327
    %p329 = scmp.eq.s32.totalorder %s25, 0
    %p330 = por %p328, %p329
    %p331 = scmp.le.s32.totalorder 1, %s19
    %p332 = scmp.lt.s32.totalorder %s19, 3
    %p333 = pnand %p331, %p332
    %p334 = pneg %p333
    // Predicated region
    $region9: #{residual_local_attention_block.1} parent=5 // pred_check
      _
    $region10: #{residual_local_attention_block.1} parent=5 // pred_check_branch
      %336 = sbr.rel (%p333) target = $region12
    $region11: #{residual_local_attention_block.1} parent=5 // pred_region
      %s337 = ssub.s32 %s19, 1
      // Predicated region
      $region13: #{residual_local_attention_block.1} parent=11 // pred_check
        %p338 = pneg %p66
      $region14: #{residual_local_attention_block.1} parent=11 // pred_check_branch
        %340 = sbr.rel (%p338) target = $region16
      $region15: #{residual_local_attention_block.1} parent=11 // pred_region
        _
      $region16: #{residual_local_attention_block.1} parent=11 // pred_fallthru
        _
      // Predicated region
      $region17: #{residual_local_attention_block.1} parent=11 // pred_check
        %p341 = pneg %p87
      $region18: #{residual_local_attention_block.1} parent=11 // pred_check_branch
        %343 = sbr.rel (%p341) target = $region20
      $region19: #{residual_local_attention_block.1} parent=11 // pred_region
        _
      $region20: #{residual_local_attention_block.1} parent=11 // pred_fallthru
        _
      // Predicated region
      $region21: #{residual_local_attention_block.1} parent=11 // pred_check
        %p344 = pneg %p108
      $region22: #{residual_local_attention_block.1} parent=11 // pred_check_branch
        %346 = sbr.rel (%p344) target = $region24
      $region23: #{residual_local_attention_block.1} parent=11 // pred_region
        _
      $region24: #{residual_local_attention_block.1} parent=11 // pred_fallthru
        _
      // Predicated region
      $region25: #{residual_local_attention_block.1} parent=11 // pred_check
        %p347 = pneg %p129
      $region26: #{residual_local_attention_block.1} parent=11 // pred_check_branch
        %349 = sbr.rel (%p347) target = $region28
      $region27: #{residual_local_attention_block.1} parent=11 // pred_region
        _
      $region28: #{residual_local_attention_block.1} parent=11 // pred_fallthru
        _
      // Predicated region
      $region29: #{residual_local_attention_block.1} parent=11 // pred_check
        %p350 = pneg %p150
      $region30: #{residual_local_attention_block.1} parent=11 // pred_check_branch
        %352 = sbr.rel (%p350) target = $region32
      $region31: #{residual_local_attention_block.1} parent=11 // pred_region
        _
      $region32: #{residual_local_attention_block.1} parent=11 // pred_fallthru
        _
      // Predicated region
      $region33: #{residual_local_attention_block.1} parent=11 // pred_check
        %p353 = pneg %p171
      $region34: #{residual_local_attention_block.1} parent=11 // pred_check_branch
        %355 = sbr.rel (%p353) target = $region36
      $region35: #{residual_local_attention_block.1} parent=11 // pred_region
        _
      $region36: #{residual_local_attention_block.1} parent=11 // pred_fallthru
        _
      // Predicated region
      $region37: #{residual_local_attention_block.1} parent=11 // pred_check
        %p356 = pneg %p192
      $region38: #{residual_local_attention_block.1} parent=11 // pred_check_branch
        %358 = sbr.rel (%p356) target = $region40
      $region39: #{residual_local_attention_block.1} parent=11 // pred_region
        _
      $region40: #{residual_local_attention_block.1} parent=11 // pred_fallthru
        _
      // Predicated region
      $region41: #{residual_local_attention_block.1} parent=11 // pred_check
        %p359 = pneg %p213
      $region42: #{residual_local_attention_block.1} parent=11 // pred_check_branch
        %361 = sbr.rel (%p359) target = $region44
      $region43: #{residual_local_attention_block.1} parent=11 // pred_region
        _
      $region44: #{residual_local_attention_block.1} parent=11 // pred_fallthru
        _
      // Predicated region
      $region45: #{residual_local_attention_block.1} parent=11 // pred_check
        %p362 = pneg %p234
      $region46: #{residual_local_attention_block.1} parent=11 // pred_check_branch
        %364 = sbr.rel (%p362) target = $region48
      $region47: #{residual_local_attention_block.1} parent=11 // pred_region
        _
      $region48: #{residual_local_attention_block.1} parent=11 // pred_fallthru
        _
      // Predicated region
      $region49: #{residual_local_attention_block.1} parent=11 // pred_check
        %p365 = pneg %p255
      $region50: #{residual_local_attention_block.1} parent=11 // pred_check_branch
        %367 = sbr.rel (%p365) target = $region52
      $region51: #{residual_local_attention_block.1} parent=11 // pred_region
        _
      $region52: #{residual_local_attention_block.1} parent=11 // pred_fallthru
        _
      // Predicated region
      $region53: #{residual_local_attention_block.1} parent=11 // pred_check
        %p368 = pneg %p276
      $region54: #{residual_local_attention_block.1} parent=11 // pred_check_branch
        %370 = sbr.rel (%p368) target = $region56
      $region55: #{residual_local_attention_block.1} parent=11 // pred_region
        _
      $region56: #{residual_local_attention_block.1} parent=11 // pred_fallthru
        _
      // Predicated region
      $region57: #{residual_local_attention_block.1} parent=11 // pred_check
        %p371 = pneg %p297
      $region58: #{residual_local_attention_block.1} parent=11 // pred_check_branch
        %373 = sbr.rel (%p371) target = $region60
      $region59: #{residual_local_attention_block.1} parent=11 // pred_region
        _
      $region60: #{residual_local_attention_block.1} parent=11 // pred_fallthru
        _
    $region12: #{residual_local_attention_block.1} parent=5 // pred_fallthru
      _
    %p374 = scmp.lt.s32.totalorder %s19, 2
    // Predicated region
    $region61: #{residual_local_attention_block.1} parent=5 // pred_check
      %p375 = pneg %p374
    $region62: #{residual_local_attention_block.1} parent=5 // pred_check_branch
      %377 = sbr.rel (%p375) target = $region64
    $region63: #{residual_local_attention_block.1} parent=5 // pred_region
      // Predicated region
      $region65: #{residual_local_attention_block.1} parent=63 // pred_check
        %p378 = pneg %p39
      $region66: #{residual_local_attention_block.1} parent=63 // pred_check_branch
        %380 = sbr.rel (%p378) target = $region68
      $region67: #{residual_local_attention_block.1} parent=63 // pred_region
        %p381 = scmp.lt.s32.totalorder %s19, 1
        %s382 = scalar_select %p381, %s19, 1
        %s383 = smul.addr %s382, 12
        %s384 = smul.addr %s383, 8
        %s385 = scalar_lea.vmem %s0, %s384
      $region68: #{residual_local_attention_block.1} parent=63 // pred_fallthru
        _
    $region64: #{residual_local_attention_block.1} parent=5 // pred_fallthru
      _
    %p386 = scmp.le.s32.totalorder 1, %s19
    %p387 = scmp.lt.s32.totalorder %s19, 3
    %p388 = pnand %p386, %p387
    %p389 = pneg %p388
    // Predicated region
    $region69: #{residual_local_attention_block.1} parent=5 // pred_check
      _
    $region70: #{residual_local_attention_block.1} parent=5 // pred_check_branch
      %391 = sbr.rel (%p388) target = $region72
    $region71: #{residual_local_attention_block.1} parent=5 // pred_region
      %s392 = ssub.s32 %s19, 1
      %p393 = scmp.lt.s32.totalorder %s24, 1
      %s394 = scalar_select %p393, %s24, 1
      %s395 = smul.addr %s394, 12
      %s396 = smul.addr %s395, 8
      %s397 = scalar_lea.vmem %s0, %s396
      %p398 = pneg %p45
      %p399 = pneg %p42
      %p400 = pneg %p66
      %p401 = pneg %p63
      %p402 = pneg %p87
      %p403 = pneg %p84
      %p404 = pneg %p108
      %p405 = pneg %p105
      %p406 = pneg %p129
      %p407 = pneg %p126
      %p408 = pneg %p150
      %p409 = pneg %p147
      %p410 = pneg %p171
      %p411 = pneg %p168
      %p412 = pneg %p192
      %p413 = pneg %p189
      %p414 = pneg %p213
      %p415 = pneg %p210
      %p416 = pneg %p234
      %p417 = pneg %p231
      %p418 = pneg %p255
      %p419 = pneg %p252
      %p420 = pneg %p276
      %p421 = pneg %p273
      %p422 = pneg %p297
      %p423 = pneg %p294
      %p424 = pneg %p323
      %p425 = pneg %p320
      %p426 = scmp.lt.s32.totalorder %s24, 1
      %s427 = scalar_select %p426, %s24, 1
      %s428 = smul.addr %s427, 12
      %s429 = smul.addr %s428, 8
      %s430 = scalar_lea.vmem %s13, %s429
      %p431 = scmp.lt.s32.totalorder %s24, 1
      %s432 = scalar_select %p431, %s24, 1
      %s433 = smul.addr %s432, 12
      %s434 = smul.addr %s433, 8
      %s435 = scalar_lea.vmem %s0, %s434
      %p436 = scmp.lt.s32.totalorder %s24, 1
      %s437 = scalar_select %p436, %s24, 1
      %s438 = smul.addr %s437, 12
      %s439 = smul.addr %s438, 8
      %s440 = scalar_lea.vmem %s13, %s439
      %vm442 = vcmask 1048320
      %443 = vst.msk [vmem:[#allocation2] sm:$0xff] %vm442, 0
      %vm444 = vcmask 326720
      %445 = vst.msk [vmem:[#allocation2 + $0x30] sm:$0xff] %vm444, 0
      %446 = vst.msk [vmem:[#allocation3] sm:$0xff] %vm442, 0.0
      %447 = vst.msk [vmem:[#allocation3 + $0x30] sm:$0xff] %vm444, 0.0
      %448 = vst.msk [vmem:[#allocation4] sm:$0xff] %vm442, 0.0
      %449 = vst.msk [vmem:[#allocation4 + $0x40] sm:$0xff] %vm442, 0.0
      %450 = vst.msk [vmem:[#allocation4 + $0x30] sm:$0xff] %vm444, 0.0
      %451 = vst.msk [vmem:[#allocation4 + $0x70] sm:$0xff] %vm444, 0.0
      %v452 = vld [vmem:[%s435] sm:$0xff]
      %v453 = vld [vmem:[%s435 + $0x8] sm:$0xff]
      %v454 = vld [vmem:[%s435 + $0x10] sm:$0xff]
      %v455 = vld [vmem:[%s435 + $0x18] sm:$0xff]
      %v456 = vld [vmem:[%s435 + $0x20] sm:$0xff]
      %v457 = vld [vmem:[%s435 + $0x28] sm:$0xff]
      %v458 = vld [vmem:[%s435 + $0x30] sm:$0xff]
      %v459 = vld [vmem:[%s435 + $0x38] sm:$0xff]
      %v460 = vld [vmem:[%s435 + $0x40] sm:$0xff]
      %v461 = vld [vmem:[%s435 + $0x48] sm:$0xff]
      %v462 = vld [vmem:[%s435 + $0x50] sm:$0xff]
      %v463 = vld [vmem:[%s435 + $0x58] sm:$0xff]
      %v464 = vld [vmem:[%s1] sm:$0x3f]
      %v465 = vld [vmem:[%s2] sm:$0xff]
      %v466 = vld [vmem:[%s2 + $0x8] sm:$0xff]
      %468 = vset.pattern.permute.xlu0 0
      %469 = vperm.xlu0 %468, %v465
      %v470 = vpop.permute.xlu0 %469
      %473 = vset.pattern.permute.xlu0 0
      %474 = vperm.xlu0 %473, %v466
      %v475 = vpop.permute.xlu0 %474
      %v477 = vmul.f32 %v452, %v470
      %v478 = vmul.f32 %v453, %v470
      %v479 = vmul.f32 %v454, %v470
      %v480 = vmul.f32 %v455, %v470
      %v481 = vmul.f32 %v456, %v470
      %v482 = vmul.f32 %v457, %v470
      %v483 = vmul.f32 %v458, %v475
      %v484 = vmul.f32 %v459, %v475
      %v485 = vmul.f32 %v460, %v475
      %v486 = vmul.f32 %v461, %v475
      %v487 = vmul.f32 %v462, %v475
      %v488 = vmul.f32 %v463, %v475
      %v489 = vld [vmem:[%s3] sm:$0xff]
      %v490 = vld [vmem:[%s3 + $0x8] sm:$0xff]
      %492 = vset.pattern.permute.xlu0 0
      %493 = vperm.xlu0 %492, %v489
      %v494 = vpop.permute.xlu0 %493
      %497 = vset.pattern.permute.xlu0 0
      %498 = vperm.xlu0 %497, %v490
      %v499 = vpop.permute.xlu0 %498
      %v501 = vadd.f32 %v477, %v494
      %v502 = vadd.f32 %v478, %v494
      %v503 = vadd.f32 %v479, %v494
      %v504 = vadd.f32 %v480, %v494
      %v505 = vadd.f32 %v481, %v494
      %v506 = vadd.f32 %v482, %v494
      %v507 = vadd.f32 %v483, %v499
      %v508 = vadd.f32 %v484, %v499
      %v509 = vadd.f32 %v485, %v499
      %v510 = vadd.f32 %v486, %v499
      %v511 = vadd.f32 %v487, %v499
      %v512 = vadd.f32 %v488, %v499
      %v513 = vmul.f32 %v501, -1.702
      %v514 = vmul.f32 %v502, -1.702
      %v515 = vmul.f32 %v503, -1.702
      %v516 = vmul.f32 %v504, -1.702
      %v517 = vmul.f32 %v505, -1.702
      %v518 = vmul.f32 %v506, -1.702
      %v519 = vmul.f32 %v507, -1.702
      %v520 = vmul.f32 %v508, -1.702
      %v521 = vmul.f32 %v509, -1.702
      %v522 = vmul.f32 %v510, -1.702
      %v523 = vmul.f32 %v511, -1.702
      %v524 = vmul.f32 %v512, -1.702
      %v525 = vmul.f32 %v513, 1.442695
      %v526 = vpow.pop %v525
      %v527 = vmul.f32 %v514, 1.442695
      %v528 = vpow.pop %v527
      %v529 = vmul.f32 %v515, 1.442695
      %v530 = vpow.pop %v529
      %v531 = vmul.f32 %v516, 1.442695
      %v532 = vpow.pop %v531
      %v533 = vmul.f32 %v517, 1.442695
      %v534 = vpow.pop %v533
      %v535 = vmul.f32 %v518, 1.442695
      %v536 = vpow.pop %v535
      %v537 = vmul.f32 %v519, 1.442695
      %v538 = vpow.pop %v537
      %v539 = vmul.f32 %v520, 1.442695
      %v540 = vpow.pop %v539
      %v541 = vmul.f32 %v521, 1.442695
      %v542 = vpow.pop %v541
      %v543 = vmul.f32 %v522, 1.442695
      %v544 = vpow.pop %v543
      %v545 = vmul.f32 %v523, 1.442695
      %v546 = vpow.pop %v545
      %v547 = vmul.f32 %v524, 1.442695
      %v548 = vpow.pop %v547
      %v549 = vadd.f32 %v526, 1.0
      %v550 = vadd.f32 %v528, 1.0
      %v551 = vadd.f32 %v530, 1.0
      %v552 = vadd.f32 %v532, 1.0
      %v553 = vadd.f32 %v534, 1.0
      %v554 = vadd.f32 %v536, 1.0
      %v555 = vadd.f32 %v538, 1.0
      %v556 = vadd.f32 %v540, 1.0
      %v557 = vadd.f32 %v542, 1.0
      %v558 = vadd.f32 %v544, 1.0
      %v559 = vadd.f32 %v546, 1.0
      %v560 = vadd.f32 %v548, 1.0
      %v561 = vrcp.pop %v549
      %v562 = vrcp.pop %v550
      %v563 = vrcp.pop %v551
      %v564 = vrcp.pop %v552
      %v565 = vrcp.pop %v553
      %v566 = vrcp.pop %v554
      %v567 = vrcp.pop %v555
      %v568 = vrcp.pop %v556
      %v569 = vrcp.pop %v557
      %v570 = vrcp.pop %v558
      %v571 = vrcp.pop %v559
      %v572 = vrcp.pop %v560
      %v573 = vmul.f32 %v501, %v561
      %v574 = vmul.f32 %v502, %v562
      %v575 = vmul.f32 %v503, %v563
      %v576 = vmul.f32 %v504, %v564
      %v577 = vmul.f32 %v505, %v565
      %v578 = vmul.f32 %v506, %v566
      %v579 = vmul.f32 %v507, %v567
      %v580 = vmul.f32 %v508, %v568
      %v581 = vmul.f32 %v509, %v569
      %v582 = vmul.f32 %v510, %v570
      %v583 = vmul.f32 %v511, %v571
      %v584 = vmul.f32 %v512, %v572
      %v586 = vlaneseq
      %v587 = vshrl.u32 %v586, 7
      %v588 = vsub.s32 0, %v587
      %v589 = vrot.slane %v464, %v588
      %v590 = vlaneseq
      %v591 = vshrl.u32 %v590, 7
      %v592 = vsub.s32 1, %v591
      %v593 = vrot.slane %v464, %v592
      %v594 = vlaneseq
      %v595 = vshrl.u32 %v594, 7
      %v596 = vsub.s32 2, %v595
      %v597 = vrot.slane %v464, %v596
      %v598 = vlaneseq
      %v599 = vshrl.u32 %v598, 7
      %v600 = vsub.s32 3, %v599
      %v601 = vrot.slane %v464, %v600
      %v602 = vlaneseq
      %v603 = vshrl.u32 %v602, 7
      %v604 = vsub.s32 4, %v603
      %v605 = vrot.slane %v464, %v604
      %v606 = vlaneseq
      %v607 = vshrl.u32 %v606, 7
      %v608 = vsub.s32 5, %v607
      %v609 = vrot.slane %v464, %v608
      %v616 = vmul.f32 %v573, %v589
      %v617 = vmul.f32 %v574, %v593
      %v618 = vmul.f32 %v575, %v597
      %v619 = vmul.f32 %v576, %v601
      %v620 = vmul.f32 %v577, %v605
      %v621 = vmul.f32 %v578, %v609
      %v622 = vmul.f32 %v579, %v589
      %v623 = vmul.f32 %v580, %v593
      %v624 = vmul.f32 %v581, %v597
      %v625 = vmul.f32 %v582, %v601
      %v626 = vmul.f32 %v583, %v605
      %v627 = vmul.f32 %v584, %v609
      %v628 = vpack.c.bf16 %v622, %v616
      %v629 = vpack.c.bf16 %v623, %v617
      %v630 = vpack.c.bf16 %v624, %v618
      %v631 = vpack.c.bf16 %v625, %v619
      %v632 = vpack.c.bf16 %v626, %v620
      %v633 = vpack.c.bf16 %v627, %v621
      %634 = vst [vmem:[#allocation2 + $0x8] sm:$0xff] %v628
      %635 = vst [vmem:[#allocation2 + $0x10] sm:$0xff] %v629
      %636 = vst [vmem:[#allocation2 + $0x18] sm:$0xff] %v630
      %637 = vst [vmem:[#allocation2 + $0x20] sm:$0xff] %v631
      %638 = vst [vmem:[#allocation2 + $0x28] sm:$0xff] %v632
      %vm639 = vcmask 64512
      %640 = vst.msk [vmem:[#allocation2 + $0x30] sm:$0xff] %vm639, %v633
      %v641 = vld [vmem:[#allocation2] sm:$0xff]
      %v642 = vld [vmem:[#allocation2 + $0x8] sm:$0xff]
      %v643 = vld [vmem:[#allocation2 + $0x10] sm:$0xff]
      %v644 = vld [vmem:[#allocation2 + $0x18] sm:$0xff]
      %v645 = vld [vmem:[#allocation2 + $0x20] sm:$0xff]
      %v646 = vld [vmem:[#allocation2 + $0x28] sm:$0xff]
      %v647 = vld [vmem:[#allocation2 + $0x30] sm:$0xff]
      %654 = vrot.lane.b32.xlu0 %v641, 127
      %v655 = vpop.permute.xlu0 %654
      %656 = vrot.lane.b32.xlu0 %v642, 127
      %v657 = vpop.permute.xlu0 %656
      %658 = vrot.lane.b32.xlu0 %v643, 127
      %v659 = vpop.permute.xlu0 %658
      %660 = vrot.lane.b32.xlu0 %v644, 127
      %v661 = vpop.permute.xlu0 %660
      %662 = vrot.lane.b32.xlu0 %v645, 127
      %v663 = vpop.permute.xlu0 %662
      %664 = vrot.lane.b32.xlu0 %v646, 127
      %v665 = vpop.permute.xlu0 %664
      %vm666 = vcmask 1039360
      %v667 = vsel %vm666, %v655, %v657
      %v668 = vsel %vm666, %v657, %v659
      %v669 = vsel %vm666, %v659, %v661
      %v670 = vsel %vm666, %v661, %v663
      %v671 = vsel %vm666, %v663, %v665
      %672 = vrot.lane.b32.xlu0 %v641, 126
      %v673 = vpop.permute.xlu0 %672
      %674 = vrot.lane.b32.xlu0 %v642, 126
      %v675 = vpop.permute.xlu0 %674
      %676 = vrot.lane.b32.xlu0 %v643, 126
      %v677 = vpop.permute.xlu0 %676
      %678 = vrot.lane.b32.xlu0 %v644, 126
      %v679 = vpop.permute.xlu0 %678
      %680 = vrot.lane.b32.xlu0 %v645, 126
      %v681 = vpop.permute.xlu0 %680
      %682 = vrot.lane.b32.xlu0 %v646, 126
      %v683 = vpop.permute.xlu0 %682
      %vm684 = vcmask 1031168
      %v685 = vsel %vm684, %v673, %v675
      %v686 = vsel %vm684, %v675, %v677
      %v687 = vsel %vm684, %v677, %v679
      %v688 = vsel %vm684, %v679, %v681
      %v689 = vsel %vm684, %v681, %v683
      %691 = vrot.lane.b32.xlu0 %v641, 110
      %v692 = vpop.permute.xlu0 %691
      %693 = vrot.lane.b32.xlu0 %v642, 110
      %v694 = vpop.permute.xlu0 %693
      %695 = vrot.lane.b32.xlu0 %v643, 110
      %v696 = vpop.permute.xlu0 %695
      %697 = vrot.lane.b32.xlu0 %v644, 110
      %v698 = vpop.permute.xlu0 %697
      %699 = vrot.lane.b32.xlu0 %v645, 110
      %v700 = vpop.permute.xlu0 %699
      %701 = vrot.lane.b32.xlu0 %v646, 110
      %v702 = vpop.permute.xlu0 %701
      %703 = vrot.lane.b32.xlu0 %v647, 110
      %v704 = vpop.permute.xlu0 %703
      %vm705 = vcmask 900096
      %v706 = vsel %vm705, %v692, %v694
      %v707 = vsel %vm705, %v694, %v696
      %v708 = vsel %vm705, %v696, %v698
      %v709 = vsel %vm705, %v698, %v700
      %v710 = vsel %vm705, %v700, %v702
      %v711 = vsel %vm705, %v702, %v704
      %712 = vrot.lane.b32.xlu0 %v642, 109
      %v713 = vpop.permute.xlu0 %712
      %714 = vrot.lane.b32.xlu0 %v643, 109
      %v715 = vpop.permute.xlu0 %714
      %716 = vrot.lane.b32.xlu0 %v644, 109
      %v717 = vpop.permute.xlu0 %716
      %718 = vrot.lane.b32.xlu0 %v645, 109
      %v719 = vpop.permute.xlu0 %718
      %720 = vrot.lane.b32.xlu0 %v646, 109
      %v721 = vpop.permute.xlu0 %720
      %722 = vrot.lane.b32.xlu0 %v647, 109
      %v723 = vpop.permute.xlu0 %722
      %vm724 = vcmask 891904
      %v725 = vsel %vm724, %v713, %v715
      %v726 = vsel %vm724, %v715, %v717
      %v727 = vsel %vm724, %v717, %v719
      %v728 = vsel %vm724, %v719, %v721
      %v729 = vsel %vm724, %v721, %v723
      %730 = vrot.lane.b32.xlu0 %v642, 108
      %v731 = vpop.permute.xlu0 %730
      %732 = vrot.lane.b32.xlu0 %v643, 108
      %v733 = vpop.permute.xlu0 %732
      %734 = vrot.lane.b32.xlu0 %v644, 108
      %v735 = vpop.permute.xlu0 %734
      %736 = vrot.lane.b32.xlu0 %v645, 108
      %v737 = vpop.permute.xlu0 %736
      %738 = vrot.lane.b32.xlu0 %v646, 108
      %v739 = vpop.permute.xlu0 %738
      %740 = vrot.lane.b32.xlu0 %v647, 108
      %v741 = vpop.permute.xlu0 %740
      %vm742 = vcmask 883712
      %v743 = vsel %vm742, %v731, %v733
      %v744 = vsel %vm742, %v733, %v735
      %v745 = vsel %vm742, %v735, %v737
      %v746 = vsel %vm742, %v737, %v739
      %v747 = vsel %vm742, %v739, %v741
      %748 = vrot.lane.b32.xlu0 %v642, 92
      %v749 = vpop.permute.xlu0 %748
      %750 = vrot.lane.b32.xlu0 %v643, 92
      %v751 = vpop.permute.xlu0 %750
      %752 = vrot.lane.b32.xlu0 %v644, 92
      %v753 = vpop.permute.xlu0 %752
      %754 = vrot.lane.b32.xlu0 %v645, 92
      %v755 = vpop.permute.xlu0 %754
      %756 = vrot.lane.b32.xlu0 %v646, 92
      %v757 = vpop.permute.xlu0 %756
      %758 = vrot.lane.b32.xlu0 %v647, 92
      %v759 = vpop.permute.xlu0 %758
      %vm760 = vcmask 752640
      %v761 = vsel %vm760, %v749, %v751
      %v762 = vsel %vm760, %v751, %v753
      %v763 = vsel %vm760, %v753, %v755
      %v764 = vsel %vm760, %v755, %v757
      %v765 = vsel %vm760, %v757, %v759
      %766 = vrot.lane.b32.xlu0 %v642, 91
      %v767 = vpop.permute.xlu0 %766
      %768 = vrot.lane.b32.xlu0 %v643, 91
      %v769 = vpop.permute.xlu0 %768
      %770 = vrot.lane.b32.xlu0 %v644, 91
      %v771 = vpop.permute.xlu0 %770
      %772 = vrot.lane.b32.xlu0 %v645, 91
      %v773 = vpop.permute.xlu0 %772
      %774 = vrot.lane.b32.xlu0 %v646, 91
      %v775 = vpop.permute.xlu0 %774
      %776 = vrot.lane.b32.xlu0 %v647, 91
      %v777 = vpop.permute.xlu0 %776
      %vm778 = vcmask 744448
      %v779 = vsel %vm778, %v767, %v769
      %v780 = vsel %vm778, %v769, %v771
      %v781 = vsel %vm778, %v771, %v773
      %v782 = vsel %vm778, %v773, %v775
      %v783 = vsel %vm778, %v775, %v777
      %784 = vrot.lane.b32.xlu0 %v642, 90
      %v785 = vpop.permute.xlu0 %784
      %786 = vrot.lane.b32.xlu0 %v643, 90
      %v787 = vpop.permute.xlu0 %786
      %788 = vrot.lane.b32.xlu0 %v644, 90
      %v789 = vpop.permute.xlu0 %788
      %790 = vrot.lane.b32.xlu0 %v645, 90
      %v791 = vpop.permute.xlu0 %790
      %792 = vrot.lane.b32.xlu0 %v646, 90
      %v793 = vpop.permute.xlu0 %792
      %794 = vrot.lane.b32.xlu0 %v647, 90
      %v795 = vpop.permute.xlu0 %794
      %vm796 = vcmask 736256
      %v797 = vsel %vm796, %v785, %v787
      %v798 = vsel %vm796, %v787, %v789
      %v799 = vsel %vm796, %v789, %v791
      %v800 = vsel %vm796, %v791, %v793
      %v801 = vsel %vm796, %v793, %v795
      %v802 = vld [vmem:[%s4] sm:$0xff]
      %v803 = vld [vmem:[%s4 + $0x8] sm:$0xff]
      %v806 = vunpack.c.l.b16 %v802
      %v807 = vunpack.c.h.b16 %v802
      %v808 = vunpack.c.l.b16 %v803
      %v809 = vunpack.c.h.b16 %v803
      %v810 = vpack.c.b16 %v808, %v806
      %v811 = vpack.c.b16 %v809, %v807
      %813 = vrot.lane.b32.xlu0 %v641, 19
      %v814 = vpop.permute.xlu0 %813
      %815 = vrot.lane.b32.xlu0 %v642, 19
      %v816 = vpop.permute.xlu0 %815
      %817 = vrot.lane.b32.xlu0 %v643, 19
      %v818 = vpop.permute.xlu0 %817
      %819 = vrot.lane.b32.xlu0 %v644, 19
      %v820 = vpop.permute.xlu0 %819
      %821 = vrot.lane.b32.xlu0 %v645, 19
      %v822 = vpop.permute.xlu0 %821
      %823 = vrot.lane.b32.xlu0 %v646, 19
      %v824 = vpop.permute.xlu0 %823
      %825 = vrot.lane.b32.xlu0 %v667, 19
      %v826 = vpop.permute.xlu0 %825
      %827 = vrot.lane.b32.xlu0 %v668, 19
      %v828 = vpop.permute.xlu0 %827
      %829 = vrot.lane.b32.xlu0 %v669, 19
      %v830 = vpop.permute.xlu0 %829
      %831 = vrot.lane.b32.xlu0 %v670, 19
      %v832 = vpop.permute.xlu0 %831
      %833 = vrot.lane.b32.xlu0 %v671, 19
      %v834 = vpop.permute.xlu0 %833
      %835 = vrot.lane.b32.xlu0 %v665, 19
      %v836 = vpop.permute.xlu0 %835
      %837 = vrot.lane.b32.xlu0 %v685, 19
      %v838 = vpop.permute.xlu0 %837
      %839 = vrot.lane.b32.xlu0 %v686, 19
      %v840 = vpop.permute.xlu0 %839
      %841 = vrot.lane.b32.xlu0 %v687, 19
      %v842 = vpop.permute.xlu0 %841
      %843 = vrot.lane.b32.xlu0 %v688, 19
      %v844 = vpop.permute.xlu0 %843
      %845 = vrot.lane.b32.xlu0 %v689, 19
      %v846 = vpop.permute.xlu0 %845
      %847 = vrot.lane.b32.xlu0 %v683, 19
      %v848 = vpop.permute.xlu0 %847
      %849 = vrot.lane.b32.xlu0 %v706, 19
      %v850 = vpop.permute.xlu0 %849
      %851 = vrot.lane.b32.xlu0 %v707, 19
      %v852 = vpop.permute.xlu0 %851
      %853 = vrot.lane.b32.xlu0 %v708, 19
      %v854 = vpop.permute.xlu0 %853
      %855 = vrot.lane.b32.xlu0 %v709, 19
      %v856 = vpop.permute.xlu0 %855
      %857 = vrot.lane.b32.xlu0 %v710, 19
      %v858 = vpop.permute.xlu0 %857
      %859 = vrot.lane.b32.xlu0 %v711, 19
      %v860 = vpop.permute.xlu0 %859
      %861 = vrot.lane.b32.xlu0 %v713, 19
      %v862 = vpop.permute.xlu0 %861
      %863 = vrot.lane.b32.xlu0 %v725, 19
      %v864 = vpop.permute.xlu0 %863
      %865 = vrot.lane.b32.xlu0 %v726, 19
      %v866 = vpop.permute.xlu0 %865
      %867 = vrot.lane.b32.xlu0 %v727, 19
      %v868 = vpop.permute.xlu0 %867
      %869 = vrot.lane.b32.xlu0 %v728, 19
      %v870 = vpop.permute.xlu0 %869
      %871 = vrot.lane.b32.xlu0 %v729, 19
      %v872 = vpop.permute.xlu0 %871
      %873 = vrot.lane.b32.xlu0 %v731, 19
      %v874 = vpop.permute.xlu0 %873
      %875 = vrot.lane.b32.xlu0 %v743, 19
      %v876 = vpop.permute.xlu0 %875
      %877 = vrot.lane.b32.xlu0 %v744, 19
      %v878 = vpop.permute.xlu0 %877
      %879 = vrot.lane.b32.xlu0 %v745, 19
      %v880 = vpop.permute.xlu0 %879
      %881 = vrot.lane.b32.xlu0 %v746, 19
      %v882 = vpop.permute.xlu0 %881
      %883 = vrot.lane.b32.xlu0 %v747, 19
      %v884 = vpop.permute.xlu0 %883
      %885 = vrot.lane.b32.xlu0 %v749, 19
      %v886 = vpop.permute.xlu0 %885
      %887 = vrot.lane.b32.xlu0 %v761, 19
      %v888 = vpop.permute.xlu0 %887
      %889 = vrot.lane.b32.xlu0 %v762, 19
      %v890 = vpop.permute.xlu0 %889
      %891 = vrot.lane.b32.xlu0 %v763, 19
      %v892 = vpop.permute.xlu0 %891
      %893 = vrot.lane.b32.xlu0 %v764, 19
      %v894 = vpop.permute.xlu0 %893
      %895 = vrot.lane.b32.xlu0 %v765, 19
      %v896 = vpop.permute.xlu0 %895
      %897 = vrot.lane.b32.xlu0 %v767, 19
      %v898 = vpop.permute.xlu0 %897
      %899 = vrot.lane.b32.xlu0 %v779, 19
      %v900 = vpop.permute.xlu0 %899
      %901 = vrot.lane.b32.xlu0 %v780, 19
      %v902 = vpop.permute.xlu0 %901
      %903 = vrot.lane.b32.xlu0 %v781, 19
      %v904 = vpop.permute.xlu0 %903
      %905 = vrot.lane.b32.xlu0 %v782, 19
      %v906 = vpop.permute.xlu0 %905
      %907 = vrot.lane.b32.xlu0 %v783, 19
      %v908 = vpop.permute.xlu0 %907
      %909 = vrot.lane.b32.xlu0 %v785, 19
      %v910 = vpop.permute.xlu0 %909
      %911 = vrot.lane.b32.xlu0 %v797, 19
      %v912 = vpop.permute.xlu0 %911
      %913 = vrot.lane.b32.xlu0 %v798, 19
      %v914 = vpop.permute.xlu0 %913
      %915 = vrot.lane.b32.xlu0 %v799, 19
      %v916 = vpop.permute.xlu0 %915
      %917 = vrot.lane.b32.xlu0 %v800, 19
      %v918 = vpop.permute.xlu0 %917
      %919 = vrot.lane.b32.xlu0 %v801, 19
      %v920 = vpop.permute.xlu0 %919
      %vm921 = vcmask 154624
      %v922 = vsel %vm921, %v814, %v816
      %v923 = vsel %vm921, %v816, %v818
      %v924 = vsel %vm921, %v818, %v820
      %v925 = vsel %vm921, %v820, %v822
      %v926 = vsel %vm921, %v822, %v824
      %v927 = vsel %vm921, %v826, %v828
      %v928 = vsel %vm921, %v828, %v830
      %v929 = vsel %vm921, %v830, %v832
      %v930 = vsel %vm921, %v832, %v834
      %v931 = vsel %vm921, %v834, %v836
      %v932 = vsel %vm921, %v838, %v840
      %v933 = vsel %vm921, %v840, %v842
      %v934 = vsel %vm921, %v842, %v844
      %v935 = vsel %vm921, %v844, %v846
      %v936 = vsel %vm921, %v846, %v848
      %v937 = vsel %vm921, %v850, %v852
      %v938 = vsel %vm921, %v852, %v854
      %v939 = vsel %vm921, %v854, %v856
      %v940 = vsel %vm921, %v856, %v858
      %v941 = vsel %vm921, %v858, %v860
      %v942 = vsel %vm921, %v862, %v864
      %v943 = vsel %vm921, %v864, %v866
      %v944 = vsel %vm921, %v866, %v868
      %v945 = vsel %vm921, %v868, %v870
      %v946 = vsel %vm921, %v870, %v872
      %v947 = vsel %vm921, %v874, %v876
      %v948 = vsel %vm921, %v876, %v878
      %v949 = vsel %vm921, %v878, %v880
      %v950 = vsel %vm921, %v880, %v882
      %v951 = vsel %vm921, %v882, %v884
      %v952 = vsel %vm921, %v886, %v888
      %v953 = vsel %vm921, %v888, %v890
      %v954 = vsel %vm921, %v890, %v892
      %v955 = vsel %vm921, %v892, %v894
      %v956 = vsel %vm921, %v894, %v896
      %v957 = vsel %vm921, %v898, %v900
      %v958 = vsel %vm921, %v900, %v902
      %v959 = vsel %vm921, %v902, %v904
      %v960 = vsel %vm921, %v904, %v906
      %v961 = vsel %vm921, %v906, %v908
      %v962 = vsel %vm921, %v910, %v912
      %v963 = vsel %vm921, %v912, %v914
      %v964 = vsel %vm921, %v914, %v916
      %v965 = vsel %vm921, %v916, %v918
      %v966 = vsel %vm921, %v918, %v920
      %vm1021 = vcmask 130048
      %v1023 = vsel %vm1021, %v811, 0
      %1025 = vmatprep.subr.bf16.mxu0 %v923
      %1026 = vmatpush1.bf16.msra.mxu0 %v922
      %1027 = vmatprep.subr.bf16.mxu0 %v928
      %1028 = vmatpush1.bf16.msra.mxu0 %v927
      %1029 = vmatprep.subr.bf16.mxu0 %v933
      %1030 = vmatpush1.bf16.msra.mxu0 %v932
      %1031 = vmatprep.subr.bf16.mxu0 %v938
      %1032 = vmatpush1.bf16.msra.mxu0 %v937
      %1033 = vmatprep.subr.bf16.mxu0 %v943
      %1034 = vmatpush1.bf16.msra.mxu0 %v942
      %1035 = vmatprep.subr.bf16.mxu0 %v948
      %1036 = vmatpush1.bf16.msra.mxu0 %v947
      %1037 = vmatprep.subr.bf16.mxu0 %v953
      %1038 = vmatpush1.bf16.msra.mxu0 %v952
      %1039 = vmatprep.subr.bf16.mxu0 %v958
      %1040 = vmatpush1.bf16.msra.mxu0 %v957
      %1041 = vmatprep.subr.bf16.mxu0 %v963
      %1042 = vmatpush1.bf16.msra.mxu0 %v962
      %1043 = vmatprep.subr.bf16.mxu0 0
      %1044 = vmatpush1.bf16.msra.mxu0 0
      %1045 = vmatprep.subr.bf16.mxu0 0
      %1046 = vmatpush1.bf16.msra.mxu0 0
      %1047 = vmatprep.subr.bf16.mxu0 0
      %1048 = vmatpush1.bf16.msra.mxu0 0
      %1049 = vmatprep.subr.bf16.mxu0 0
      %1050 = vmatpush1.bf16.msra.mxu0 0
      %1051 = vmatprep.subr.bf16.mxu0 0
      %1052 = vmatpush1.bf16.msra.mxu0 0
      %1053 = vmatprep.subr.bf16.mxu0 0
      %1054 = vmatpush1.bf16.msra.mxu0 0
      %1055 = vmatprep.subr.bf16.mxu0 0
      %1056 = vmatpush1.bf16.msra.mxu0 0
      %1057 = vmatprep.mubr.bf16.mxu0 %v1023
      %1058 = vmatmul.mubr.bf16.gmra.mrb[0].mxu0 %v810
      %v1059 = vpop.f32.mrb[0].mxu0
      %v1060 = vadd.f32 0.0, %v1059
      %v1061 = vpop.f32.mrb[0].mxu0
      %v1062 = vadd.f32 0.0, %v1061
      %v1063 = vpop.f32.mrb[0].mxu0
      %v1064 = vadd.f32 0.0, %v1063
      %v1065 = vpop.f32.mrb[0].mxu0
      %v1066 = vadd.f32 0.0, %v1065
      %1067 = vdwg.mxu0
      %1068 = vmatprep.subr.bf16.mxu0 %v925
      %1069 = vmatpush1.bf16.msra.mxu0 %v924
      %1070 = vmatprep.subr.bf16.mxu0 %v930
      %1071 = vmatpush1.bf16.msra.mxu0 %v929
      %1072 = vmatprep.subr.bf16.mxu0 %v935
      %1073 = vmatpush1.bf16.msra.mxu0 %v934
      %1074 = vmatprep.subr.bf16.mxu0 %v940
      %1075 = vmatpush1.bf16.msra.mxu0 %v939
      %1076 = vmatprep.subr.bf16.mxu0 %v945
      %1077 = vmatpush1.bf16.msra.mxu0 %v944
      %1078 = vmatprep.subr.bf16.mxu0 %v950
      %1079 = vmatpush1.bf16.msra.mxu0 %v949
      %1080 = vmatprep.subr.bf16.mxu0 %v955
      %1081 = vmatpush1.bf16.msra.mxu0 %v954
      %1082 = vmatprep.subr.bf16.mxu0 %v960
      %1083 = vmatpush1.bf16.msra.mxu0 %v959
      %1084 = vmatprep.subr.bf16.mxu0 %v965
      %1085 = vmatpush1.bf16.msra.mxu0 %v964
      %1086 = vmatprep.subr.bf16.mxu0 0
      %1087 = vmatpush1.bf16.msra.mxu0 0
      %1088 = vmatprep.subr.bf16.mxu0 0
      %1089 = vmatpush1.bf16.msra.mxu0 0
      %1090 = vmatprep.subr.bf16.mxu0 0
      %1091 = vmatpush1.bf16.msra.mxu0 0
      %1092 = vmatprep.subr.bf16.mxu0 0
      %1093 = vmatpush1.bf16.msra.mxu0 0
      %1094 = vmatprep.subr.bf16.mxu0 0
      %1095 = vmatpush1.bf16.msra.mxu0 0
      %1096 = vmatprep.subr.bf16.mxu0 0
      %1097 = vmatpush1.bf16.msra.mxu0 0
      %1098 = vmatprep.subr.bf16.mxu0 0
      %1099 = vmatpush1.bf16.msra.mxu0 0
      %1100 = vmatprep.mubr.bf16.mxu0 %v1023
      %1101 = vmatmul.mubr.bf16.gmra.mrb[0].mxu0 %v810
      %v1102 = vpop.f32.mrb[0].mxu0
      %v1103 = vadd.f32 0.0, %v1102
      %v1104 = vpop.f32.mrb[0].mxu0
      %v1105 = vadd.f32 0.0, %v1104
      %v1106 = vpop.f32.mrb[0].mxu0
      %v1107 = vadd.f32 0.0, %v1106
      %v1108 = vpop.f32.mrb[0].mxu0
      %v1109 = vadd.f32 0.0, %v1108
      %1110 = vdwg.mxu0
      %1111 = vmatprep.subr.bf16.mxu0 %v824
      %1112 = vmatpush1.bf16.msra.mxu0 %v926
      %1113 = vmatprep.subr.bf16.mxu0 %v836
      %1114 = vmatpush1.bf16.msra.mxu0 %v931
      %1115 = vmatprep.subr.bf16.mxu0 %v848
      %1116 = vmatpush1.bf16.msra.mxu0 %v936
      %1117 = vmatprep.subr.bf16.mxu0 %v860
      %1118 = vmatpush1.bf16.msra.mxu0 %v941
      %1119 = vmatprep.subr.bf16.mxu0 %v872
      %1120 = vmatpush1.bf16.msra.mxu0 %v946
      %1121 = vmatprep.subr.bf16.mxu0 %v884
      %1122 = vmatpush1.bf16.msra.mxu0 %v951
      %1123 = vmatprep.subr.bf16.mxu0 %v896
      %1124 = vmatpush1.bf16.msra.mxu0 %v956
      %1125 = vmatprep.subr.bf16.mxu0 %v908
      %1126 = vmatpush1.bf16.msra.mxu0 %v961
      %1127 = vmatprep.subr.bf16.mxu0 %v920
      %1128 = vmatpush1.bf16.msra.mxu0 %v966
      %1129 = vmatprep.subr.bf16.mxu0 0
      %1130 = vmatpush1.bf16.msra.mxu0 0
      %1131 = vmatprep.subr.bf16.mxu0 0
      %1132 = vmatpush1.bf16.msra.mxu0 0
      %1133 = vmatprep.subr.bf16.mxu0 0
      %1134 = vmatpush1.bf16.msra.mxu0 0
      %1135 = vmatprep.subr.bf16.mxu0 0
      %1136 = vmatpush1.bf16.msra.mxu0 0
      %1137 = vmatprep.subr.bf16.mxu0 0
      %1138 = vmatpush1.bf16.msra.mxu0 0
      %1139 = vmatprep.subr.bf16.mxu0 0
      %1140 = vmatpush1.bf16.msra.mxu0 0
      %1141 = vmatprep.subr.bf16.mxu0 0
      %1142 = vmatpush1.bf16.msra.mxu0 0
      %1143 = vmatprep.mubr.bf16.mxu0 %v1023
      %1144 = vmatmul.mubr.bf16.gmra.mrb[0].mxu0 %v810
      %v1145 = vpop.f32.mrb[0].mxu0
      %v1146 = vadd.f32 0.0, %v1145
      %v1147 = vpop.f32.mrb[0].mxu0
      %v1148 = vadd.f32 0.0, %v1147
      %v1149 = vpop.f32.mrb[0].mxu0
      %v1150 = vadd.f32 0.0, %v1149
      %v1151 = vpop.f32.mrb[0].mxu0
      %v1152 = vadd.f32 0.0, %v1151
      %1153 = vdwg.mxu0
      %v1154 = vld [vmem:[%s5] sm:$0xff]
      %v1155 = vld [vmem:[%s5 + $0x8] sm:$0xff]
      %1157 = vset.pattern.permute.xlu0 0
      %1158 = vperm.xlu0 %1157, %v1154
      %v1159 = vpop.permute.xlu0 %1158
      %1162 = vset.pattern.permute.xlu0 0
      %1163 = vperm.xlu0 %1162, %v1155
      %v1164 = vpop.permute.xlu0 %1163
      %v1166 = vmul.f32 %v1060, %v1159
      %v1167 = vmul.f32 %v1062, %v1159
      %v1168 = vmul.f32 %v1103, %v1159
      %v1169 = vmul.f32 %v1105, %v1159
      %v1170 = vmul.f32 %v1146, %v1159
      %v1171 = vmul.f32 %v1148, %v1159
      %v1172 = vmul.f32 %v1064, %v1164
      %v1173 = vmul.f32 %v1066, %v1164
      %v1174 = vmul.f32 %v1107, %v1164
      %v1175 = vmul.f32 %v1109, %v1164
      %v1176 = vmul.f32 %v1150, %v1164
      %v1177 = vmul.f32 %v1152, %v1164
      %v1178 = vld [vmem:[%s6] sm:$0xff]
      %v1179 = vld [vmem:[%s6 + $0x8] sm:$0xff]
      %1181 = vset.pattern.permute.xlu0 0
      %1182 = vperm.xlu0 %1181, %v1178
      %v1183 = vpop.permute.xlu0 %1182
      %1186 = vset.pattern.permute.xlu0 0
      %1187 = vperm.xlu0 %1186, %v1179
      %v1188 = vpop.permute.xlu0 %1187
      %v1190 = vadd.f32 %v1166, %v1183
      %v1191 = vadd.f32 %v1167, %v1183
      %v1192 = vadd.f32 %v1168, %v1183
      %v1193 = vadd.f32 %v1169, %v1183
      %v1194 = vadd.f32 %v1170, %v1183
      %v1195 = vadd.f32 %v1171, %v1183
      %v1196 = vadd.f32 %v1172, %v1188
      %v1197 = vadd.f32 %v1173, %v1188
      %v1198 = vadd.f32 %v1174, %v1188
      %v1199 = vadd.f32 %v1175, %v1188
      %v1200 = vadd.f32 %v1176, %v1188
      %v1201 = vadd.f32 %v1177, %v1188
      %v1202 = vmul.f32 %v1190, -1.702
      %v1203 = vmul.f32 %v1191, -1.702
      %v1204 = vmul.f32 %v1192, -1.702
      %v1205 = vmul.f32 %v1193, -1.702
      %v1206 = vmul.f32 %v1194, -1.702
      %v1207 = vmul.f32 %v1195, -1.702
      %v1208 = vmul.f32 %v1196, -1.702
      %v1209 = vmul.f32 %v1197, -1.702
      %v1210 = vmul.f32 %v1198, -1.702
      %v1211 = vmul.f32 %v1199, -1.702
      %v1212 = vmul.f32 %v1200, -1.702
      %v1213 = vmul.f32 %v1201, -1.702
      %v1214 = vmul.f32 %v1202, 1.442695
      %v1215 = vpow.pop %v1214
      %v1216 = vmul.f32 %v1203, 1.442695
      %v1217 = vpow.pop %v1216
      %v1218 = vmul.f32 %v1204, 1.442695
      %v1219 = vpow.pop %v1218
      %v1220 = vmul.f32 %v1205, 1.442695
      %v1221 = vpow.pop %v1220
      %v1222 = vmul.f32 %v1206, 1.442695
      %v1223 = vpow.pop %v1222
      %v1224 = vmul.f32 %v1207, 1.442695
      %v1225 = vpow.pop %v1224
      %v1226 = vmul.f32 %v1208, 1.442695
      %v1227 = vpow.pop %v1226
      %v1228 = vmul.f32 %v1209, 1.442695
      %v1229 = vpow.pop %v1228
      %v1230 = vmul.f32 %v1210, 1.442695
      %v1231 = vpow.pop %v1230
      %v1232 = vmul.f32 %v1211, 1.442695
      %v1233 = vpow.pop %v1232
      %v1234 = vmul.f32 %v1212, 1.442695
      %v1235 = vpow.pop %v1234
      %v1236 = vmul.f32 %v1213, 1.442695
      %v1237 = vpow.pop %v1236
      %v1238 = vadd.f32 %v1215, 1.0
      %v1239 = vadd.f32 %v1217, 1.0
      %v1240 = vadd.f32 %v1219, 1.0
      %v1241 = vadd.f32 %v1221, 1.0
      %v1242 = vadd.f32 %v1223, 1.0
      %v1243 = vadd.f32 %v1225, 1.0
      %v1244 = vadd.f32 %v1227, 1.0
      %v1245 = vadd.f32 %v1229, 1.0
      %v1246 = vadd.f32 %v1231, 1.0
      %v1247 = vadd.f32 %v1233, 1.0
      %v1248 = vadd.f32 %v1235, 1.0
      %v1249 = vadd.f32 %v1237, 1.0
      %v1250 = vrcp.pop %v1238
      %v1251 = vrcp.pop %v1239
      %v1252 = vrcp.pop %v1240
      %v1253 = vrcp.pop %v1241
      %v1254 = vrcp.pop %v1242
      %v1255 = vrcp.pop %v1243
      %v1256 = vrcp.pop %v1244
      %v1257 = vrcp.pop %v1245
      %v1258 = vrcp.pop %v1246
      %v1259 = vrcp.pop %v1247
      %v1260 = vrcp.pop %v1248
      %v1261 = vrcp.pop %v1249
      %v1262 = vmul.f32 %v1190, %v1250
      %v1263 = vmul.f32 %v1191, %v1251
      %v1264 = vmul.f32 %v1192, %v1252
      %v1265 = vmul.f32 %v1193, %v1253
      %v1266 = vmul.f32 %v1194, %v1254
      %v1267 = vmul.f32 %v1195, %v1255
      %v1268 = vmul.f32 %v1196, %v1256
      %v1269 = vmul.f32 %v1197, %v1257
      %v1270 = vmul.f32 %v1198, %v1258
      %v1271 = vmul.f32 %v1199, %v1259
      %v1272 = vmul.f32 %v1200, %v1260
      %v1273 = vmul.f32 %v1201, %v1261
      %v1274 = vmul.f32 %v1262, %v589
      %v1275 = vmul.f32 %v1263, %v593
      %v1276 = vmul.f32 %v1264, %v597
      %v1277 = vmul.f32 %v1265, %v601
      %v1278 = vmul.f32 %v1266, %v605
      %v1279 = vmul.f32 %v1267, %v609
      %v1280 = vmul.f32 %v1268, %v589
      %v1281 = vmul.f32 %v1269, %v593
      %v1282 = vmul.f32 %v1270, %v597
      %v1283 = vmul.f32 %v1271, %v601
      %v1284 = vmul.f32 %v1272, %v605
      %v1285 = vmul.f32 %v1273, %v609
      %v1286 = vpack.c.bf16 %v1280, %v1274
      %v1287 = vpack.c.bf16 %v1281, %v1275
      %v1288 = vpack.c.bf16 %v1282, %v1276
      %v1289 = vpack.c.bf16 %v1283, %v1277
      %v1290 = vpack.c.bf16 %v1284, %v1278
      %v1291 = vpack.c.bf16 %v1285, %v1279
      %1292 = vst [vmem:[#allocation2 + $0x8] sm:$0xff] %v1286
      %1293 = vst [vmem:[#allocation2 + $0x10] sm:$0xff] %v1287
      %1294 = vst [vmem:[#allocation2 + $0x18] sm:$0xff] %v1288
      %1295 = vst [vmem:[#allocation2 + $0x20] sm:$0xff] %v1289
      %1296 = vst [vmem:[#allocation2 + $0x28] sm:$0xff] %v1290
      %1297 = vst.msk [vmem:[#allocation2 + $0x30] sm:$0xff] %vm639, %v1291
      %v1298 = vld [vmem:[#allocation2] sm:$0xff]
      %v1299 = vld [vmem:[#allocation2 + $0x8] sm:$0xff]
      %v1300 = vld [vmem:[#allocation2 + $0x10] sm:$0xff]
      %v1301 = vld [vmem:[#allocation2 + $0x18] sm:$0xff]
      %v1302 = vld [vmem:[#allocation2 + $0x20] sm:$0xff]
      %v1303 = vld [vmem:[#allocation2 + $0x28] sm:$0xff]
      %v1304 = vld [vmem:[#allocation2 + $0x30] sm:$0xff]
      %1311 = vrot.lane.b32.xlu0 %v1298, 127
      %v1312 = vpop.permute.xlu0 %1311
      %1313 = vrot.lane.b32.xlu0 %v1299, 127
      %v1314 = vpop.permute.xlu0 %1313
      %1315 = vrot.lane.b32.xlu0 %v1300, 127
      %v1316 = vpop.permute.xlu0 %1315
      %1317 = vrot.lane.b32.xlu0 %v1301, 127
      %v1318 = vpop.permute.xlu0 %1317
      %1319 = vrot.lane.b32.xlu0 %v1302, 127
      %v1320 = vpop.permute.xlu0 %1319
      %1321 = vrot.lane.b32.xlu0 %v1303, 127
      %v1322 = vpop.permute.xlu0 %1321
      %v1323 = vsel %vm666, %v1312, %v1314
      %v1324 = vsel %vm666, %v1314, %v1316
      %v1325 = vsel %vm666, %v1316, %v1318
      %v1326 = vsel %vm666, %v1318, %v1320
      %v1327 = vsel %vm666, %v1320, %v1322
      %1328 = vrot.lane.b32.xlu0 %v1298, 126
      %v1329 = vpop.permute.xlu0 %1328
      %1330 = vrot.lane.b32.xlu0 %v1299, 126
      %v1331 = vpop.permute.xlu0 %1330
      %1332 = vrot.lane.b32.xlu0 %v1300, 126
      %v1333 = vpop.permute.xlu0 %1332
      %1334 = vrot.lane.b32.xlu0 %v1301, 126
      %v1335 = vpop.permute.xlu0 %1334
      %1336 = vrot.lane.b32.xlu0 %v1302, 126
      %v1337 = vpop.permute.xlu0 %1336
      %1338 = vrot.lane.b32.xlu0 %v1303, 126
      %v1339 = vpop.permute.xlu0 %1338
      %v1340 = vsel %vm684, %v1329, %v1331
      %v1341 = vsel %vm684, %v1331, %v1333
      %v1342 = vsel %vm684, %v1333, %v1335
      %v1343 = vsel %vm684, %v1335, %v1337
      %v1344 = vsel %vm684, %v1337, %v1339
      %1346 = vrot.lane.b32.xlu0 %v1298, 110
      %v1347 = vpop.permute.xlu0 %1346
      %1348 = vrot.lane.b32.xlu0 %v1299, 110
      %v1349 = vpop.permute.xlu0 %1348
      %1350 = vrot.lane.b32.xlu0 %v1300, 110
      %v1351 = vpop.permute.xlu0 %1350
      %1352 = vrot.lane.b32.xlu0 %v1301, 110
      %v1353 = vpop.permute.xlu0 %1352
      %1354 = vrot.lane.b32.xlu0 %v1302, 110
      %v1355 = vpop.permute.xlu0 %1354
      %1356 = vrot.lane.b32.xlu0 %v1303, 110
      %v1357 = vpop.permute.xlu0 %1356
      %1358 = vrot.lane.b32.xlu0 %v1304, 110
      %v1359 = vpop.permute.xlu0 %1358
      %v1360 = vsel %vm705, %v1347, %v1349
      %v1361 = vsel %vm705, %v1349, %v1351
      %v1362 = vsel %vm705, %v1351, %v1353
      %v1363 = vsel %vm705, %v1353, %v1355
      %v1364 = vsel %vm705, %v1355, %v1357
      %v1365 = vsel %vm705, %v1357, %v1359
      %1366 = vrot.lane.b32.xlu0 %v1299, 109
      %v1367 = vpop.permute.xlu0 %1366
      %1368 = vrot.lane.b32.xlu0 %v1300, 109
      %v1369 = vpop.permute.xlu0 %1368
      %1370 = vrot.lane.b32.xlu0 %v1301, 109
      %v1371 = vpop.permute.xlu0 %1370
      %1372 = vrot.lane.b32.xlu0 %v1302, 109
      %v1373 = vpop.permute.xlu0 %1372
      %1374 = vrot.lane.b32.xlu0 %v1303, 109
      %v1375 = vpop.permute.xlu0 %1374
      %1376 = vrot.lane.b32.xlu0 %v1304, 109
      %v1377 = vpop.permute.xlu0 %1376
      %v1378 = vsel %vm724, %v1367, %v1369
      %v1379 = vsel %vm724, %v1369, %v1371
      %v1380 = vsel %vm724, %v1371, %v1373
      %v1381 = vsel %vm724, %v1373, %v1375
      %v1382 = vsel %vm724, %v1375, %v1377
      %1383 = vrot.lane.b32.xlu0 %v1299, 108
      %v1384 = vpop.permute.xlu0 %1383
      %1385 = vrot.lane.b32.xlu0 %v1300, 108
      %v1386 = vpop.permute.xlu0 %1385
      %1387 = vrot.lane.b32.xlu0 %v1301, 108
      %v1388 = vpop.permute.xlu0 %1387
      %1389 = vrot.lane.b32.xlu0 %v1302, 108
      %v1390 = vpop.permute.xlu0 %1389
      %1391 = vrot.lane.b32.xlu0 %v1303, 108
      %v1392 = vpop.permute.xlu0 %1391
      %1393 = vrot.lane.b32.xlu0 %v1304, 108
      %v1394 = vpop.permute.xlu0 %1393
      %v1395 = vsel %vm742, %v1384, %v1386
      %v1396 = vsel %vm742, %v1386, %v1388
      %v1397 = vsel %vm742, %v1388, %v1390
      %v1398 = vsel %vm742, %v1390, %v1392
      %v1399 = vsel %vm742, %v1392, %v1394
      %1400 = vrot.lane.b32.xlu0 %v1299, 92
      %v1401 = vpop.permute.xlu0 %1400
      %1402 = vrot.lane.b32.xlu0 %v1300, 92
      %v1403 = vpop.permute.xlu0 %1402
      %1404 = vrot.lane.b32.xlu0 %v1301, 92
      %v1405 = vpop.permute.xlu0 %1404
      %1406 = vrot.lane.b32.xlu0 %v1302, 92
      %v1407 = vpop.permute.xlu0 %1406
      %1408 = vrot.lane.b32.xlu0 %v1303, 92
      %v1409 = vpop.permute.xlu0 %1408
      %1410 = vrot.lane.b32.xlu0 %v1304, 92
      %v1411 = vpop.permute.xlu0 %1410
      %v1412 = vsel %vm760, %v1401, %v1403
      %v1413 = vsel %vm760, %v1403, %v1405
      %v1414 = vsel %vm760, %v1405, %v1407
      %v1415 = vsel %vm760, %v1407, %v1409
      %v1416 = vsel %vm760, %v1409, %v1411
      %1417 = vrot.lane.b32.xlu0 %v1299, 91
      %v1418 = vpop.permute.xlu0 %1417
      %1419 = vrot.lane.b32.xlu0 %v1300, 91
      %v1420 = vpop.permute.xlu0 %1419
      %1421 = vrot.lane.b32.xlu0 %v1301, 91
      %v1422 = vpop.permute.xlu0 %1421
      %1423 = vrot.lane.b32.xlu0 %v1302, 91
      %v1424 = vpop.permute.xlu0 %1423
      %1425 = vrot.lane.b32.xlu0 %v1303, 91
      %v1426 = vpop.permute.xlu0 %1425
      %1427 = vrot.lane.b32.xlu0 %v1304, 91
      %v1428 = vpop.permute.xlu0 %1427
      %v1429 = vsel %vm778, %v1418, %v1420
      %v1430 = vsel %vm778, %v1420, %v1422
      %v1431 = vsel %vm778, %v1422, %v1424
      %v1432 = vsel %vm778, %v1424, %v1426
      %v1433 = vsel %vm778, %v1426, %v1428
      %1434 = vrot.lane.b32.xlu0 %v1299, 90
      %v1435 = vpop.permute.xlu0 %1434
      %1436 = vrot.lane.b32.xlu0 %v1300, 90
      %v1437 = vpop.permute.xlu0 %1436
      %1438 = vrot.lane.b32.xlu0 %v1301, 90
      %v1439 = vpop.permute.xlu0 %1438
      %1440 = vrot.lane.b32.xlu0 %v1302, 90
      %v1441 = vpop.permute.xlu0 %1440
      %1442 = vrot.lane.b32.xlu0 %v1303, 90
      %v1443 = vpop.permute.xlu0 %1442
      %1444 = vrot.lane.b32.xlu0 %v1304, 90
      %v1445 = vpop.permute.xlu0 %1444
      %v1446 = vsel %vm796, %v1435, %v1437
      %v1447 = vsel %vm796, %v1437, %v1439
      %v1448 = vsel %vm796, %v1439, %v1441
      %v1449 = vsel %vm796, %v1441, %v1443
      %v1450 = vsel %vm796, %v1443, %v1445
      %v1451 = vld [vmem:[%s7] sm:$0xff]
      %v1452 = vld [vmem:[%s7 + $0x8] sm:$0xff]
      %v1455 = vunpack.c.l.b16 %v1451
      %v1456 = vunpack.c.h.b16 %v1451
      %v1457 = vunpack.c.l.b16 %v1452
      %v1458 = vunpack.c.h.b16 %v1452
      %v1459 = vpack.c.b16 %v1457, %v1455
      %v1460 = vpack.c.b16 %v1458, %v1456
      %1462 = vrot.lane.b32.xlu0 %v1298, 19
      %v1463 = vpop.permute.xlu0 %1462
      %1464 = vrot.lane.b32.xlu0 %v1299, 19
      %v1465 = vpop.permute.xlu0 %1464
      %1466 = vrot.lane.b32.xlu0 %v1300, 19
      %v1467 = vpop.permute.xlu0 %1466
      %1468 = vrot.lane.b32.xlu0 %v1301, 19
      %v1469 = vpop.permute.xlu0 %1468
      %1470 = vrot.lane.b32.xlu0 %v1302, 19
      %v1471 = vpop.permute.xlu0 %1470
      %1472 = vrot.lane.b32.xlu0 %v1303, 19
      %v1473 = vpop.permute.xlu0 %1472
      %1474 = vrot.lane.b32.xlu0 %v1323, 19
      %v1475 = vpop.permute.xlu0 %1474
      %1476 = vrot.lane.b32.xlu0 %v1324, 19
      %v1477 = vpop.permute.xlu0 %1476
      %1478 = vrot.lane.b32.xlu0 %v1325, 19
      %v1479 = vpop.permute.xlu0 %1478
      %1480 = vrot.lane.b32.xlu0 %v1326, 19
      %v1481 = vpop.permute.xlu0 %1480
      %1482 = vrot.lane.b32.xlu0 %v1327, 19
      %v1483 = vpop.permute.xlu0 %1482
      %1484 = vrot.lane.b32.xlu0 %v1322, 19
      %v1485 = vpop.permute.xlu0 %1484
      %1486 = vrot.lane.b32.xlu0 %v1340, 19
      %v1487 = vpop.permute.xlu0 %1486
      %1488 = vrot.lane.b32.xlu0 %v1341, 19
      %v1489 = vpop.permute.xlu0 %1488
      %1490 = vrot.lane.b32.xlu0 %v1342, 19
      %v1491 = vpop.permute.xlu0 %1490
      %1492 = vrot.lane.b32.xlu0 %v1343, 19
      %v1493 = vpop.permute.xlu0 %1492
      %1494 = vrot.lane.b32.xlu0 %v1344, 19
      %v1495 = vpop.permute.xlu0 %1494
      %1496 = vrot.lane.b32.xlu0 %v1339, 19
      %v1497 = vpop.permute.xlu0 %1496
      %1498 = vrot.lane.b32.xlu0 %v1360, 19
      %v1499 = vpop.permute.xlu0 %1498
      %1500 = vrot.lane.b32.xlu0 %v1361, 19
      %v1501 = vpop.permute.xlu0 %1500
      %1502 = vrot.lane.b32.xlu0 %v1362, 19
      %v1503 = vpop.permute.xlu0 %1502
      %1504 = vrot.lane.b32.xlu0 %v1363, 19
      %v1505 = vpop.permute.xlu0 %1504
      %1506 = vrot.lane.b32.xlu0 %v1364, 19
      %v1507 = vpop.permute.xlu0 %1506
      %1508 = vrot.lane.b32.xlu0 %v1365, 19
      %v1509 = vpop.permute.xlu0 %1508
      %1510 = vrot.lane.b32.xlu0 %v1367, 19
      %v1511 = vpop.permute.xlu0 %1510
      %1512 = vrot.lane.b32.xlu0 %v1378, 19
      %v1513 = vpop.permute.xlu0 %1512
      %1514 = vrot.lane.b32.xlu0 %v1379, 19
      %v1515 = vpop.permute.xlu0 %1514
      %1516 = vrot.lane.b32.xlu0 %v1380, 19
      %v1517 = vpop.permute.xlu0 %1516
      %1518 = vrot.lane.b32.xlu0 %v1381, 19
      %v1519 = vpop.permute.xlu0 %1518
      %1520 = vrot.lane.b32.xlu0 %v1382, 19
      %v1521 = vpop.permute.xlu0 %1520
      %1522 = vrot.lane.b32.xlu0 %v1384, 19
      %v1523 = vpop.permute.xlu0 %1522
      %1524 = vrot.lane.b32.xlu0 %v1395, 19
      %v1525 = vpop.permute.xlu0 %1524
      %1526 = vrot.lane.b32.xlu0 %v1396, 19
      %v1527 = vpop.permute.xlu0 %1526
      %1528 = vrot.lane.b32.xlu0 %v1397, 19
      %v1529 = vpop.permute.xlu0 %1528
      %1530 = vrot.lane.b32.xlu0 %v1398, 19
      %v1531 = vpop.permute.xlu0 %1530
      %1532 = vrot.lane.b32.xlu0 %v1399, 19
      %v1533 = vpop.permute.xlu0 %1532
      %1534 = vrot.lane.b32.xlu0 %v1401, 19
      %v1535 = vpop.permute.xlu0 %1534
      %1536 = vrot.lane.b32.xlu0 %v1412, 19
      %v1537 = vpop.permute.xlu0 %1536
      %1538 = vrot.lane.b32.xlu0 %v1413, 19
      %v1539 = vpop.permute.xlu0 %1538
      %1540 = vrot.lane.b32.xlu0 %v1414, 19
      %v1541 = vpop.permute.xlu0 %1540
      %1542 = vrot.lane.b32.xlu0 %v1415, 19
      %v1543 = vpop.permute.xlu0 %1542
      %1544 = vrot.lane.b32.xlu0 %v1416, 19
      %v1545 = vpop.permute.xlu0 %1544
      %1546 = vrot.lane.b32.xlu0 %v1418, 19
      %v1547 = vpop.permute.xlu0 %1546
      %1548 = vrot.lane.b32.xlu0 %v1429, 19
      %v1549 = vpop.permute.xlu0 %1548
      %1550 = vrot.lane.b32.xlu0 %v1430, 19
      %v1551 = vpop.permute.xlu0 %1550
      %1552 = vrot.lane.b32.xlu0 %v1431, 19
      %v1553 = vpop.permute.xlu0 %1552
      %1554 = vrot.lane.b32.xlu0 %v1432, 19
      %v1555 = vpop.permute.xlu0 %1554
      %1556 = vrot.lane.b32.xlu0 %v1433, 19
      %v1557 = vpop.permute.xlu0 %1556
      %1558 = vrot.lane.b32.xlu0 %v1435, 19
      %v1559 = vpop.permute.xlu0 %1558
      %1560 = vrot.lane.b32.xlu0 %v1446, 19
      %v1561 = vpop.permute.xlu0 %1560
      %1562 = vrot.lane.b32.xlu0 %v1447, 19
      %v1563 = vpop.permute.xlu0 %1562
      %1564 = vrot.lane.b32.xlu0 %v1448, 19
      %v1565 = vpop.permute.xlu0 %1564
      %1566 = vrot.lane.b32.xlu0 %v1449, 19
      %v1567 = vpop.permute.xlu0 %1566
      %1568 = vrot.lane.b32.xlu0 %v1450, 19
      %v1569 = vpop.permute.xlu0 %1568
      %v1570 = vsel %vm921, %v1463, %v1465
      %v1571 = vsel %vm921, %v1465, %v1467
      %v1572 = vsel %vm921, %v1467, %v1469
      %v1573 = vsel %vm921, %v1469, %v1471
      %v1574 = vsel %vm921, %v1471, %v1473
      %v1575 = vsel %vm921, %v1475, %v1477
      %v1576 = vsel %vm921, %v1477, %v1479
      %v1577 = vsel %vm921, %v1479, %v1481
      %v1578 = vsel %vm921, %v1481, %v1483
      %v1579 = vsel %vm921, %v1483, %v1485
      %v1580 = vsel %vm921, %v1487, %v1489
      %v1581 = vsel %vm921, %v1489, %v1491
      %v1582 = vsel %vm921, %v1491, %v1493
      %v1583 = vsel %vm921, %v1493, %v1495
      %v1584 = vsel %vm921, %v1495, %v1497
      %v1585 = vsel %vm921, %v1499, %v1501
      %v1586 = vsel %vm921, %v1501, %v1503
      %v1587 = vsel %vm921, %v1503, %v1505
      %v1588 = vsel %vm921, %v1505, %v1507
      %v1589 = vsel %vm921, %v1507, %v1509
      %v1590 = vsel %vm921, %v1511, %v1513
      %v1591 = vsel %vm921, %v1513, %v1515
      %v1592 = vsel %vm921, %v1515, %v1517
      %v1593 = vsel %vm921, %v1517, %v1519
      %v1594 = vsel %vm921, %v1519, %v1521
      %v1595 = vsel %vm921, %v1523, %v1525
      %v1596 = vsel %vm921, %v1525, %v1527
      %v1597 = vsel %vm921, %v1527, %v1529
      %v1598 = vsel %vm921, %v1529, %v1531
      %v1599 = vsel %vm921, %v1531, %v1533
      %v1600 = vsel %vm921, %v1535, %v1537
      %v1601 = vsel %vm921, %v1537, %v1539
      %v1602 = vsel %vm921, %v1539, %v1541
      %v1603 = vsel %vm921, %v1541, %v1543
      %v1604 = vsel %vm921, %v1543, %v1545
      %v1605 = vsel %vm921, %v1547, %v1549
      %v1606 = vsel %vm921, %v1549, %v1551
      %v1607 = vsel %vm921, %v1551, %v1553
      %v1608 = vsel %vm921, %v1553, %v1555
      %v1609 = vsel %vm921, %v1555, %v1557
      %v1610 = vsel %vm921, %v1559, %v1561
      %v1611 = vsel %vm921, %v1561, %v1563
      %v1612 = vsel %vm921, %v1563, %v1565
      %v1613 = vsel %vm921, %v1565, %v1567
      %v1614 = vsel %vm921, %v1567, %v1569
      %v1670 = vsel %vm1021, %v1460, 0
      %1672 = vmatprep.subr.bf16.mxu0 %v1571
      %1673 = vmatpush1.bf16.msra.mxu0 %v1570
      %1674 = vmatprep.subr.bf16.mxu0 %v1576
      %1675 = vmatpush1.bf16.msra.mxu0 %v1575
      %1676 = vmatprep.subr.bf16.mxu0 %v1581
      %1677 = vmatpush1.bf16.msra.mxu0 %v1580
      %1678 = vmatprep.subr.bf16.mxu0 %v1586
      %1679 = vmatpush1.bf16.msra.mxu0 %v1585
      %1680 = vmatprep.subr.bf16.mxu0 %v1591
      %1681 = vmatpush1.bf16.msra.mxu0 %v1590
      %1682 = vmatprep.subr.bf16.mxu0 %v1596
      %1683 = vmatpush1.bf16.msra.mxu0 %v1595
      %1684 = vmatprep.subr.bf16.mxu0 %v1601
      %1685 = vmatpush1.bf16.msra.mxu0 %v1600
      %1686 = vmatprep.subr.bf16.mxu0 %v1606
      %1687 = vmatpush1.bf16.msra.mxu0 %v1605
      %1688 = vmatprep.subr.bf16.mxu0 %v1611
      %1689 = vmatpush1.bf16.msra.mxu0 %v1610
      %1690 = vmatprep.subr.bf16.mxu0 0
      %1691 = vmatpush1.bf16.msra.mxu0 0
      %1692 = vmatprep.subr.bf16.mxu0 0
      %1693 = vmatpush1.bf16.msra.mxu0 0
      %1694 = vmatprep.subr.bf16.mxu0 0
      %1695 = vmatpush1.bf16.msra.mxu0 0
      %1696 = vmatprep.subr.bf16.mxu0 0
      %1697 = vmatpush1.bf16.msra.mxu0 0
      %1698 = vmatprep.subr.bf16.mxu0 0
      %1699 = vmatpush1.bf16.msra.mxu0 0
      %1700 = vmatprep.subr.bf16.mxu0 0
      %1701 = vmatpush1.bf16.msra.mxu0 0
      %1702 = vmatprep.subr.bf16.mxu0 0
      %1703 = vmatpush1.bf16.msra.mxu0 0
      %1704 = vmatprep.mubr.bf16.mxu0 %v1670
      %1705 = vmatmul.mubr.bf16.gmra.mrb[0].mxu0 %v1459
      %v1706 = vpop.f32.mrb[0].mxu0
      %v1707 = vadd.f32 %v452, %v1706
      %v1708 = vpop.f32.mrb[0].mxu0
      %v1709 = vadd.f32 %v453, %v1708
      %v1710 = vpop.f32.mrb[0].mxu0
      %v1711 = vadd.f32 %v458, %v1710
      %v1712 = vpop.f32.mrb[0].mxu0
      %v1713 = vadd.f32 %v459, %v1712
      %1714 = vdwg.mxu0
      %1715 = vmatprep.subr.bf16.mxu0 %v1573
      %1716 = vmatpush1.bf16.msra.mxu0 %v1572
      %1717 = vmatprep.subr.bf16.mxu0 %v1578
      %1718 = vmatpush1.bf16.msra.mxu0 %v1577
      %1719 = vmatprep.subr.bf16.mxu0 %v1583
      %1720 = vmatpush1.bf16.msra.mxu0 %v1582
      %1721 = vmatprep.subr.bf16.mxu0 %v1588
      %1722 = vmatpush1.bf16.msra.mxu0 %v1587
      %1723 = vmatprep.subr.bf16.mxu0 %v1593
      %1724 = vmatpush1.bf16.msra.mxu0 %v1592
      %1725 = vmatprep.subr.bf16.mxu0 %v1598
      %1726 = vmatpush1.bf16.msra.mxu0 %v1597
      %1727 = vmatprep.subr.bf16.mxu0 %v1603
      %1728 = vmatpush1.bf16.msra.mxu0 %v1602
      %1729 = vmatprep.subr.bf16.mxu0 %v1608
      %1730 = vmatpush1.bf16.msra.mxu0 %v1607
      %1731 = vmatprep.subr.bf16.mxu0 %v1613
      %1732 = vmatpush1.bf16.msra.mxu0 %v1612
      %1733 = vmatprep.subr.bf16.mxu0 0
      %1734 = vmatpush1.bf16.msra.mxu0 0
      %1735 = vmatprep.subr.bf16.mxu0 0
      %1736 = vmatpush1.bf16.msra.mxu0 0
      %1737 = vmatprep.subr.bf16.mxu0 0
      %1738 = vmatpush1.bf16.msra.mxu0 0
      %1739 = vmatprep.subr.bf16.mxu0 0
      %1740 = vmatpush1.bf16.msra.mxu0 0
      %1741 = vmatprep.subr.bf16.mxu0 0
      %1742 = vmatpush1.bf16.msra.mxu0 0
      %1743 = vmatprep.subr.bf16.mxu0 0
      %1744 = vmatpush1.bf16.msra.mxu0 0
      %1745 = vmatprep.subr.bf16.mxu0 0
      %1746 = vmatpush1.bf16.msra.mxu0 0
      %1747 = vmatprep.mubr.bf16.mxu0 %v1670
      %1748 = vmatmul.mubr.bf16.gmra.mrb[0].mxu0 %v1459
      %v1749 = vpop.f32.mrb[0].mxu0
      %v1750 = vadd.f32 %v454, %v1749
      %v1751 = vpop.f32.mrb[0].mxu0
      %v1752 = vadd.f32 %v455, %v1751
      %v1753 = vpop.f32.mrb[0].mxu0
      %v1754 = vadd.f32 %v460, %v1753
      %v1755 = vpop.f32.mrb[0].mxu0
      %v1756 = vadd.f32 %v461, %v1755
      %1757 = vdwg.mxu0
      %1758 = vmatprep.subr.bf16.mxu0 %v1473
      %1759 = vmatpush1.bf16.msra.mxu0 %v1574
      %1760 = vmatprep.subr.bf16.mxu0 %v1485
      %1761 = vmatpush1.bf16.msra.mxu0 %v1579
      %1762 = vmatprep.subr.bf16.mxu0 %v1497
      %1763 = vmatpush1.bf16.msra.mxu0 %v1584
      %1764 = vmatprep.subr.bf16.mxu0 %v1509
      %1765 = vmatpush1.bf16.msra.mxu0 %v1589
      %1766 = vmatprep.subr.bf16.mxu0 %v1521
      %1767 = vmatpush1.bf16.msra.mxu0 %v1594
      %1768 = vmatprep.subr.bf16.mxu0 %v1533
      %1769 = vmatpush1.bf16.msra.mxu0 %v1599
      %1770 = vmatprep.subr.bf16.mxu0 %v1545
      %1771 = vmatpush1.bf16.msra.mxu0 %v1604
      %1772 = vmatprep.subr.bf16.mxu0 %v1557
      %1773 = vmatpush1.bf16.msra.mxu0 %v1609
      %1774 = vmatprep.subr.bf16.mxu0 %v1569
      %1775 = vmatpush1.bf16.msra.mxu0 %v1614
      %1776 = vmatprep.subr.bf16.mxu0 0
      %1777 = vmatpush1.bf16.msra.mxu0 0
      %1778 = vmatprep.subr.bf16.mxu0 0
      %1779 = vmatpush1.bf16.msra.mxu0 0
      %1780 = vmatprep.subr.bf16.mxu0 0
      %1781 = vmatpush1.bf16.msra.mxu0 0
      %1782 = vmatprep.subr.bf16.mxu0 0
      %1783 = vmatpush1.bf16.msra.mxu0 0
      %1784 = vmatprep.subr.bf16.mxu0 0
      %1785 = vmatpush1.bf16.msra.mxu0 0
      %1786 = vmatprep.subr.bf16.mxu0 0
      %1787 = vmatpush1.bf16.msra.mxu0 0
      %1788 = vmatprep.subr.bf16.mxu0 0
      %1789 = vmatpush1.bf16.msra.mxu0 0
      %1790 = vmatprep.mubr.bf16.mxu0 %v1670
      %1791 = vmatmul.mubr.bf16.gmra.mrb[0].mxu0 %v1459
      %v1792 = vpop.f32.mrb[0].mxu0
      %v1793 = vadd.f32 %v456, %v1792
      %v1794 = vpop.f32.mrb[0].mxu0
      %v1795 = vadd.f32 %v457, %v1794
      %v1796 = vpop.f32.mrb[0].mxu0
      %v1797 = vadd.f32 %v462, %v1796
      %v1798 = vpop.f32.mrb[0].mxu0
      %v1799 = vadd.f32 %v463, %v1798
      %1800 = vdwg.mxu0
      %v1801 = vld [vmem:[%s8] sm:$0xff]
      %v1802 = vld [vmem:[%s8 + $0x8] sm:$0xff]
      %1804 = vset.pattern.permute.xlu0 0
      %1805 = vperm.xlu0 %1804, %v1801
      %v1806 = vpop.permute.xlu0 %1805
      %1809 = vset.pattern.permute.xlu0 0
      %1810 = vperm.xlu0 %1809, %v1802
      %v1811 = vpop.permute.xlu0 %1810
      %v1813 = vmul.f32 %v1707, %v1806
      %v1814 = vmul.f32 %v1709, %v1806
      %v1815 = vmul.f32 %v1750, %v1806
      %v1816 = vmul.f32 %v1752, %v1806
      %v1817 = vmul.f32 %v1793, %v1806
      %v1818 = vmul.f32 %v1795, %v1806
      %v1819 = vmul.f32 %v1711, %v1811
      %v1820 = vmul.f32 %v1713, %v1811
      %v1821 = vmul.f32 %v1754, %v1811
      %v1822 = vmul.f32 %v1756, %v1811
      %v1823 = vmul.f32 %v1797, %v1811
      %v1824 = vmul.f32 %v1799, %v1811
      %v1825 = vld [vmem:[%s9] sm:$0xff]
      %v1826 = vld [vmem:[%s9 + $0x8] sm:$0xff]
      %1828 = vset.pattern.permute.xlu0 0
      %1829 = vperm.xlu0 %1828, %v1825
      %v1830 = vpop.permute.xlu0 %1829
      %1833 = vset.pattern.permute.xlu0 0
      %1834 = vperm.xlu0 %1833, %v1826
      %v1835 = vpop.permute.xlu0 %1834
      %v1837 = vadd.f32 %v1813, %v1830
      %v1838 = vadd.f32 %v1814, %v1830
      %v1839 = vadd.f32 %v1815, %v1830
      %v1840 = vadd.f32 %v1816, %v1830
      %v1841 = vadd.f32 %v1817, %v1830
      %v1842 = vadd.f32 %v1818, %v1830
      %v1843 = vadd.f32 %v1819, %v1835
      %v1844 = vadd.f32 %v1820, %v1835
      %v1845 = vadd.f32 %v1821, %v1835
      %v1846 = vadd.f32 %v1822, %v1835
      %v1847 = vadd.f32 %v1823, %v1835
      %v1848 = vadd.f32 %v1824, %v1835
      %v1849 = vmul.f32 %v1837, %v589
      %v1850 = vmul.f32 %v1838, %v593
      %v1851 = vmul.f32 %v1839, %v597
      %v1852 = vmul.f32 %v1840, %v601
      %v1853 = vmul.f32 %v1841, %v605
      %v1854 = vmul.f32 %v1842, %v609
      %v1855 = vmul.f32 %v1843, %v589
      %v1856 = vmul.f32 %v1844, %v593
      %v1857 = vmul.f32 %v1845, %v597
      %v1858 = vmul.f32 %v1846, %v601
      %v1859 = vmul.f32 %v1847, %v605
      %v1860 = vmul.f32 %v1848, %v609
      %v1861 = vpack.c.bf16 %v1855, %v1849
      %v1862 = vpack.c.bf16 %v1856, %v1850
      %v1863 = vpack.c.bf16 %v1857, %v1851
      %v1864 = vpack.c.bf16 %v1858, %v1852
      %v1865 = vpack.c.bf16 %v1859, %v1853
      %v1866 = vpack.c.bf16 %v1860, %v1854
      %v1867 = vld [vmem:[%s10] sm:$0xf]
      %v1868 = vld [vmem:[%s10 + $0x4] sm:$0xf]
      %v1869 = vld [vmem:[%s10 + $0x8] sm:$0xf]
      %v1870 = vld [vmem:[%s10 + $0xc] sm:$0xf]
      %v1875 = vunpack.c.l.b16 %v1867
      %v1876 = vunpack.c.l.b16 %v1868
      %v1877 = vunpack.c.l.b16 %v1869
      %v1878 = vunpack.c.l.b16 %v1870
      %v1879 = vpack.c.b16 %v1876, %v1875
      %v1880 = vpack.c.b16 %v1878, %v1877
      %v1882 = vsel %vm1021, %v1879, 0
      %v1885 = vsel %vm1021, %v1880, 0
      %1887 = vmatprep.subr.bf16.mxu0 %v1862
      %1888 = vmatpush1.bf16.msra.mxu0 %v1861
      %1889 = vmatprep.subr.bf16.mxu0 0
      %1890 = vmatpush1.bf16.msra.mxu0 0
      %1891 = vmatprep.subr.bf16.mxu0 0
      %1892 = vmatpush1.bf16.msra.mxu0 0
      %1893 = vmatprep.subr.bf16.mxu0 0
      %1894 = vmatpush1.bf16.msra.mxu0 0
      %1895 = vmatprep.subr.bf16.mxu0 0
      %1896 = vmatpush1.bf16.msra.mxu0 0
      %1897 = vmatprep.subr.bf16.mxu0 0
      %1898 = vmatpush1.bf16.msra.mxu0 0
      %1899 = vmatprep.subr.bf16.mxu0 0
      %1900 = vmatpush1.bf16.msra.mxu0 0
      %1901 = vmatprep.subr.bf16.mxu0 0
      %1902 = vmatpush1.bf16.msra.mxu0 0
      %1903 = vmatprep.subr.bf16.mxu0 0
      %1904 = vmatpush1.bf16.msra.mxu0 0
      %1905 = vmatprep.subr.bf16.mxu0 0
      %1906 = vmatpush1.bf16.msra.mxu0 0
      %1907 = vmatprep.subr.bf16.mxu0 0
      %1908 = vmatpush1.bf16.msra.mxu0 0
      %1909 = vmatprep.subr.bf16.mxu0 0
      %1910 = vmatpush1.bf16.msra.mxu0 0
      %1911 = vmatprep.subr.bf16.mxu0 0
      %1912 = vmatpush1.bf16.msra.mxu0 0
      %1913 = vmatprep.subr.bf16.mxu0 0
      %1914 = vmatpush1.bf16.msra.mxu0 0
      %1915 = vmatprep.subr.bf16.mxu0 0
      %1916 = vmatpush1.bf16.msra.mxu0 0
      %1917 = vmatprep.subr.bf16.mxu0 0
      %1918 = vmatpush1.bf16.msra.mxu0 0
      %1919 = vmatprep.mubr.bf16.mxu0 0
      %1920 = vmatmul.mubr.bf16.gmra.mrb[0].mxu0 %v1882
      %v1921 = vpop.f32.mrb[0].mxu0
      %v1922 = vadd.f32 0.0, %v1921
      %v1923 = vpop.f32.mrb[0].mxu0
      %v1924 = vadd.f32 0.0, %v1923
      %v1925 = vpop.f32.mrb[0].mxu0
      %v1926 = vadd.f32 0.0, %v1925
      %v1927 = vpop.f32.mrb[0].mxu0
      %v1928 = vadd.f32 0.0, %v1927
      %1929 = vmatprep.mubr.bf16.mxu0 0
      %1930 = vmatmul.mubr.bf16.gmra.mrb[0].mxu0 %v1885
      %v1931 = vpop.f32.mrb[0].mxu0
      %v1932 = vadd.f32 0.0, %v1931
      %v1933 = vpop.f32.mrb[0].mxu0
      %v1934 = vadd.f32 0.0, %v1933
      %v1935 = vpop.f32.mrb[0].mxu0
      %v1936 = vadd.f32 0.0, %v1935
      %v1937 = vpop.f32.mrb[0].mxu0
      %v1938 = vadd.f32 0.0, %v1937
      %1939 = vdwg.mxu0
      %1940 = vmatprep.subr.bf16.mxu0 %v1864
      %1941 = vmatpush1.bf16.msra.mxu0 %v1863
      %1942 = vmatprep.subr.bf16.mxu0 0
      %1943 = vmatpush1.bf16.msra.mxu0 0
      %1944 = vmatprep.subr.bf16.mxu0 0
      %1945 = vmatpush1.bf16.msra.mxu0 0
      %1946 = vmatprep.subr.bf16.mxu0 0
      %1947 = vmatpush1.bf16.msra.mxu0 0
      %1948 = vmatprep.subr.bf16.mxu0 0
      %1949 = vmatpush1.bf16.msra.mxu0 0
      %1950 = vmatprep.subr.bf16.mxu0 0
      %1951 = vmatpush1.bf16.msra.mxu0 0
      %1952 = vmatprep.subr.bf16.mxu0 0
      %1953 = vmatpush1.bf16.msra.mxu0 0
      %1954 = vmatprep.subr.bf16.mxu0 0
      %1955 = vmatpush1.bf16.msra.mxu0 0
      %1956 = vmatprep.subr.bf16.mxu0 0
      %1957 = vmatpush1.bf16.msra.mxu0 0
      %1958 = vmatprep.subr.bf16.mxu0 0
      %1959 = vmatpush1.bf16.msra.mxu0 0
      %1960 = vmatprep.subr.bf16.mxu0 0
      %1961 = vmatpush1.bf16.msra.mxu0 0
      %1962 = vmatprep.subr.bf16.mxu0 0
      %1963 = vmatpush1.bf16.msra.mxu0 0
      %1964 = vmatprep.subr.bf16.mxu0 0
      %1965 = vmatpush1.bf16.msra.mxu0 0
      %1966 = vmatprep.subr.bf16.mxu0 0
      %1967 = vmatpush1.bf16.msra.mxu0 0
      %1968 = vmatprep.subr.bf16.mxu0 0
      %1969 = vmatpush1.bf16.msra.mxu0 0
      %1970 = vmatprep.subr.bf16.mxu0 0
      %1971 = vmatpush1.bf16.msra.mxu0 0
      %1972 = vmatprep.mubr.bf16.mxu0 0
      %1973 = vmatmul.mubr.bf16.gmra.mrb[0].mxu0 %v1882
      %v1974 = vpop.f32.mrb[0].mxu0
      %v1975 = vadd.f32 0.0, %v1974
      %v1976 = vpop.f32.mrb[0].mxu0
      %v1977 = vadd.f32 0.0, %v1976
      %v1978 = vpop.f32.mrb[0].mxu0
      %v1979 = vadd.f32 0.0, %v1978
      %v1980 = vpop.f32.mrb[0].mxu0
      %v1981 = vadd.f32 0.0, %v1980
      %1982 = vmatprep.mubr.bf16.mxu0 0
      %1983 = vmatmul.mubr.bf16.gmra.mrb[0].mxu0 %v1885
      %v1984 = vpop.f32.mrb[0].mxu0
      %v1985 = vadd.f32 0.0, %v1984
      %v1986 = vpop.f32.mrb[0].mxu0
      %v1987 = vadd.f32 0.0, %v1986
      %v1988 = vpop.f32.mrb[0].mxu0
      %v1989 = vadd.f32 0.0, %v1988
      %v1990 = vpop.f32.mrb[0].mxu0
      %v1991 = vadd.f32 0.0, %v1990
      %1992 = vdwg.mxu0
      %1993 = vmatprep.subr.bf16.mxu0 %v1866
      %1994 = vmatpush1.bf16.msra.mxu0 %v1865
      %1995 = vmatprep.subr.bf16.mxu0 0
      %1996 = vmatpush1.bf16.msra.mxu0 0
      %1997 = vmatprep.subr.bf16.mxu0 0
      %1998 = vmatpush1.bf16.msra.mxu0 0
      %1999 = vmatprep.subr.bf16.mxu0 0
      %2000 = vmatpush1.bf16.msra.mxu0 0
      %2001 = vmatprep.subr.bf16.mxu0 0
      %2002 = vmatpush1.bf16.msra.mxu0 0
      %2003 = vmatprep.subr.bf16.mxu0 0
      %2004 = vmatpush1.bf16.msra.mxu0 0
      %2005 = vmatprep.subr.bf16.mxu0 0
      %2006 = vmatpush1.bf16.msra.mxu0 0
      %2007 = vmatprep.subr.bf16.mxu0 0
      %2008 = vmatpush1.bf16.msra.mxu0 0
      %2009 = vmatprep.subr.bf16.mxu0 0
      %2010 = vmatpush1.bf16.msra.mxu0 0
      %2011 = vmatprep.subr.bf16.mxu0 0
      %2012 = vmatpush1.bf16.msra.mxu0 0
      %2013 = vmatprep.subr.bf16.mxu0 0
      %2014 = vmatpush1.bf16.msra.mxu0 0
      %2015 = vmatprep.subr.bf16.mxu0 0
      %2016 = vmatpush1.bf16.msra.mxu0 0
      %2017 = vmatprep.subr.bf16.mxu0 0
      %2018 = vmatpush1.bf16.msra.mxu0 0
      %2019 = vmatprep.subr.bf16.mxu0 0
      %2020 = vmatpush1.bf16.msra.mxu0 0
      %2021 = vmatprep.subr.bf16.mxu0 0
      %2022 = vmatpush1.bf16.msra.mxu0 0
      %2023 = vmatprep.subr.bf16.mxu0 0
      %2024 = vmatpush1.bf16.msra.mxu0 0
      %2025 = vmatprep.mubr.bf16.mxu0 0
      %2026 = vmatmul.mubr.bf16.gmra.mrb[0].mxu0 %v1882
      %v2027 = vpop.f32.mrb[0].mxu0
      %v2028 = vadd.f32 0.0, %v2027
      %v2029 = vpop.f32.mrb[0].mxu0
      %v2030 = vadd.f32 0.0, %v2029
      %v2031 = vpop.f32.mrb[0].mxu0
      %v2032 = vadd.f32 0.0, %v2031
      %v2033 = vpop.f32.mrb[0].mxu0
      %v2034 = vadd.f32 0.0, %v2033
      %2035 = vmatprep.mubr.bf16.mxu0 0
      %2036 = vmatmul.mubr.bf16.gmra.mrb[0].mxu0 %v1885
      %v2037 = vpop.f32.mrb[0].mxu0
      %v2038 = vadd.f32 0.0, %v2037
      %v2039 = vpop.f32.mrb[0].mxu0
      %v2040 = vadd.f32 0.0, %v2039
      %v2041 = vpop.f32.mrb[0].mxu0
      %v2042 = vadd.f32 0.0, %v2041
      %v2043 = vpop.f32.mrb[0].mxu0
      %v2044 = vadd.f32 0.0, %v2043
      %2045 = vdwg.mxu0
      %2046 = vst [vmem:[#allocation4 + $0x8] sm:$0xff] %v1932
      %2047 = vst [vmem:[#allocation4 + $0x10] sm:$0xff] %v1934
      %2048 = vst [vmem:[#allocation4 + $0x18] sm:$0xff] %v1985
      %2049 = vst [vmem:[#allocation4 + $0x20] sm:$0xff] %v1987
      %2050 = vst [vmem:[#allocation4 + $0x28] sm:$0xff] %v2038
      %2051 = vst.msk [vmem:[#allocation4 + $0x30] sm:$0xff] %vm639, %v2040
      %2052 = vst [vmem:[#allocation4 + $0x48] sm:$0xff] %v1936
      %2053 = vst [vmem:[#allocation4 + $0x50] sm:$0xff] %v1938
      %2054 = vst [vmem:[#allocation4 + $0x58] sm:$0xff] %v1989
      %2055 = vst [vmem:[#allocation4 + $0x60] sm:$0xff] %v1991
      %2056 = vst [vmem:[#allocation4 + $0x68] sm:$0xff] %v2042
      %2057 = vst.msk [vmem:[#allocation4 + $0x70] sm:$0xff] %vm639, %v2044
      %v2058 = vld [vmem:[%s11] sm:$0xf]
      %v2059 = vpack.c.bf16 %v1926, %v1922
      %v2060 = vpack.c.bf16 %v1928, %v1924
      %v2061 = vpack.c.bf16 %v1979, %v1975
      %v2062 = vpack.c.bf16 %v1981, %v1977
      %v2063 = vpack.c.bf16 %v2032, %v2028
      %v2064 = vpack.c.bf16 %v2034, %v2030
      %v2066 = vsel %vm1021, %v2058, 0
      %2068 = vmatprep.subr.bf16.mxu0 %v2060
      %2069 = vmatpush1.bf16.msra.mxu0 %v2059
      %2070 = vmatprep.subr.bf16.mxu0 0
      %2071 = vmatpush1.bf16.msra.mxu0 0
      %2072 = vmatprep.subr.bf16.mxu0 0
      %2073 = vmatpush1.bf16.msra.mxu0 0
      %2074 = vmatprep.subr.bf16.mxu0 0
      %2075 = vmatpush1.bf16.msra.mxu0 0
      %2076 = vmatprep.subr.bf16.mxu0 0
      %2077 = vmatpush1.bf16.msra.mxu0 0
      %2078 = vmatprep.subr.bf16.mxu0 0
      %2079 = vmatpush1.bf16.msra.mxu0 0
      %2080 = vmatprep.subr.bf16.mxu0 0
      %2081 = vmatpush1.bf16.msra.mxu0 0
      %2082 = vmatprep.subr.bf16.mxu0 0
      %2083 = vmatpush1.bf16.msra.mxu0 0
      %2084 = vmatprep.subr.bf16.mxu0 0
      %2085 = vmatpush1.bf16.msra.mxu0 0
      %2086 = vmatprep.subr.bf16.mxu0 0
      %2087 = vmatpush1.bf16.msra.mxu0 0
      %2088 = vmatprep.subr.bf16.mxu0 0
      %2089 = vmatpush1.bf16.msra.mxu0 0
      %2090 = vmatprep.subr.bf16.mxu0 0
      %2091 = vmatpush1.bf16.msra.mxu0 0
      %2092 = vmatprep.subr.bf16.mxu0 0
      %2093 = vmatpush1.bf16.msra.mxu0 0
      %2094 = vmatprep.subr.bf16.mxu0 0
      %2095 = vmatpush1.bf16.msra.mxu0 0
      %2096 = vmatprep.subr.bf16.mxu0 0
      %2097 = vmatpush1.bf16.msra.mxu0 0
      %2098 = vmatprep.subr.bf16.mxu0 0
      %2099 = vmatpush1.bf16.msra.mxu0 0
      %2100 = vmatprep.mubr.bf16.mxu0 0
      %2101 = vmatmul.mubr.bf16.gmra.mrb[0].mxu0 %v2066
      %v2102 = vpop.f32.mrb[0].mxu0
      %v2103 = vadd.f32 0.0, %v2102
      %v2104 = vpop.f32.mrb[0].mxu0
      %v2105 = vadd.f32 0.0, %v2104
      %v2106 = vpop.f32.mrb[0].mxu0
      %v2107 = vpop.f32.mrb[0].mxu0
      %2108 = vdwg.mxu0
      %2109 = vmatprep.subr.bf16.mxu0 %v2062
      %2110 = vmatpush1.bf16.msra.mxu0 %v2061
      %2111 = vmatprep.subr.bf16.mxu0 0
      %2112 = vmatpush1.bf16.msra.mxu0 0
      %2113 = vmatprep.subr.bf16.mxu0 0
      %2114 = vmatpush1.bf16.msra.mxu0 0
      %2115 = vmatprep.subr.bf16.mxu0 0
      %2116 = vmatpush1.bf16.msra.mxu0 0
      %2117 = vmatprep.subr.bf16.mxu0 0
      %2118 = vmatpush1.bf16.msra.mxu0 0
      %2119 = vmatprep.subr.bf16.mxu0 0
      %2120 = vmatpush1.bf16.msra.mxu0 0
      %2121 = vmatprep.subr.bf16.mxu0 0
      %2122 = vmatpush1.bf16.msra.mxu0 0
      %2123 = vmatprep.subr.bf16.mxu0 0
      %2124 = vmatpush1.bf16.msra.mxu0 0
      %2125 = vmatprep.subr.bf16.mxu0 0
      %2126 = vmatpush1.bf16.msra.mxu0 0
      %2127 = vmatprep.subr.bf16.mxu0 0
      %2128 = vmatpush1.bf16.msra.mxu0 0
      %2129 = vmatprep.subr.bf16.mxu0 0
      %2130 = vmatpush1.bf16.msra.mxu0 0
      %2131 = vmatprep.subr.bf16.mxu0 0
      %2132 = vmatpush1.bf16.msra.mxu0 0
      %2133 = vmatprep.subr.bf16.mxu0 0
      %2134 = vmatpush1.bf16.msra.mxu0 0
      %2135 = vmatprep.subr.bf16.mxu0 0
      %2136 = vmatpush1.bf16.msra.mxu0 0
      %2137 = vmatprep.subr.bf16.mxu0 0
      %2138 = vmatpush1.bf16.msra.mxu0 0
      %2139 = vmatprep.subr.bf16.mxu0 0
      %2140 = vmatpush1.bf16.msra.mxu0 0
      %2141 = vmatprep.mubr.bf16.mxu0 0
      %2142 = vmatmul.mubr.bf16.gmra.mrb[0].mxu0 %v2066
      %v2143 = vpop.f32.mrb[0].mxu0
      %v2144 = vadd.f32 0.0, %v2143
      %v2145 = vpop.f32.mrb[0].mxu0
      %v2146 = vadd.f32 0.0, %v2145
      %v2147 = vpop.f32.mrb[0].mxu0
      %v2148 = vpop.f32.mrb[0].mxu0
      %2149 = vdwg.mxu0
      %2150 = vmatprep.subr.bf16.mxu0 %v2064
      %2151 = vmatpush1.bf16.msra.mxu0 %v2063
      %2152 = vmatprep.subr.bf16.mxu0 0
      %2153 = vmatpush1.bf16.msra.mxu0 0
      %2154 = vmatprep.subr.bf16.mxu0 0
      %2155 = vmatpush1.bf16.msra.mxu0 0
      %2156 = vmatprep.subr.bf16.mxu0 0
      %2157 = vmatpush1.bf16.msra.mxu0 0
      %2158 = vmatprep.subr.bf16.mxu0 0
      %2159 = vmatpush1.bf16.msra.mxu0 0
      %2160 = vmatprep.subr.bf16.mxu0 0
      %2161 = vmatpush1.bf16.msra.mxu0 0
      %2162 = vmatprep.subr.bf16.mxu0 0
      %2163 = vmatpush1.bf16.msra.mxu0 0
      %2164 = vmatprep.subr.bf16.mxu0 0
      %2165 = vmatpush1.bf16.msra.mxu0 0
      %2166 = vmatprep.subr.bf16.mxu0 0
      %2167 = vmatpush1.bf16.msra.mxu0 0
      %2168 = vmatprep.subr.bf16.mxu0 0
      %2169 = vmatpush1.bf16.msra.mxu0 0
      %2170 = vmatprep.subr.bf16.mxu0 0
      %2171 = vmatpush1.bf16.msra.mxu0 0
      %2172 = vmatprep.subr.bf16.mxu0 0
      %2173 = vmatpush1.bf16.msra.mxu0 0
      %2174 = vmatprep.subr.bf16.mxu0 0
      %2175 = vmatpush1.bf16.msra.mxu0 0
      %2176 = vmatprep.subr.bf16.mxu0 0
      %2177 = vmatpush1.bf16.msra.mxu0 0
      %2178 = vmatprep.subr.bf16.mxu0 0
      %2179 = vmatpush1.bf16.msra.mxu0 0
      %2180 = vmatprep.subr.bf16.mxu0 0
      %2181 = vmatpush1.bf16.msra.mxu0 0
      %2182 = vmatprep.mubr.bf16.mxu0 0
      %2183 = vmatmul.mubr.bf16.gmra.mrb[0].mxu0 %v2066
      %v2184 = vpop.f32.mrb[0].mxu0
      %v2185 = vadd.f32 0.0, %v2184
      %v2186 = vpop.f32.mrb[0].mxu0
      %v2187 = vadd.f32 0.0, %v2186
      %v2188 = vpop.f32.mrb[0].mxu0
      %v2189 = vpop.f32.mrb[0].mxu0
      %2190 = vdwg.mxu0
      %2191 = vst [vmem:[#allocation3 + $0x8] sm:$0xff] %v2103
      %2192 = vst [vmem:[#allocation3 + $0x10] sm:$0xff] %v2105
      %2193 = vst [vmem:[#allocation3 + $0x18] sm:$0xff] %v2144
      %2194 = vst [vmem:[#allocation3 + $0x20] sm:$0xff] %v2146
      %2195 = vst [vmem:[#allocation3 + $0x28] sm:$0xff] %v2185
      %2196 = vst.msk [vmem:[#allocation3 + $0x30] sm:$0xff] %vm639, %v2187
      %v2197 = vld [vmem:[#allocation3] sm:$0xff]
      %v2198 = vld [vmem:[#allocation3 + $0x8] sm:$0xff]
      %v2199 = vld [vmem:[#allocation3 + $0x10] sm:$0xff]
      %v2200 = vld [vmem:[#allocation3 + $0x18] sm:$0xff]
      %v2201 = vld [vmem:[#allocation3 + $0x20] sm:$0xff]
      %v2202 = vld [vmem:[#allocation3 + $0x28] sm:$0xff]
      %2209 = vrot.lane.b32.xlu0 %v2197, 127
      %v2210 = vpop.permute.xlu0 %2209
      %2211 = vrot.lane.b32.xlu0 %v2198, 127
      %v2212 = vpop.permute.xlu0 %2211
      %2213 = vrot.lane.b32.xlu0 %v2199, 127
      %v2214 = vpop.permute.xlu0 %2213
      %2215 = vrot.lane.b32.xlu0 %v2200, 127
      %v2216 = vpop.permute.xlu0 %2215
      %2217 = vrot.lane.b32.xlu0 %v2201, 127
      %v2218 = vpop.permute.xlu0 %2217
      %2219 = vrot.lane.b32.xlu0 %v2202, 127
      %v2220 = vpop.permute.xlu0 %2219
      %vm2221 = vcmask 1039360
      %v2222 = vsel %vm2221, %v2210, %v2212
      %v2223 = vsel %vm2221, %v2212, %v2214
      %v2224 = vsel %vm2221, %v2214, %v2216
      %v2225 = vsel %vm2221, %v2216, %v2218
      %v2226 = vsel %vm2221, %v2218, %v2220
      %v2233 = vmax.f32 %v2197, %v2222
      %v2234 = vmax.f32 %v2198, %v2223
      %v2235 = vmax.f32 %v2199, %v2224
      %v2236 = vmax.f32 %v2200, %v2225
      %v2237 = vmax.f32 %v2201, %v2226
      %v2238 = vmax.f32 %v2202, %v2220
      %2239 = vrot.lane.b32.xlu0 %v2197, 126
      %v2240 = vpop.permute.xlu0 %2239
      %2241 = vrot.lane.b32.xlu0 %v2198, 126
      %v2242 = vpop.permute.xlu0 %2241
      %2243 = vrot.lane.b32.xlu0 %v2199, 126
      %v2244 = vpop.permute.xlu0 %2243
      %2245 = vrot.lane.b32.xlu0 %v2200, 126
      %v2246 = vpop.permute.xlu0 %2245
      %2247 = vrot.lane.b32.xlu0 %v2201, 126
      %v2248 = vpop.permute.xlu0 %2247
      %2249 = vrot.lane.b32.xlu0 %v2202, 126
      %v2250 = vpop.permute.xlu0 %2249
      %vm2251 = vcmask 1031168
      %v2252 = vsel %vm2251, %v2240, %v2242
      %v2253 = vsel %vm2251, %v2242, %v2244
      %v2254 = vsel %vm2251, %v2244, %v2246
      %v2255 = vsel %vm2251, %v2246, %v2248
      %v2256 = vsel %vm2251, %v2248, %v2250
      %v2263 = vmax.f32 %v2233, %v2252
      %v2264 = vmax.f32 %v2234, %v2253
      %v2265 = vmax.f32 %v2235, %v2254
      %v2266 = vmax.f32 %v2236, %v2255
      %v2267 = vmax.f32 %v2237, %v2256
      %v2268 = vmax.f32 %v2238, %v2250
      %v2269 = vld [vmem:[#allocation3 + $0x30] sm:$0xff]
      %2271 = vrot.lane.b32.xlu0 %v2197, 110
      %v2272 = vpop.permute.xlu0 %2271
      %2273 = vrot.lane.b32.xlu0 %v2198, 110
      %v2274 = vpop.permute.xlu0 %2273
      %2275 = vrot.lane.b32.xlu0 %v2199, 110
      %v2276 = vpop.permute.xlu0 %2275
      %2277 = vrot.lane.b32.xlu0 %v2200, 110
      %v2278 = vpop.permute.xlu0 %2277
      %2279 = vrot.lane.b32.xlu0 %v2201, 110
      %v2280 = vpop.permute.xlu0 %2279
      %2281 = vrot.lane.b32.xlu0 %v2202, 110
      %v2282 = vpop.permute.xlu0 %2281
      %2283 = vrot.lane.b32.xlu0 %v2269, 110
      %v2284 = vpop.permute.xlu0 %2283
      %vm2285 = vcmask 900096
      %v2286 = vsel %vm2285, %v2272, %v2274
      %v2287 = vsel %vm2285, %v2274, %v2276
      %v2288 = vsel %vm2285, %v2276, %v2278
      %v2289 = vsel %vm2285, %v2278, %v2280
      %v2290 = vsel %vm2285, %v2280, %v2282
      %v2291 = vsel %vm2285, %v2282, %v2284
      %v2298 = vmax.f32 %v2263, %v2286
      %v2299 = vmax.f32 %v2264, %v2287
      %v2300 = vmax.f32 %v2265, %v2288
      %v2301 = vmax.f32 %v2266, %v2289
      %v2302 = vmax.f32 %v2267, %v2290
      %v2303 = vmax.f32 %v2268, %v2291
      %2304 = vrot.lane.b32.xlu0 %v2198, 109
      %v2305 = vpop.permute.xlu0 %2304
      %2306 = vrot.lane.b32.xlu0 %v2199, 109
      %v2307 = vpop.permute.xlu0 %2306
      %2308 = vrot.lane.b32.xlu0 %v2200, 109
      %v2309 = vpop.permute.xlu0 %2308
      %2310 = vrot.lane.b32.xlu0 %v2201, 109
      %v2311 = vpop.permute.xlu0 %2310
      %2312 = vrot.lane.b32.xlu0 %v2202, 109
      %v2313 = vpop.permute.xlu0 %2312
      %2314 = vrot.lane.b32.xlu0 %v2269, 109
      %v2315 = vpop.permute.xlu0 %2314
      %vm2316 = vcmask 891904
      %v2317 = vsel %vm2316, %v2305, %v2307
      %v2318 = vsel %vm2316, %v2307, %v2309
      %v2319 = vsel %vm2316, %v2309, %v2311
      %v2320 = vsel %vm2316, %v2311, %v2313
      %v2321 = vsel %vm2316, %v2313, %v2315
      %v2328 = vmax.f32 %v2298, %v2305
      %v2329 = vmax.f32 %v2299, %v2317
      %v2330 = vmax.f32 %v2300, %v2318
      %v2331 = vmax.f32 %v2301, %v2319
      %v2332 = vmax.f32 %v2302, %v2320
      %v2333 = vmax.f32 %v2303, %v2321
      %2334 = vrot.lane.b32.xlu0 %v2198, 108
      %v2335 = vpop.permute.xlu0 %2334
      %2336 = vrot.lane.b32.xlu0 %v2199, 108
      %v2337 = vpop.permute.xlu0 %2336
      %2338 = vrot.lane.b32.xlu0 %v2200, 108
      %v2339 = vpop.permute.xlu0 %2338
      %2340 = vrot.lane.b32.xlu0 %v2201, 108
      %v2341 = vpop.permute.xlu0 %2340
      %2342 = vrot.lane.b32.xlu0 %v2202, 108
      %v2343 = vpop.permute.xlu0 %2342
      %2344 = vrot.lane.b32.xlu0 %v2269, 108
      %v2345 = vpop.permute.xlu0 %2344
      %vm2346 = vcmask 883712
      %v2347 = vsel %vm2346, %v2335, %v2337
      %v2348 = vsel %vm2346, %v2337, %v2339
      %v2349 = vsel %vm2346, %v2339, %v2341
      %v2350 = vsel %vm2346, %v2341, %v2343
      %v2351 = vsel %vm2346, %v2343, %v2345
      %v2358 = vmax.f32 %v2328, %v2335
      %v2359 = vmax.f32 %v2329, %v2347
      %v2360 = vmax.f32 %v2330, %v2348
      %v2361 = vmax.f32 %v2331, %v2349
      %v2362 = vmax.f32 %v2332, %v2350
      %v2363 = vmax.f32 %v2333, %v2351
      %2364 = vrot.lane.b32.xlu0 %v2198, 92
      %v2365 = vpop.permute.xlu0 %2364
      %2366 = vrot.lane.b32.xlu0 %v2199, 92
      %v2367 = vpop.permute.xlu0 %2366
      %2368 = vrot.lane.b32.xlu0 %v2200, 92
      %v2369 = vpop.permute.xlu0 %2368
      %2370 = vrot.lane.b32.xlu0 %v2201, 92
      %v2371 = vpop.permute.xlu0 %2370
      %2372 = vrot.lane.b32.xlu0 %v2202, 92
      %v2373 = vpop.permute.xlu0 %2372
      %2374 = vrot.lane.b32.xlu0 %v2269, 92
      %v2375 = vpop.permute.xlu0 %2374
      %vm2376 = vcmask 752640
      %v2377 = vsel %vm2376, %v2365, %v2367
      %v2378 = vsel %vm2376, %v2367, %v2369
      %v2379 = vsel %vm2376, %v2369, %v2371
      %v2380 = vsel %vm2376, %v2371, %v2373
      %v2381 = vsel %vm2376, %v2373, %v2375
      %v2388 = vmax.f32 %v2358, %v2365
      %v2389 = vmax.f32 %v2359, %v2377
      %v2390 = vmax.f32 %v2360, %v2378
      %v2391 = vmax.f32 %v2361, %v2379
      %v2392 = vmax.f32 %v2362, %v2380
      %v2393 = vmax.f32 %v2363, %v2381
      %2394 = vrot.lane.b32.xlu0 %v2198, 91
      %v2395 = vpop.permute.xlu0 %2394
      %2396 = vrot.lane.b32.xlu0 %v2199, 91
      %v2397 = vpop.permute.xlu0 %2396
      %2398 = vrot.lane.b32.xlu0 %v2200, 91
      %v2399 = vpop.permute.xlu0 %2398
      %2400 = vrot.lane.b32.xlu0 %v2201, 91
      %v2401 = vpop.permute.xlu0 %2400
      %2402 = vrot.lane.b32.xlu0 %v2202, 91
      %v2403 = vpop.permute.xlu0 %2402
      %2404 = vrot.lane.b32.xlu0 %v2269, 91
      %v2405 = vpop.permute.xlu0 %2404
      %vm2406 = vcmask 744448
      %v2407 = vsel %vm2406, %v2395, %v2397
      %v2408 = vsel %vm2406, %v2397, %v2399
      %v2409 = vsel %vm2406, %v2399, %v2401
      %v2410 = vsel %vm2406, %v2401, %v2403
      %v2411 = vsel %vm2406, %v2403, %v2405
      %v2418 = vmax.f32 %v2388, %v2395
      %v2419 = vmax.f32 %v2389, %v2407
      %v2420 = vmax.f32 %v2390, %v2408
      %v2421 = vmax.f32 %v2391, %v2409
      %v2422 = vmax.f32 %v2392, %v2410
      %v2423 = vmax.f32 %v2393, %v2411
      %2424 = vrot.lane.b32.xlu0 %v2198, 90
      %v2425 = vpop.permute.xlu0 %2424
      %2426 = vrot.lane.b32.xlu0 %v2199, 90
      %v2427 = vpop.permute.xlu0 %2426
      %2428 = vrot.lane.b32.xlu0 %v2200, 90
      %v2429 = vpop.permute.xlu0 %2428
      %2430 = vrot.lane.b32.xlu0 %v2201, 90
      %v2431 = vpop.permute.xlu0 %2430
      %2432 = vrot.lane.b32.xlu0 %v2202, 90
      %v2433 = vpop.permute.xlu0 %2432
      %2434 = vrot.lane.b32.xlu0 %v2269, 90
      %v2435 = vpop.permute.xlu0 %2434
      %vm2436 = vcmask 736256
      %v2437 = vsel %vm2436, %v2425, %v2427
      %v2438 = vsel %vm2436, %v2427, %v2429
      %v2439 = vsel %vm2436, %v2429, %v2431
      %v2440 = vsel %vm2436, %v2431, %v2433
      %v2441 = vsel %vm2436, %v2433, %v2435
      %v2448 = vmax.f32 %v2418, %v2425
      %v2449 = vmax.f32 %v2419, %v2437
      %v2450 = vmax.f32 %v2420, %v2438
      %v2451 = vmax.f32 %v2421, %v2439
      %v2452 = vmax.f32 %v2422, %v2440
      %v2453 = vmax.f32 %v2423, %v2441
      %v2454 = vsub.f32 %v2197, %v2448
      %v2455 = vsub.f32 %v2198, %v2449
      %v2456 = vsub.f32 %v2199, %v2450
      %v2457 = vsub.f32 %v2200, %v2451
      %v2458 = vsub.f32 %v2201, %v2452
      %v2459 = vsub.f32 %v2202, %v2453
      %v2460 = vmul.f32 %v2454, 1.442695
      %v2461 = vpow.pop %v2460
      %v2462 = vmul.f32 %v2455, 1.442695
      %v2463 = vpow.pop %v2462
      %v2464 = vmul.f32 %v2456, 1.442695
      %v2465 = vpow.pop %v2464
      %v2466 = vmul.f32 %v2457, 1.442695
      %v2467 = vpow.pop %v2466
      %v2468 = vmul.f32 %v2458, 1.442695
      %v2469 = vpow.pop %v2468
      %v2470 = vmul.f32 %v2459, 1.442695
      %v2471 = vpow.pop %v2470
      %v2472 = vadd.f32 %v2461, 0.0
      %v2473 = vadd.f32 %v2463, 0.0
      %v2474 = vadd.f32 %v2465, 0.0
      %v2475 = vadd.f32 %v2467, 0.0
      %v2476 = vadd.f32 %v2469, 0.0
      %v2477 = vadd.f32 %v2471, 0.0
      %v2478 = vld [vmem:[#allocation4] sm:$0xff]
      %v2479 = vld [vmem:[#allocation4 + $0x8] sm:$0xff]
      %v2480 = vld [vmem:[#allocation4 + $0x10] sm:$0xff]
      %v2481 = vld [vmem:[#allocation4 + $0x18] sm:$0xff]
      %v2482 = vld [vmem:[#allocation4 + $0x20] sm:$0xff]
      %v2483 = vld [vmem:[#allocation4 + $0x28] sm:$0xff]
      %v2484 = vld [vmem:[#allocation4 + $0x40] sm:$0xff]
      %v2485 = vld [vmem:[#allocation4 + $0x48] sm:$0xff]
      %v2486 = vld [vmem:[#allocation4 + $0x50] sm:$0xff]
      %v2487 = vld [vmem:[#allocation4 + $0x58] sm:$0xff]
      %v2488 = vld [vmem:[#allocation4 + $0x60] sm:$0xff]
      %v2489 = vld [vmem:[#allocation4 + $0x68] sm:$0xff]
      %v2490 = vlaneseq
      %v2491 = vshrl.u32 %v2490, 7
      %v2492 = vsub.s32 0, %v2491
      %v2493 = vrot.slane %v2461, %v2492
      %v2494 = vlaneseq
      %v2495 = vshrl.u32 %v2494, 7
      %v2496 = vsub.s32 0, %v2495
      %v2497 = vrot.slane %v2463, %v2496
      %v2498 = vlaneseq
      %v2499 = vshrl.u32 %v2498, 7
      %v2500 = vsub.s32 0, %v2499
      %v2501 = vrot.slane %v2465, %v2500
      %v2502 = vlaneseq
      %v2503 = vshrl.u32 %v2502, 7
      %v2504 = vsub.s32 0, %v2503
      %v2505 = vrot.slane %v2467, %v2504
      %v2506 = vlaneseq
      %v2507 = vshrl.u32 %v2506, 7
      %v2508 = vsub.s32 0, %v2507
      %v2509 = vrot.slane %v2469, %v2508
      %v2510 = vlaneseq
      %v2511 = vshrl.u32 %v2510, 7
      %v2512 = vsub.s32 0, %v2511
      %v2513 = vrot.slane %v2471, %v2512
      %v2514 = vmul.f32 %v2493, %v2478
      %v2515 = vmul.f32 %v2497, %v2479
      %v2516 = vmul.f32 %v2501, %v2480
      %v2517 = vmul.f32 %v2505, %v2481
      %v2518 = vmul.f32 %v2509, %v2482
      %v2519 = vmul.f32 %v2513, %v2483
      %v2520 = vadd.f32 %v2514, 0.0
      %v2521 = vadd.f32 %v2515, 0.0
      %v2522 = vadd.f32 %v2516, 0.0
      %v2523 = vadd.f32 %v2517, 0.0
      %v2524 = vadd.f32 %v2518, 0.0
      %v2525 = vadd.f32 %v2519, 0.0
      %v2526 = vlaneseq
      %v2527 = vshrl.u32 %v2526, 7
      %v2528 = vsub.s32 1, %v2527
      %v2529 = vrot.slane %v2461, %v2528
      %v2530 = vlaneseq
      %v2531 = vshrl.u32 %v2530, 7
      %v2532 = vsub.s32 1, %v2531
      %v2533 = vrot.slane %v2463, %v2532
      %v2534 = vlaneseq
      %v2535 = vshrl.u32 %v2534, 7
      %v2536 = vsub.s32 1, %v2535
      %v2537 = vrot.slane %v2465, %v2536
      %v2538 = vlaneseq
      %v2539 = vshrl.u32 %v2538, 7
      %v2540 = vsub.s32 1, %v2539
      %v2541 = vrot.slane %v2467, %v2540
      %v2542 = vlaneseq
      %v2543 = vshrl.u32 %v2542, 7
      %v2544 = vsub.s32 1, %v2543
      %v2545 = vrot.slane %v2469, %v2544
      %v2546 = vlaneseq
      %v2547 = vshrl.u32 %v2546, 7
      %v2548 = vsub.s32 1, %v2547
      %v2549 = vrot.slane %v2471, %v2548
      %v2550 = vmul.f32 %v2529, %v2478
      %v2551 = vmul.f32 %v2533, %v2479
      %v2552 = vmul.f32 %v2537, %v2480
      %v2553 = vmul.f32 %v2541, %v2481
      %v2554 = vmul.f32 %v2545, %v2482
      %v2555 = vmul.f32 %v2549, %v2483
      %v2556 = vadd.f32 %v2550, 0.0
      %v2557 = vadd.f32 %v2551, 0.0
      %v2558 = vadd.f32 %v2552, 0.0
      %v2559 = vadd.f32 %v2553, 0.0
      %v2560 = vadd.f32 %v2554, 0.0
      %v2561 = vadd.f32 %v2555, 0.0
      %v2562 = vlaneseq
      %v2563 = vshrl.u32 %v2562, 7
      %v2564 = vsub.s32 2, %v2563
      %v2565 = vrot.slane %v2461, %v2564
      %v2566 = vlaneseq
      %v2567 = vshrl.u32 %v2566, 7
      %v2568 = vsub.s32 2, %v2567
      %v2569 = vrot.slane %v2463, %v2568
      %v2570 = vlaneseq
      %v2571 = vshrl.u32 %v2570, 7
      %v2572 = vsub.s32 2, %v2571
      %v2573 = vrot.slane %v2465, %v2572
      %v2574 = vlaneseq
      %v2575 = vshrl.u32 %v2574, 7
      %v2576 = vsub.s32 2, %v2575
      %v2577 = vrot.slane %v2467, %v2576
      %v2578 = vlaneseq
      %v2579 = vshrl.u32 %v2578, 7
      %v2580 = vsub.s32 2, %v2579
      %v2581 = vrot.slane %v2469, %v2580
      %v2582 = vlaneseq
      %v2583 = vshrl.u32 %v2582, 7
      %v2584 = vsub.s32 2, %v2583
      %v2585 = vrot.slane %v2471, %v2584
      %v2586 = vmul.f32 %v2565, %v2478
      %v2587 = vmul.f32 %v2569, %v2479
      %v2588 = vmul.f32 %v2573, %v2480
      %v2589 = vmul.f32 %v2577, %v2481
      %v2590 = vmul.f32 %v2581, %v2482
      %v2591 = vmul.f32 %v2585, %v2483
      %v2592 = vadd.f32 %v2586, 0.0
      %v2593 = vadd.f32 %v2587, 0.0
      %v2594 = vadd.f32 %v2588, 0.0
      %v2595 = vadd.f32 %v2589, 0.0
      %v2596 = vadd.f32 %v2590, 0.0
      %v2597 = vadd.f32 %v2591, 0.0
      %v2598 = vlaneseq
      %v2599 = vshrl.u32 %v2598, 7
      %v2600 = vsub.s32 3, %v2599
      %v2601 = vrot.slane %v2461, %v2600
      %v2602 = vlaneseq
      %v2603 = vshrl.u32 %v2602, 7
      %v2604 = vsub.s32 3, %v2603
      %v2605 = vrot.slane %v2463, %v2604
      %v2606 = vlaneseq
      %v2607 = vshrl.u32 %v2606, 7
      %v2608 = vsub.s32 3, %v2607
      %v2609 = vrot.slane %v2465, %v2608
      %v2610 = vlaneseq
      %v2611 = vshrl.u32 %v2610, 7
      %v2612 = vsub.s32 3, %v2611
      %v2613 = vrot.slane %v2467, %v2612
      %v2614 = vlaneseq
      %v2615 = vshrl.u32 %v2614, 7
      %v2616 = vsub.s32 3, %v2615
      %v2617 = vrot.slane %v2469, %v2616
      %v2618 = vlaneseq
      %v2619 = vshrl.u32 %v2618, 7
      %v2620 = vsub.s32 3, %v2619
      %v2621 = vrot.slane %v2471, %v2620
      %v2622 = vmul.f32 %v2601, %v2478
      %v2623 = vmul.f32 %v2605, %v2479
      %v2624 = vmul.f32 %v2609, %v2480
      %v2625 = vmul.f32 %v2613, %v2481
      %v2626 = vmul.f32 %v2617, %v2482
      %v2627 = vmul.f32 %v2621, %v2483
      %v2628 = vadd.f32 %v2622, 0.0
      %v2629 = vadd.f32 %v2623, 0.0
      %v2630 = vadd.f32 %v2624, 0.0
      %v2631 = vadd.f32 %v2625, 0.0
      %v2632 = vadd.f32 %v2626, 0.0
      %v2633 = vadd.f32 %v2627, 0.0
      %v2634 = vlaneseq
      %v2635 = vshrl.u32 %v2634, 7
      %v2636 = vsub.s32 4, %v2635
      %v2637 = vrot.slane %v2461, %v2636
      %v2638 = vlaneseq
      %v2639 = vshrl.u32 %v2638, 7
      %v2640 = vsub.s32 4, %v2639
      %v2641 = vrot.slane %v2463, %v2640
      %v2642 = vlaneseq
      %v2643 = vshrl.u32 %v2642, 7
      %v2644 = vsub.s32 4, %v2643
      %v2645 = vrot.slane %v2465, %v2644
      %v2646 = vlaneseq
      %v2647 = vshrl.u32 %v2646, 7
      %v2648 = vsub.s32 4, %v2647
      %v2649 = vrot.slane %v2467, %v2648
      %v2650 = vlaneseq
      %v2651 = vshrl.u32 %v2650, 7
      %v2652 = vsub.s32 4, %v2651
      %v2653 = vrot.slane %v2469, %v2652
      %v2654 = vlaneseq
      %v2655 = vshrl.u32 %v2654, 7
      %v2656 = vsub.s32 4, %v2655
      %v2657 = vrot.slane %v2471, %v2656
      %v2658 = vmul.f32 %v2637, %v2484
      %v2659 = vmul.f32 %v2641, %v2485
      %v2660 = vmul.f32 %v2645, %v2486
      %v2661 = vmul.f32 %v2649, %v2487
      %v2662 = vmul.f32 %v2653, %v2488
      %v2663 = vmul.f32 %v2657, %v2489
      %v2664 = vadd.f32 %v2658, 0.0
      %v2665 = vadd.f32 %v2659, 0.0
      %v2666 = vadd.f32 %v2660, 0.0
      %v2667 = vadd.f32 %v2661, 0.0
      %v2668 = vadd.f32 %v2662, 0.0
      %v2669 = vadd.f32 %v2663, 0.0
      %v2670 = vlaneseq
      %v2671 = vshrl.u32 %v2670, 7
      %v2672 = vsub.s32 5, %v2671
      %v2673 = vrot.slane %v2461, %v2672
      %v2674 = vlaneseq
      %v2675 = vshrl.u32 %v2674, 7
      %v2676 = vsub.s32 5, %v2675
      %v2677 = vrot.slane %v2463, %v2676
      %v2678 = vlaneseq
      %v2679 = vshrl.u32 %v2678, 7
      %v2680 = vsub.s32 5, %v2679
      %v2681 = vrot.slane %v2465, %v2680
      %v2682 = vlaneseq
      %v2683 = vshrl.u32 %v2682, 7
      %v2684 = vsub.s32 5, %v2683
      %v2685 = vrot.slane %v2467, %v2684
      %v2686 = vlaneseq
      %v2687 = vshrl.u32 %v2686, 7
      %v2688 = vsub.s32 5, %v2687
      %v2689 = vrot.slane %v2469, %v2688
      %v2690 = vlaneseq
      %v2691 = vshrl.u32 %v2690, 7
      %v2692 = vsub.s32 5, %v2691
      %v2693 = vrot.slane %v2471, %v2692
      %v2694 = vmul.f32 %v2673, %v2484
      %v2695 = vmul.f32 %v2677, %v2485
      %v2696 = vmul.f32 %v2681, %v2486
      %v2697 = vmul.f32 %v2685, %v2487
      %v2698 = vmul.f32 %v2689, %v2488
      %v2699 = vmul.f32 %v2693, %v2489
      %v2700 = vadd.f32 %v2694, 0.0
      %v2701 = vadd.f32 %v2695, 0.0
      %v2702 = vadd.f32 %v2696, 0.0
      %v2703 = vadd.f32 %v2697, 0.0
      %v2704 = vadd.f32 %v2698, 0.0
      %v2705 = vadd.f32 %v2699, 0.0
      %v2706 = vlaneseq
      %v2707 = vshrl.u32 %v2706, 7
      %v2708 = vsub.s32 6, %v2707
      %v2709 = vrot.slane %v2461, %v2708
      %v2710 = vlaneseq
      %v2711 = vshrl.u32 %v2710, 7
      %v2712 = vsub.s32 6, %v2711
      %v2713 = vrot.slane %v2463, %v2712
      %v2714 = vlaneseq
      %v2715 = vshrl.u32 %v2714, 7
      %v2716 = vsub.s32 6, %v2715
      %v2717 = vrot.slane %v2465, %v2716
      %v2718 = vlaneseq
      %v2719 = vshrl.u32 %v2718, 7
      %v2720 = vsub.s32 6, %v2719
      %v2721 = vrot.slane %v2467, %v2720
      %v2722 = vlaneseq
      %v2723 = vshrl.u32 %v2722, 7
      %v2724 = vsub.s32 6, %v2723
      %v2725 = vrot.slane %v2469, %v2724
      %v2726 = vlaneseq
      %v2727 = vshrl.u32 %v2726, 7
      %v2728 = vsub.s32 6, %v2727
      %v2729 = vrot.slane %v2471, %v2728
      %v2730 = vmul.f32 %v2709, %v2484
      %v2731 = vmul.f32 %v2713, %v2485
      %v2732 = vmul.f32 %v2717, %v2486
      %v2733 = vmul.f32 %v2721, %v2487
      %v2734 = vmul.f32 %v2725, %v2488
      %v2735 = vmul.f32 %v2729, %v2489
      %v2736 = vadd.f32 %v2730, 0.0
      %v2737 = vadd.f32 %v2731, 0.0
      %v2738 = vadd.f32 %v2732, 0.0
      %v2739 = vadd.f32 %v2733, 0.0
      %v2740 = vadd.f32 %v2734, 0.0
      %v2741 = vadd.f32 %v2735, 0.0
      %v2742 = vlaneseq
      %v2743 = vshrl.u32 %v2742, 7
      %v2744 = vsub.s32 7, %v2743
      %v2745 = vrot.slane %v2461, %v2744
      %v2746 = vlaneseq
      %v2747 = vshrl.u32 %v2746, 7
      %v2748 = vsub.s32 7, %v2747
      %v2749 = vrot.slane %v2463, %v2748
      %v2750 = vlaneseq
      %v2751 = vshrl.u32 %v2750, 7
      %v2752 = vsub.s32 7, %v2751
      %v2753 = vrot.slane %v2465, %v2752
      %v2754 = vlaneseq
      %v2755 = vshrl.u32 %v2754, 7
      %v2756 = vsub.s32 7, %v2755
      %v2757 = vrot.slane %v2467, %v2756
      %v2758 = vlaneseq
      %v2759 = vshrl.u32 %v2758, 7
      %v2760 = vsub.s32 7, %v2759
      %v2761 = vrot.slane %v2469, %v2760
      %v2762 = vlaneseq
      %v2763 = vshrl.u32 %v2762, 7
      %v2764 = vsub.s32 7, %v2763
      %v2765 = vrot.slane %v2471, %v2764
      %v2766 = vmul.f32 %v2745, %v2484
      %v2767 = vmul.f32 %v2749, %v2485
      %v2768 = vmul.f32 %v2753, %v2486
      %v2769 = vmul.f32 %v2757, %v2487
      %v2770 = vmul.f32 %v2761, %v2488
      %v2771 = vmul.f32 %v2765, %v2489
      %v2772 = vadd.f32 %v2766, 0.0
      %v2773 = vadd.f32 %v2767, 0.0
      %v2774 = vadd.f32 %v2768, 0.0
      %v2775 = vadd.f32 %v2769, 0.0
      %v2776 = vadd.f32 %v2770, 0.0
      %v2777 = vadd.f32 %v2771, 0.0
      %2784 = vrot.lane.b32.xlu0 %v2448, 1
      %v2785 = vpop.permute.xlu0 %2784
      %2786 = vrot.lane.b32.xlu0 %v2449, 1
      %v2787 = vpop.permute.xlu0 %2786
      %2788 = vrot.lane.b32.xlu0 %v2450, 1
      %v2789 = vpop.permute.xlu0 %2788
      %2790 = vrot.lane.b32.xlu0 %v2451, 1
      %v2791 = vpop.permute.xlu0 %2790
      %2792 = vrot.lane.b32.xlu0 %v2452, 1
      %v2793 = vpop.permute.xlu0 %2792
      %2794 = vrot.lane.b32.xlu0 %v2453, 1
      %v2795 = vpop.permute.xlu0 %2794
      %vm2796 = vcmask 7168
      %v2797 = vsel %vm2796, %v2785, %v2787
      %v2798 = vsel %vm2796, %v2787, %v2789
      %v2799 = vsel %vm2796, %v2789, %v2791
      %v2800 = vsel %vm2796, %v2791, %v2793
      %v2801 = vsel %vm2796, %v2793, %v2795
      %v2808 = vsub.f32 %v2197, %v2785
      %v2809 = vsub.f32 %v2198, %v2797
      %v2810 = vsub.f32 %v2199, %v2798
      %v2811 = vsub.f32 %v2200, %v2799
      %v2812 = vsub.f32 %v2201, %v2800
      %v2813 = vsub.f32 %v2202, %v2801
      %v2814 = vmul.f32 %v2808, 1.442695
      %v2815 = vpow.pop %v2814
      %v2816 = vmul.f32 %v2809, 1.442695
      %v2817 = vpow.pop %v2816
      %v2818 = vmul.f32 %v2810, 1.442695
      %v2819 = vpow.pop %v2818
      %v2820 = vmul.f32 %v2811, 1.442695
      %v2821 = vpow.pop %v2820
      %v2822 = vmul.f32 %v2812, 1.442695
      %v2823 = vpow.pop %v2822
      %v2824 = vmul.f32 %v2813, 1.442695
      %v2825 = vpow.pop %v2824
      %2832 = vrot.lane.b32.xlu0 %v2815, 127
      %v2833 = vpop.permute.xlu0 %2832
      %2834 = vrot.lane.b32.xlu0 %v2817, 127
      %v2835 = vpop.permute.xlu0 %2834
      %2836 = vrot.lane.b32.xlu0 %v2819, 127
      %v2837 = vpop.permute.xlu0 %2836
      %2838 = vrot.lane.b32.xlu0 %v2821, 127
      %v2839 = vpop.permute.xlu0 %2838
      %2840 = vrot.lane.b32.xlu0 %v2823, 127
      %v2841 = vpop.permute.xlu0 %2840
      %2842 = vrot.lane.b32.xlu0 %v2825, 127
      %v2843 = vpop.permute.xlu0 %2842
      %v2844 = vsel %vm2221, %v2833, %v2835
      %v2845 = vsel %vm2221, %v2835, %v2837
      %v2846 = vsel %vm2221, %v2837, %v2839
      %v2847 = vsel %vm2221, %v2839, %v2841
      %v2848 = vsel %vm2221, %v2841, %v2843
      %v2855 = vadd.f32 %v2472, %v2844
      %v2856 = vadd.f32 %v2473, %v2845
      %v2857 = vadd.f32 %v2474, %v2846
      %v2858 = vadd.f32 %v2475, %v2847
      %v2859 = vadd.f32 %v2476, %v2848
      %v2860 = vadd.f32 %v2477, %v2843
      %v2861 = vlaneseq
      %v2862 = vshrl.u32 %v2861, 7
      %v2863 = vsub.s32 0, %v2862
      %v2864 = vrot.slane %v2815, %v2863
      %v2865 = vlaneseq
      %v2866 = vshrl.u32 %v2865, 7
      %v2867 = vsub.s32 0, %v2866
      %v2868 = vrot.slane %v2817, %v2867
      %v2869 = vlaneseq
      %v2870 = vshrl.u32 %v2869, 7
      %v2871 = vsub.s32 0, %v2870
      %v2872 = vrot.slane %v2819, %v2871
      %v2873 = vlaneseq
      %v2874 = vshrl.u32 %v2873, 7
      %v2875 = vsub.s32 0, %v2874
      %v2876 = vrot.slane %v2821, %v2875
      %v2877 = vlaneseq
      %v2878 = vshrl.u32 %v2877, 7
      %v2879 = vsub.s32 0, %v2878
      %v2880 = vrot.slane %v2823, %v2879
      %v2881 = vlaneseq
      %v2882 = vshrl.u32 %v2881, 7
      %v2883 = vsub.s32 0, %v2882
      %v2884 = vrot.slane %v2825, %v2883
      %v2885 = vmul.f32 %v2864, %v2478
      %v2886 = vmul.f32 %v2868, %v2479
      %v2887 = vmul.f32 %v2872, %v2480
      %v2888 = vmul.f32 %v2876, %v2481
      %v2889 = vmul.f32 %v2880, %v2482
      %v2890 = vmul.f32 %v2884, %v2483
      %2897 = vrot.lane.b32.xlu0 %v2885, 127
      %v2898 = vpop.permute.xlu0 %2897
      %2899 = vrot.lane.b32.xlu0 %v2886, 127
      %v2900 = vpop.permute.xlu0 %2899
      %2901 = vrot.lane.b32.xlu0 %v2887, 127
      %v2902 = vpop.permute.xlu0 %2901
      %2903 = vrot.lane.b32.xlu0 %v2888, 127
      %v2904 = vpop.permute.xlu0 %2903
      %2905 = vrot.lane.b32.xlu0 %v2889, 127
      %v2906 = vpop.permute.xlu0 %2905
      %2907 = vrot.lane.b32.xlu0 %v2890, 127
      %v2908 = vpop.permute.xlu0 %2907
      %v2909 = vsel %vm2221, %v2898, %v2900
      %v2910 = vsel %vm2221, %v2900, %v2902
      %v2911 = vsel %vm2221, %v2902, %v2904
      %v2912 = vsel %vm2221, %v2904, %v2906
      %v2913 = vsel %vm2221, %v2906, %v2908
      %v2920 = vadd.f32 %v2520, %v2909
      %v2921 = vadd.f32 %v2521, %v2910
      %v2922 = vadd.f32 %v2522, %v2911
      %v2923 = vadd.f32 %v2523, %v2912
      %v2924 = vadd.f32 %v2524, %v2913
      %v2925 = vadd.f32 %v2525, %v2908
      %v2926 = vlaneseq
      %v2927 = vshrl.u32 %v2926, 7
      %v2928 = vsub.s32 1, %v2927
      %v2929 = vrot.slane %v2815, %v2928
      %v2930 = vlaneseq
      %v2931 = vshrl.u32 %v2930, 7
      %v2932 = vsub.s32 1, %v2931
      %v2933 = vrot.slane %v2817, %v2932
      %v2934 = vlaneseq
      %v2935 = vshrl.u32 %v2934, 7
      %v2936 = vsub.s32 1, %v2935
      %v2937 = vrot.slane %v2819, %v2936
      %v2938 = vlaneseq
      %v2939 = vshrl.u32 %v2938, 7
      %v2940 = vsub.s32 1, %v2939
      %v2941 = vrot.slane %v2821, %v2940
      %v2942 = vlaneseq
      %v2943 = vshrl.u32 %v2942, 7
      %v2944 = vsub.s32 1, %v2943
      %v2945 = vrot.slane %v2823, %v2944
      %v2946 = vlaneseq
      %v2947 = vshrl.u32 %v2946, 7
      %v2948 = vsub.s32 1, %v2947
      %v2949 = vrot.slane %v2825, %v2948
      %v2950 = vmul.f32 %v2929, %v2478
      %v2951 = vmul.f32 %v2933, %v2479
      %v2952 = vmul.f32 %v2937, %v2480
      %v2953 = vmul.f32 %v2941, %v2481
      %v2954 = vmul.f32 %v2945, %v2482
      %v2955 = vmul.f32 %v2949, %v2483
      %2962 = vrot.lane.b32.xlu0 %v2950, 127
      %v2963 = vpop.permute.xlu0 %2962
      %2964 = vrot.lane.b32.xlu0 %v2951, 127
      %v2965 = vpop.permute.xlu0 %2964
      %2966 = vrot.lane.b32.xlu0 %v2952, 127
      %v2967 = vpop.permute.xlu0 %2966
      %2968 = vrot.lane.b32.xlu0 %v2953, 127
      %v2969 = vpop.permute.xlu0 %2968
      %2970 = vrot.lane.b32.xlu0 %v2954, 127
      %v2971 = vpop.permute.xlu0 %2970
      %2972 = vrot.lane.b32.xlu0 %v2955, 127
      %v2973 = vpop.permute.xlu0 %2972
      %v2974 = vsel %vm2221, %v2963, %v2965
      %v2975 = vsel %vm2221, %v2965, %v2967
      %v2976 = vsel %vm2221, %v2967, %v2969
      %v2977 = vsel %vm2221, %v2969, %v2971
      %v2978 = vsel %vm2221, %v2971, %v2973
      %v2985 = vadd.f32 %v2556, %v2974
      %v2986 = vadd.f32 %v2557, %v2975
      %v2987 = vadd.f32 %v2558, %v2976
      %v2988 = vadd.f32 %v2559, %v2977
      %v2989 = vadd.f32 %v2560, %v2978
      %v2990 = vadd.f32 %v2561, %v2973
      %v2991 = vlaneseq
      %v2992 = vshrl.u32 %v2991, 7
      %v2993 = vsub.s32 2, %v2992
      %v2994 = vrot.slane %v2815, %v2993
      %v2995 = vlaneseq
      %v2996 = vshrl.u32 %v2995, 7
      %v2997 = vsub.s32 2, %v2996
      %v2998 = vrot.slane %v2817, %v2997
      %v2999 = vlaneseq
      %v3000 = vshrl.u32 %v2999, 7
      %v3001 = vsub.s32 2, %v3000
      %v3002 = vrot.slane %v2819, %v3001
      %v3003 = vlaneseq
      %v3004 = vshrl.u32 %v3003, 7
      %v3005 = vsub.s32 2, %v3004
      %v3006 = vrot.slane %v2821, %v3005
      %v3007 = vlaneseq
      %v3008 = vshrl.u32 %v3007, 7
      %v3009 = vsub.s32 2, %v3008
      %v3010 = vrot.slane %v2823, %v3009
      %v3011 = vlaneseq
      %v3012 = vshrl.u32 %v3011, 7
      %v3013 = vsub.s32 2, %v3012
      %v3014 = vrot.slane %v2825, %v3013
      %v3015 = vmul.f32 %v2994, %v2478
      %v3016 = vmul.f32 %v2998, %v2479
      %v3017 = vmul.f32 %v3002, %v2480
      %v3018 = vmul.f32 %v3006, %v2481
      %v3019 = vmul.f32 %v3010, %v2482
      %v3020 = vmul.f32 %v3014, %v2483
      %3027 = vrot.lane.b32.xlu0 %v3015, 127
      %v3028 = vpop.permute.xlu0 %3027
      %3029 = vrot.lane.b32.xlu0 %v3016, 127
      %v3030 = vpop.permute.xlu0 %3029
      %3031 = vrot.lane.b32.xlu0 %v3017, 127
      %v3032 = vpop.permute.xlu0 %3031
      %3033 = vrot.lane.b32.xlu0 %v3018, 127
      %v3034 = vpop.permute.xlu0 %3033
      %3035 = vrot.lane.b32.xlu0 %v3019, 127
      %v3036 = vpop.permute.xlu0 %3035
      %3037 = vrot.lane.b32.xlu0 %v3020, 127
      %v3038 = vpop.permute.xlu0 %3037
      %v3039 = vsel %vm2221, %v3028, %v3030
      %v3040 = vsel %vm2221, %v3030, %v3032
      %v3041 = vsel %vm2221, %v3032, %v3034
      %v3042 = vsel %vm2221, %v3034, %v3036
      %v3043 = vsel %vm2221, %v3036, %v3038
      %v3050 = vadd.f32 %v2592, %v3039
      %v3051 = vadd.f32 %v2593, %v3040
      %v3052 = vadd.f32 %v2594, %v3041
      %v3053 = vadd.f32 %v2595, %v3042
      %v3054 = vadd.f32 %v2596, %v3043
      %v3055 = vadd.f32 %v2597, %v3038
      %v3056 = vlaneseq
      %v3057 = vshrl.u32 %v3056, 7
      %v3058 = vsub.s32 3, %v3057
      %v3059 = vrot.slane %v2815, %v3058
      %v3060 = vlaneseq
      %v3061 = vshrl.u32 %v3060, 7
      %v3062 = vsub.s32 3, %v3061
      %v3063 = vrot.slane %v2817, %v3062
      %v3064 = vlaneseq
      %v3065 = vshrl.u32 %v3064, 7
      %v3066 = vsub.s32 3, %v3065
      %v3067 = vrot.slane %v2819, %v3066
      %v3068 = vlaneseq
      %v3069 = vshrl.u32 %v3068, 7
      %v3070 = vsub.s32 3, %v3069
      %v3071 = vrot.slane %v2821, %v3070
      %v3072 = vlaneseq
      %v3073 = vshrl.u32 %v3072, 7
      %v3074 = vsub.s32 3, %v3073
      %v3075 = vrot.slane %v2823, %v3074
      %v3076 = vlaneseq
      %v3077 = vshrl.u32 %v3076, 7
      %v3078 = vsub.s32 3, %v3077
      %v3079 = vrot.slane %v2825, %v3078
      %v3080 = vmul.f32 %v3059, %v2478
      %v3081 = vmul.f32 %v3063, %v2479
      %v3082 = vmul.f32 %v3067, %v2480
      %v3083 = vmul.f32 %v3071, %v2481
      %v3084 = vmul.f32 %v3075, %v2482
      %v3085 = vmul.f32 %v3079, %v2483
      %3092 = vrot.lane.b32.xlu0 %v3080, 127
      %v3093 = vpop.permute.xlu0 %3092
      %3094 = vrot.lane.b32.xlu0 %v3081, 127
      %v3095 = vpop.permute.xlu0 %3094
      %3096 = vrot.lane.b32.xlu0 %v3082, 127
      %v3097 = vpop.permute.xlu0 %3096
      %3098 = vrot.lane.b32.xlu0 %v3083, 127
      %v3099 = vpop.permute.xlu0 %3098
      %3100 = vrot.lane.b32.xlu0 %v3084, 127
      %v3101 = vpop.permute.xlu0 %3100
      %3102 = vrot.lane.b32.xlu0 %v3085, 127
      %v3103 = vpop.permute.xlu0 %3102
      %v3104 = vsel %vm2221, %v3093, %v3095
      %v3105 = vsel %vm2221, %v3095, %v3097
      %v3106 = vsel %vm2221, %v3097, %v3099
      %v3107 = vsel %vm2221, %v3099, %v3101
      %v3108 = vsel %vm2221, %v3101, %v3103
      %v3115 = vadd.f32 %v2628, %v3104
      %v3116 = vadd.f32 %v2629, %v3105
      %v3117 = vadd.f32 %v2630, %v3106
      %v3118 = vadd.f32 %v2631, %v3107
      %v3119 = vadd.f32 %v2632, %v3108
      %v3120 = vadd.f32 %v2633, %v3103
      %v3121 = vlaneseq
      %v3122 = vshrl.u32 %v3121, 7
      %v3123 = vsub.s32 4, %v3122
      %v3124 = vrot.slane %v2815, %v3123
      %v3125 = vlaneseq
      %v3126 = vshrl.u32 %v3125, 7
      %v3127 = vsub.s32 4, %v3126
      %v3128 = vrot.slane %v2817, %v3127
      %v3129 = vlaneseq
      %v3130 = vshrl.u32 %v3129, 7
      %v3131 = vsub.s32 4, %v3130
      %v3132 = vrot.slane %v2819, %v3131
      %v3133 = vlaneseq
      %v3134 = vshrl.u32 %v3133, 7
      %v3135 = vsub.s32 4, %v3134
      %v3136 = vrot.slane %v2821, %v3135
      %v3137 = vlaneseq
      %v3138 = vshrl.u32 %v3137, 7
      %v3139 = vsub.s32 4, %v3138
      %v3140 = vrot.slane %v2823, %v3139
      %v3141 = vlaneseq
      %v3142 = vshrl.u32 %v3141, 7
      %v3143 = vsub.s32 4, %v3142
      %v3144 = vrot.slane %v2825, %v3143
      %v3145 = vmul.f32 %v3124, %v2484
      %v3146 = vmul.f32 %v3128, %v2485
      %v3147 = vmul.f32 %v3132, %v2486
      %v3148 = vmul.f32 %v3136, %v2487
      %v3149 = vmul.f32 %v3140, %v2488
      %v3150 = vmul.f32 %v3144, %v2489
      %3157 = vrot.lane.b32.xlu0 %v3145, 127
      %v3158 = vpop.permute.xlu0 %3157
      %3159 = vrot.lane.b32.xlu0 %v3146, 127
      %v3160 = vpop.permute.xlu0 %3159
      %3161 = vrot.lane.b32.xlu0 %v3147, 127
      %v3162 = vpop.permute.xlu0 %3161
      %3163 = vrot.lane.b32.xlu0 %v3148, 127
      %v3164 = vpop.permute.xlu0 %3163
      %3165 = vrot.lane.b32.xlu0 %v3149, 127
      %v3166 = vpop.permute.xlu0 %3165
      %3167 = vrot.lane.b32.xlu0 %v3150, 127
      %v3168 = vpop.permute.xlu0 %3167
      %v3169 = vsel %vm2221, %v3158, %v3160
      %v3170 = vsel %vm2221, %v3160, %v3162
      %v3171 = vsel %vm2221, %v3162, %v3164
      %v3172 = vsel %vm2221, %v3164, %v3166
      %v3173 = vsel %vm2221, %v3166, %v3168
      %v3180 = vadd.f32 %v2664, %v3169
      %v3181 = vadd.f32 %v2665, %v3170
      %v3182 = vadd.f32 %v2666, %v3171
      %v3183 = vadd.f32 %v2667, %v3172
      %v3184 = vadd.f32 %v2668, %v3173
      %v3185 = vadd.f32 %v2669, %v3168
      %v3186 = vlaneseq
      %v3187 = vshrl.u32 %v3186, 7
      %v3188 = vsub.s32 5, %v3187
      %v3189 = vrot.slane %v2815, %v3188
      %v3190 = vlaneseq
      %v3191 = vshrl.u32 %v3190, 7
      %v3192 = vsub.s32 5, %v3191
      %v3193 = vrot.slane %v2817, %v3192
      %v3194 = vlaneseq
      %v3195 = vshrl.u32 %v3194, 7
      %v3196 = vsub.s32 5, %v3195
      %v3197 = vrot.slane %v2819, %v3196
      %v3198 = vlaneseq
      %v3199 = vshrl.u32 %v3198, 7
      %v3200 = vsub.s32 5, %v3199
      %v3201 = vrot.slane %v2821, %v3200
      %v3202 = vlaneseq
      %v3203 = vshrl.u32 %v3202, 7
      %v3204 = vsub.s32 5, %v3203
      %v3205 = vrot.slane %v2823, %v3204
      %v3206 = vlaneseq
      %v3207 = vshrl.u32 %v3206, 7
      %v3208 = vsub.s32 5, %v3207
      %v3209 = vrot.slane %v2825, %v3208
      %v3210 = vmul.f32 %v3189, %v2484
      %v3211 = vmul.f32 %v3193, %v2485
      %v3212 = vmul.f32 %v3197, %v2486
      %v3213 = vmul.f32 %v3201, %v2487
      %v3214 = vmul.f32 %v3205, %v2488
      %v3215 = vmul.f32 %v3209, %v2489
      %3222 = vrot.lane.b32.xlu0 %v3210, 127
      %v3223 = vpop.permute.xlu0 %3222
      %3224 = vrot.lane.b32.xlu0 %v3211, 127
      %v3225 = vpop.permute.xlu0 %3224
      %3226 = vrot.lane.b32.xlu0 %v3212, 127
      %v3227 = vpop.permute.xlu0 %3226
      %3228 = vrot.lane.b32.xlu0 %v3213, 127
      %v3229 = vpop.permute.xlu0 %3228
      %3230 = vrot.lane.b32.xlu0 %v3214, 127
      %v3231 = vpop.permute.xlu0 %3230
      %3232 = vrot.lane.b32.xlu0 %v3215, 127
      %v3233 = vpop.permute.xlu0 %3232
      %v3234 = vsel %vm2221, %v3223, %v3225
      %v3235 = vsel %vm2221, %v3225, %v3227
      %v3236 = vsel %vm2221, %v3227, %v3229
      %v3237 = vsel %vm2221, %v3229, %v3231
      %v3238 = vsel %vm2221, %v3231, %v3233
      %v3245 = vadd.f32 %v2700, %v3234
      %v3246 = vadd.f32 %v2701, %v3235
      %v3247 = vadd.f32 %v2702, %v3236
      %v3248 = vadd.f32 %v2703, %v3237
      %v3249 = vadd.f32 %v2704, %v3238
      %v3250 = vadd.f32 %v2705, %v3233
      %v3251 = vlaneseq
      %v3252 = vshrl.u32 %v3251, 7
      %v3253 = vsub.s32 6, %v3252
      %v3254 = vrot.slane %v2815, %v3253
      %v3255 = vlaneseq
      %v3256 = vshrl.u32 %v3255, 7
      %v3257 = vsub.s32 6, %v3256
      %v3258 = vrot.slane %v2817, %v3257
      %v3259 = vlaneseq
      %v3260 = vshrl.u32 %v3259, 7
      %v3261 = vsub.s32 6, %v3260
      %v3262 = vrot.slane %v2819, %v3261
      %v3263 = vlaneseq
      %v3264 = vshrl.u32 %v3263, 7
      %v3265 = vsub.s32 6, %v3264
      %v3266 = vrot.slane %v2821, %v3265
      %v3267 = vlaneseq
      %v3268 = vshrl.u32 %v3267, 7
      %v3269 = vsub.s32 6, %v3268
      %v3270 = vrot.slane %v2823, %v3269
      %v3271 = vlaneseq
      %v3272 = vshrl.u32 %v3271, 7
      %v3273 = vsub.s32 6, %v3272
      %v3274 = vrot.slane %v2825, %v3273
      %v3275 = vmul.f32 %v3254, %v2484
      %v3276 = vmul.f32 %v3258, %v2485
      %v3277 = vmul.f32 %v3262, %v2486
      %v3278 = vmul.f32 %v3266, %v2487
      %v3279 = vmul.f32 %v3270, %v2488
      %v3280 = vmul.f32 %v3274, %v2489
      %3287 = vrot.lane.b32.xlu0 %v3275, 127
      %v3288 = vpop.permute.xlu0 %3287
      %3289 = vrot.lane.b32.xlu0 %v3276, 127
      %v3290 = vpop.permute.xlu0 %3289
      %3291 = vrot.lane.b32.xlu0 %v3277, 127
      %v3292 = vpop.permute.xlu0 %3291
      %3293 = vrot.lane.b32.xlu0 %v3278, 127
      %v3294 = vpop.permute.xlu0 %3293
      %3295 = vrot.lane.b32.xlu0 %v3279, 127
      %v3296 = vpop.permute.xlu0 %3295
      %3297 = vrot.lane.b32.xlu0 %v3280, 127
      %v3298 = vpop.permute.xlu0 %3297
      %v3299 = vsel %vm2221, %v3288, %v3290
      %v3300 = vsel %vm2221, %v3290, %v3292
      %v3301 = vsel %vm2221, %v3292, %v3294
      %v3302 = vsel %vm2221, %v3294, %v3296
      %v3303 = vsel %vm2221, %v3296, %v3298
      %v3310 = vadd.f32 %v2736, %v3299
      %v3311 = vadd.f32 %v2737, %v3300
      %v3312 = vadd.f32 %v2738, %v3301
      %v3313 = vadd.f32 %v2739, %v3302
      %v3314 = vadd.f32 %v2740, %v3303
      %v3315 = vadd.f32 %v2741, %v3298
      %v3316 = vlaneseq
      %v3317 = vshrl.u32 %v3316, 7
      %v3318 = vsub.s32 7, %v3317
      %v3319 = vrot.slane %v2815, %v3318
      %v3320 = vlaneseq
      %v3321 = vshrl.u32 %v3320, 7
      %v3322 = vsub.s32 7, %v3321
      %v3323 = vrot.slane %v2817, %v3322
      %v3324 = vlaneseq
      %v3325 = vshrl.u32 %v3324, 7
      %v3326 = vsub.s32 7, %v3325
      %v3327 = vrot.slane %v2819, %v3326
      %v3328 = vlaneseq
      %v3329 = vshrl.u32 %v3328, 7
      %v3330 = vsub.s32 7, %v3329
      %v3331 = vrot.slane %v2821, %v3330
      %v3332 = vlaneseq
      %v3333 = vshrl.u32 %v3332, 7
      %v3334 = vsub.s32 7, %v3333
      %v3335 = vrot.slane %v2823, %v3334
      %v3336 = vlaneseq
      %v3337 = vshrl.u32 %v3336, 7
      %v3338 = vsub.s32 7, %v3337
      %v3339 = vrot.slane %v2825, %v3338
      %v3340 = vmul.f32 %v3319, %v2484
      %v3341 = vmul.f32 %v3323, %v2485
      %v3342 = vmul.f32 %v3327, %v2486
      %v3343 = vmul.f32 %v3331, %v2487
      %v3344 = vmul.f32 %v3335, %v2488
      %v3345 = vmul.f32 %v3339, %v2489
      %3352 = vrot.lane.b32.xlu0 %v3340, 127
      %v3353 = vpop.permute.xlu0 %3352
      %3354 = vrot.lane.b32.xlu0 %v3341, 127
      %v3355 = vpop.permute.xlu0 %3354
      %3356 = vrot.lane.b32.xlu0 %v3342, 127
      %v3357 = vpop.permute.xlu0 %3356
      %3358 = vrot.lane.b32.xlu0 %v3343, 127
      %v3359 = vpop.permute.xlu0 %3358
      %3360 = vrot.lane.b32.xlu0 %v3344, 127
      %v3361 = vpop.permute.xlu0 %3360
      %3362 = vrot.lane.b32.xlu0 %v3345, 127
      %v3363 = vpop.permute.xlu0 %3362
      %v3364 = vsel %vm2221, %v3353, %v3355
      %v3365 = vsel %vm2221, %v3355, %v3357
      %v3366 = vsel %vm2221, %v3357, %v3359
      %v3367 = vsel %vm2221, %v3359, %v3361
      %v3368 = vsel %vm2221, %v3361, %v3363
      %v3375 = vadd.f32 %v2772, %v3364
      %v3376 = vadd.f32 %v2773, %v3365
      %v3377 = vadd.f32 %v2774, %v3366
      %v3378 = vadd.f32 %v2775, %v3367
      %v3379 = vadd.f32 %v2776, %v3368
      %v3380 = vadd.f32 %v2777, %v3363
      %3381 = vrot.lane.b32.xlu0 %v2448, 2
      %v3382 = vpop.permute.xlu0 %3381
      %3383 = vrot.lane.b32.xlu0 %v2449, 2
      %v3384 = vpop.permute.xlu0 %3383
      %3385 = vrot.lane.b32.xlu0 %v2450, 2
      %v3386 = vpop.permute.xlu0 %3385
      %3387 = vrot.lane.b32.xlu0 %v2451, 2
      %v3388 = vpop.permute.xlu0 %3387
      %3389 = vrot.lane.b32.xlu0 %v2452, 2
      %v3390 = vpop.permute.xlu0 %3389
      %3391 = vrot.lane.b32.xlu0 %v2453, 2
      %v3392 = vpop.permute.xlu0 %3391
      %vm3393 = vcmask 15360
      %v3394 = vsel %vm3393, %v3382, %v3384
      %v3395 = vsel %vm3393, %v3384, %v3386
      %v3396 = vsel %vm3393, %v3386, %v3388
      %v3397 = vsel %vm3393, %v3388, %v3390
      %v3398 = vsel %vm3393, %v3390, %v3392
      %v3405 = vsub.f32 %v2197, %v3382
      %v3406 = vsub.f32 %v2198, %v3394
      %v3407 = vsub.f32 %v2199, %v3395
      %v3408 = vsub.f32 %v2200, %v3396
      %v3409 = vsub.f32 %v2201, %v3397
      %v3410 = vsub.f32 %v2202, %v3398
      %v3411 = vmul.f32 %v3405, 1.442695
      %v3412 = vpow.pop %v3411
      %v3413 = vmul.f32 %v3406, 1.442695
      %v3414 = vpow.pop %v3413
      %v3415 = vmul.f32 %v3407, 1.442695
      %v3416 = vpow.pop %v3415
      %v3417 = vmul.f32 %v3408, 1.442695
      %v3418 = vpow.pop %v3417
      %v3419 = vmul.f32 %v3409, 1.442695
      %v3420 = vpow.pop %v3419
      %v3421 = vmul.f32 %v3410, 1.442695
      %v3422 = vpow.pop %v3421
      %3429 = vrot.lane.b32.xlu0 %v3412, 126
      %v3430 = vpop.permute.xlu0 %3429
      %3431 = vrot.lane.b32.xlu0 %v3414, 126
      %v3432 = vpop.permute.xlu0 %3431
      %3433 = vrot.lane.b32.xlu0 %v3416, 126
      %v3434 = vpop.permute.xlu0 %3433
      %3435 = vrot.lane.b32.xlu0 %v3418, 126
      %v3436 = vpop.permute.xlu0 %3435
      %3437 = vrot.lane.b32.xlu0 %v3420, 126
      %v3438 = vpop.permute.xlu0 %3437
      %3439 = vrot.lane.b32.xlu0 %v3422, 126
      %v3440 = vpop.permute.xlu0 %3439
      %v3441 = vsel %vm2251, %v3430, %v3432
      %v3442 = vsel %vm2251, %v3432, %v3434
      %v3443 = vsel %vm2251, %v3434, %v3436
      %v3444 = vsel %vm2251, %v3436, %v3438
      %v3445 = vsel %vm2251, %v3438, %v3440
      %v3452 = vadd.f32 %v2855, %v3441
      %v3453 = vadd.f32 %v2856, %v3442
      %v3454 = vadd.f32 %v2857, %v3443
      %v3455 = vadd.f32 %v2858, %v3444
      %v3456 = vadd.f32 %v2859, %v3445
      %v3457 = vadd.f32 %v2860, %v3440
      %v3458 = vlaneseq
      %v3459 = vshrl.u32 %v3458, 7
      %v3460 = vsub.s32 0, %v3459
      %v3461 = vrot.slane %v3412, %v3460
      %v3462 = vlaneseq
      %v3463 = vshrl.u32 %v3462, 7
      %v3464 = vsub.s32 0, %v3463
      %v3465 = vrot.slane %v3414, %v3464
      %v3466 = vlaneseq
      %v3467 = vshrl.u32 %v3466, 7
      %v3468 = vsub.s32 0, %v3467
      %v3469 = vrot.slane %v3416, %v3468
      %v3470 = vlaneseq
      %v3471 = vshrl.u32 %v3470, 7
      %v3472 = vsub.s32 0, %v3471
      %v3473 = vrot.slane %v3418, %v3472
      %v3474 = vlaneseq
      %v3475 = vshrl.u32 %v3474, 7
      %v3476 = vsub.s32 0, %v3475
      %v3477 = vrot.slane %v3420, %v3476
      %v3478 = vlaneseq
      %v3479 = vshrl.u32 %v3478, 7
      %v3480 = vsub.s32 0, %v3479
      %v3481 = vrot.slane %v3422, %v3480
      %v3482 = vmul.f32 %v3461, %v2478
      %v3483 = vmul.f32 %v3465, %v2479
      %v3484 = vmul.f32 %v3469, %v2480
      %v3485 = vmul.f32 %v3473, %v2481
      %v3486 = vmul.f32 %v3477, %v2482
      %v3487 = vmul.f32 %v3481, %v2483
      %3494 = vrot.lane.b32.xlu0 %v3482, 126
      %v3495 = vpop.permute.xlu0 %3494
      %3496 = vrot.lane.b32.xlu0 %v3483, 126
      %v3497 = vpop.permute.xlu0 %3496
      %3498 = vrot.lane.b32.xlu0 %v3484, 126
      %v3499 = vpop.permute.xlu0 %3498
      %3500 = vrot.lane.b32.xlu0 %v3485, 126
      %v3501 = vpop.permute.xlu0 %3500
      %3502 = vrot.lane.b32.xlu0 %v3486, 126
      %v3503 = vpop.permute.xlu0 %3502
      %3504 = vrot.lane.b32.xlu0 %v3487, 126
      %v3505 = vpop.permute.xlu0 %3504
      %v3506 = vsel %vm2251, %v3495, %v3497
      %v3507 = vsel %vm2251, %v3497, %v3499
      %v3508 = vsel %vm2251, %v3499, %v3501
      %v3509 = vsel %vm2251, %v3501, %v3503
      %v3510 = vsel %vm2251, %v3503, %v3505
      %v3517 = vadd.f32 %v2920, %v3506
      %v3518 = vadd.f32 %v2921, %v3507
      %v3519 = vadd.f32 %v2922, %v3508
      %v3520 = vadd.f32 %v2923, %v3509
      %v3521 = vadd.f32 %v2924, %v3510
      %v3522 = vadd.f32 %v2925, %v3505
      %v3523 = vlaneseq
      %v3524 = vshrl.u32 %v3523, 7
      %v3525 = vsub.s32 1, %v3524
      %v3526 = vrot.slane %v3412, %v3525
      %v3527 = vlaneseq
      %v3528 = vshrl.u32 %v3527, 7
      %v3529 = vsub.s32 1, %v3528
      %v3530 = vrot.slane %v3414, %v3529
      %v3531 = vlaneseq
      %v3532 = vshrl.u32 %v3531, 7
      %v3533 = vsub.s32 1, %v3532
      %v3534 = vrot.slane %v3416, %v3533
      %v3535 = vlaneseq
      %v3536 = vshrl.u32 %v3535, 7
      %v3537 = vsub.s32 1, %v3536
      %v3538 = vrot.slane %v3418, %v3537
      %v3539 = vlaneseq
      %v3540 = vshrl.u32 %v3539, 7
      %v3541 = vsub.s32 1, %v3540
      %v3542 = vrot.slane %v3420, %v3541
      %v3543 = vlaneseq
      %v3544 = vshrl.u32 %v3543, 7
      %v3545 = vsub.s32 1, %v3544
      %v3546 = vrot.slane %v3422, %v3545
      %v3547 = vmul.f32 %v3526, %v2478
      %v3548 = vmul.f32 %v3530, %v2479
      %v3549 = vmul.f32 %v3534, %v2480
      %v3550 = vmul.f32 %v3538, %v2481
      %v3551 = vmul.f32 %v3542, %v2482
      %v3552 = vmul.f32 %v3546, %v2483
      %3559 = vrot.lane.b32.xlu0 %v3547, 126
      %v3560 = vpop.permute.xlu0 %3559
      %3561 = vrot.lane.b32.xlu0 %v3548, 126
      %v3562 = vpop.permute.xlu0 %3561
      %3563 = vrot.lane.b32.xlu0 %v3549, 126
      %v3564 = vpop.permute.xlu0 %3563
      %3565 = vrot.lane.b32.xlu0 %v3550, 126
      %v3566 = vpop.permute.xlu0 %3565
      %3567 = vrot.lane.b32.xlu0 %v3551, 126
      %v3568 = vpop.permute.xlu0 %3567
      %3569 = vrot.lane.b32.xlu0 %v3552, 126
      %v3570 = vpop.permute.xlu0 %3569
      %v3571 = vsel %vm2251, %v3560, %v3562
      %v3572 = vsel %vm2251, %v3562, %v3564
      %v3573 = vsel %vm2251, %v3564, %v3566
      %v3574 = vsel %vm2251, %v3566, %v3568
      %v3575 = vsel %vm2251, %v3568, %v3570
      %v3582 = vadd.f32 %v2985, %v3571
      %v3583 = vadd.f32 %v2986, %v3572
      %v3584 = vadd.f32 %v2987, %v3573
      %v3585 = vadd.f32 %v2988, %v3574
      %v3586 = vadd.f32 %v2989, %v3575
      %v3587 = vadd.f32 %v2990, %v3570
      %v3588 = vlaneseq
      %v3589 = vshrl.u32 %v3588, 7
      %v3590 = vsub.s32 2, %v3589
      %v3591 = vrot.slane %v3412, %v3590
      %v3592 = vlaneseq
      %v3593 = vshrl.u32 %v3592, 7
      %v3594 = vsub.s32 2, %v3593
      %v3595 = vrot.slane %v3414, %v3594
      %v3596 = vlaneseq
      %v3597 = vshrl.u32 %v3596, 7
      %v3598 = vsub.s32 2, %v3597
      %v3599 = vrot.slane %v3416, %v3598
      %v3600 = vlaneseq
      %v3601 = vshrl.u32 %v3600, 7
      %v3602 = vsub.s32 2, %v3601
      %v3603 = vrot.slane %v3418, %v3602
      %v3604 = vlaneseq
      %v3605 = vshrl.u32 %v3604, 7
      %v3606 = vsub.s32 2, %v3605
      %v3607 = vrot.slane %v3420, %v3606
      %v3608 = vlaneseq
      %v3609 = vshrl.u32 %v3608, 7
      %v3610 = vsub.s32 2, %v3609
      %v3611 = vrot.slane %v3422, %v3610
      %v3612 = vmul.f32 %v3591, %v2478
      %v3613 = vmul.f32 %v3595, %v2479
      %v3614 = vmul.f32 %v3599, %v2480
      %v3615 = vmul.f32 %v3603, %v2481
      %v3616 = vmul.f32 %v3607, %v2482
      %v3617 = vmul.f32 %v3611, %v2483
      %3624 = vrot.lane.b32.xlu0 %v3612, 126
      %v3625 = vpop.permute.xlu0 %3624
      %3626 = vrot.lane.b32.xlu0 %v3613, 126
      %v3627 = vpop.permute.xlu0 %3626
      %3628 = vrot.lane.b32.xlu0 %v3614, 126
      %v3629 = vpop.permute.xlu0 %3628
      %3630 = vrot.lane.b32.xlu0 %v3615, 126
      %v3631 = vpop.permute.xlu0 %3630
      %3632 = vrot.lane.b32.xlu0 %v3616, 126
      %v3633 = vpop.permute.xlu0 %3632
      %3634 = vrot.lane.b32.xlu0 %v3617, 126
      %v3635 = vpop.permute.xlu0 %3634
      %v3636 = vsel %vm2251, %v3625, %v3627
      %v3637 = vsel %vm2251, %v3627, %v3629
      %v3638 = vsel %vm2251, %v3629, %v3631
      %v3639 = vsel %vm2251, %v3631, %v3633
      %v3640 = vsel %vm2251, %v3633, %v3635
      %v3647 = vadd.f32 %v3050, %v3636
      %v3648 = vadd.f32 %v3051, %v3637
      %v3649 = vadd.f32 %v3052, %v3638
      %v3650 = vadd.f32 %v3053, %v3639
      %v3651 = vadd.f32 %v3054, %v3640
      %v3652 = vadd.f32 %v3055, %v3635
      %v3653 = vlaneseq
      %v3654 = vshrl.u32 %v3653, 7
      %v3655 = vsub.s32 3, %v3654
      %v3656 = vrot.slane %v3412, %v3655
      %v3657 = vlaneseq
      %v3658 = vshrl.u32 %v3657, 7
      %v3659 = vsub.s32 3, %v3658
      %v3660 = vrot.slane %v3414, %v3659
      %v3661 = vlaneseq
      %v3662 = vshrl.u32 %v3661, 7
      %v3663 = vsub.s32 3, %v3662
      %v3664 = vrot.slane %v3416, %v3663
      %v3665 = vlaneseq
      %v3666 = vshrl.u32 %v3665, 7
      %v3667 = vsub.s32 3, %v3666
      %v3668 = vrot.slane %v3418, %v3667
      %v3669 = vlaneseq
      %v3670 = vshrl.u32 %v3669, 7
      %v3671 = vsub.s32 3, %v3670
      %v3672 = vrot.slane %v3420, %v3671
      %v3673 = vlaneseq
      %v3674 = vshrl.u32 %v3673, 7
      %v3675 = vsub.s32 3, %v3674
      %v3676 = vrot.slane %v3422, %v3675
      %v3677 = vmul.f32 %v3656, %v2478
      %v3678 = vmul.f32 %v3660, %v2479
      %v3679 = vmul.f32 %v3664, %v2480
      %v3680 = vmul.f32 %v3668, %v2481
      %v3681 = vmul.f32 %v3672, %v2482
      %v3682 = vmul.f32 %v3676, %v2483
      %3689 = vrot.lane.b32.xlu0 %v3677, 126
      %v3690 = vpop.permute.xlu0 %3689
      %3691 = vrot.lane.b32.xlu0 %v3678, 126
      %v3692 = vpop.permute.xlu0 %3691
      %3693 = vrot.lane.b32.xlu0 %v3679, 126
      %v3694 = vpop.permute.xlu0 %3693
      %3695 = vrot.lane.b32.xlu0 %v3680, 126
      %v3696 = vpop.permute.xlu0 %3695
      %3697 = vrot.lane.b32.xlu0 %v3681, 126
      %v3698 = vpop.permute.xlu0 %3697
      %3699 = vrot.lane.b32.xlu0 %v3682, 126
      %v3700 = vpop.permute.xlu0 %3699
      %v3701 = vsel %vm2251, %v3690, %v3692
      %v3702 = vsel %vm2251, %v3692, %v3694
      %v3703 = vsel %vm2251, %v3694, %v3696
      %v3704 = vsel %vm2251, %v3696, %v3698
      %v3705 = vsel %vm2251, %v3698, %v3700
      %v3712 = vadd.f32 %v3115, %v3701
      %v3713 = vadd.f32 %v3116, %v3702
      %v3714 = vadd.f32 %v3117, %v3703
      %v3715 = vadd.f32 %v3118, %v3704
      %v3716 = vadd.f32 %v3119, %v3705
      %v3717 = vadd.f32 %v3120, %v3700
      %v3718 = vlaneseq
      %v3719 = vshrl.u32 %v3718, 7
      %v3720 = vsub.s32 4, %v3719
      %v3721 = vrot.slane %v3412, %v3720
      %v3722 = vlaneseq
      %v3723 = vshrl.u32 %v3722, 7
      %v3724 = vsub.s32 4, %v3723
      %v3725 = vrot.slane %v3414, %v3724
      %v3726 = vlaneseq
      %v3727 = vshrl.u32 %v3726, 7
      %v3728 = vsub.s32 4, %v3727
      %v3729 = vrot.slane %v3416, %v3728
      %v3730 = vlaneseq
      %v3731 = vshrl.u32 %v3730, 7
      %v3732 = vsub.s32 4, %v3731
      %v3733 = vrot.slane %v3418, %v3732
      %v3734 = vlaneseq
      %v3735 = vshrl.u32 %v3734, 7
      %v3736 = vsub.s32 4, %v3735
      %v3737 = vrot.slane %v3420, %v3736
      %v3738 = vlaneseq
      %v3739 = vshrl.u32 %v3738, 7
      %v3740 = vsub.s32 4, %v3739
      %v3741 = vrot.slane %v3422, %v3740
      %v3742 = vmul.f32 %v3721, %v2484
      %v3743 = vmul.f32 %v3725, %v2485
      %v3744 = vmul.f32 %v3729, %v2486
      %v3745 = vmul.f32 %v3733, %v2487
      %v3746 = vmul.f32 %v3737, %v2488
      %v3747 = vmul.f32 %v3741, %v2489
      %3754 = vrot.lane.b32.xlu0 %v3742, 126
      %v3755 = vpop.permute.xlu0 %3754
      %3756 = vrot.lane.b32.xlu0 %v3743, 126
      %v3757 = vpop.permute.xlu0 %3756
      %3758 = vrot.lane.b32.xlu0 %v3744, 126
      %v3759 = vpop.permute.xlu0 %3758
      %3760 = vrot.lane.b32.xlu0 %v3745, 126
      %v3761 = vpop.permute.xlu0 %3760
      %3762 = vrot.lane.b32.xlu0 %v3746, 126
      %v3763 = vpop.permute.xlu0 %3762
      %3764 = vrot.lane.b32.xlu0 %v3747, 126
      %v3765 = vpop.permute.xlu0 %3764
      %v3766 = vsel %vm2251, %v3755, %v3757
      %v3767 = vsel %vm2251, %v3757, %v3759
      %v3768 = vsel %vm2251, %v3759, %v3761
      %v3769 = vsel %vm2251, %v3761, %v3763
      %v3770 = vsel %vm2251, %v3763, %v3765
      %v3777 = vadd.f32 %v3180, %v3766
      %v3778 = vadd.f32 %v3181, %v3767
      %v3779 = vadd.f32 %v3182, %v3768
      %v3780 = vadd.f32 %v3183, %v3769
      %v3781 = vadd.f32 %v3184, %v3770
      %v3782 = vadd.f32 %v3185, %v3765
      %v3783 = vlaneseq
      %v3784 = vshrl.u32 %v3783, 7
      %v3785 = vsub.s32 5, %v3784
      %v3786 = vrot.slane %v3412, %v3785
      %v3787 = vlaneseq
      %v3788 = vshrl.u32 %v3787, 7
      %v3789 = vsub.s32 5, %v3788
      %v3790 = vrot.slane %v3414, %v3789
      %v3791 = vlaneseq
      %v3792 = vshrl.u32 %v3791, 7
      %v3793 = vsub.s32 5, %v3792
      %v3794 = vrot.slane %v3416, %v3793
      %v3795 = vlaneseq
      %v3796 = vshrl.u32 %v3795, 7
      %v3797 = vsub.s32 5, %v3796
      %v3798 = vrot.slane %v3418, %v3797
      %v3799 = vlaneseq
      %v3800 = vshrl.u32 %v3799, 7
      %v3801 = vsub.s32 5, %v3800
      %v3802 = vrot.slane %v3420, %v3801
      %v3803 = vlaneseq
      %v3804 = vshrl.u32 %v3803, 7
      %v3805 = vsub.s32 5, %v3804
      %v3806 = vrot.slane %v3422, %v3805
      %v3807 = vmul.f32 %v3786, %v2484
      %v3808 = vmul.f32 %v3790, %v2485
      %v3809 = vmul.f32 %v3794, %v2486
      %v3810 = vmul.f32 %v3798, %v2487
      %v3811 = vmul.f32 %v3802, %v2488
      %v3812 = vmul.f32 %v3806, %v2489
      %3819 = vrot.lane.b32.xlu0 %v3807, 126
      %v3820 = vpop.permute.xlu0 %3819
      %3821 = vrot.lane.b32.xlu0 %v3808, 126
      %v3822 = vpop.permute.xlu0 %3821
      %3823 = vrot.lane.b32.xlu0 %v3809, 126
      %v3824 = vpop.permute.xlu0 %3823
      %3825 = vrot.lane.b32.xlu0 %v3810, 126
      %v3826 = vpop.permute.xlu0 %3825
      %3827 = vrot.lane.b32.xlu0 %v3811, 126
      %v3828 = vpop.permute.xlu0 %3827
      %3829 = vrot.lane.b32.xlu0 %v3812, 126
      %v3830 = vpop.permute.xlu0 %3829
      %v3831 = vsel %vm2251, %v3820, %v3822
      %v3832 = vsel %vm2251, %v3822, %v3824
      %v3833 = vsel %vm2251, %v3824, %v3826
      %v3834 = vsel %vm2251, %v3826, %v3828
      %v3835 = vsel %vm2251, %v3828, %v3830
      %v3842 = vadd.f32 %v3245, %v3831
      %v3843 = vadd.f32 %v3246, %v3832
      %v3844 = vadd.f32 %v3247, %v3833
      %v3845 = vadd.f32 %v3248, %v3834
      %v3846 = vadd.f32 %v3249, %v3835
      %v3847 = vadd.f32 %v3250, %v3830
      %v3848 = vlaneseq
      %v3849 = vshrl.u32 %v3848, 7
      %v3850 = vsub.s32 6, %v3849
      %v3851 = vrot.slane %v3412, %v3850
      %v3852 = vlaneseq
      %v3853 = vshrl.u32 %v3852, 7
      %v3854 = vsub.s32 6, %v3853
      %v3855 = vrot.slane %v3414, %v3854
      %v3856 = vlaneseq
      %v3857 = vshrl.u32 %v3856, 7
      %v3858 = vsub.s32 6, %v3857
      %v3859 = vrot.slane %v3416, %v3858
      %v3860 = vlaneseq
      %v3861 = vshrl.u32 %v3860, 7
      %v3862 = vsub.s32 6, %v3861
      %v3863 = vrot.slane %v3418, %v3862
      %v3864 = vlaneseq
      %v3865 = vshrl.u32 %v3864, 7
      %v3866 = vsub.s32 6, %v3865
      %v3867 = vrot.slane %v3420, %v3866
      %v3868 = vlaneseq
      %v3869 = vshrl.u32 %v3868, 7
      %v3870 = vsub.s32 6, %v3869
      %v3871 = vrot.slane %v3422, %v3870
      %v3872 = vmul.f32 %v3851, %v2484
      %v3873 = vmul.f32 %v3855, %v2485
      %v3874 = vmul.f32 %v3859, %v2486
      %v3875 = vmul.f32 %v3863, %v2487
      %v3876 = vmul.f32 %v3867, %v2488
      %v3877 = vmul.f32 %v3871, %v2489
      %3884 = vrot.lane.b32.xlu0 %v3872, 126
      %v3885 = vpop.permute.xlu0 %3884
      %3886 = vrot.lane.b32.xlu0 %v3873, 126
      %v3887 = vpop.permute.xlu0 %3886
      %3888 = vrot.lane.b32.xlu0 %v3874, 126
      %v3889 = vpop.permute.xlu0 %3888
      %3890 = vrot.lane.b32.xlu0 %v3875, 126
      %v3891 = vpop.permute.xlu0 %3890
      %3892 = vrot.lane.b32.xlu0 %v3876, 126
      %v3893 = vpop.permute.xlu0 %3892
      %3894 = vrot.lane.b32.xlu0 %v3877, 126
      %v3895 = vpop.permute.xlu0 %3894
      %v3896 = vsel %vm2251, %v3885, %v3887
      %v3897 = vsel %vm2251, %v3887, %v3889
      %v3898 = vsel %vm2251, %v3889, %v3891
      %v3899 = vsel %vm2251, %v3891, %v3893
      %v3900 = vsel %vm2251, %v3893, %v3895
      %v3907 = vadd.f32 %v3310, %v3896
      %v3908 = vadd.f32 %v3311, %v3897
      %v3909 = vadd.f32 %v3312, %v3898
      %v3910 = vadd.f32 %v3313, %v3899
      %v3911 = vadd.f32 %v3314, %v3900
      %v3912 = vadd.f32 %v3315, %v3895
      %v3913 = vlaneseq
      %v3914 = vshrl.u32 %v3913, 7
      %v3915 = vsub.s32 7, %v3914
      %v3916 = vrot.slane %v3412, %v3915
      %v3917 = vlaneseq
      %v3918 = vshrl.u32 %v3917, 7
      %v3919 = vsub.s32 7, %v3918
      %v3920 = vrot.slane %v3414, %v3919
      %v3921 = vlaneseq
      %v3922 = vshrl.u32 %v3921, 7
      %v3923 = vsub.s32 7, %v3922
      %v3924 = vrot.slane %v3416, %v3923
      %v3925 = vlaneseq
      %v3926 = vshrl.u32 %v3925, 7
      %v3927 = vsub.s32 7, %v3926
      %v3928 = vrot.slane %v3418, %v3927
      %v3929 = vlaneseq
      %v3930 = vshrl.u32 %v3929, 7
      %v3931 = vsub.s32 7, %v3930
      %v3932 = vrot.slane %v3420, %v3931
      %v3933 = vlaneseq
      %v3934 = vshrl.u32 %v3933, 7
      %v3935 = vsub.s32 7, %v3934
      %v3936 = vrot.slane %v3422, %v3935
      %v3937 = vmul.f32 %v3916, %v2484
      %v3938 = vmul.f32 %v3920, %v2485
      %v3939 = vmul.f32 %v3924, %v2486
      %v3940 = vmul.f32 %v3928, %v2487
      %v3941 = vmul.f32 %v3932, %v2488
      %v3942 = vmul.f32 %v3936, %v2489
      %3949 = vrot.lane.b32.xlu0 %v3937, 126
      %v3950 = vpop.permute.xlu0 %3949
      %3951 = vrot.lane.b32.xlu0 %v3938, 126
      %v3952 = vpop.permute.xlu0 %3951
      %3953 = vrot.lane.b32.xlu0 %v3939, 126
      %v3954 = vpop.permute.xlu0 %3953
      %3955 = vrot.lane.b32.xlu0 %v3940, 126
      %v3956 = vpop.permute.xlu0 %3955
      %3957 = vrot.lane.b32.xlu0 %v3941, 126
      %v3958 = vpop.permute.xlu0 %3957
      %3959 = vrot.lane.b32.xlu0 %v3942, 126
      %v3960 = vpop.permute.xlu0 %3959
      %v3961 = vsel %vm2251, %v3950, %v3952
      %v3962 = vsel %vm2251, %v3952, %v3954
      %v3963 = vsel %vm2251, %v3954, %v3956
      %v3964 = vsel %vm2251, %v3956, %v3958
      %v3965 = vsel %vm2251, %v3958, %v3960
      %v3972 = vadd.f32 %v3375, %v3961
      %v3973 = vadd.f32 %v3376, %v3962
      %v3974 = vadd.f32 %v3377, %v3963
      %v3975 = vadd.f32 %v3378, %v3964
      %v3976 = vadd.f32 %v3379, %v3965
      %v3977 = vadd.f32 %v3380, %v3960
      %3978 = vrot.lane.b32.xlu0 %v2448, 18
      %v3979 = vpop.permute.xlu0 %3978
      %3980 = vrot.lane.b32.xlu0 %v2449, 18
      %v3981 = vpop.permute.xlu0 %3980
      %3982 = vrot.lane.b32.xlu0 %v2450, 18
      %v3983 = vpop.permute.xlu0 %3982
      %3984 = vrot.lane.b32.xlu0 %v2451, 18
      %v3985 = vpop.permute.xlu0 %3984
      %3986 = vrot.lane.b32.xlu0 %v2452, 18
      %v3987 = vpop.permute.xlu0 %3986
      %3988 = vrot.lane.b32.xlu0 %v2453, 18
      %v3989 = vpop.permute.xlu0 %3988
      %vm3990 = vcmask 146432
      %v3991 = vsel %vm3990, %v3979, %v3981
      %v3992 = vsel %vm3990, %v3981, %v3983
      %v3993 = vsel %vm3990, %v3983, %v3985
      %v3994 = vsel %vm3990, %v3985, %v3987
      %v3995 = vsel %vm3990, %v3987, %v3989
      %v4003 = vsub.f32 %v2197, %v3979
      %v4004 = vsub.f32 %v2198, %v3991
      %v4005 = vsub.f32 %v2199, %v3992
      %v4006 = vsub.f32 %v2200, %v3993
      %v4007 = vsub.f32 %v2201, %v3994
      %v4008 = vsub.f32 %v2202, %v3995
      %v4009 = vsub.f32 %v2269, %v3989
      %v4010 = vmul.f32 %v4003, 1.442695
      %v4011 = vpow.pop %v4010
      %v4012 = vmul.f32 %v4004, 1.442695
      %v4013 = vpow.pop %v4012
      %v4014 = vmul.f32 %v4005, 1.442695
      %v4015 = vpow.pop %v4014
      %v4016 = vmul.f32 %v4006, 1.442695
      %v4017 = vpow.pop %v4016
      %v4018 = vmul.f32 %v4007, 1.442695
      %v4019 = vpow.pop %v4018
      %v4020 = vmul.f32 %v4008, 1.442695
      %v4021 = vpow.pop %v4020
      %v4022 = vmul.f32 %v4009, 1.442695
      %v4023 = vpow.pop %v4022
      %4031 = vrot.lane.b32.xlu0 %v4011, 110
      %v4032 = vpop.permute.xlu0 %4031
      %4033 = vrot.lane.b32.xlu0 %v4013, 110
      %v4034 = vpop.permute.xlu0 %4033
      %4035 = vrot.lane.b32.xlu0 %v4015, 110
      %v4036 = vpop.permute.xlu0 %4035
      %4037 = vrot.lane.b32.xlu0 %v4017, 110
      %v4038 = vpop.permute.xlu0 %4037
      %4039 = vrot.lane.b32.xlu0 %v4019, 110
      %v4040 = vpop.permute.xlu0 %4039
      %4041 = vrot.lane.b32.xlu0 %v4021, 110
      %v4042 = vpop.permute.xlu0 %4041
      %4043 = vrot.lane.b32.xlu0 %v4023, 110
      %v4044 = vpop.permute.xlu0 %4043
      %v4045 = vsel %vm2285, %v4032, %v4034
      %v4046 = vsel %vm2285, %v4034, %v4036
      %v4047 = vsel %vm2285, %v4036, %v4038
      %v4048 = vsel %vm2285, %v4038, %v4040
      %v4049 = vsel %vm2285, %v4040, %v4042
      %v4050 = vsel %vm2285, %v4042, %v4044
      %v4057 = vadd.f32 %v3452, %v4045
      %v4058 = vadd.f32 %v3453, %v4046
      %v4059 = vadd.f32 %v3454, %v4047
      %v4060 = vadd.f32 %v3455, %v4048
      %v4061 = vadd.f32 %v3456, %v4049
      %v4062 = vadd.f32 %v3457, %v4050
      %v4063 = vld [vmem:[#allocation4 + $0x30] sm:$0xff]
      %v4064 = vld [vmem:[#allocation4 + $0x70] sm:$0xff]
      %v4065 = vlaneseq
      %v4066 = vshrl.u32 %v4065, 7
      %v4067 = vsub.s32 0, %v4066
      %v4068 = vrot.slane %v4011, %v4067
      %v4069 = vlaneseq
      %v4070 = vshrl.u32 %v4069, 7
      %v4071 = vsub.s32 0, %v4070
      %v4072 = vrot.slane %v4013, %v4071
      %v4073 = vlaneseq
      %v4074 = vshrl.u32 %v4073, 7
      %v4075 = vsub.s32 0, %v4074
      %v4076 = vrot.slane %v4015, %v4075
      %v4077 = vlaneseq
      %v4078 = vshrl.u32 %v4077, 7
      %v4079 = vsub.s32 0, %v4078
      %v4080 = vrot.slane %v4017, %v4079
      %v4081 = vlaneseq
      %v4082 = vshrl.u32 %v4081, 7
      %v4083 = vsub.s32 0, %v4082
      %v4084 = vrot.slane %v4019, %v4083
      %v4085 = vlaneseq
      %v4086 = vshrl.u32 %v4085, 7
      %v4087 = vsub.s32 0, %v4086
      %v4088 = vrot.slane %v4021, %v4087
      %v4089 = vlaneseq
      %v4090 = vshrl.u32 %v4089, 7
      %v4091 = vsub.s32 0, %v4090
      %v4092 = vrot.slane %v4023, %v4091
      %v4093 = vmul.f32 %v4068, %v2478
      %v4094 = vmul.f32 %v4072, %v2479
      %v4095 = vmul.f32 %v4076, %v2480
      %v4096 = vmul.f32 %v4080, %v2481
      %v4097 = vmul.f32 %v4084, %v2482
      %v4098 = vmul.f32 %v4088, %v2483
      %v4099 = vmul.f32 %v4092, %v4063
      %4107 = vrot.lane.b32.xlu0 %v4093, 110
      %v4108 = vpop.permute.xlu0 %4107
      %4109 = vrot.lane.b32.xlu0 %v4094, 110
      %v4110 = vpop.permute.xlu0 %4109
      %4111 = vrot.lane.b32.xlu0 %v4095, 110
      %v4112 = vpop.permute.xlu0 %4111
      %4113 = vrot.lane.b32.xlu0 %v4096, 110
      %v4114 = vpop.permute.xlu0 %4113
      %4115 = vrot.lane.b32.xlu0 %v4097, 110
      %v4116 = vpop.permute.xlu0 %4115
      %4117 = vrot.lane.b32.xlu0 %v4098, 110
      %v4118 = vpop.permute.xlu0 %4117
      %4119 = vrot.lane.b32.xlu0 %v4099, 110
      %v4120 = vpop.permute.xlu0 %4119
      %v4121 = vsel %vm2285, %v4108, %v4110
      %v4122 = vsel %vm2285, %v4110, %v4112
      %v4123 = vsel %vm2285, %v4112, %v4114
      %v4124 = vsel %vm2285, %v4114, %v4116
      %v4125 = vsel %vm2285, %v4116, %v4118
      %v4126 = vsel %vm2285, %v4118, %v4120
      %v4133 = vadd.f32 %v3517, %v4121
      %v4134 = vadd.f32 %v3518, %v4122
      %v4135 = vadd.f32 %v3519, %v4123
      %v4136 = vadd.f32 %v3520, %v4124
      %v4137 = vadd.f32 %v3521, %v4125
      %v4138 = vadd.f32 %v3522, %v4126
      %v4139 = vlaneseq
      %v4140 = vshrl.u32 %v4139, 7
      %v4141 = vsub.s32 1, %v4140
      %v4142 = vrot.slane %v4011, %v4141
      %v4143 = vlaneseq
      %v4144 = vshrl.u32 %v4143, 7
      %v4145 = vsub.s32 1, %v4144
      %v4146 = vrot.slane %v4013, %v4145
      %v4147 = vlaneseq
      %v4148 = vshrl.u32 %v4147, 7
      %v4149 = vsub.s32 1, %v4148
      %v4150 = vrot.slane %v4015, %v4149
      %v4151 = vlaneseq
      %v4152 = vshrl.u32 %v4151, 7
      %v4153 = vsub.s32 1, %v4152
      %v4154 = vrot.slane %v4017, %v4153
      %v4155 = vlaneseq
      %v4156 = vshrl.u32 %v4155, 7
      %v4157 = vsub.s32 1, %v4156
      %v4158 = vrot.slane %v4019, %v4157
      %v4159 = vlaneseq
      %v4160 = vshrl.u32 %v4159, 7
      %v4161 = vsub.s32 1, %v4160
      %v4162 = vrot.slane %v4021, %v4161
      %v4163 = vlaneseq
      %v4164 = vshrl.u32 %v4163, 7
      %v4165 = vsub.s32 1, %v4164
      %v4166 = vrot.slane %v4023, %v4165
      %v4167 = vmul.f32 %v4142, %v2478
      %v4168 = vmul.f32 %v4146, %v2479
      %v4169 = vmul.f32 %v4150, %v2480
      %v4170 = vmul.f32 %v4154, %v2481
      %v4171 = vmul.f32 %v4158, %v2482
      %v4172 = vmul.f32 %v4162, %v2483
      %v4173 = vmul.f32 %v4166, %v4063
      %4181 = vrot.lane.b32.xlu0 %v4167, 110
      %v4182 = vpop.permute.xlu0 %4181
      %4183 = vrot.lane.b32.xlu0 %v4168, 110
      %v4184 = vpop.permute.xlu0 %4183
      %4185 = vrot.lane.b32.xlu0 %v4169, 110
      %v4186 = vpop.permute.xlu0 %4185
      %4187 = vrot.lane.b32.xlu0 %v4170, 110
      %v4188 = vpop.permute.xlu0 %4187
      %4189 = vrot.lane.b32.xlu0 %v4171, 110
      %v4190 = vpop.permute.xlu0 %4189
      %4191 = vrot.lane.b32.xlu0 %v4172, 110
      %v4192 = vpop.permute.xlu0 %4191
      %4193 = vrot.lane.b32.xlu0 %v4173, 110
      %v4194 = vpop.permute.xlu0 %4193
      %v4195 = vsel %vm2285, %v4182, %v4184
      %v4196 = vsel %vm2285, %v4184, %v4186
      %v4197 = vsel %vm2285, %v4186, %v4188
      %v4198 = vsel %vm2285, %v4188, %v4190
      %v4199 = vsel %vm2285, %v4190, %v4192
      %v4200 = vsel %vm2285, %v4192, %v4194
      %v4207 = vadd.f32 %v3582, %v4195
      %v4208 = vadd.f32 %v3583, %v4196
      %v4209 = vadd.f32 %v3584, %v4197
      %v4210 = vadd.f32 %v3585, %v4198
      %v4211 = vadd.f32 %v3586, %v4199
      %v4212 = vadd.f32 %v3587, %v4200
      %v4213 = vlaneseq
      %v4214 = vshrl.u32 %v4213, 7
      %v4215 = vsub.s32 2, %v4214
      %v4216 = vrot.slane %v4011, %v4215
      %v4217 = vlaneseq
      %v4218 = vshrl.u32 %v4217, 7
      %v4219 = vsub.s32 2, %v4218
      %v4220 = vrot.slane %v4013, %v4219
      %v4221 = vlaneseq
      %v4222 = vshrl.u32 %v4221, 7
      %v4223 = vsub.s32 2, %v4222
      %v4224 = vrot.slane %v4015, %v4223
      %v4225 = vlaneseq
      %v4226 = vshrl.u32 %v4225, 7
      %v4227 = vsub.s32 2, %v4226
      %v4228 = vrot.slane %v4017, %v4227
      %v4229 = vlaneseq
      %v4230 = vshrl.u32 %v4229, 7
      %v4231 = vsub.s32 2, %v4230
      %v4232 = vrot.slane %v4019, %v4231
      %v4233 = vlaneseq
      %v4234 = vshrl.u32 %v4233, 7
      %v4235 = vsub.s32 2, %v4234
      %v4236 = vrot.slane %v4021, %v4235
      %v4237 = vlaneseq
      %v4238 = vshrl.u32 %v4237, 7
      %v4239 = vsub.s32 2, %v4238
      %v4240 = vrot.slane %v4023, %v4239
      %v4241 = vmul.f32 %v4216, %v2478
      %v4242 = vmul.f32 %v4220, %v2479
      %v4243 = vmul.f32 %v4224, %v2480
      %v4244 = vmul.f32 %v4228, %v2481
      %v4245 = vmul.f32 %v4232, %v2482
      %v4246 = vmul.f32 %v4236, %v2483
      %v4247 = vmul.f32 %v4240, %v4063
      %4255 = vrot.lane.b32.xlu0 %v4241, 110
      %v4256 = vpop.permute.xlu0 %4255
      %4257 = vrot.lane.b32.xlu0 %v4242, 110
      %v4258 = vpop.permute.xlu0 %4257
      %4259 = vrot.lane.b32.xlu0 %v4243, 110
      %v4260 = vpop.permute.xlu0 %4259
      %4261 = vrot.lane.b32.xlu0 %v4244, 110
      %v4262 = vpop.permute.xlu0 %4261
      %4263 = vrot.lane.b32.xlu0 %v4245, 110
      %v4264 = vpop.permute.xlu0 %4263
      %4265 = vrot.lane.b32.xlu0 %v4246, 110
      %v4266 = vpop.permute.xlu0 %4265
      %4267 = vrot.lane.b32.xlu0 %v4247, 110
      %v4268 = vpop.permute.xlu0 %4267
      %v4269 = vsel %vm2285, %v4256, %v4258
      %v4270 = vsel %vm2285, %v4258, %v4260
      %v4271 = vsel %vm2285, %v4260, %v4262
      %v4272 = vsel %vm2285, %v4262, %v4264
      %v4273 = vsel %vm2285, %v4264, %v4266
      %v4274 = vsel %vm2285, %v4266, %v4268
      %v4281 = vadd.f32 %v3647, %v4269
      %v4282 = vadd.f32 %v3648, %v4270
      %v4283 = vadd.f32 %v3649, %v4271
      %v4284 = vadd.f32 %v3650, %v4272
      %v4285 = vadd.f32 %v3651, %v4273
      %v4286 = vadd.f32 %v3652, %v4274
      %v4287 = vlaneseq
      %v4288 = vshrl.u32 %v4287, 7
      %v4289 = vsub.s32 3, %v4288
      %v4290 = vrot.slane %v4011, %v4289
      %v4291 = vlaneseq
      %v4292 = vshrl.u32 %v4291, 7
      %v4293 = vsub.s32 3, %v4292
      %v4294 = vrot.slane %v4013, %v4293
      %v4295 = vlaneseq
      %v4296 = vshrl.u32 %v4295, 7
      %v4297 = vsub.s32 3, %v4296
      %v4298 = vrot.slane %v4015, %v4297
      %v4299 = vlaneseq
      %v4300 = vshrl.u32 %v4299, 7
      %v4301 = vsub.s32 3, %v4300
      %v4302 = vrot.slane %v4017, %v4301
      %v4303 = vlaneseq
      %v4304 = vshrl.u32 %v4303, 7
      %v4305 = vsub.s32 3, %v4304
      %v4306 = vrot.slane %v4019, %v4305
      %v4307 = vlaneseq
      %v4308 = vshrl.u32 %v4307, 7
      %v4309 = vsub.s32 3, %v4308
      %v4310 = vrot.slane %v4021, %v4309
      %v4311 = vlaneseq
      %v4312 = vshrl.u32 %v4311, 7
      %v4313 = vsub.s32 3, %v4312
      %v4314 = vrot.slane %v4023, %v4313
      %v4315 = vmul.f32 %v4290, %v2478
      %v4316 = vmul.f32 %v4294, %v2479
      %v4317 = vmul.f32 %v4298, %v2480
      %v4318 = vmul.f32 %v4302, %v2481
      %v4319 = vmul.f32 %v4306, %v2482
      %v4320 = vmul.f32 %v4310, %v2483
      %v4321 = vmul.f32 %v4314, %v4063
      %4329 = vrot.lane.b32.xlu0 %v4315, 110
      %v4330 = vpop.permute.xlu0 %4329
      %4331 = vrot.lane.b32.xlu0 %v4316, 110
      %v4332 = vpop.permute.xlu0 %4331
      %4333 = vrot.lane.b32.xlu0 %v4317, 110
      %v4334 = vpop.permute.xlu0 %4333
      %4335 = vrot.lane.b32.xlu0 %v4318, 110
      %v4336 = vpop.permute.xlu0 %4335
      %4337 = vrot.lane.b32.xlu0 %v4319, 110
      %v4338 = vpop.permute.xlu0 %4337
      %4339 = vrot.lane.b32.xlu0 %v4320, 110
      %v4340 = vpop.permute.xlu0 %4339
      %4341 = vrot.lane.b32.xlu0 %v4321, 110
      %v4342 = vpop.permute.xlu0 %4341
      %v4343 = vsel %vm2285, %v4330, %v4332
      %v4344 = vsel %vm2285, %v4332, %v4334
      %v4345 = vsel %vm2285, %v4334, %v4336
      %v4346 = vsel %vm2285, %v4336, %v4338
      %v4347 = vsel %vm2285, %v4338, %v4340
      %v4348 = vsel %vm2285, %v4340, %v4342
      %v4355 = vadd.f32 %v3712, %v4343
      %v4356 = vadd.f32 %v3713, %v4344
      %v4357 = vadd.f32 %v3714, %v4345
      %v4358 = vadd.f32 %v3715, %v4346
      %v4359 = vadd.f32 %v3716, %v4347
      %v4360 = vadd.f32 %v3717, %v4348
      %v4361 = vlaneseq
      %v4362 = vshrl.u32 %v4361, 7
      %v4363 = vsub.s32 4, %v4362
      %v4364 = vrot.slane %v4011, %v4363
      %v4365 = vlaneseq
      %v4366 = vshrl.u32 %v4365, 7
      %v4367 = vsub.s32 4, %v4366
      %v4368 = vrot.slane %v4013, %v4367
      %v4369 = vlaneseq
      %v4370 = vshrl.u32 %v4369, 7
      %v4371 = vsub.s32 4, %v4370
      %v4372 = vrot.slane %v4015, %v4371
      %v4373 = vlaneseq
      %v4374 = vshrl.u32 %v4373, 7
      %v4375 = vsub.s32 4, %v4374
      %v4376 = vrot.slane %v4017, %v4375
      %v4377 = vlaneseq
      %v4378 = vshrl.u32 %v4377, 7
      %v4379 = vsub.s32 4, %v4378
      %v4380 = vrot.slane %v4019, %v4379
      %v4381 = vlaneseq
      %v4382 = vshrl.u32 %v4381, 7
      %v4383 = vsub.s32 4, %v4382
      %v4384 = vrot.slane %v4021, %v4383
      %v4385 = vlaneseq
      %v4386 = vshrl.u32 %v4385, 7
      %v4387 = vsub.s32 4, %v4386
      %v4388 = vrot.slane %v4023, %v4387
      %v4389 = vmul.f32 %v4364, %v2484
      %v4390 = vmul.f32 %v4368, %v2485
      %v4391 = vmul.f32 %v4372, %v2486
      %v4392 = vmul.f32 %v4376, %v2487
      %v4393 = vmul.f32 %v4380, %v2488
      %v4394 = vmul.f32 %v4384, %v2489
      %v4395 = vmul.f32 %v4388, %v4064
      %4403 = vrot.lane.b32.xlu0 %v4389, 110
      %v4404 = vpop.permute.xlu0 %4403
      %4405 = vrot.lane.b32.xlu0 %v4390, 110
      %v4406 = vpop.permute.xlu0 %4405
      %4407 = vrot.lane.b32.xlu0 %v4391, 110
      %v4408 = vpop.permute.xlu0 %4407
      %4409 = vrot.lane.b32.xlu0 %v4392, 110
      %v4410 = vpop.permute.xlu0 %4409
      %4411 = vrot.lane.b32.xlu0 %v4393, 110
      %v4412 = vpop.permute.xlu0 %4411
      %4413 = vrot.lane.b32.xlu0 %v4394, 110
      %v4414 = vpop.permute.xlu0 %4413
      %4415 = vrot.lane.b32.xlu0 %v4395, 110
      %v4416 = vpop.permute.xlu0 %4415
      %v4417 = vsel %vm2285, %v4404, %v4406
      %v4418 = vsel %vm2285, %v4406, %v4408
      %v4419 = vsel %vm2285, %v4408, %v4410
      %v4420 = vsel %vm2285, %v4410, %v4412
      %v4421 = vsel %vm2285, %v4412, %v4414
      %v4422 = vsel %vm2285, %v4414, %v4416
      %v4429 = vadd.f32 %v3777, %v4417
      %v4430 = vadd.f32 %v3778, %v4418
      %v4431 = vadd.f32 %v3779, %v4419
      %v4432 = vadd.f32 %v3780, %v4420
      %v4433 = vadd.f32 %v3781, %v4421
      %v4434 = vadd.f32 %v3782, %v4422
      %v4435 = vlaneseq
      %v4436 = vshrl.u32 %v4435, 7
      %v4437 = vsub.s32 5, %v4436
      %v4438 = vrot.slane %v4011, %v4437
      %v4439 = vlaneseq
      %v4440 = vshrl.u32 %v4439, 7
      %v4441 = vsub.s32 5, %v4440
      %v4442 = vrot.slane %v4013, %v4441
      %v4443 = vlaneseq
      %v4444 = vshrl.u32 %v4443, 7
      %v4445 = vsub.s32 5, %v4444
      %v4446 = vrot.slane %v4015, %v4445
      %v4447 = vlaneseq
      %v4448 = vshrl.u32 %v4447, 7
      %v4449 = vsub.s32 5, %v4448
      %v4450 = vrot.slane %v4017, %v4449
      %v4451 = vlaneseq
      %v4452 = vshrl.u32 %v4451, 7
      %v4453 = vsub.s32 5, %v4452
      %v4454 = vrot.slane %v4019, %v4453
      %v4455 = vlaneseq
      %v4456 = vshrl.u32 %v4455, 7
      %v4457 = vsub.s32 5, %v4456
      %v4458 = vrot.slane %v4021, %v4457
      %v4459 = vlaneseq
      %v4460 = vshrl.u32 %v4459, 7
      %v4461 = vsub.s32 5, %v4460
      %v4462 = vrot.slane %v4023, %v4461
      %v4463 = vmul.f32 %v4438, %v2484
      %v4464 = vmul.f32 %v4442, %v2485
      %v4465 = vmul.f32 %v4446, %v2486
      %v4466 = vmul.f32 %v4450, %v2487
      %v4467 = vmul.f32 %v4454, %v2488
      %v4468 = vmul.f32 %v4458, %v2489
      %v4469 = vmul.f32 %v4462, %v4064
      %4477 = vrot.lane.b32.xlu0 %v4463, 110
      %v4478 = vpop.permute.xlu0 %4477
      %4479 = vrot.lane.b32.xlu0 %v4464, 110
      %v4480 = vpop.permute.xlu0 %4479
      %4481 = vrot.lane.b32.xlu0 %v4465, 110
      %v4482 = vpop.permute.xlu0 %4481
      %4483 = vrot.lane.b32.xlu0 %v4466, 110
      %v4484 = vpop.permute.xlu0 %4483
      %4485 = vrot.lane.b32.xlu0 %v4467, 110
      %v4486 = vpop.permute.xlu0 %4485
      %4487 = vrot.lane.b32.xlu0 %v4468, 110
      %v4488 = vpop.permute.xlu0 %4487
      %4489 = vrot.lane.b32.xlu0 %v4469, 110
      %v4490 = vpop.permute.xlu0 %4489
      %v4491 = vsel %vm2285, %v4478, %v4480
      %v4492 = vsel %vm2285, %v4480, %v4482
      %v4493 = vsel %vm2285, %v4482, %v4484
      %v4494 = vsel %vm2285, %v4484, %v4486
      %v4495 = vsel %vm2285, %v4486, %v4488
      %v4496 = vsel %vm2285, %v4488, %v4490
      %v4503 = vadd.f32 %v3842, %v4491
      %v4504 = vadd.f32 %v3843, %v4492
      %v4505 = vadd.f32 %v3844, %v4493
      %v4506 = vadd.f32 %v3845, %v4494
      %v4507 = vadd.f32 %v3846, %v4495
      %v4508 = vadd.f32 %v3847, %v4496
      %v4509 = vlaneseq
      %v4510 = vshrl.u32 %v4509, 7
      %v4511 = vsub.s32 6, %v4510
      %v4512 = vrot.slane %v4011, %v4511
      %v4513 = vlaneseq
      %v4514 = vshrl.u32 %v4513, 7
      %v4515 = vsub.s32 6, %v4514
      %v4516 = vrot.slane %v4013, %v4515
      %v4517 = vlaneseq
      %v4518 = vshrl.u32 %v4517, 7
      %v4519 = vsub.s32 6, %v4518
      %v4520 = vrot.slane %v4015, %v4519
      %v4521 = vlaneseq
      %v4522 = vshrl.u32 %v4521, 7
      %v4523 = vsub.s32 6, %v4522
      %v4524 = vrot.slane %v4017, %v4523
      %v4525 = vlaneseq
      %v4526 = vshrl.u32 %v4525, 7
      %v4527 = vsub.s32 6, %v4526
      %v4528 = vrot.slane %v4019, %v4527
      %v4529 = vlaneseq
      %v4530 = vshrl.u32 %v4529, 7
      %v4531 = vsub.s32 6, %v4530
      %v4532 = vrot.slane %v4021, %v4531
      %v4533 = vlaneseq
      %v4534 = vshrl.u32 %v4533, 7
      %v4535 = vsub.s32 6, %v4534
      %v4536 = vrot.slane %v4023, %v4535
      %v4537 = vmul.f32 %v4512, %v2484
      %v4538 = vmul.f32 %v4516, %v2485
      %v4539 = vmul.f32 %v4520, %v2486
      %v4540 = vmul.f32 %v4524, %v2487
      %v4541 = vmul.f32 %v4528, %v2488
      %v4542 = vmul.f32 %v4532, %v2489
      %v4543 = vmul.f32 %v4536, %v4064
      %4551 = vrot.lane.b32.xlu0 %v4537, 110
      %v4552 = vpop.permute.xlu0 %4551
      %4553 = vrot.lane.b32.xlu0 %v4538, 110
      %v4554 = vpop.permute.xlu0 %4553
      %4555 = vrot.lane.b32.xlu0 %v4539, 110
      %v4556 = vpop.permute.xlu0 %4555
      %4557 = vrot.lane.b32.xlu0 %v4540, 110
      %v4558 = vpop.permute.xlu0 %4557
      %4559 = vrot.lane.b32.xlu0 %v4541, 110
      %v4560 = vpop.permute.xlu0 %4559
      %4561 = vrot.lane.b32.xlu0 %v4542, 110
      %v4562 = vpop.permute.xlu0 %4561
      %4563 = vrot.lane.b32.xlu0 %v4543, 110
      %v4564 = vpop.permute.xlu0 %4563
      %v4565 = vsel %vm2285, %v4552, %v4554
      %v4566 = vsel %vm2285, %v4554, %v4556
      %v4567 = vsel %vm2285, %v4556, %v4558
      %v4568 = vsel %vm2285, %v4558, %v4560
      %v4569 = vsel %vm2285, %v4560, %v4562
      %v4570 = vsel %vm2285, %v4562, %v4564
      %v4577 = vadd.f32 %v3907, %v4565
      %v4578 = vadd.f32 %v3908, %v4566
      %v4579 = vadd.f32 %v3909, %v4567
      %v4580 = vadd.f32 %v3910, %v4568
      %v4581 = vadd.f32 %v3911, %v4569
      %v4582 = vadd.f32 %v3912, %v4570
      %v4583 = vlaneseq
      %v4584 = vshrl.u32 %v4583, 7
      %v4585 = vsub.s32 7, %v4584
      %v4586 = vrot.slane %v4011, %v4585
      %v4587 = vlaneseq
      %v4588 = vshrl.u32 %v4587, 7
      %v4589 = vsub.s32 7, %v4588
      %v4590 = vrot.slane %v4013, %v4589
      %v4591 = vlaneseq
      %v4592 = vshrl.u32 %v4591, 7
      %v4593 = vsub.s32 7, %v4592
      %v4594 = vrot.slane %v4015, %v4593
      %v4595 = vlaneseq
      %v4596 = vshrl.u32 %v4595, 7
      %v4597 = vsub.s32 7, %v4596
      %v4598 = vrot.slane %v4017, %v4597
      %v4599 = vlaneseq
      %v4600 = vshrl.u32 %v4599, 7
      %v4601 = vsub.s32 7, %v4600
      %v4602 = vrot.slane %v4019, %v4601
      %v4603 = vlaneseq
      %v4604 = vshrl.u32 %v4603, 7
      %v4605 = vsub.s32 7, %v4604
      %v4606 = vrot.slane %v4021, %v4605
      %v4607 = vlaneseq
      %v4608 = vshrl.u32 %v4607, 7
      %v4609 = vsub.s32 7, %v4608
      %v4610 = vrot.slane %v4023, %v4609
      %v4611 = vmul.f32 %v4586, %v2484
      %v4612 = vmul.f32 %v4590, %v2485
      %v4613 = vmul.f32 %v4594, %v2486
      %v4614 = vmul.f32 %v4598, %v2487
      %v4615 = vmul.f32 %v4602, %v2488
      %v4616 = vmul.f32 %v4606, %v2489
      %v4617 = vmul.f32 %v4610, %v4064
      %4625 = vrot.lane.b32.xlu0 %v4611, 110
      %v4626 = vpop.permute.xlu0 %4625
      %4627 = vrot.lane.b32.xlu0 %v4612, 110
      %v4628 = vpop.permute.xlu0 %4627
      %4629 = vrot.lane.b32.xlu0 %v4613, 110
      %v4630 = vpop.permute.xlu0 %4629
      %4631 = vrot.lane.b32.xlu0 %v4614, 110
      %v4632 = vpop.permute.xlu0 %4631
      %4633 = vrot.lane.b32.xlu0 %v4615, 110
      %v4634 = vpop.permute.xlu0 %4633
      %4635 = vrot.lane.b32.xlu0 %v4616, 110
      %v4636 = vpop.permute.xlu0 %4635
      %4637 = vrot.lane.b32.xlu0 %v4617, 110
      %v4638 = vpop.permute.xlu0 %4637
      %v4639 = vsel %vm2285, %v4626, %v4628
      %v4640 = vsel %vm2285, %v4628, %v4630
      %v4641 = vsel %vm2285, %v4630, %v4632
      %v4642 = vsel %vm2285, %v4632, %v4634
      %v4643 = vsel %vm2285, %v4634, %v4636
      %v4644 = vsel %vm2285, %v4636, %v4638
      %v4651 = vadd.f32 %v3972, %v4639
      %v4652 = vadd.f32 %v3973, %v4640
      %v4653 = vadd.f32 %v3974, %v4641
      %v4654 = vadd.f32 %v3975, %v4642
      %v4655 = vadd.f32 %v3976, %v4643
      %v4656 = vadd.f32 %v3977, %v4644
      %4657 = vrot.lane.b32.xlu0 %v2448, 19
      %v4658 = vpop.permute.xlu0 %4657
      %4659 = vrot.lane.b32.xlu0 %v2449, 19
      %v4660 = vpop.permute.xlu0 %4659
      %4661 = vrot.lane.b32.xlu0 %v2450, 19
      %v4662 = vpop.permute.xlu0 %4661
      %4663 = vrot.lane.b32.xlu0 %v2451, 19
      %v4664 = vpop.permute.xlu0 %4663
      %4665 = vrot.lane.b32.xlu0 %v2452, 19
      %v4666 = vpop.permute.xlu0 %4665
      %4667 = vrot.lane.b32.xlu0 %v2453, 19
      %v4668 = vpop.permute.xlu0 %4667
      %vm4669 = vcmask 154624
      %v4670 = vsel %vm4669, %v4658, %v4660
      %v4671 = vsel %vm4669, %v4660, %v4662
      %v4672 = vsel %vm4669, %v4662, %v4664
      %v4673 = vsel %vm4669, %v4664, %v4666
      %v4674 = vsel %vm4669, %v4666, %v4668
      %v4681 = vsub.f32 %v2198, %v4670
      %v4682 = vsub.f32 %v2199, %v4671
      %v4683 = vsub.f32 %v2200, %v4672
      %v4684 = vsub.f32 %v2201, %v4673
      %v4685 = vsub.f32 %v2202, %v4674
      %v4686 = vsub.f32 %v2269, %v4668
      %v4687 = vmul.f32 %v4681, 1.442695
      %v4688 = vpow.pop %v4687
      %v4689 = vmul.f32 %v4682, 1.442695
      %v4690 = vpow.pop %v4689
      %v4691 = vmul.f32 %v4683, 1.442695
      %v4692 = vpow.pop %v4691
      %v4693 = vmul.f32 %v4684, 1.442695
      %v4694 = vpow.pop %v4693
      %v4695 = vmul.f32 %v4685, 1.442695
      %v4696 = vpow.pop %v4695
      %v4697 = vmul.f32 %v4686, 1.442695
      %v4698 = vpow.pop %v4697
      %4705 = vrot.lane.b32.xlu0 %v4688, 109
      %v4706 = vpop.permute.xlu0 %4705
      %4707 = vrot.lane.b32.xlu0 %v4690, 109
      %v4708 = vpop.permute.xlu0 %4707
      %4709 = vrot.lane.b32.xlu0 %v4692, 109
      %v4710 = vpop.permute.xlu0 %4709
      %4711 = vrot.lane.b32.xlu0 %v4694, 109
      %v4712 = vpop.permute.xlu0 %4711
      %4713 = vrot.lane.b32.xlu0 %v4696, 109
      %v4714 = vpop.permute.xlu0 %4713
      %4715 = vrot.lane.b32.xlu0 %v4698, 109
      %v4716 = vpop.permute.xlu0 %4715
      %v4717 = vsel %vm2316, %v4706, %v4708
      %v4718 = vsel %vm2316, %v4708, %v4710
      %v4719 = vsel %vm2316, %v4710, %v4712
      %v4720 = vsel %vm2316, %v4712, %v4714
      %v4721 = vsel %vm2316, %v4714, %v4716
      %v4728 = vadd.f32 %v4057, %v4706
      %v4729 = vadd.f32 %v4058, %v4717
      %v4730 = vadd.f32 %v4059, %v4718
      %v4731 = vadd.f32 %v4060, %v4719
      %v4732 = vadd.f32 %v4061, %v4720
      %v4733 = vadd.f32 %v4062, %v4721
      %v4734 = vlaneseq
      %v4735 = vshrl.u32 %v4734, 7
      %v4736 = vsub.s32 0, %v4735
      %v4737 = vrot.slane %v4688, %v4736
      %v4738 = vlaneseq
      %v4739 = vshrl.u32 %v4738, 7
      %v4740 = vsub.s32 0, %v4739
      %v4741 = vrot.slane %v4690, %v4740
      %v4742 = vlaneseq
      %v4743 = vshrl.u32 %v4742, 7
      %v4744 = vsub.s32 0, %v4743
      %v4745 = vrot.slane %v4692, %v4744
      %v4746 = vlaneseq
      %v4747 = vshrl.u32 %v4746, 7
      %v4748 = vsub.s32 0, %v4747
      %v4749 = vrot.slane %v4694, %v4748
      %v4750 = vlaneseq
      %v4751 = vshrl.u32 %v4750, 7
      %v4752 = vsub.s32 0, %v4751
      %v4753 = vrot.slane %v4696, %v4752
      %v4754 = vlaneseq
      %v4755 = vshrl.u32 %v4754, 7
      %v4756 = vsub.s32 0, %v4755
      %v4757 = vrot.slane %v4698, %v4756
      %v4758 = vmul.f32 %v4737, %v2479
      %v4759 = vmul.f32 %v4741, %v2480
      %v4760 = vmul.f32 %v4745, %v2481
      %v4761 = vmul.f32 %v4749, %v2482
      %v4762 = vmul.f32 %v4753, %v2483
      %v4763 = vmul.f32 %v4757, %v4063
      %4770 = vrot.lane.b32.xlu0 %v4758, 109
      %v4771 = vpop.permute.xlu0 %4770
      %4772 = vrot.lane.b32.xlu0 %v4759, 109
      %v4773 = vpop.permute.xlu0 %4772
      %4774 = vrot.lane.b32.xlu0 %v4760, 109
      %v4775 = vpop.permute.xlu0 %4774
      %4776 = vrot.lane.b32.xlu0 %v4761, 109
      %v4777 = vpop.permute.xlu0 %4776
      %4778 = vrot.lane.b32.xlu0 %v4762, 109
      %v4779 = vpop.permute.xlu0 %4778
      %4780 = vrot.lane.b32.xlu0 %v4763, 109
      %v4781 = vpop.permute.xlu0 %4780
      %v4782 = vsel %vm2316, %v4771, %v4773
      %v4783 = vsel %vm2316, %v4773, %v4775
      %v4784 = vsel %vm2316, %v4775, %v4777
      %v4785 = vsel %vm2316, %v4777, %v4779
      %v4786 = vsel %vm2316, %v4779, %v4781
      %v4793 = vadd.f32 %v4133, %v4771
      %v4794 = vadd.f32 %v4134, %v4782
      %v4795 = vadd.f32 %v4135, %v4783
      %v4796 = vadd.f32 %v4136, %v4784
      %v4797 = vadd.f32 %v4137, %v4785
      %v4798 = vadd.f32 %v4138, %v4786
      %v4799 = vlaneseq
      %v4800 = vshrl.u32 %v4799, 7
      %v4801 = vsub.s32 1, %v4800
      %v4802 = vrot.slane %v4688, %v4801
      %v4803 = vlaneseq
      %v4804 = vshrl.u32 %v4803, 7
      %v4805 = vsub.s32 1, %v4804
      %v4806 = vrot.slane %v4690, %v4805
      %v4807 = vlaneseq
      %v4808 = vshrl.u32 %v4807, 7
      %v4809 = vsub.s32 1, %v4808
      %v4810 = vrot.slane %v4692, %v4809
      %v4811 = vlaneseq
      %v4812 = vshrl.u32 %v4811, 7
      %v4813 = vsub.s32 1, %v4812
      %v4814 = vrot.slane %v4694, %v4813
      %v4815 = vlaneseq
      %v4816 = vshrl.u32 %v4815, 7
      %v4817 = vsub.s32 1, %v4816
      %v4818 = vrot.slane %v4696, %v4817
      %v4819 = vlaneseq
      %v4820 = vshrl.u32 %v4819, 7
      %v4821 = vsub.s32 1, %v4820
      %v4822 = vrot.slane %v4698, %v4821
      %v4823 = vmul.f32 %v4802, %v2479
      %v4824 = vmul.f32 %v4806, %v2480
      %v4825 = vmul.f32 %v4810, %v2481
      %v4826 = vmul.f32 %v4814, %v2482
      %v4827 = vmul.f32 %v4818, %v2483
      %v4828 = vmul.f32 %v4822, %v4063
      %4835 = vrot.lane.b32.xlu0 %v4823, 109
      %v4836 = vpop.permute.xlu0 %4835
      %4837 = vrot.lane.b32.xlu0 %v4824, 109
      %v4838 = vpop.permute.xlu0 %4837
      %4839 = vrot.lane.b32.xlu0 %v4825, 109
      %v4840 = vpop.permute.xlu0 %4839
      %4841 = vrot.lane.b32.xlu0 %v4826, 109
      %v4842 = vpop.permute.xlu0 %4841
      %4843 = vrot.lane.b32.xlu0 %v4827, 109
      %v4844 = vpop.permute.xlu0 %4843
      %4845 = vrot.lane.b32.xlu0 %v4828, 109
      %v4846 = vpop.permute.xlu0 %4845
      %v4847 = vsel %vm2316, %v4836, %v4838
      %v4848 = vsel %vm2316, %v4838, %v4840
      %v4849 = vsel %vm2316, %v4840, %v4842
      %v4850 = vsel %vm2316, %v4842, %v4844
      %v4851 = vsel %vm2316, %v4844, %v4846
      %v4858 = vadd.f32 %v4207, %v4836
      %v4859 = vadd.f32 %v4208, %v4847
      %v4860 = vadd.f32 %v4209, %v4848
      %v4861 = vadd.f32 %v4210, %v4849
      %v4862 = vadd.f32 %v4211, %v4850
      %v4863 = vadd.f32 %v4212, %v4851
      %v4864 = vlaneseq
      %v4865 = vshrl.u32 %v4864, 7
      %v4866 = vsub.s32 2, %v4865
      %v4867 = vrot.slane %v4688, %v4866
      %v4868 = vlaneseq
      %v4869 = vshrl.u32 %v4868, 7
      %v4870 = vsub.s32 2, %v4869
      %v4871 = vrot.slane %v4690, %v4870
      %v4872 = vlaneseq
      %v4873 = vshrl.u32 %v4872, 7
      %v4874 = vsub.s32 2, %v4873
      %v4875 = vrot.slane %v4692, %v4874
      %v4876 = vlaneseq
      %v4877 = vshrl.u32 %v4876, 7
      %v4878 = vsub.s32 2, %v4877
      %v4879 = vrot.slane %v4694, %v4878
      %v4880 = vlaneseq
      %v4881 = vshrl.u32 %v4880, 7
      %v4882 = vsub.s32 2, %v4881
      %v4883 = vrot.slane %v4696, %v4882
      %v4884 = vlaneseq
      %v4885 = vshrl.u32 %v4884, 7
      %v4886 = vsub.s32 2, %v4885
      %v4887 = vrot.slane %v4698, %v4886
      %v4888 = vmul.f32 %v4867, %v2479
      %v4889 = vmul.f32 %v4871, %v2480
      %v4890 = vmul.f32 %v4875, %v2481
      %v4891 = vmul.f32 %v4879, %v2482
      %v4892 = vmul.f32 %v4883, %v2483
      %v4893 = vmul.f32 %v4887, %v4063
      %4900 = vrot.lane.b32.xlu0 %v4888, 109
      %v4901 = vpop.permute.xlu0 %4900
      %4902 = vrot.lane.b32.xlu0 %v4889, 109
      %v4903 = vpop.permute.xlu0 %4902
      %4904 = vrot.lane.b32.xlu0 %v4890, 109
      %v4905 = vpop.permute.xlu0 %4904
      %4906 = vrot.lane.b32.xlu0 %v4891, 109
      %v4907 = vpop.permute.xlu0 %4906
      %4908 = vrot.lane.b32.xlu0 %v4892, 109
      %v4909 = vpop.permute.xlu0 %4908
      %4910 = vrot.lane.b32.xlu0 %v4893, 109
      %v4911 = vpop.permute.xlu0 %4910
      %v4912 = vsel %vm2316, %v4901, %v4903
      %v4913 = vsel %vm2316, %v4903, %v4905
      %v4914 = vsel %vm2316, %v4905, %v4907
      %v4915 = vsel %vm2316, %v4907, %v4909
      %v4916 = vsel %vm2316, %v4909, %v4911
      %v4923 = vadd.f32 %v4281, %v4901
      %v4924 = vadd.f32 %v4282, %v4912
      %v4925 = vadd.f32 %v4283, %v4913
      %v4926 = vadd.f32 %v4284, %v4914
      %v4927 = vadd.f32 %v4285, %v4915
      %v4928 = vadd.f32 %v4286, %v4916
      %v4929 = vlaneseq
      %v4930 = vshrl.u32 %v4929, 7
      %v4931 = vsub.s32 3, %v4930
      %v4932 = vrot.slane %v4688, %v4931
      %v4933 = vlaneseq
      %v4934 = vshrl.u32 %v4933, 7
      %v4935 = vsub.s32 3, %v4934
      %v4936 = vrot.slane %v4690, %v4935
      %v4937 = vlaneseq
      %v4938 = vshrl.u32 %v4937, 7
      %v4939 = vsub.s32 3, %v4938
      %v4940 = vrot.slane %v4692, %v4939
      %v4941 = vlaneseq
      %v4942 = vshrl.u32 %v4941, 7
      %v4943 = vsub.s32 3, %v4942
      %v4944 = vrot.slane %v4694, %v4943
      %v4945 = vlaneseq
      %v4946 = vshrl.u32 %v4945, 7
      %v4947 = vsub.s32 3, %v4946
      %v4948 = vrot.slane %v4696, %v4947
      %v4949 = vlaneseq
      %v4950 = vshrl.u32 %v4949, 7
      %v4951 = vsub.s32 3, %v4950
      %v4952 = vrot.slane %v4698, %v4951
      %v4953 = vmul.f32 %v4932, %v2479
      %v4954 = vmul.f32 %v4936, %v2480
      %v4955 = vmul.f32 %v4940, %v2481
      %v4956 = vmul.f32 %v4944, %v2482
      %v4957 = vmul.f32 %v4948, %v2483
      %v4958 = vmul.f32 %v4952, %v4063
      %4965 = vrot.lane.b32.xlu0 %v4953, 109
      %v4966 = vpop.permute.xlu0 %4965
      %4967 = vrot.lane.b32.xlu0 %v4954, 109
      %v4968 = vpop.permute.xlu0 %4967
      %4969 = vrot.lane.b32.xlu0 %v4955, 109
      %v4970 = vpop.permute.xlu0 %4969
      %4971 = vrot.lane.b32.xlu0 %v4956, 109
      %v4972 = vpop.permute.xlu0 %4971
      %4973 = vrot.lane.b32.xlu0 %v4957, 109
      %v4974 = vpop.permute.xlu0 %4973
      %4975 = vrot.lane.b32.xlu0 %v4958, 109
      %v4976 = vpop.permute.xlu0 %4975
      %v4977 = vsel %vm2316, %v4966, %v4968
      %v4978 = vsel %vm2316, %v4968, %v4970
      %v4979 = vsel %vm2316, %v4970, %v4972
      %v4980 = vsel %vm2316, %v4972, %v4974
      %v4981 = vsel %vm2316, %v4974, %v4976
      %v4988 = vadd.f32 %v4355, %v4966
      %v4989 = vadd.f32 %v4356, %v4977
      %v4990 = vadd.f32 %v4357, %v4978
      %v4991 = vadd.f32 %v4358, %v4979
      %v4992 = vadd.f32 %v4359, %v4980
      %v4993 = vadd.f32 %v4360, %v4981
      %v4994 = vlaneseq
      %v4995 = vshrl.u32 %v4994, 7
      %v4996 = vsub.s32 4, %v4995
      %v4997 = vrot.slane %v4688, %v4996
      %v4998 = vlaneseq
      %v4999 = vshrl.u32 %v4998, 7
      %v5000 = vsub.s32 4, %v4999
      %v5001 = vrot.slane %v4690, %v5000
      %v5002 = vlaneseq
      %v5003 = vshrl.u32 %v5002, 7
      %v5004 = vsub.s32 4, %v5003
      %v5005 = vrot.slane %v4692, %v5004
      %v5006 = vlaneseq
      %v5007 = vshrl.u32 %v5006, 7
      %v5008 = vsub.s32 4, %v5007
      %v5009 = vrot.slane %v4694, %v5008
      %v5010 = vlaneseq
      %v5011 = vshrl.u32 %v5010, 7
      %v5012 = vsub.s32 4, %v5011
      %v5013 = vrot.slane %v4696, %v5012
      %v5014 = vlaneseq
      %v5015 = vshrl.u32 %v5014, 7
      %v5016 = vsub.s32 4, %v5015
      %v5017 = vrot.slane %v4698, %v5016
      %v5018 = vmul.f32 %v4997, %v2485
      %v5019 = vmul.f32 %v5001, %v2486
      %v5020 = vmul.f32 %v5005, %v2487
      %v5021 = vmul.f32 %v5009, %v2488
      %v5022 = vmul.f32 %v5013, %v2489
      %v5023 = vmul.f32 %v5017, %v4064
      %5030 = vrot.lane.b32.xlu0 %v5018, 109
      %v5031 = vpop.permute.xlu0 %5030
      %5032 = vrot.lane.b32.xlu0 %v5019, 109
      %v5033 = vpop.permute.xlu0 %5032
      %5034 = vrot.lane.b32.xlu0 %v5020, 109
      %v5035 = vpop.permute.xlu0 %5034
      %5036 = vrot.lane.b32.xlu0 %v5021, 109
      %v5037 = vpop.permute.xlu0 %5036
      %5038 = vrot.lane.b32.xlu0 %v5022, 109
      %v5039 = vpop.permute.xlu0 %5038
      %5040 = vrot.lane.b32.xlu0 %v5023, 109
      %v5041 = vpop.permute.xlu0 %5040
      %v5042 = vsel %vm2316, %v5031, %v5033
      %v5043 = vsel %vm2316, %v5033, %v5035
      %v5044 = vsel %vm2316, %v5035, %v5037
      %v5045 = vsel %vm2316, %v5037, %v5039
      %v5046 = vsel %vm2316, %v5039, %v5041
      %v5053 = vadd.f32 %v4429, %v5031
      %v5054 = vadd.f32 %v4430, %v5042
      %v5055 = vadd.f32 %v4431, %v5043
      %v5056 = vadd.f32 %v4432, %v5044
      %v5057 = vadd.f32 %v4433, %v5045
      %v5058 = vadd.f32 %v4434, %v5046
      %v5059 = vlaneseq
      %v5060 = vshrl.u32 %v5059, 7
      %v5061 = vsub.s32 5, %v5060
      %v5062 = vrot.slane %v4688, %v5061
      %v5063 = vlaneseq
      %v5064 = vshrl.u32 %v5063, 7
      %v5065 = vsub.s32 5, %v5064
      %v5066 = vrot.slane %v4690, %v5065
      %v5067 = vlaneseq
      %v5068 = vshrl.u32 %v5067, 7
      %v5069 = vsub.s32 5, %v5068
      %v5070 = vrot.slane %v4692, %v5069
      %v5071 = vlaneseq
      %v5072 = vshrl.u32 %v5071, 7
      %v5073 = vsub.s32 5, %v5072
      %v5074 = vrot.slane %v4694, %v5073
      %v5075 = vlaneseq
      %v5076 = vshrl.u32 %v5075, 7
      %v5077 = vsub.s32 5, %v5076
      %v5078 = vrot.slane %v4696, %v5077
      %v5079 = vlaneseq
      %v5080 = vshrl.u32 %v5079, 7
      %v5081 = vsub.s32 5, %v5080
      %v5082 = vrot.slane %v4698, %v5081
      %v5083 = vmul.f32 %v5062, %v2485
      %v5084 = vmul.f32 %v5066, %v2486
      %v5085 = vmul.f32 %v5070, %v2487
      %v5086 = vmul.f32 %v5074, %v2488
      %v5087 = vmul.f32 %v5078, %v2489
      %v5088 = vmul.f32 %v5082, %v4064
      %5095 = vrot.lane.b32.xlu0 %v5083, 109
      %v5096 = vpop.permute.xlu0 %5095
      %5097 = vrot.lane.b32.xlu0 %v5084, 109
      %v5098 = vpop.permute.xlu0 %5097
      %5099 = vrot.lane.b32.xlu0 %v5085, 109
      %v5100 = vpop.permute.xlu0 %5099
      %5101 = vrot.lane.b32.xlu0 %v5086, 109
      %v5102 = vpop.permute.xlu0 %5101
      %5103 = vrot.lane.b32.xlu0 %v5087, 109
      %v5104 = vpop.permute.xlu0 %5103
      %5105 = vrot.lane.b32.xlu0 %v5088, 109
      %v5106 = vpop.permute.xlu0 %5105
      %v5107 = vsel %vm2316, %v5096, %v5098
      %v5108 = vsel %vm2316, %v5098, %v5100
      %v5109 = vsel %vm2316, %v5100, %v5102
      %v5110 = vsel %vm2316, %v5102, %v5104
      %v5111 = vsel %vm2316, %v5104, %v5106
      %v5118 = vadd.f32 %v4503, %v5096
      %v5119 = vadd.f32 %v4504, %v5107
      %v5120 = vadd.f32 %v4505, %v5108
      %v5121 = vadd.f32 %v4506, %v5109
      %v5122 = vadd.f32 %v4507, %v5110
      %v5123 = vadd.f32 %v4508, %v5111
      %v5124 = vlaneseq
      %v5125 = vshrl.u32 %v5124, 7
      %v5126 = vsub.s32 6, %v5125
      %v5127 = vrot.slane %v4688, %v5126
      %v5128 = vlaneseq
      %v5129 = vshrl.u32 %v5128, 7
      %v5130 = vsub.s32 6, %v5129
      %v5131 = vrot.slane %v4690, %v5130
      %v5132 = vlaneseq
      %v5133 = vshrl.u32 %v5132, 7
      %v5134 = vsub.s32 6, %v5133
      %v5135 = vrot.slane %v4692, %v5134
      %v5136 = vlaneseq
      %v5137 = vshrl.u32 %v5136, 7
      %v5138 = vsub.s32 6, %v5137
      %v5139 = vrot.slane %v4694, %v5138
      %v5140 = vlaneseq
      %v5141 = vshrl.u32 %v5140, 7
      %v5142 = vsub.s32 6, %v5141
      %v5143 = vrot.slane %v4696, %v5142
      %v5144 = vlaneseq
      %v5145 = vshrl.u32 %v5144, 7
      %v5146 = vsub.s32 6, %v5145
      %v5147 = vrot.slane %v4698, %v5146
      %v5148 = vmul.f32 %v5127, %v2485
      %v5149 = vmul.f32 %v5131, %v2486
      %v5150 = vmul.f32 %v5135, %v2487
      %v5151 = vmul.f32 %v5139, %v2488
      %v5152 = vmul.f32 %v5143, %v2489
      %v5153 = vmul.f32 %v5147, %v4064
      %5160 = vrot.lane.b32.xlu0 %v5148, 109
      %v5161 = vpop.permute.xlu0 %5160
      %5162 = vrot.lane.b32.xlu0 %v5149, 109
      %v5163 = vpop.permute.xlu0 %5162
      %5164 = vrot.lane.b32.xlu0 %v5150, 109
      %v5165 = vpop.permute.xlu0 %5164
      %5166 = vrot.lane.b32.xlu0 %v5151, 109
      %v5167 = vpop.permute.xlu0 %5166
      %5168 = vrot.lane.b32.xlu0 %v5152, 109
      %v5169 = vpop.permute.xlu0 %5168
      %5170 = vrot.lane.b32.xlu0 %v5153, 109
      %v5171 = vpop.permute.xlu0 %5170
      %v5172 = vsel %vm2316, %v5161, %v5163
      %v5173 = vsel %vm2316, %v5163, %v5165
      %v5174 = vsel %vm2316, %v5165, %v5167
      %v5175 = vsel %vm2316, %v5167, %v5169
      %v5176 = vsel %vm2316, %v5169, %v5171
      %v5183 = vadd.f32 %v4577, %v5161
      %v5184 = vadd.f32 %v4578, %v5172
      %v5185 = vadd.f32 %v4579, %v5173
      %v5186 = vadd.f32 %v4580, %v5174
      %v5187 = vadd.f32 %v4581, %v5175
      %v5188 = vadd.f32 %v4582, %v5176
      %v5189 = vlaneseq
      %v5190 = vshrl.u32 %v5189, 7
      %v5191 = vsub.s32 7, %v5190
      %v5192 = vrot.slane %v4688, %v5191
      %v5193 = vlaneseq
      %v5194 = vshrl.u32 %v5193, 7
      %v5195 = vsub.s32 7, %v5194
      %v5196 = vrot.slane %v4690, %v5195
      %v5197 = vlaneseq
      %v5198 = vshrl.u32 %v5197, 7
      %v5199 = vsub.s32 7, %v5198
      %v5200 = vrot.slane %v4692, %v5199
      %v5201 = vlaneseq
      %v5202 = vshrl.u32 %v5201, 7
      %v5203 = vsub.s32 7, %v5202
      %v5204 = vrot.slane %v4694, %v5203
      %v5205 = vlaneseq
      %v5206 = vshrl.u32 %v5205, 7
      %v5207 = vsub.s32 7, %v5206
      %v5208 = vrot.slane %v4696, %v5207
      %v5209 = vlaneseq
      %v5210 = vshrl.u32 %v5209, 7
      %v5211 = vsub.s32 7, %v5210
      %v5212 = vrot.slane %v4698, %v5211
      %v5213 = vmul.f32 %v5192, %v2485
      %v5214 = vmul.f32 %v5196, %v2486
      %v5215 = vmul.f32 %v5200, %v2487
      %v5216 = vmul.f32 %v5204, %v2488
      %v5217 = vmul.f32 %v5208, %v2489
      %v5218 = vmul.f32 %v5212, %v4064
      %5225 = vrot.lane.b32.xlu0 %v5213, 109
      %v5226 = vpop.permute.xlu0 %5225
      %5227 = vrot.lane.b32.xlu0 %v5214, 109
      %v5228 = vpop.permute.xlu0 %5227
      %5229 = vrot.lane.b32.xlu0 %v5215, 109
      %v5230 = vpop.permute.xlu0 %5229
      %5231 = vrot.lane.b32.xlu0 %v5216, 109
      %v5232 = vpop.permute.xlu0 %5231
      %5233 = vrot.lane.b32.xlu0 %v5217, 109
      %v5234 = vpop.permute.xlu0 %5233
      %5235 = vrot.lane.b32.xlu0 %v5218, 109
      %v5236 = vpop.permute.xlu0 %5235
      %v5237 = vsel %vm2316, %v5226, %v5228
      %v5238 = vsel %vm2316, %v5228, %v5230
      %v5239 = vsel %vm2316, %v5230, %v5232
      %v5240 = vsel %vm2316, %v5232, %v5234
      %v5241 = vsel %vm2316, %v5234, %v5236
      %v5248 = vadd.f32 %v4651, %v5226
      %v5249 = vadd.f32 %v4652, %v5237
      %v5250 = vadd.f32 %v4653, %v5238
      %v5251 = vadd.f32 %v4654, %v5239
      %v5252 = vadd.f32 %v4655, %v5240
      %v5253 = vadd.f32 %v4656, %v5241
      %5254 = vrot.lane.b32.xlu0 %v2448, 20
      %v5255 = vpop.permute.xlu0 %5254
      %5256 = vrot.lane.b32.xlu0 %v2449, 20
      %v5257 = vpop.permute.xlu0 %5256
      %5258 = vrot.lane.b32.xlu0 %v2450, 20
      %v5259 = vpop.permute.xlu0 %5258
      %5260 = vrot.lane.b32.xlu0 %v2451, 20
      %v5261 = vpop.permute.xlu0 %5260
      %5262 = vrot.lane.b32.xlu0 %v2452, 20
      %v5263 = vpop.permute.xlu0 %5262
      %5264 = vrot.lane.b32.xlu0 %v2453, 20
      %v5265 = vpop.permute.xlu0 %5264
      %vm5266 = vcmask 162816
      %v5267 = vsel %vm5266, %v5255, %v5257
      %v5268 = vsel %vm5266, %v5257, %v5259
      %v5269 = vsel %vm5266, %v5259, %v5261
      %v5270 = vsel %vm5266, %v5261, %v5263
      %v5271 = vsel %vm5266, %v5263, %v5265
      %v5278 = vsub.f32 %v2198, %v5267
      %v5279 = vsub.f32 %v2199, %v5268
      %v5280 = vsub.f32 %v2200, %v5269
      %v5281 = vsub.f32 %v2201, %v5270
      %v5282 = vsub.f32 %v2202, %v5271
      %v5283 = vsub.f32 %v2269, %v5265
      %v5284 = vmul.f32 %v5278, 1.442695
      %v5285 = vpow.pop %v5284
      %v5286 = vmul.f32 %v5279, 1.442695
      %v5287 = vpow.pop %v5286
      %v5288 = vmul.f32 %v5280, 1.442695
      %v5289 = vpow.pop %v5288
      %v5290 = vmul.f32 %v5281, 1.442695
      %v5291 = vpow.pop %v5290
      %v5292 = vmul.f32 %v5282, 1.442695
      %v5293 = vpow.pop %v5292
      %v5294 = vmul.f32 %v5283, 1.442695
      %v5295 = vpow.pop %v5294
      %5302 = vrot.lane.b32.xlu0 %v5285, 108
      %v5303 = vpop.permute.xlu0 %5302
      %5304 = vrot.lane.b32.xlu0 %v5287, 108
      %v5305 = vpop.permute.xlu0 %5304
      %5306 = vrot.lane.b32.xlu0 %v5289, 108
      %v5307 = vpop.permute.xlu0 %5306
      %5308 = vrot.lane.b32.xlu0 %v5291, 108
      %v5309 = vpop.permute.xlu0 %5308
      %5310 = vrot.lane.b32.xlu0 %v5293, 108
      %v5311 = vpop.permute.xlu0 %5310
      %5312 = vrot.lane.b32.xlu0 %v5295, 108
      %v5313 = vpop.permute.xlu0 %5312
      %v5314 = vsel %vm2346, %v5303, %v5305
      %v5315 = vsel %vm2346, %v5305, %v5307
      %v5316 = vsel %vm2346, %v5307, %v5309
      %v5317 = vsel %vm2346, %v5309, %v5311
      %v5318 = vsel %vm2346, %v5311, %v5313
      %v5325 = vadd.f32 %v4728, %v5303
      %v5326 = vadd.f32 %v4729, %v5314
      %v5327 = vadd.f32 %v4730, %v5315
      %v5328 = vadd.f32 %v4731, %v5316
      %v5329 = vadd.f32 %v4732, %v5317
      %v5330 = vadd.f32 %v4733, %v5318
      %v5331 = vlaneseq
      %v5332 = vshrl.u32 %v5331, 7
      %v5333 = vsub.s32 0, %v5332
      %v5334 = vrot.slane %v5285, %v5333
      %v5335 = vlaneseq
      %v5336 = vshrl.u32 %v5335, 7
      %v5337 = vsub.s32 0, %v5336
      %v5338 = vrot.slane %v5287, %v5337
      %v5339 = vlaneseq
      %v5340 = vshrl.u32 %v5339, 7
      %v5341 = vsub.s32 0, %v5340
      %v5342 = vrot.slane %v5289, %v5341
      %v5343 = vlaneseq
      %v5344 = vshrl.u32 %v5343, 7
      %v5345 = vsub.s32 0, %v5344
      %v5346 = vrot.slane %v5291, %v5345
      %v5347 = vlaneseq
      %v5348 = vshrl.u32 %v5347, 7
      %v5349 = vsub.s32 0, %v5348
      %v5350 = vrot.slane %v5293, %v5349
      %v5351 = vlaneseq
      %v5352 = vshrl.u32 %v5351, 7
      %v5353 = vsub.s32 0, %v5352
      %v5354 = vrot.slane %v5295, %v5353
      %v5355 = vmul.f32 %v5334, %v2479
      %v5356 = vmul.f32 %v5338, %v2480
      %v5357 = vmul.f32 %v5342, %v2481
      %v5358 = vmul.f32 %v5346, %v2482
      %v5359 = vmul.f32 %v5350, %v2483
      %v5360 = vmul.f32 %v5354, %v4063
      %5367 = vrot.lane.b32.xlu0 %v5355, 108
      %v5368 = vpop.permute.xlu0 %5367
      %5369 = vrot.lane.b32.xlu0 %v5356, 108
      %v5370 = vpop.permute.xlu0 %5369
      %5371 = vrot.lane.b32.xlu0 %v5357, 108
      %v5372 = vpop.permute.xlu0 %5371
      %5373 = vrot.lane.b32.xlu0 %v5358, 108
      %v5374 = vpop.permute.xlu0 %5373
      %5375 = vrot.lane.b32.xlu0 %v5359, 108
      %v5376 = vpop.permute.xlu0 %5375
      %5377 = vrot.lane.b32.xlu0 %v5360, 108
      %v5378 = vpop.permute.xlu0 %5377
      %v5379 = vsel %vm2346, %v5368, %v5370
      %v5380 = vsel %vm2346, %v5370, %v5372
      %v5381 = vsel %vm2346, %v5372, %v5374
      %v5382 = vsel %vm2346, %v5374, %v5376
      %v5383 = vsel %vm2346, %v5376, %v5378
      %v5390 = vadd.f32 %v4793, %v5368
      %v5391 = vadd.f32 %v4794, %v5379
      %v5392 = vadd.f32 %v4795, %v5380
      %v5393 = vadd.f32 %v4796, %v5381
      %v5394 = vadd.f32 %v4797, %v5382
      %v5395 = vadd.f32 %v4798, %v5383
      %v5396 = vlaneseq
      %v5397 = vshrl.u32 %v5396, 7
      %v5398 = vsub.s32 1, %v5397
      %v5399 = vrot.slane %v5285, %v5398
      %v5400 = vlaneseq
      %v5401 = vshrl.u32 %v5400, 7
      %v5402 = vsub.s32 1, %v5401
      %v5403 = vrot.slane %v5287, %v5402
      %v5404 = vlaneseq
      %v5405 = vshrl.u32 %v5404, 7
      %v5406 = vsub.s32 1, %v5405
      %v5407 = vrot.slane %v5289, %v5406
      %v5408 = vlaneseq
      %v5409 = vshrl.u32 %v5408, 7
      %v5410 = vsub.s32 1, %v5409
      %v5411 = vrot.slane %v5291, %v5410
      %v5412 = vlaneseq
      %v5413 = vshrl.u32 %v5412, 7
      %v5414 = vsub.s32 1, %v5413
      %v5415 = vrot.slane %v5293, %v5414
      %v5416 = vlaneseq
      %v5417 = vshrl.u32 %v5416, 7
      %v5418 = vsub.s32 1, %v5417
      %v5419 = vrot.slane %v5295, %v5418
      %v5420 = vmul.f32 %v5399, %v2479
      %v5421 = vmul.f32 %v5403, %v2480
      %v5422 = vmul.f32 %v5407, %v2481
      %v5423 = vmul.f32 %v5411, %v2482
      %v5424 = vmul.f32 %v5415, %v2483
      %v5425 = vmul.f32 %v5419, %v4063
      %5432 = vrot.lane.b32.xlu0 %v5420, 108
      %v5433 = vpop.permute.xlu0 %5432
      %5434 = vrot.lane.b32.xlu0 %v5421, 108
      %v5435 = vpop.permute.xlu0 %5434
      %5436 = vrot.lane.b32.xlu0 %v5422, 108
      %v5437 = vpop.permute.xlu0 %5436
      %5438 = vrot.lane.b32.xlu0 %v5423, 108
      %v5439 = vpop.permute.xlu0 %5438
      %5440 = vrot.lane.b32.xlu0 %v5424, 108
      %v5441 = vpop.permute.xlu0 %5440
      %5442 = vrot.lane.b32.xlu0 %v5425, 108
      %v5443 = vpop.permute.xlu0 %5442
      %v5444 = vsel %vm2346, %v5433, %v5435
      %v5445 = vsel %vm2346, %v5435, %v5437
      %v5446 = vsel %vm2346, %v5437, %v5439
      %v5447 = vsel %vm2346, %v5439, %v5441
      %v5448 = vsel %vm2346, %v5441, %v5443
      %v5455 = vadd.f32 %v4858, %v5433
      %v5456 = vadd.f32 %v4859, %v5444
      %v5457 = vadd.f32 %v4860, %v5445
      %v5458 = vadd.f32 %v4861, %v5446
      %v5459 = vadd.f32 %v4862, %v5447
      %v5460 = vadd.f32 %v4863, %v5448
      %v5461 = vlaneseq
      %v5462 = vshrl.u32 %v5461, 7
      %v5463 = vsub.s32 2, %v5462
      %v5464 = vrot.slane %v5285, %v5463
      %v5465 = vlaneseq
      %v5466 = vshrl.u32 %v5465, 7
      %v5467 = vsub.s32 2, %v5466
      %v5468 = vrot.slane %v5287, %v5467
      %v5469 = vlaneseq
      %v5470 = vshrl.u32 %v5469, 7
      %v5471 = vsub.s32 2, %v5470
      %v5472 = vrot.slane %v5289, %v5471
      %v5473 = vlaneseq
      %v5474 = vshrl.u32 %v5473, 7
      %v5475 = vsub.s32 2, %v5474
      %v5476 = vrot.slane %v5291, %v5475
      %v5477 = vlaneseq
      %v5478 = vshrl.u32 %v5477, 7
      %v5479 = vsub.s32 2, %v5478
      %v5480 = vrot.slane %v5293, %v5479
      %v5481 = vlaneseq
      %v5482 = vshrl.u32 %v5481, 7
      %v5483 = vsub.s32 2, %v5482
      %v5484 = vrot.slane %v5295, %v5483
      %v5485 = vmul.f32 %v5464, %v2479
      %v5486 = vmul.f32 %v5468, %v2480
      %v5487 = vmul.f32 %v5472, %v2481
      %v5488 = vmul.f32 %v5476, %v2482
      %v5489 = vmul.f32 %v5480, %v2483
      %v5490 = vmul.f32 %v5484, %v4063
      %5497 = vrot.lane.b32.xlu0 %v5485, 108
      %v5498 = vpop.permute.xlu0 %5497
      %5499 = vrot.lane.b32.xlu0 %v5486, 108
      %v5500 = vpop.permute.xlu0 %5499
      %5501 = vrot.lane.b32.xlu0 %v5487, 108
      %v5502 = vpop.permute.xlu0 %5501
      %5503 = vrot.lane.b32.xlu0 %v5488, 108
      %v5504 = vpop.permute.xlu0 %5503
      %5505 = vrot.lane.b32.xlu0 %v5489, 108
      %v5506 = vpop.permute.xlu0 %5505
      %5507 = vrot.lane.b32.xlu0 %v5490, 108
      %v5508 = vpop.permute.xlu0 %5507
      %v5509 = vsel %vm2346, %v5498, %v5500
      %v5510 = vsel %vm2346, %v5500, %v5502
      %v5511 = vsel %vm2346, %v5502, %v5504
      %v5512 = vsel %vm2346, %v5504, %v5506
      %v5513 = vsel %vm2346, %v5506, %v5508
      %v5520 = vadd.f32 %v4923, %v5498
      %v5521 = vadd.f32 %v4924, %v5509
      %v5522 = vadd.f32 %v4925, %v5510
      %v5523 = vadd.f32 %v4926, %v5511
      %v5524 = vadd.f32 %v4927, %v5512
      %v5525 = vadd.f32 %v4928, %v5513
      %v5526 = vlaneseq
      %v5527 = vshrl.u32 %v5526, 7
      %v5528 = vsub.s32 3, %v5527
      %v5529 = vrot.slane %v5285, %v5528
      %v5530 = vlaneseq
      %v5531 = vshrl.u32 %v5530, 7
      %v5532 = vsub.s32 3, %v5531
      %v5533 = vrot.slane %v5287, %v5532
      %v5534 = vlaneseq
      %v5535 = vshrl.u32 %v5534, 7
      %v5536 = vsub.s32 3, %v5535
      %v5537 = vrot.slane %v5289, %v5536
      %v5538 = vlaneseq
      %v5539 = vshrl.u32 %v5538, 7
      %v5540 = vsub.s32 3, %v5539
      %v5541 = vrot.slane %v5291, %v5540
      %v5542 = vlaneseq
      %v5543 = vshrl.u32 %v5542, 7
      %v5544 = vsub.s32 3, %v5543
      %v5545 = vrot.slane %v5293, %v5544
      %v5546 = vlaneseq
      %v5547 = vshrl.u32 %v5546, 7
      %v5548 = vsub.s32 3, %v5547
      %v5549 = vrot.slane %v5295, %v5548
      %v5550 = vmul.f32 %v5529, %v2479
      %v5551 = vmul.f32 %v5533, %v2480
      %v5552 = vmul.f32 %v5537, %v2481
      %v5553 = vmul.f32 %v5541, %v2482
      %v5554 = vmul.f32 %v5545, %v2483
      %v5555 = vmul.f32 %v5549, %v4063
      %5562 = vrot.lane.b32.xlu0 %v5550, 108
      %v5563 = vpop.permute.xlu0 %5562
      %5564 = vrot.lane.b32.xlu0 %v5551, 108
      %v5565 = vpop.permute.xlu0 %5564
      %5566 = vrot.lane.b32.xlu0 %v5552, 108
      %v5567 = vpop.permute.xlu0 %5566
      %5568 = vrot.lane.b32.xlu0 %v5553, 108
      %v5569 = vpop.permute.xlu0 %5568
      %5570 = vrot.lane.b32.xlu0 %v5554, 108
      %v5571 = vpop.permute.xlu0 %5570
      %5572 = vrot.lane.b32.xlu0 %v5555, 108
      %v5573 = vpop.permute.xlu0 %5572
      %v5574 = vsel %vm2346, %v5563, %v5565
      %v5575 = vsel %vm2346, %v5565, %v5567
      %v5576 = vsel %vm2346, %v5567, %v5569
      %v5577 = vsel %vm2346, %v5569, %v5571
      %v5578 = vsel %vm2346, %v5571, %v5573
      %v5585 = vadd.f32 %v4988, %v5563
      %v5586 = vadd.f32 %v4989, %v5574
      %v5587 = vadd.f32 %v4990, %v5575
      %v5588 = vadd.f32 %v4991, %v5576
      %v5589 = vadd.f32 %v4992, %v5577
      %v5590 = vadd.f32 %v4993, %v5578
      %v5591 = vlaneseq
      %v5592 = vshrl.u32 %v5591, 7
      %v5593 = vsub.s32 4, %v5592
      %v5594 = vrot.slane %v5285, %v5593
      %v5595 = vlaneseq
      %v5596 = vshrl.u32 %v5595, 7
      %v5597 = vsub.s32 4, %v5596
      %v5598 = vrot.slane %v5287, %v5597
      %v5599 = vlaneseq
      %v5600 = vshrl.u32 %v5599, 7
      %v5601 = vsub.s32 4, %v5600
      %v5602 = vrot.slane %v5289, %v5601
      %v5603 = vlaneseq
      %v5604 = vshrl.u32 %v5603, 7
      %v5605 = vsub.s32 4, %v5604
      %v5606 = vrot.slane %v5291, %v5605
      %v5607 = vlaneseq
      %v5608 = vshrl.u32 %v5607, 7
      %v5609 = vsub.s32 4, %v5608
      %v5610 = vrot.slane %v5293, %v5609
      %v5611 = vlaneseq
      %v5612 = vshrl.u32 %v5611, 7
      %v5613 = vsub.s32 4, %v5612
      %v5614 = vrot.slane %v5295, %v5613
      %v5615 = vmul.f32 %v5594, %v2485
      %v5616 = vmul.f32 %v5598, %v2486
      %v5617 = vmul.f32 %v5602, %v2487
      %v5618 = vmul.f32 %v5606, %v2488
      %v5619 = vmul.f32 %v5610, %v2489
      %v5620 = vmul.f32 %v5614, %v4064
      %5627 = vrot.lane.b32.xlu0 %v5615, 108
      %v5628 = vpop.permute.xlu0 %5627
      %5629 = vrot.lane.b32.xlu0 %v5616, 108
      %v5630 = vpop.permute.xlu0 %5629
      %5631 = vrot.lane.b32.xlu0 %v5617, 108
      %v5632 = vpop.permute.xlu0 %5631
      %5633 = vrot.lane.b32.xlu0 %v5618, 108
      %v5634 = vpop.permute.xlu0 %5633
      %5635 = vrot.lane.b32.xlu0 %v5619, 108
      %v5636 = vpop.permute.xlu0 %5635
      %5637 = vrot.lane.b32.xlu0 %v5620, 108
      %v5638 = vpop.permute.xlu0 %5637
      %v5639 = vsel %vm2346, %v5628, %v5630
      %v5640 = vsel %vm2346, %v5630, %v5632
      %v5641 = vsel %vm2346, %v5632, %v5634
      %v5642 = vsel %vm2346, %v5634, %v5636
      %v5643 = vsel %vm2346, %v5636, %v5638
      %v5650 = vadd.f32 %v5053, %v5628
      %v5651 = vadd.f32 %v5054, %v5639
      %v5652 = vadd.f32 %v5055, %v5640
      %v5653 = vadd.f32 %v5056, %v5641
      %v5654 = vadd.f32 %v5057, %v5642
      %v5655 = vadd.f32 %v5058, %v5643
      %v5656 = vlaneseq
      %v5657 = vshrl.u32 %v5656, 7
      %v5658 = vsub.s32 5, %v5657
      %v5659 = vrot.slane %v5285, %v5658
      %v5660 = vlaneseq
      %v5661 = vshrl.u32 %v5660, 7
      %v5662 = vsub.s32 5, %v5661
      %v5663 = vrot.slane %v5287, %v5662
      %v5664 = vlaneseq
      %v5665 = vshrl.u32 %v5664, 7
      %v5666 = vsub.s32 5, %v5665
      %v5667 = vrot.slane %v5289, %v5666
      %v5668 = vlaneseq
      %v5669 = vshrl.u32 %v5668, 7
      %v5670 = vsub.s32 5, %v5669
      %v5671 = vrot.slane %v5291, %v5670
      %v5672 = vlaneseq
      %v5673 = vshrl.u32 %v5672, 7
      %v5674 = vsub.s32 5, %v5673
      %v5675 = vrot.slane %v5293, %v5674
      %v5676 = vlaneseq
      %v5677 = vshrl.u32 %v5676, 7
      %v5678 = vsub.s32 5, %v5677
      %v5679 = vrot.slane %v5295, %v5678
      %v5680 = vmul.f32 %v5659, %v2485
      %v5681 = vmul.f32 %v5663, %v2486
      %v5682 = vmul.f32 %v5667, %v2487
      %v5683 = vmul.f32 %v5671, %v2488
      %v5684 = vmul.f32 %v5675, %v2489
      %v5685 = vmul.f32 %v5679, %v4064
      %5692 = vrot.lane.b32.xlu0 %v5680, 108
      %v5693 = vpop.permute.xlu0 %5692
      %5694 = vrot.lane.b32.xlu0 %v5681, 108
      %v5695 = vpop.permute.xlu0 %5694
      %5696 = vrot.lane.b32.xlu0 %v5682, 108
      %v5697 = vpop.permute.xlu0 %5696
      %5698 = vrot.lane.b32.xlu0 %v5683, 108
      %v5699 = vpop.permute.xlu0 %5698
      %5700 = vrot.lane.b32.xlu0 %v5684, 108
      %v5701 = vpop.permute.xlu0 %5700
      %5702 = vrot.lane.b32.xlu0 %v5685, 108
      %v5703 = vpop.permute.xlu0 %5702
      %v5704 = vsel %vm2346, %v5693, %v5695
      %v5705 = vsel %vm2346, %v5695, %v5697
      %v5706 = vsel %vm2346, %v5697, %v5699
      %v5707 = vsel %vm2346, %v5699, %v5701
      %v5708 = vsel %vm2346, %v5701, %v5703
      %v5715 = vadd.f32 %v5118, %v5693
      %v5716 = vadd.f32 %v5119, %v5704
      %v5717 = vadd.f32 %v5120, %v5705
      %v5718 = vadd.f32 %v5121, %v5706
      %v5719 = vadd.f32 %v5122, %v5707
      %v5720 = vadd.f32 %v5123, %v5708
      %v5721 = vlaneseq
      %v5722 = vshrl.u32 %v5721, 7
      %v5723 = vsub.s32 6, %v5722
      %v5724 = vrot.slane %v5285, %v5723
      %v5725 = vlaneseq
      %v5726 = vshrl.u32 %v5725, 7
      %v5727 = vsub.s32 6, %v5726
      %v5728 = vrot.slane %v5287, %v5727
      %v5729 = vlaneseq
      %v5730 = vshrl.u32 %v5729, 7
      %v5731 = vsub.s32 6, %v5730
      %v5732 = vrot.slane %v5289, %v5731
      %v5733 = vlaneseq
      %v5734 = vshrl.u32 %v5733, 7
      %v5735 = vsub.s32 6, %v5734
      %v5736 = vrot.slane %v5291, %v5735
      %v5737 = vlaneseq
      %v5738 = vshrl.u32 %v5737, 7
      %v5739 = vsub.s32 6, %v5738
      %v5740 = vrot.slane %v5293, %v5739
      %v5741 = vlaneseq
      %v5742 = vshrl.u32 %v5741, 7
      %v5743 = vsub.s32 6, %v5742
      %v5744 = vrot.slane %v5295, %v5743
      %v5745 = vmul.f32 %v5724, %v2485
      %v5746 = vmul.f32 %v5728, %v2486
      %v5747 = vmul.f32 %v5732, %v2487
      %v5748 = vmul.f32 %v5736, %v2488
      %v5749 = vmul.f32 %v5740, %v2489
      %v5750 = vmul.f32 %v5744, %v4064
      %5757 = vrot.lane.b32.xlu0 %v5745, 108
      %v5758 = vpop.permute.xlu0 %5757
      %5759 = vrot.lane.b32.xlu0 %v5746, 108
      %v5760 = vpop.permute.xlu0 %5759
      %5761 = vrot.lane.b32.xlu0 %v5747, 108
      %v5762 = vpop.permute.xlu0 %5761
      %5763 = vrot.lane.b32.xlu0 %v5748, 108
      %v5764 = vpop.permute.xlu0 %5763
      %5765 = vrot.lane.b32.xlu0 %v5749, 108
      %v5766 = vpop.permute.xlu0 %5765
      %5767 = vrot.lane.b32.xlu0 %v5750, 108
      %v5768 = vpop.permute.xlu0 %5767
      %v5769 = vsel %vm2346, %v5758, %v5760
      %v5770 = vsel %vm2346, %v5760, %v5762
      %v5771 = vsel %vm2346, %v5762, %v5764
      %v5772 = vsel %vm2346, %v5764, %v5766
      %v5773 = vsel %vm2346, %v5766, %v5768
      %v5780 = vadd.f32 %v5183, %v5758
      %v5781 = vadd.f32 %v5184, %v5769
      %v5782 = vadd.f32 %v5185, %v5770
      %v5783 = vadd.f32 %v5186, %v5771
      %v5784 = vadd.f32 %v5187, %v5772
      %v5785 = vadd.f32 %v5188, %v5773
      %v5786 = vlaneseq
      %v5787 = vshrl.u32 %v5786, 7
      %v5788 = vsub.s32 7, %v5787
      %v5789 = vrot.slane %v5285, %v5788
      %v5790 = vlaneseq
      %v5791 = vshrl.u32 %v5790, 7
      %v5792 = vsub.s32 7, %v5791
      %v5793 = vrot.slane %v5287, %v5792
      %v5794 = vlaneseq
      %v5795 = vshrl.u32 %v5794, 7
      %v5796 = vsub.s32 7, %v5795
      %v5797 = vrot.slane %v5289, %v5796
      %v5798 = vlaneseq
      %v5799 = vshrl.u32 %v5798, 7
      %v5800 = vsub.s32 7, %v5799
      %v5801 = vrot.slane %v5291, %v5800
      %v5802 = vlaneseq
      %v5803 = vshrl.u32 %v5802, 7
      %v5804 = vsub.s32 7, %v5803
      %v5805 = vrot.slane %v5293, %v5804
      %v5806 = vlaneseq
      %v5807 = vshrl.u32 %v5806, 7
      %v5808 = vsub.s32 7, %v5807
      %v5809 = vrot.slane %v5295, %v5808
      %v5810 = vmul.f32 %v5789, %v2485
      %v5811 = vmul.f32 %v5793, %v2486
      %v5812 = vmul.f32 %v5797, %v2487
      %v5813 = vmul.f32 %v5801, %v2488
      %v5814 = vmul.f32 %v5805, %v2489
      %v5815 = vmul.f32 %v5809, %v4064
      %5822 = vrot.lane.b32.xlu0 %v5810, 108
      %v5823 = vpop.permute.xlu0 %5822
      %5824 = vrot.lane.b32.xlu0 %v5811, 108
      %v5825 = vpop.permute.xlu0 %5824
      %5826 = vrot.lane.b32.xlu0 %v5812, 108
      %v5827 = vpop.permute.xlu0 %5826
      %5828 = vrot.lane.b32.xlu0 %v5813, 108
      %v5829 = vpop.permute.xlu0 %5828
      %5830 = vrot.lane.b32.xlu0 %v5814, 108
      %v5831 = vpop.permute.xlu0 %5830
      %5832 = vrot.lane.b32.xlu0 %v5815, 108
      %v5833 = vpop.permute.xlu0 %5832
      %v5834 = vsel %vm2346, %v5823, %v5825
      %v5835 = vsel %vm2346, %v5825, %v5827
      %v5836 = vsel %vm2346, %v5827, %v5829
      %v5837 = vsel %vm2346, %v5829, %v5831
      %v5838 = vsel %vm2346, %v5831, %v5833
      %v5845 = vadd.f32 %v5248, %v5823
      %v5846 = vadd.f32 %v5249, %v5834
      %v5847 = vadd.f32 %v5250, %v5835
      %v5848 = vadd.f32 %v5251, %v5836
      %v5849 = vadd.f32 %v5252, %v5837
      %v5850 = vadd.f32 %v5253, %v5838
      %5851 = vrot.lane.b32.xlu0 %v2448, 36
      %v5852 = vpop.permute.xlu0 %5851
      %5853 = vrot.lane.b32.xlu0 %v2449, 36
      %v5854 = vpop.permute.xlu0 %5853
      %5855 = vrot.lane.b32.xlu0 %v2450, 36
      %v5856 = vpop.permute.xlu0 %5855
      %5857 = vrot.lane.b32.xlu0 %v2451, 36
      %v5858 = vpop.permute.xlu0 %5857
      %5859 = vrot.lane.b32.xlu0 %v2452, 36
      %v5860 = vpop.permute.xlu0 %5859
      %5861 = vrot.lane.b32.xlu0 %v2453, 36
      %v5862 = vpop.permute.xlu0 %5861
      %vm5863 = vcmask 293888
      %v5864 = vsel %vm5863, %v5852, %v5854
      %v5865 = vsel %vm5863, %v5854, %v5856
      %v5866 = vsel %vm5863, %v5856, %v5858
      %v5867 = vsel %vm5863, %v5858, %v5860
      %v5868 = vsel %vm5863, %v5860, %v5862
      %v5875 = vsub.f32 %v2198, %v5864
      %v5876 = vsub.f32 %v2199, %v5865
      %v5877 = vsub.f32 %v2200, %v5866
      %v5878 = vsub.f32 %v2201, %v5867
      %v5879 = vsub.f32 %v2202, %v5868
      %v5880 = vsub.f32 %v2269, %v5862
      %v5881 = vmul.f32 %v5875, 1.442695
      %v5882 = vpow.pop %v5881
      %v5883 = vmul.f32 %v5876, 1.442695
      %v5884 = vpow.pop %v5883
      %v5885 = vmul.f32 %v5877, 1.442695
      %v5886 = vpow.pop %v5885
      %v5887 = vmul.f32 %v5878, 1.442695
      %v5888 = vpow.pop %v5887
      %v5889 = vmul.f32 %v5879, 1.442695
      %v5890 = vpow.pop %v5889
      %v5891 = vmul.f32 %v5880, 1.442695
      %v5892 = vpow.pop %v5891
      %5899 = vrot.lane.b32.xlu0 %v5882, 92
      %v5900 = vpop.permute.xlu0 %5899
      %5901 = vrot.lane.b32.xlu0 %v5884, 92
      %v5902 = vpop.permute.xlu0 %5901
      %5903 = vrot.lane.b32.xlu0 %v5886, 92
      %v5904 = vpop.permute.xlu0 %5903
      %5905 = vrot.lane.b32.xlu0 %v5888, 92
      %v5906 = vpop.permute.xlu0 %5905
      %5907 = vrot.lane.b32.xlu0 %v5890, 92
      %v5908 = vpop.permute.xlu0 %5907
      %5909 = vrot.lane.b32.xlu0 %v5892, 92
      %v5910 = vpop.permute.xlu0 %5909
      %v5911 = vsel %vm2376, %v5900, %v5902
      %v5912 = vsel %vm2376, %v5902, %v5904
      %v5913 = vsel %vm2376, %v5904, %v5906
      %v5914 = vsel %vm2376, %v5906, %v5908
      %v5915 = vsel %vm2376, %v5908, %v5910
      %v5922 = vadd.f32 %v5325, %v5900
      %v5923 = vadd.f32 %v5326, %v5911
      %v5924 = vadd.f32 %v5327, %v5912
      %v5925 = vadd.f32 %v5328, %v5913
      %v5926 = vadd.f32 %v5329, %v5914
      %v5927 = vadd.f32 %v5330, %v5915
      %v5928 = vlaneseq
      %v5929 = vshrl.u32 %v5928, 7
      %v5930 = vsub.s32 0, %v5929
      %v5931 = vrot.slane %v5882, %v5930
      %v5932 = vlaneseq
      %v5933 = vshrl.u32 %v5932, 7
      %v5934 = vsub.s32 0, %v5933
      %v5935 = vrot.slane %v5884, %v5934
      %v5936 = vlaneseq
      %v5937 = vshrl.u32 %v5936, 7
      %v5938 = vsub.s32 0, %v5937
      %v5939 = vrot.slane %v5886, %v5938
      %v5940 = vlaneseq
      %v5941 = vshrl.u32 %v5940, 7
      %v5942 = vsub.s32 0, %v5941
      %v5943 = vrot.slane %v5888, %v5942
      %v5944 = vlaneseq
      %v5945 = vshrl.u32 %v5944, 7
      %v5946 = vsub.s32 0, %v5945
      %v5947 = vrot.slane %v5890, %v5946
      %v5948 = vlaneseq
      %v5949 = vshrl.u32 %v5948, 7
      %v5950 = vsub.s32 0, %v5949
      %v5951 = vrot.slane %v5892, %v5950
      %v5952 = vmul.f32 %v5931, %v2479
      %v5953 = vmul.f32 %v5935, %v2480
      %v5954 = vmul.f32 %v5939, %v2481
      %v5955 = vmul.f32 %v5943, %v2482
      %v5956 = vmul.f32 %v5947, %v2483
      %v5957 = vmul.f32 %v5951, %v4063
      %5964 = vrot.lane.b32.xlu0 %v5952, 92
      %v5965 = vpop.permute.xlu0 %5964
      %5966 = vrot.lane.b32.xlu0 %v5953, 92
      %v5967 = vpop.permute.xlu0 %5966
      %5968 = vrot.lane.b32.xlu0 %v5954, 92
      %v5969 = vpop.permute.xlu0 %5968
      %5970 = vrot.lane.b32.xlu0 %v5955, 92
      %v5971 = vpop.permute.xlu0 %5970
      %5972 = vrot.lane.b32.xlu0 %v5956, 92
      %v5973 = vpop.permute.xlu0 %5972
      %5974 = vrot.lane.b32.xlu0 %v5957, 92
      %v5975 = vpop.permute.xlu0 %5974
      %v5976 = vsel %vm2376, %v5965, %v5967
      %v5977 = vsel %vm2376, %v5967, %v5969
      %v5978 = vsel %vm2376, %v5969, %v5971
      %v5979 = vsel %vm2376, %v5971, %v5973
      %v5980 = vsel %vm2376, %v5973, %v5975
      %v5987 = vadd.f32 %v5390, %v5965
      %v5988 = vadd.f32 %v5391, %v5976
      %v5989 = vadd.f32 %v5392, %v5977
      %v5990 = vadd.f32 %v5393, %v5978
      %v5991 = vadd.f32 %v5394, %v5979
      %v5992 = vadd.f32 %v5395, %v5980
      %v5993 = vlaneseq
      %v5994 = vshrl.u32 %v5993, 7
      %v5995 = vsub.s32 1, %v5994
      %v5996 = vrot.slane %v5882, %v5995
      %v5997 = vlaneseq
      %v5998 = vshrl.u32 %v5997, 7
      %v5999 = vsub.s32 1, %v5998
      %v6000 = vrot.slane %v5884, %v5999
      %v6001 = vlaneseq
      %v6002 = vshrl.u32 %v6001, 7
      %v6003 = vsub.s32 1, %v6002
      %v6004 = vrot.slane %v5886, %v6003
      %v6005 = vlaneseq
      %v6006 = vshrl.u32 %v6005, 7
      %v6007 = vsub.s32 1, %v6006
      %v6008 = vrot.slane %v5888, %v6007
      %v6009 = vlaneseq
      %v6010 = vshrl.u32 %v6009, 7
      %v6011 = vsub.s32 1, %v6010
      %v6012 = vrot.slane %v5890, %v6011
      %v6013 = vlaneseq
      %v6014 = vshrl.u32 %v6013, 7
      %v6015 = vsub.s32 1, %v6014
      %v6016 = vrot.slane %v5892, %v6015
      %v6017 = vmul.f32 %v5996, %v2479
      %v6018 = vmul.f32 %v6000, %v2480
      %v6019 = vmul.f32 %v6004, %v2481
      %v6020 = vmul.f32 %v6008, %v2482
      %v6021 = vmul.f32 %v6012, %v2483
      %v6022 = vmul.f32 %v6016, %v4063
      %6029 = vrot.lane.b32.xlu0 %v6017, 92
      %v6030 = vpop.permute.xlu0 %6029
      %6031 = vrot.lane.b32.xlu0 %v6018, 92
      %v6032 = vpop.permute.xlu0 %6031
      %6033 = vrot.lane.b32.xlu0 %v6019, 92
      %v6034 = vpop.permute.xlu0 %6033
      %6035 = vrot.lane.b32.xlu0 %v6020, 92
      %v6036 = vpop.permute.xlu0 %6035
      %6037 = vrot.lane.b32.xlu0 %v6021, 92
      %v6038 = vpop.permute.xlu0 %6037
      %6039 = vrot.lane.b32.xlu0 %v6022, 92
      %v6040 = vpop.permute.xlu0 %6039
      %v6041 = vsel %vm2376, %v6030, %v6032
      %v6042 = vsel %vm2376, %v6032, %v6034
      %v6043 = vsel %vm2376, %v6034, %v6036
      %v6044 = vsel %vm2376, %v6036, %v6038
      %v6045 = vsel %vm2376, %v6038, %v6040
      %v6052 = vadd.f32 %v5455, %v6030
      %v6053 = vadd.f32 %v5456, %v6041
      %v6054 = vadd.f32 %v5457, %v6042
      %v6055 = vadd.f32 %v5458, %v6043
      %v6056 = vadd.f32 %v5459, %v6044
      %v6057 = vadd.f32 %v5460, %v6045
      %v6058 = vlaneseq
      %v6059 = vshrl.u32 %v6058, 7
      %v6060 = vsub.s32 2, %v6059
      %v6061 = vrot.slane %v5882, %v6060
      %v6062 = vlaneseq
      %v6063 = vshrl.u32 %v6062, 7
      %v6064 = vsub.s32 2, %v6063
      %v6065 = vrot.slane %v5884, %v6064
      %v6066 = vlaneseq
      %v6067 = vshrl.u32 %v6066, 7
      %v6068 = vsub.s32 2, %v6067
      %v6069 = vrot.slane %v5886, %v6068
      %v6070 = vlaneseq
      %v6071 = vshrl.u32 %v6070, 7
      %v6072 = vsub.s32 2, %v6071
      %v6073 = vrot.slane %v5888, %v6072
      %v6074 = vlaneseq
      %v6075 = vshrl.u32 %v6074, 7
      %v6076 = vsub.s32 2, %v6075
      %v6077 = vrot.slane %v5890, %v6076
      %v6078 = vlaneseq
      %v6079 = vshrl.u32 %v6078, 7
      %v6080 = vsub.s32 2, %v6079
      %v6081 = vrot.slane %v5892, %v6080
      %v6082 = vmul.f32 %v6061, %v2479
      %v6083 = vmul.f32 %v6065, %v2480
      %v6084 = vmul.f32 %v6069, %v2481
      %v6085 = vmul.f32 %v6073, %v2482
      %v6086 = vmul.f32 %v6077, %v2483
      %v6087 = vmul.f32 %v6081, %v4063
      %6094 = vrot.lane.b32.xlu0 %v6082, 92
      %v6095 = vpop.permute.xlu0 %6094
      %6096 = vrot.lane.b32.xlu0 %v6083, 92
      %v6097 = vpop.permute.xlu0 %6096
      %6098 = vrot.lane.b32.xlu0 %v6084, 92
      %v6099 = vpop.permute.xlu0 %6098
      %6100 = vrot.lane.b32.xlu0 %v6085, 92
      %v6101 = vpop.permute.xlu0 %6100
      %6102 = vrot.lane.b32.xlu0 %v6086, 92
      %v6103 = vpop.permute.xlu0 %6102
      %6104 = vrot.lane.b32.xlu0 %v6087, 92
      %v6105 = vpop.permute.xlu0 %6104
      %v6106 = vsel %vm2376, %v6095, %v6097
      %v6107 = vsel %vm2376, %v6097, %v6099
      %v6108 = vsel %vm2376, %v6099, %v6101
      %v6109 = vsel %vm2376, %v6101, %v6103
      %v6110 = vsel %vm2376, %v6103, %v6105
      %v6117 = vadd.f32 %v5520, %v6095
      %v6118 = vadd.f32 %v5521, %v6106
      %v6119 = vadd.f32 %v5522, %v6107
      %v6120 = vadd.f32 %v5523, %v6108
      %v6121 = vadd.f32 %v5524, %v6109
      %v6122 = vadd.f32 %v5525, %v6110
      %v6123 = vlaneseq
      %v6124 = vshrl.u32 %v6123, 7
      %v6125 = vsub.s32 3, %v6124
      %v6126 = vrot.slane %v5882, %v6125
      %v6127 = vlaneseq
      %v6128 = vshrl.u32 %v6127, 7
      %v6129 = vsub.s32 3, %v6128
      %v6130 = vrot.slane %v5884, %v6129
      %v6131 = vlaneseq
      %v6132 = vshrl.u32 %v6131, 7
      %v6133 = vsub.s32 3, %v6132
      %v6134 = vrot.slane %v5886, %v6133
      %v6135 = vlaneseq
      %v6136 = vshrl.u32 %v6135, 7
      %v6137 = vsub.s32 3, %v6136
      %v6138 = vrot.slane %v5888, %v6137
      %v6139 = vlaneseq
      %v6140 = vshrl.u32 %v6139, 7
      %v6141 = vsub.s32 3, %v6140
      %v6142 = vrot.slane %v5890, %v6141
      %v6143 = vlaneseq
      %v6144 = vshrl.u32 %v6143, 7
      %v6145 = vsub.s32 3, %v6144
      %v6146 = vrot.slane %v5892, %v6145
      %v6147 = vmul.f32 %v6126, %v2479
      %v6148 = vmul.f32 %v6130, %v2480
      %v6149 = vmul.f32 %v6134, %v2481
      %v6150 = vmul.f32 %v6138, %v2482
      %v6151 = vmul.f32 %v6142, %v2483
      %v6152 = vmul.f32 %v6146, %v4063
      %6159 = vrot.lane.b32.xlu0 %v6147, 92
      %v6160 = vpop.permute.xlu0 %6159
      %6161 = vrot.lane.b32.xlu0 %v6148, 92
      %v6162 = vpop.permute.xlu0 %6161
      %6163 = vrot.lane.b32.xlu0 %v6149, 92
      %v6164 = vpop.permute.xlu0 %6163
      %6165 = vrot.lane.b32.xlu0 %v6150, 92
      %v6166 = vpop.permute.xlu0 %6165
      %6167 = vrot.lane.b32.xlu0 %v6151, 92
      %v6168 = vpop.permute.xlu0 %6167
      %6169 = vrot.lane.b32.xlu0 %v6152, 92
      %v6170 = vpop.permute.xlu0 %6169
      %v6171 = vsel %vm2376, %v6160, %v6162
      %v6172 = vsel %vm2376, %v6162, %v6164
      %v6173 = vsel %vm2376, %v6164, %v6166
      %v6174 = vsel %vm2376, %v6166, %v6168
      %v6175 = vsel %vm2376, %v6168, %v6170
      %v6182 = vadd.f32 %v5585, %v6160
      %v6183 = vadd.f32 %v5586, %v6171
      %v6184 = vadd.f32 %v5587, %v6172
      %v6185 = vadd.f32 %v5588, %v6173
      %v6186 = vadd.f32 %v5589, %v6174
      %v6187 = vadd.f32 %v5590, %v6175
      %v6188 = vlaneseq
      %v6189 = vshrl.u32 %v6188, 7
      %v6190 = vsub.s32 4, %v6189
      %v6191 = vrot.slane %v5882, %v6190
      %v6192 = vlaneseq
      %v6193 = vshrl.u32 %v6192, 7
      %v6194 = vsub.s32 4, %v6193
      %v6195 = vrot.slane %v5884, %v6194
      %v6196 = vlaneseq
      %v6197 = vshrl.u32 %v6196, 7
      %v6198 = vsub.s32 4, %v6197
      %v6199 = vrot.slane %v5886, %v6198
      %v6200 = vlaneseq
      %v6201 = vshrl.u32 %v6200, 7
      %v6202 = vsub.s32 4, %v6201
      %v6203 = vrot.slane %v5888, %v6202
      %v6204 = vlaneseq
      %v6205 = vshrl.u32 %v6204, 7
      %v6206 = vsub.s32 4, %v6205
      %v6207 = vrot.slane %v5890, %v6206
      %v6208 = vlaneseq
      %v6209 = vshrl.u32 %v6208, 7
      %v6210 = vsub.s32 4, %v6209
      %v6211 = vrot.slane %v5892, %v6210
      %v6212 = vmul.f32 %v6191, %v2485
      %v6213 = vmul.f32 %v6195, %v2486
      %v6214 = vmul.f32 %v6199, %v2487
      %v6215 = vmul.f32 %v6203, %v2488
      %v6216 = vmul.f32 %v6207, %v2489
      %v6217 = vmul.f32 %v6211, %v4064
      %6224 = vrot.lane.b32.xlu0 %v6212, 92
      %v6225 = vpop.permute.xlu0 %6224
      %6226 = vrot.lane.b32.xlu0 %v6213, 92
      %v6227 = vpop.permute.xlu0 %6226
      %6228 = vrot.lane.b32.xlu0 %v6214, 92
      %v6229 = vpop.permute.xlu0 %6228
      %6230 = vrot.lane.b32.xlu0 %v6215, 92
      %v6231 = vpop.permute.xlu0 %6230
      %6232 = vrot.lane.b32.xlu0 %v6216, 92
      %v6233 = vpop.permute.xlu0 %6232
      %6234 = vrot.lane.b32.xlu0 %v6217, 92
      %v6235 = vpop.permute.xlu0 %6234
      %v6236 = vsel %vm2376, %v6225, %v6227
      %v6237 = vsel %vm2376, %v6227, %v6229
      %v6238 = vsel %vm2376, %v6229, %v6231
      %v6239 = vsel %vm2376, %v6231, %v6233
      %v6240 = vsel %vm2376, %v6233, %v6235
      %v6247 = vadd.f32 %v5650, %v6225
      %v6248 = vadd.f32 %v5651, %v6236
      %v6249 = vadd.f32 %v5652, %v6237
      %v6250 = vadd.f32 %v5653, %v6238
      %v6251 = vadd.f32 %v5654, %v6239
      %v6252 = vadd.f32 %v5655, %v6240
      %v6253 = vlaneseq
      %v6254 = vshrl.u32 %v6253, 7
      %v6255 = vsub.s32 5, %v6254
      %v6256 = vrot.slane %v5882, %v6255
      %v6257 = vlaneseq
      %v6258 = vshrl.u32 %v6257, 7
      %v6259 = vsub.s32 5, %v6258
      %v6260 = vrot.slane %v5884, %v6259
      %v6261 = vlaneseq
      %v6262 = vshrl.u32 %v6261, 7
      %v6263 = vsub.s32 5, %v6262
      %v6264 = vrot.slane %v5886, %v6263
      %v6265 = vlaneseq
      %v6266 = vshrl.u32 %v6265, 7
      %v6267 = vsub.s32 5, %v6266
      %v6268 = vrot.slane %v5888, %v6267
      %v6269 = vlaneseq
      %v6270 = vshrl.u32 %v6269, 7
      %v6271 = vsub.s32 5, %v6270
      %v6272 = vrot.slane %v5890, %v6271
      %v6273 = vlaneseq
      %v6274 = vshrl.u32 %v6273, 7
      %v6275 = vsub.s32 5, %v6274
      %v6276 = vrot.slane %v5892, %v6275
      %v6277 = vmul.f32 %v6256, %v2485
      %v6278 = vmul.f32 %v6260, %v2486
      %v6279 = vmul.f32 %v6264, %v2487
      %v6280 = vmul.f32 %v6268, %v2488
      %v6281 = vmul.f32 %v6272, %v2489
      %v6282 = vmul.f32 %v6276, %v4064
      %6289 = vrot.lane.b32.xlu0 %v6277, 92
      %v6290 = vpop.permute.xlu0 %6289
      %6291 = vrot.lane.b32.xlu0 %v6278, 92
      %v6292 = vpop.permute.xlu0 %6291
      %6293 = vrot.lane.b32.xlu0 %v6279, 92
      %v6294 = vpop.permute.xlu0 %6293
      %6295 = vrot.lane.b32.xlu0 %v6280, 92
      %v6296 = vpop.permute.xlu0 %6295
      %6297 = vrot.lane.b32.xlu0 %v6281, 92
      %v6298 = vpop.permute.xlu0 %6297
      %6299 = vrot.lane.b32.xlu0 %v6282, 92
      %v6300 = vpop.permute.xlu0 %6299
      %v6301 = vsel %vm2376, %v6290, %v6292
      %v6302 = vsel %vm2376, %v6292, %v6294
      %v6303 = vsel %vm2376, %v6294, %v6296
      %v6304 = vsel %vm2376, %v6296, %v6298
      %v6305 = vsel %vm2376, %v6298, %v6300
      %v6312 = vadd.f32 %v5715, %v6290
      %v6313 = vadd.f32 %v5716, %v6301
      %v6314 = vadd.f32 %v5717, %v6302
      %v6315 = vadd.f32 %v5718, %v6303
      %v6316 = vadd.f32 %v5719, %v6304
      %v6317 = vadd.f32 %v5720, %v6305
      %v6318 = vlaneseq
      %v6319 = vshrl.u32 %v6318, 7
      %v6320 = vsub.s32 6, %v6319
      %v6321 = vrot.slane %v5882, %v6320
      %v6322 = vlaneseq
      %v6323 = vshrl.u32 %v6322, 7
      %v6324 = vsub.s32 6, %v6323
      %v6325 = vrot.slane %v5884, %v6324
      %v6326 = vlaneseq
      %v6327 = vshrl.u32 %v6326, 7
      %v6328 = vsub.s32 6, %v6327
      %v6329 = vrot.slane %v5886, %v6328
      %v6330 = vlaneseq
      %v6331 = vshrl.u32 %v6330, 7
      %v6332 = vsub.s32 6, %v6331
      %v6333 = vrot.slane %v5888, %v6332
      %v6334 = vlaneseq
      %v6335 = vshrl.u32 %v6334, 7
      %v6336 = vsub.s32 6, %v6335
      %v6337 = vrot.slane %v5890, %v6336
      %v6338 = vlaneseq
      %v6339 = vshrl.u32 %v6338, 7
      %v6340 = vsub.s32 6, %v6339
      %v6341 = vrot.slane %v5892, %v6340
      %v6342 = vmul.f32 %v6321, %v2485
      %v6343 = vmul.f32 %v6325, %v2486
      %v6344 = vmul.f32 %v6329, %v2487
      %v6345 = vmul.f32 %v6333, %v2488
      %v6346 = vmul.f32 %v6337, %v2489
      %v6347 = vmul.f32 %v6341, %v4064
      %6354 = vrot.lane.b32.xlu0 %v6342, 92
      %v6355 = vpop.permute.xlu0 %6354
      %6356 = vrot.lane.b32.xlu0 %v6343, 92
      %v6357 = vpop.permute.xlu0 %6356
      %6358 = vrot.lane.b32.xlu0 %v6344, 92
      %v6359 = vpop.permute.xlu0 %6358
      %6360 = vrot.lane.b32.xlu0 %v6345, 92
      %v6361 = vpop.permute.xlu0 %6360
      %6362 = vrot.lane.b32.xlu0 %v6346, 92
      %v6363 = vpop.permute.xlu0 %6362
      %6364 = vrot.lane.b32.xlu0 %v6347, 92
      %v6365 = vpop.permute.xlu0 %6364
      %v6366 = vsel %vm2376, %v6355, %v6357
      %v6367 = vsel %vm2376, %v6357, %v6359
      %v6368 = vsel %vm2376, %v6359, %v6361
      %v6369 = vsel %vm2376, %v6361, %v6363
      %v6370 = vsel %vm2376, %v6363, %v6365
      %v6377 = vadd.f32 %v5780, %v6355
      %v6378 = vadd.f32 %v5781, %v6366
      %v6379 = vadd.f32 %v5782, %v6367
      %v6380 = vadd.f32 %v5783, %v6368
      %v6381 = vadd.f32 %v5784, %v6369
      %v6382 = vadd.f32 %v5785, %v6370
      %v6383 = vlaneseq
      %v6384 = vshrl.u32 %v6383, 7
      %v6385 = vsub.s32 7, %v6384
      %v6386 = vrot.slane %v5882, %v6385
      %v6387 = vlaneseq
      %v6388 = vshrl.u32 %v6387, 7
      %v6389 = vsub.s32 7, %v6388
      %v6390 = vrot.slane %v5884, %v6389
      %v6391 = vlaneseq
      %v6392 = vshrl.u32 %v6391, 7
      %v6393 = vsub.s32 7, %v6392
      %v6394 = vrot.slane %v5886, %v6393
      %v6395 = vlaneseq
      %v6396 = vshrl.u32 %v6395, 7
      %v6397 = vsub.s32 7, %v6396
      %v6398 = vrot.slane %v5888, %v6397
      %v6399 = vlaneseq
      %v6400 = vshrl.u32 %v6399, 7
      %v6401 = vsub.s32 7, %v6400
      %v6402 = vrot.slane %v5890, %v6401
      %v6403 = vlaneseq
      %v6404 = vshrl.u32 %v6403, 7
      %v6405 = vsub.s32 7, %v6404
      %v6406 = vrot.slane %v5892, %v6405
      %v6407 = vmul.f32 %v6386, %v2485
      %v6408 = vmul.f32 %v6390, %v2486
      %v6409 = vmul.f32 %v6394, %v2487
      %v6410 = vmul.f32 %v6398, %v2488
      %v6411 = vmul.f32 %v6402, %v2489
      %v6412 = vmul.f32 %v6406, %v4064
      %6419 = vrot.lane.b32.xlu0 %v6407, 92
      %v6420 = vpop.permute.xlu0 %6419
      %6421 = vrot.lane.b32.xlu0 %v6408, 92
      %v6422 = vpop.permute.xlu0 %6421
      %6423 = vrot.lane.b32.xlu0 %v6409, 92
      %v6424 = vpop.permute.xlu0 %6423
      %6425 = vrot.lane.b32.xlu0 %v6410, 92
      %v6426 = vpop.permute.xlu0 %6425
      %6427 = vrot.lane.b32.xlu0 %v6411, 92
      %v6428 = vpop.permute.xlu0 %6427
      %6429 = vrot.lane.b32.xlu0 %v6412, 92
      %v6430 = vpop.permute.xlu0 %6429
      %v6431 = vsel %vm2376, %v6420, %v6422
      %v6432 = vsel %vm2376, %v6422, %v6424
      %v6433 = vsel %vm2376, %v6424, %v6426
      %v6434 = vsel %vm2376, %v6426, %v6428
      %v6435 = vsel %vm2376, %v6428, %v6430
      %v6442 = vadd.f32 %v5845, %v6420
      %v6443 = vadd.f32 %v5846, %v6431
      %v6444 = vadd.f32 %v5847, %v6432
      %v6445 = vadd.f32 %v5848, %v6433
      %v6446 = vadd.f32 %v5849, %v6434
      %v6447 = vadd.f32 %v5850, %v6435
      %6448 = vrot.lane.b32.xlu0 %v2448, 37
      %v6449 = vpop.permute.xlu0 %6448
      %6450 = vrot.lane.b32.xlu0 %v2449, 37
      %v6451 = vpop.permute.xlu0 %6450
      %6452 = vrot.lane.b32.xlu0 %v2450, 37
      %v6453 = vpop.permute.xlu0 %6452
      %6454 = vrot.lane.b32.xlu0 %v2451, 37
      %v6455 = vpop.permute.xlu0 %6454
      %6456 = vrot.lane.b32.xlu0 %v2452, 37
      %v6457 = vpop.permute.xlu0 %6456
      %6458 = vrot.lane.b32.xlu0 %v2453, 37
      %v6459 = vpop.permute.xlu0 %6458
      %vm6460 = vcmask 302080
      %v6461 = vsel %vm6460, %v6449, %v6451
      %v6462 = vsel %vm6460, %v6451, %v6453
      %v6463 = vsel %vm6460, %v6453, %v6455
      %v6464 = vsel %vm6460, %v6455, %v6457
      %v6465 = vsel %vm6460, %v6457, %v6459
      %v6472 = vsub.f32 %v2198, %v6461
      %v6473 = vsub.f32 %v2199, %v6462
      %v6474 = vsub.f32 %v2200, %v6463
      %v6475 = vsub.f32 %v2201, %v6464
      %v6476 = vsub.f32 %v2202, %v6465
      %v6477 = vsub.f32 %v2269, %v6459
      %v6478 = vmul.f32 %v6472, 1.442695
      %v6479 = vpow.pop %v6478
      %v6480 = vmul.f32 %v6473, 1.442695
      %v6481 = vpow.pop %v6480
      %v6482 = vmul.f32 %v6474, 1.442695
      %v6483 = vpow.pop %v6482
      %v6484 = vmul.f32 %v6475, 1.442695
      %v6485 = vpow.pop %v6484
      %v6486 = vmul.f32 %v6476, 1.442695
      %v6487 = vpow.pop %v6486
      %v6488 = vmul.f32 %v6477, 1.442695
      %v6489 = vpow.pop %v6488
      %6496 = vrot.lane.b32.xlu0 %v6479, 91
      %v6497 = vpop.permute.xlu0 %6496
      %6498 = vrot.lane.b32.xlu0 %v6481, 91
      %v6499 = vpop.permute.xlu0 %6498
      %6500 = vrot.lane.b32.xlu0 %v6483, 91
      %v6501 = vpop.permute.xlu0 %6500
      %6502 = vrot.lane.b32.xlu0 %v6485, 91
      %v6503 = vpop.permute.xlu0 %6502
      %6504 = vrot.lane.b32.xlu0 %v6487, 91
      %v6505 = vpop.permute.xlu0 %6504
      %6506 = vrot.lane.b32.xlu0 %v6489, 91
      %v6507 = vpop.permute.xlu0 %6506
      %v6508 = vsel %vm2406, %v6497, %v6499
      %v6509 = vsel %vm2406, %v6499, %v6501
      %v6510 = vsel %vm2406, %v6501, %v6503
      %v6511 = vsel %vm2406, %v6503, %v6505
      %v6512 = vsel %vm2406, %v6505, %v6507
      %v6519 = vadd.f32 %v5922, %v6497
      %v6520 = vadd.f32 %v5923, %v6508
      %v6521 = vadd.f32 %v5924, %v6509
      %v6522 = vadd.f32 %v5925, %v6510
      %v6523 = vadd.f32 %v5926, %v6511
      %v6524 = vadd.f32 %v5927, %v6512
      %v6525 = vlaneseq
      %v6526 = vshrl.u32 %v6525, 7
      %v6527 = vsub.s32 0, %v6526
      %v6528 = vrot.slane %v6479, %v6527
      %v6529 = vlaneseq
      %v6530 = vshrl.u32 %v6529, 7
      %v6531 = vsub.s32 0, %v6530
      %v6532 = vrot.slane %v6481, %v6531
      %v6533 = vlaneseq
      %v6534 = vshrl.u32 %v6533, 7
      %v6535 = vsub.s32 0, %v6534
      %v6536 = vrot.slane %v6483, %v6535
      %v6537 = vlaneseq
      %v6538 = vshrl.u32 %v6537, 7
      %v6539 = vsub.s32 0, %v6538
      %v6540 = vrot.slane %v6485, %v6539
      %v6541 = vlaneseq
      %v6542 = vshrl.u32 %v6541, 7
      %v6543 = vsub.s32 0, %v6542
      %v6544 = vrot.slane %v6487, %v6543
      %v6545 = vlaneseq
      %v6546 = vshrl.u32 %v6545, 7
      %v6547 = vsub.s32 0, %v6546
      %v6548 = vrot.slane %v6489, %v6547
      %v6549 = vmul.f32 %v6528, %v2479
      %v6550 = vmul.f32 %v6532, %v2480
      %v6551 = vmul.f32 %v6536, %v2481
      %v6552 = vmul.f32 %v6540, %v2482
      %v6553 = vmul.f32 %v6544, %v2483
      %v6554 = vmul.f32 %v6548, %v4063
      %6561 = vrot.lane.b32.xlu0 %v6549, 91
      %v6562 = vpop.permute.xlu0 %6561
      %6563 = vrot.lane.b32.xlu0 %v6550, 91
      %v6564 = vpop.permute.xlu0 %6563
      %6565 = vrot.lane.b32.xlu0 %v6551, 91
      %v6566 = vpop.permute.xlu0 %6565
      %6567 = vrot.lane.b32.xlu0 %v6552, 91
      %v6568 = vpop.permute.xlu0 %6567
      %6569 = vrot.lane.b32.xlu0 %v6553, 91
      %v6570 = vpop.permute.xlu0 %6569
      %6571 = vrot.lane.b32.xlu0 %v6554, 91
      %v6572 = vpop.permute.xlu0 %6571
      %v6573 = vsel %vm2406, %v6562, %v6564
      %v6574 = vsel %vm2406, %v6564, %v6566
      %v6575 = vsel %vm2406, %v6566, %v6568
      %v6576 = vsel %vm2406, %v6568, %v6570
      %v6577 = vsel %vm2406, %v6570, %v6572
      %v6584 = vadd.f32 %v5987, %v6562
      %v6585 = vadd.f32 %v5988, %v6573
      %v6586 = vadd.f32 %v5989, %v6574
      %v6587 = vadd.f32 %v5990, %v6575
      %v6588 = vadd.f32 %v5991, %v6576
      %v6589 = vadd.f32 %v5992, %v6577
      %v6590 = vlaneseq
      %v6591 = vshrl.u32 %v6590, 7
      %v6592 = vsub.s32 1, %v6591
      %v6593 = vrot.slane %v6479, %v6592
      %v6594 = vlaneseq
      %v6595 = vshrl.u32 %v6594, 7
      %v6596 = vsub.s32 1, %v6595
      %v6597 = vrot.slane %v6481, %v6596
      %v6598 = vlaneseq
      %v6599 = vshrl.u32 %v6598, 7
      %v6600 = vsub.s32 1, %v6599
      %v6601 = vrot.slane %v6483, %v6600
      %v6602 = vlaneseq
      %v6603 = vshrl.u32 %v6602, 7
      %v6604 = vsub.s32 1, %v6603
      %v6605 = vrot.slane %v6485, %v6604
      %v6606 = vlaneseq
      %v6607 = vshrl.u32 %v6606, 7
      %v6608 = vsub.s32 1, %v6607
      %v6609 = vrot.slane %v6487, %v6608
      %v6610 = vlaneseq
      %v6611 = vshrl.u32 %v6610, 7
      %v6612 = vsub.s32 1, %v6611
      %v6613 = vrot.slane %v6489, %v6612
      %v6614 = vmul.f32 %v6593, %v2479
      %v6615 = vmul.f32 %v6597, %v2480
      %v6616 = vmul.f32 %v6601, %v2481
      %v6617 = vmul.f32 %v6605, %v2482
      %v6618 = vmul.f32 %v6609, %v2483
      %v6619 = vmul.f32 %v6613, %v4063
      %6626 = vrot.lane.b32.xlu0 %v6614, 91
      %v6627 = vpop.permute.xlu0 %6626
      %6628 = vrot.lane.b32.xlu0 %v6615, 91
      %v6629 = vpop.permute.xlu0 %6628
      %6630 = vrot.lane.b32.xlu0 %v6616, 91
      %v6631 = vpop.permute.xlu0 %6630
      %6632 = vrot.lane.b32.xlu0 %v6617, 91
      %v6633 = vpop.permute.xlu0 %6632
      %6634 = vrot.lane.b32.xlu0 %v6618, 91
      %v6635 = vpop.permute.xlu0 %6634
      %6636 = vrot.lane.b32.xlu0 %v6619, 91
      %v6637 = vpop.permute.xlu0 %6636
      %v6638 = vsel %vm2406, %v6627, %v6629
      %v6639 = vsel %vm2406, %v6629, %v6631
      %v6640 = vsel %vm2406, %v6631, %v6633
      %v6641 = vsel %vm2406, %v6633, %v6635
      %v6642 = vsel %vm2406, %v6635, %v6637
      %v6649 = vadd.f32 %v6052, %v6627
      %v6650 = vadd.f32 %v6053, %v6638
      %v6651 = vadd.f32 %v6054, %v6639
      %v6652 = vadd.f32 %v6055, %v6640
      %v6653 = vadd.f32 %v6056, %v6641
      %v6654 = vadd.f32 %v6057, %v6642
      %v6655 = vlaneseq
      %v6656 = vshrl.u32 %v6655, 7
      %v6657 = vsub.s32 2, %v6656
      %v6658 = vrot.slane %v6479, %v6657
      %v6659 = vlaneseq
      %v6660 = vshrl.u32 %v6659, 7
      %v6661 = vsub.s32 2, %v6660
      %v6662 = vrot.slane %v6481, %v6661
      %v6663 = vlaneseq
      %v6664 = vshrl.u32 %v6663, 7
      %v6665 = vsub.s32 2, %v6664
      %v6666 = vrot.slane %v6483, %v6665
      %v6667 = vlaneseq
      %v6668 = vshrl.u32 %v6667, 7
      %v6669 = vsub.s32 2, %v6668
      %v6670 = vrot.slane %v6485, %v6669
      %v6671 = vlaneseq
      %v6672 = vshrl.u32 %v6671, 7
      %v6673 = vsub.s32 2, %v6672
      %v6674 = vrot.slane %v6487, %v6673
      %v6675 = vlaneseq
      %v6676 = vshrl.u32 %v6675, 7
      %v6677 = vsub.s32 2, %v6676
      %v6678 = vrot.slane %v6489, %v6677
      %v6679 = vmul.f32 %v6658, %v2479
      %v6680 = vmul.f32 %v6662, %v2480
      %v6681 = vmul.f32 %v6666, %v2481
      %v6682 = vmul.f32 %v6670, %v2482
      %v6683 = vmul.f32 %v6674, %v2483
      %v6684 = vmul.f32 %v6678, %v4063
      %6691 = vrot.lane.b32.xlu0 %v6679, 91
      %v6692 = vpop.permute.xlu0 %6691
      %6693 = vrot.lane.b32.xlu0 %v6680, 91
      %v6694 = vpop.permute.xlu0 %6693
      %6695 = vrot.lane.b32.xlu0 %v6681, 91
      %v6696 = vpop.permute.xlu0 %6695
      %6697 = vrot.lane.b32.xlu0 %v6682, 91
      %v6698 = vpop.permute.xlu0 %6697
      %6699 = vrot.lane.b32.xlu0 %v6683, 91
      %v6700 = vpop.permute.xlu0 %6699
      %6701 = vrot.lane.b32.xlu0 %v6684, 91
      %v6702 = vpop.permute.xlu0 %6701
      %v6703 = vsel %vm2406, %v6692, %v6694
      %v6704 = vsel %vm2406, %v6694, %v6696
      %v6705 = vsel %vm2406, %v6696, %v6698
      %v6706 = vsel %vm2406, %v6698, %v6700
      %v6707 = vsel %vm2406, %v6700, %v6702
      %v6714 = vadd.f32 %v6117, %v6692
      %v6715 = vadd.f32 %v6118, %v6703
      %v6716 = vadd.f32 %v6119, %v6704
      %v6717 = vadd.f32 %v6120, %v6705
      %v6718 = vadd.f32 %v6121, %v6706
      %v6719 = vadd.f32 %v6122, %v6707
      %v6720 = vlaneseq
      %v6721 = vshrl.u32 %v6720, 7
      %v6722 = vsub.s32 3, %v6721
      %v6723 = vrot.slane %v6479, %v6722
      %v6724 = vlaneseq
      %v6725 = vshrl.u32 %v6724, 7
      %v6726 = vsub.s32 3, %v6725
      %v6727 = vrot.slane %v6481, %v6726
      %v6728 = vlaneseq
      %v6729 = vshrl.u32 %v6728, 7
      %v6730 = vsub.s32 3, %v6729
      %v6731 = vrot.slane %v6483, %v6730
      %v6732 = vlaneseq
      %v6733 = vshrl.u32 %v6732, 7
      %v6734 = vsub.s32 3, %v6733
      %v6735 = vrot.slane %v6485, %v6734
      %v6736 = vlaneseq
      %v6737 = vshrl.u32 %v6736, 7
      %v6738 = vsub.s32 3, %v6737
      %v6739 = vrot.slane %v6487, %v6738
      %v6740 = vlaneseq
      %v6741 = vshrl.u32 %v6740, 7
      %v6742 = vsub.s32 3, %v6741
      %v6743 = vrot.slane %v6489, %v6742
      %v6744 = vmul.f32 %v6723, %v2479
      %v6745 = vmul.f32 %v6727, %v2480
      %v6746 = vmul.f32 %v6731, %v2481
      %v6747 = vmul.f32 %v6735, %v2482
      %v6748 = vmul.f32 %v6739, %v2483
      %v6749 = vmul.f32 %v6743, %v4063
      %6756 = vrot.lane.b32.xlu0 %v6744, 91
      %v6757 = vpop.permute.xlu0 %6756
      %6758 = vrot.lane.b32.xlu0 %v6745, 91
      %v6759 = vpop.permute.xlu0 %6758
      %6760 = vrot.lane.b32.xlu0 %v6746, 91
      %v6761 = vpop.permute.xlu0 %6760
      %6762 = vrot.lane.b32.xlu0 %v6747, 91
      %v6763 = vpop.permute.xlu0 %6762
      %6764 = vrot.lane.b32.xlu0 %v6748, 91
      %v6765 = vpop.permute.xlu0 %6764
      %6766 = vrot.lane.b32.xlu0 %v6749, 91
      %v6767 = vpop.permute.xlu0 %6766
      %v6768 = vsel %vm2406, %v6757, %v6759
      %v6769 = vsel %vm2406, %v6759, %v6761
      %v6770 = vsel %vm2406, %v6761, %v6763
      %v6771 = vsel %vm2406, %v6763, %v6765
      %v6772 = vsel %vm2406, %v6765, %v6767
      %v6779 = vadd.f32 %v6182, %v6757
      %v6780 = vadd.f32 %v6183, %v6768
      %v6781 = vadd.f32 %v6184, %v6769
      %v6782 = vadd.f32 %v6185, %v6770
      %v6783 = vadd.f32 %v6186, %v6771
      %v6784 = vadd.f32 %v6187, %v6772
      %v6785 = vlaneseq
      %v6786 = vshrl.u32 %v6785, 7
      %v6787 = vsub.s32 4, %v6786
      %v6788 = vrot.slane %v6479, %v6787
      %v6789 = vlaneseq
      %v6790 = vshrl.u32 %v6789, 7
      %v6791 = vsub.s32 4, %v6790
      %v6792 = vrot.slane %v6481, %v6791
      %v6793 = vlaneseq
      %v6794 = vshrl.u32 %v6793, 7
      %v6795 = vsub.s32 4, %v6794
      %v6796 = vrot.slane %v6483, %v6795
      %v6797 = vlaneseq
      %v6798 = vshrl.u32 %v6797, 7
      %v6799 = vsub.s32 4, %v6798
      %v6800 = vrot.slane %v6485, %v6799
      %v6801 = vlaneseq
      %v6802 = vshrl.u32 %v6801, 7
      %v6803 = vsub.s32 4, %v6802
      %v6804 = vrot.slane %v6487, %v6803
      %v6805 = vlaneseq
      %v6806 = vshrl.u32 %v6805, 7
      %v6807 = vsub.s32 4, %v6806
      %v6808 = vrot.slane %v6489, %v6807
      %v6809 = vmul.f32 %v6788, %v2485
      %v6810 = vmul.f32 %v6792, %v2486
      %v6811 = vmul.f32 %v6796, %v2487
      %v6812 = vmul.f32 %v6800, %v2488
      %v6813 = vmul.f32 %v6804, %v2489
      %v6814 = vmul.f32 %v6808, %v4064
      %6821 = vrot.lane.b32.xlu0 %v6809, 91
      %v6822 = vpop.permute.xlu0 %6821
      %6823 = vrot.lane.b32.xlu0 %v6810, 91
      %v6824 = vpop.permute.xlu0 %6823
      %6825 = vrot.lane.b32.xlu0 %v6811, 91
      %v6826 = vpop.permute.xlu0 %6825
      %6827 = vrot.lane.b32.xlu0 %v6812, 91
      %v6828 = vpop.permute.xlu0 %6827
      %6829 = vrot.lane.b32.xlu0 %v6813, 91
      %v6830 = vpop.permute.xlu0 %6829
      %6831 = vrot.lane.b32.xlu0 %v6814, 91
      %v6832 = vpop.permute.xlu0 %6831
      %v6833 = vsel %vm2406, %v6822, %v6824
      %v6834 = vsel %vm2406, %v6824, %v6826
      %v6835 = vsel %vm2406, %v6826, %v6828
      %v6836 = vsel %vm2406, %v6828, %v6830
      %v6837 = vsel %vm2406, %v6830, %v6832
      %v6844 = vadd.f32 %v6247, %v6822
      %v6845 = vadd.f32 %v6248, %v6833
      %v6846 = vadd.f32 %v6249, %v6834
      %v6847 = vadd.f32 %v6250, %v6835
      %v6848 = vadd.f32 %v6251, %v6836
      %v6849 = vadd.f32 %v6252, %v6837
      %v6850 = vlaneseq
      %v6851 = vshrl.u32 %v6850, 7
      %v6852 = vsub.s32 5, %v6851
      %v6853 = vrot.slane %v6479, %v6852
      %v6854 = vlaneseq
      %v6855 = vshrl.u32 %v6854, 7
      %v6856 = vsub.s32 5, %v6855
      %v6857 = vrot.slane %v6481, %v6856
      %v6858 = vlaneseq
      %v6859 = vshrl.u32 %v6858, 7
      %v6860 = vsub.s32 5, %v6859
      %v6861 = vrot.slane %v6483, %v6860
      %v6862 = vlaneseq
      %v6863 = vshrl.u32 %v6862, 7
      %v6864 = vsub.s32 5, %v6863
      %v6865 = vrot.slane %v6485, %v6864
      %v6866 = vlaneseq
      %v6867 = vshrl.u32 %v6866, 7
      %v6868 = vsub.s32 5, %v6867
      %v6869 = vrot.slane %v6487, %v6868
      %v6870 = vlaneseq
      %v6871 = vshrl.u32 %v6870, 7
      %v6872 = vsub.s32 5, %v6871
      %v6873 = vrot.slane %v6489, %v6872
      %v6874 = vmul.f32 %v6853, %v2485
      %v6875 = vmul.f32 %v6857, %v2486
      %v6876 = vmul.f32 %v6861, %v2487
      %v6877 = vmul.f32 %v6865, %v2488
      %v6878 = vmul.f32 %v6869, %v2489
      %v6879 = vmul.f32 %v6873, %v4064
      %6886 = vrot.lane.b32.xlu0 %v6874, 91
      %v6887 = vpop.permute.xlu0 %6886
      %6888 = vrot.lane.b32.xlu0 %v6875, 91
      %v6889 = vpop.permute.xlu0 %6888
      %6890 = vrot.lane.b32.xlu0 %v6876, 91
      %v6891 = vpop.permute.xlu0 %6890
      %6892 = vrot.lane.b32.xlu0 %v6877, 91
      %v6893 = vpop.permute.xlu0 %6892
      %6894 = vrot.lane.b32.xlu0 %v6878, 91
      %v6895 = vpop.permute.xlu0 %6894
      %6896 = vrot.lane.b32.xlu0 %v6879, 91
      %v6897 = vpop.permute.xlu0 %6896
      %v6898 = vsel %vm2406, %v6887, %v6889
      %v6899 = vsel %vm2406, %v6889, %v6891
      %v6900 = vsel %vm2406, %v6891, %v6893
      %v6901 = vsel %vm2406, %v6893, %v6895
      %v6902 = vsel %vm2406, %v6895, %v6897
      %v6909 = vadd.f32 %v6312, %v6887
      %v6910 = vadd.f32 %v6313, %v6898
      %v6911 = vadd.f32 %v6314, %v6899
      %v6912 = vadd.f32 %v6315, %v6900
      %v6913 = vadd.f32 %v6316, %v6901
      %v6914 = vadd.f32 %v6317, %v6902
      %v6915 = vlaneseq
      %v6916 = vshrl.u32 %v6915, 7
      %v6917 = vsub.s32 6, %v6916
      %v6918 = vrot.slane %v6479, %v6917
      %v6919 = vlaneseq
      %v6920 = vshrl.u32 %v6919, 7
      %v6921 = vsub.s32 6, %v6920
      %v6922 = vrot.slane %v6481, %v6921
      %v6923 = vlaneseq
      %v6924 = vshrl.u32 %v6923, 7
      %v6925 = vsub.s32 6, %v6924
      %v6926 = vrot.slane %v6483, %v6925
      %v6927 = vlaneseq
      %v6928 = vshrl.u32 %v6927, 7
      %v6929 = vsub.s32 6, %v6928
      %v6930 = vrot.slane %v6485, %v6929
      %v6931 = vlaneseq
      %v6932 = vshrl.u32 %v6931, 7
      %v6933 = vsub.s32 6, %v6932
      %v6934 = vrot.slane %v6487, %v6933
      %v6935 = vlaneseq
      %v6936 = vshrl.u32 %v6935, 7
      %v6937 = vsub.s32 6, %v6936
      %v6938 = vrot.slane %v6489, %v6937
      %v6939 = vmul.f32 %v6918, %v2485
      %v6940 = vmul.f32 %v6922, %v2486
      %v6941 = vmul.f32 %v6926, %v2487
      %v6942 = vmul.f32 %v6930, %v2488
      %v6943 = vmul.f32 %v6934, %v2489
      %v6944 = vmul.f32 %v6938, %v4064
      %6951 = vrot.lane.b32.xlu0 %v6939, 91
      %v6952 = vpop.permute.xlu0 %6951
      %6953 = vrot.lane.b32.xlu0 %v6940, 91
      %v6954 = vpop.permute.xlu0 %6953
      %6955 = vrot.lane.b32.xlu0 %v6941, 91
      %v6956 = vpop.permute.xlu0 %6955
      %6957 = vrot.lane.b32.xlu0 %v6942, 91
      %v6958 = vpop.permute.xlu0 %6957
      %6959 = vrot.lane.b32.xlu0 %v6943, 91
      %v6960 = vpop.permute.xlu0 %6959
      %6961 = vrot.lane.b32.xlu0 %v6944, 91
      %v6962 = vpop.permute.xlu0 %6961
      %v6963 = vsel %vm2406, %v6952, %v6954
      %v6964 = vsel %vm2406, %v6954, %v6956
      %v6965 = vsel %vm2406, %v6956, %v6958
      %v6966 = vsel %vm2406, %v6958, %v6960
      %v6967 = vsel %vm2406, %v6960, %v6962
      %v6974 = vadd.f32 %v6377, %v6952
      %v6975 = vadd.f32 %v6378, %v6963
      %v6976 = vadd.f32 %v6379, %v6964
      %v6977 = vadd.f32 %v6380, %v6965
      %v6978 = vadd.f32 %v6381, %v6966
      %v6979 = vadd.f32 %v6382, %v6967
      %v6980 = vlaneseq
      %v6981 = vshrl.u32 %v6980, 7
      %v6982 = vsub.s32 7, %v6981
      %v6983 = vrot.slane %v6479, %v6982
      %v6984 = vlaneseq
      %v6985 = vshrl.u32 %v6984, 7
      %v6986 = vsub.s32 7, %v6985
      %v6987 = vrot.slane %v6481, %v6986
      %v6988 = vlaneseq
      %v6989 = vshrl.u32 %v6988, 7
      %v6990 = vsub.s32 7, %v6989
      %v6991 = vrot.slane %v6483, %v6990
      %v6992 = vlaneseq
      %v6993 = vshrl.u32 %v6992, 7
      %v6994 = vsub.s32 7, %v6993
      %v6995 = vrot.slane %v6485, %v6994
      %v6996 = vlaneseq
      %v6997 = vshrl.u32 %v6996, 7
      %v6998 = vsub.s32 7, %v6997
      %v6999 = vrot.slane %v6487, %v6998
      %v7000 = vlaneseq
      %v7001 = vshrl.u32 %v7000, 7
      %v7002 = vsub.s32 7, %v7001
      %v7003 = vrot.slane %v6489, %v7002
      %v7004 = vmul.f32 %v6983, %v2485
      %v7005 = vmul.f32 %v6987, %v2486
      %v7006 = vmul.f32 %v6991, %v2487
      %v7007 = vmul.f32 %v6995, %v2488
      %v7008 = vmul.f32 %v6999, %v2489
      %v7009 = vmul.f32 %v7003, %v4064
      %7016 = vrot.lane.b32.xlu0 %v7004, 91
      %v7017 = vpop.permute.xlu0 %7016
      %7018 = vrot.lane.b32.xlu0 %v7005, 91
      %v7019 = vpop.permute.xlu0 %7018
      %7020 = vrot.lane.b32.xlu0 %v7006, 91
      %v7021 = vpop.permute.xlu0 %7020
      %7022 = vrot.lane.b32.xlu0 %v7007, 91
      %v7023 = vpop.permute.xlu0 %7022
      %7024 = vrot.lane.b32.xlu0 %v7008, 91
      %v7025 = vpop.permute.xlu0 %7024
      %7026 = vrot.lane.b32.xlu0 %v7009, 91
      %v7027 = vpop.permute.xlu0 %7026
      %v7028 = vsel %vm2406, %v7017, %v7019
      %v7029 = vsel %vm2406, %v7019, %v7021
      %v7030 = vsel %vm2406, %v7021, %v7023
      %v7031 = vsel %vm2406, %v7023, %v7025
      %v7032 = vsel %vm2406, %v7025, %v7027
      %v7039 = vadd.f32 %v6442, %v7017
      %v7040 = vadd.f32 %v6443, %v7028
      %v7041 = vadd.f32 %v6444, %v7029
      %v7042 = vadd.f32 %v6445, %v7030
      %v7043 = vadd.f32 %v6446, %v7031
      %v7044 = vadd.f32 %v6447, %v7032
      %7045 = vrot.lane.b32.xlu0 %v2448, 38
      %v7046 = vpop.permute.xlu0 %7045
      %7047 = vrot.lane.b32.xlu0 %v2449, 38
      %v7048 = vpop.permute.xlu0 %7047
      %7049 = vrot.lane.b32.xlu0 %v2450, 38
      %v7050 = vpop.permute.xlu0 %7049
      %7051 = vrot.lane.b32.xlu0 %v2451, 38
      %v7052 = vpop.permute.xlu0 %7051
      %7053 = vrot.lane.b32.xlu0 %v2452, 38
      %v7054 = vpop.permute.xlu0 %7053
      %7055 = vrot.lane.b32.xlu0 %v2453, 38
      %v7056 = vpop.permute.xlu0 %7055
      %vm7057 = vcmask 310272
      %v7058 = vsel %vm7057, %v7046, %v7048
      %v7059 = vsel %vm7057, %v7048, %v7050
      %v7060 = vsel %vm7057, %v7050, %v7052
      %v7061 = vsel %vm7057, %v7052, %v7054
      %v7062 = vsel %vm7057, %v7054, %v7056
      %v7069 = vsub.f32 %v2198, %v7058
      %v7070 = vsub.f32 %v2199, %v7059
      %v7071 = vsub.f32 %v2200, %v7060
      %v7072 = vsub.f32 %v2201, %v7061
      %v7073 = vsub.f32 %v2202, %v7062
      %v7074 = vsub.f32 %v2269, %v7056
      %v7075 = vmul.f32 %v7069, 1.442695
      %v7076 = vpow.pop %v7075
      %v7077 = vmul.f32 %v7070, 1.442695
      %v7078 = vpow.pop %v7077
      %v7079 = vmul.f32 %v7071, 1.442695
      %v7080 = vpow.pop %v7079
      %v7081 = vmul.f32 %v7072, 1.442695
      %v7082 = vpow.pop %v7081
      %v7083 = vmul.f32 %v7073, 1.442695
      %v7084 = vpow.pop %v7083
      %v7085 = vmul.f32 %v7074, 1.442695
      %v7086 = vpow.pop %v7085
      %7093 = vrot.lane.b32.xlu0 %v7076, 90
      %v7094 = vpop.permute.xlu0 %7093
      %7095 = vrot.lane.b32.xlu0 %v7078, 90
      %v7096 = vpop.permute.xlu0 %7095
      %7097 = vrot.lane.b32.xlu0 %v7080, 90
      %v7098 = vpop.permute.xlu0 %7097
      %7099 = vrot.lane.b32.xlu0 %v7082, 90
      %v7100 = vpop.permute.xlu0 %7099
      %7101 = vrot.lane.b32.xlu0 %v7084, 90
      %v7102 = vpop.permute.xlu0 %7101
      %7103 = vrot.lane.b32.xlu0 %v7086, 90
      %v7104 = vpop.permute.xlu0 %7103
      %v7105 = vsel %vm2436, %v7094, %v7096
      %v7106 = vsel %vm2436, %v7096, %v7098
      %v7107 = vsel %vm2436, %v7098, %v7100
      %v7108 = vsel %vm2436, %v7100, %v7102
      %v7109 = vsel %vm2436, %v7102, %v7104
      %v7116 = vadd.f32 %v6519, %v7094
      %v7117 = vadd.f32 %v6520, %v7105
      %v7118 = vadd.f32 %v6521, %v7106
      %v7119 = vadd.f32 %v6522, %v7107
      %v7120 = vadd.f32 %v6523, %v7108
      %v7121 = vadd.f32 %v6524, %v7109
      %v7122 = vlaneseq
      %v7123 = vshrl.u32 %v7122, 7
      %v7124 = vsub.s32 0, %v7123
      %v7125 = vrot.slane %v7076, %v7124
      %v7126 = vlaneseq
      %v7127 = vshrl.u32 %v7126, 7
      %v7128 = vsub.s32 0, %v7127
      %v7129 = vrot.slane %v7078, %v7128
      %v7130 = vlaneseq
      %v7131 = vshrl.u32 %v7130, 7
      %v7132 = vsub.s32 0, %v7131
      %v7133 = vrot.slane %v7080, %v7132
      %v7134 = vlaneseq
      %v7135 = vshrl.u32 %v7134, 7
      %v7136 = vsub.s32 0, %v7135
      %v7137 = vrot.slane %v7082, %v7136
      %v7138 = vlaneseq
      %v7139 = vshrl.u32 %v7138, 7
      %v7140 = vsub.s32 0, %v7139
      %v7141 = vrot.slane %v7084, %v7140
      %v7142 = vlaneseq
      %v7143 = vshrl.u32 %v7142, 7
      %v7144 = vsub.s32 0, %v7143
      %v7145 = vrot.slane %v7086, %v7144
      %v7146 = vmul.f32 %v7125, %v2479
      %v7147 = vmul.f32 %v7129, %v2480
      %v7148 = vmul.f32 %v7133, %v2481
      %v7149 = vmul.f32 %v7137, %v2482
      %v7150 = vmul.f32 %v7141, %v2483
      %v7151 = vmul.f32 %v7145, %v4063
      %7158 = vrot.lane.b32.xlu0 %v7146, 90
      %v7159 = vpop.permute.xlu0 %7158
      %7160 = vrot.lane.b32.xlu0 %v7147, 90
      %v7161 = vpop.permute.xlu0 %7160
      %7162 = vrot.lane.b32.xlu0 %v7148, 90
      %v7163 = vpop.permute.xlu0 %7162
      %7164 = vrot.lane.b32.xlu0 %v7149, 90
      %v7165 = vpop.permute.xlu0 %7164
      %7166 = vrot.lane.b32.xlu0 %v7150, 90
      %v7167 = vpop.permute.xlu0 %7166
      %7168 = vrot.lane.b32.xlu0 %v7151, 90
      %v7169 = vpop.permute.xlu0 %7168
      %v7170 = vsel %vm2436, %v7159, %v7161
      %v7171 = vsel %vm2436, %v7161, %v7163
      %v7172 = vsel %vm2436, %v7163, %v7165
      %v7173 = vsel %vm2436, %v7165, %v7167
      %v7174 = vsel %vm2436, %v7167, %v7169
      %v7181 = vadd.f32 %v6584, %v7159
      %v7182 = vadd.f32 %v6585, %v7170
      %v7183 = vadd.f32 %v6586, %v7171
      %v7184 = vadd.f32 %v6587, %v7172
      %v7185 = vadd.f32 %v6588, %v7173
      %v7186 = vadd.f32 %v6589, %v7174
      %v7187 = vlaneseq
      %v7188 = vshrl.u32 %v7187, 7
      %v7189 = vsub.s32 1, %v7188
      %v7190 = vrot.slane %v7076, %v7189
      %v7191 = vlaneseq
      %v7192 = vshrl.u32 %v7191, 7
      %v7193 = vsub.s32 1, %v7192
      %v7194 = vrot.slane %v7078, %v7193
      %v7195 = vlaneseq
      %v7196 = vshrl.u32 %v7195, 7
      %v7197 = vsub.s32 1, %v7196
      %v7198 = vrot.slane %v7080, %v7197
      %v7199 = vlaneseq
      %v7200 = vshrl.u32 %v7199, 7
      %v7201 = vsub.s32 1, %v7200
      %v7202 = vrot.slane %v7082, %v7201
      %v7203 = vlaneseq
      %v7204 = vshrl.u32 %v7203, 7
      %v7205 = vsub.s32 1, %v7204
      %v7206 = vrot.slane %v7084, %v7205
      %v7207 = vlaneseq
      %v7208 = vshrl.u32 %v7207, 7
      %v7209 = vsub.s32 1, %v7208
      %v7210 = vrot.slane %v7086, %v7209
      %v7211 = vmul.f32 %v7190, %v2479
      %v7212 = vmul.f32 %v7194, %v2480
      %v7213 = vmul.f32 %v7198, %v2481
      %v7214 = vmul.f32 %v7202, %v2482
      %v7215 = vmul.f32 %v7206, %v2483
      %v7216 = vmul.f32 %v7210, %v4063
      %7223 = vrot.lane.b32.xlu0 %v7211, 90
      %v7224 = vpop.permute.xlu0 %7223
      %7225 = vrot.lane.b32.xlu0 %v7212, 90
      %v7226 = vpop.permute.xlu0 %7225
      %7227 = vrot.lane.b32.xlu0 %v7213, 90
      %v7228 = vpop.permute.xlu0 %7227
      %7229 = vrot.lane.b32.xlu0 %v7214, 90
      %v7230 = vpop.permute.xlu0 %7229
      %7231 = vrot.lane.b32.xlu0 %v7215, 90
      %v7232 = vpop.permute.xlu0 %7231
      %7233 = vrot.lane.b32.xlu0 %v7216, 90
      %v7234 = vpop.permute.xlu0 %7233
      %v7235 = vsel %vm2436, %v7224, %v7226
      %v7236 = vsel %vm2436, %v7226, %v7228
      %v7237 = vsel %vm2436, %v7228, %v7230
      %v7238 = vsel %vm2436, %v7230, %v7232
      %v7239 = vsel %vm2436, %v7232, %v7234
      %v7246 = vadd.f32 %v6649, %v7224
      %v7247 = vadd.f32 %v6650, %v7235
      %v7248 = vadd.f32 %v6651, %v7236
      %v7249 = vadd.f32 %v6652, %v7237
      %v7250 = vadd.f32 %v6653, %v7238
      %v7251 = vadd.f32 %v6654, %v7239
      %v7252 = vlaneseq
      %v7253 = vshrl.u32 %v7252, 7
      %v7254 = vsub.s32 2, %v7253
      %v7255 = vrot.slane %v7076, %v7254
      %v7256 = vlaneseq
      %v7257 = vshrl.u32 %v7256, 7
      %v7258 = vsub.s32 2, %v7257
      %v7259 = vrot.slane %v7078, %v7258
      %v7260 = vlaneseq
      %v7261 = vshrl.u32 %v7260, 7
      %v7262 = vsub.s32 2, %v7261
      %v7263 = vrot.slane %v7080, %v7262
      %v7264 = vlaneseq
      %v7265 = vshrl.u32 %v7264, 7
      %v7266 = vsub.s32 2, %v7265
      %v7267 = vrot.slane %v7082, %v7266
      %v7268 = vlaneseq
      %v7269 = vshrl.u32 %v7268, 7
      %v7270 = vsub.s32 2, %v7269
      %v7271 = vrot.slane %v7084, %v7270
      %v7272 = vlaneseq
      %v7273 = vshrl.u32 %v7272, 7
      %v7274 = vsub.s32 2, %v7273
      %v7275 = vrot.slane %v7086, %v7274
      %v7276 = vmul.f32 %v7255, %v2479
      %v7277 = vmul.f32 %v7259, %v2480
      %v7278 = vmul.f32 %v7263, %v2481
      %v7279 = vmul.f32 %v7267, %v2482
      %v7280 = vmul.f32 %v7271, %v2483
      %v7281 = vmul.f32 %v7275, %v4063
      %7288 = vrot.lane.b32.xlu0 %v7276, 90
      %v7289 = vpop.permute.xlu0 %7288
      %7290 = vrot.lane.b32.xlu0 %v7277, 90
      %v7291 = vpop.permute.xlu0 %7290
      %7292 = vrot.lane.b32.xlu0 %v7278, 90
      %v7293 = vpop.permute.xlu0 %7292
      %7294 = vrot.lane.b32.xlu0 %v7279, 90
      %v7295 = vpop.permute.xlu0 %7294
      %7296 = vrot.lane.b32.xlu0 %v7280, 90
      %v7297 = vpop.permute.xlu0 %7296
      %7298 = vrot.lane.b32.xlu0 %v7281, 90
      %v7299 = vpop.permute.xlu0 %7298
      %v7300 = vsel %vm2436, %v7289, %v7291
      %v7301 = vsel %vm2436, %v7291, %v7293
      %v7302 = vsel %vm2436, %v7293, %v7295
      %v7303 = vsel %vm2436, %v7295, %v7297
      %v7304 = vsel %vm2436, %v7297, %v7299
      %v7311 = vadd.f32 %v6714, %v7289
      %v7312 = vadd.f32 %v6715, %v7300
      %v7313 = vadd.f32 %v6716, %v7301
      %v7314 = vadd.f32 %v6717, %v7302
      %v7315 = vadd.f32 %v6718, %v7303
      %v7316 = vadd.f32 %v6719, %v7304
      %v7317 = vlaneseq
      %v7318 = vshrl.u32 %v7317, 7
      %v7319 = vsub.s32 3, %v7318
      %v7320 = vrot.slane %v7076, %v7319
      %v7321 = vlaneseq
      %v7322 = vshrl.u32 %v7321, 7
      %v7323 = vsub.s32 3, %v7322
      %v7324 = vrot.slane %v7078, %v7323
      %v7325 = vlaneseq
      %v7326 = vshrl.u32 %v7325, 7
      %v7327 = vsub.s32 3, %v7326
      %v7328 = vrot.slane %v7080, %v7327
      %v7329 = vlaneseq
      %v7330 = vshrl.u32 %v7329, 7
      %v7331 = vsub.s32 3, %v7330
      %v7332 = vrot.slane %v7082, %v7331
      %v7333 = vlaneseq
      %v7334 = vshrl.u32 %v7333, 7
      %v7335 = vsub.s32 3, %v7334
      %v7336 = vrot.slane %v7084, %v7335
      %v7337 = vlaneseq
      %v7338 = vshrl.u32 %v7337, 7
      %v7339 = vsub.s32 3, %v7338
      %v7340 = vrot.slane %v7086, %v7339
      %v7341 = vmul.f32 %v7320, %v2479
      %v7342 = vmul.f32 %v7324, %v2480
      %v7343 = vmul.f32 %v7328, %v2481
      %v7344 = vmul.f32 %v7332, %v2482
      %v7345 = vmul.f32 %v7336, %v2483
      %v7346 = vmul.f32 %v7340, %v4063
      %7353 = vrot.lane.b32.xlu0 %v7341, 90
      %v7354 = vpop.permute.xlu0 %7353
      %7355 = vrot.lane.b32.xlu0 %v7342, 90
      %v7356 = vpop.permute.xlu0 %7355
      %7357 = vrot.lane.b32.xlu0 %v7343, 90
      %v7358 = vpop.permute.xlu0 %7357
      %7359 = vrot.lane.b32.xlu0 %v7344, 90
      %v7360 = vpop.permute.xlu0 %7359
      %7361 = vrot.lane.b32.xlu0 %v7345, 90
      %v7362 = vpop.permute.xlu0 %7361
      %7363 = vrot.lane.b32.xlu0 %v7346, 90
      %v7364 = vpop.permute.xlu0 %7363
      %v7365 = vsel %vm2436, %v7354, %v7356
      %v7366 = vsel %vm2436, %v7356, %v7358
      %v7367 = vsel %vm2436, %v7358, %v7360
      %v7368 = vsel %vm2436, %v7360, %v7362
      %v7369 = vsel %vm2436, %v7362, %v7364
      %v7376 = vadd.f32 %v6779, %v7354
      %v7377 = vadd.f32 %v6780, %v7365
      %v7378 = vadd.f32 %v6781, %v7366
      %v7379 = vadd.f32 %v6782, %v7367
      %v7380 = vadd.f32 %v6783, %v7368
      %v7381 = vadd.f32 %v6784, %v7369
      %v7382 = vlaneseq
      %v7383 = vshrl.u32 %v7382, 7
      %v7384 = vsub.s32 4, %v7383
      %v7385 = vrot.slane %v7076, %v7384
      %v7386 = vlaneseq
      %v7387 = vshrl.u32 %v7386, 7
      %v7388 = vsub.s32 4, %v7387
      %v7389 = vrot.slane %v7078, %v7388
      %v7390 = vlaneseq
      %v7391 = vshrl.u32 %v7390, 7
      %v7392 = vsub.s32 4, %v7391
      %v7393 = vrot.slane %v7080, %v7392
      %v7394 = vlaneseq
      %v7395 = vshrl.u32 %v7394, 7
      %v7396 = vsub.s32 4, %v7395
      %v7397 = vrot.slane %v7082, %v7396
      %v7398 = vlaneseq
      %v7399 = vshrl.u32 %v7398, 7
      %v7400 = vsub.s32 4, %v7399
      %v7401 = vrot.slane %v7084, %v7400
      %v7402 = vlaneseq
      %v7403 = vshrl.u32 %v7402, 7
      %v7404 = vsub.s32 4, %v7403
      %v7405 = vrot.slane %v7086, %v7404
      %v7406 = vmul.f32 %v7385, %v2485
      %v7407 = vmul.f32 %v7389, %v2486
      %v7408 = vmul.f32 %v7393, %v2487
      %v7409 = vmul.f32 %v7397, %v2488
      %v7410 = vmul.f32 %v7401, %v2489
      %v7411 = vmul.f32 %v7405, %v4064
      %7418 = vrot.lane.b32.xlu0 %v7406, 90
      %v7419 = vpop.permute.xlu0 %7418
      %7420 = vrot.lane.b32.xlu0 %v7407, 90
      %v7421 = vpop.permute.xlu0 %7420
      %7422 = vrot.lane.b32.xlu0 %v7408, 90
      %v7423 = vpop.permute.xlu0 %7422
      %7424 = vrot.lane.b32.xlu0 %v7409, 90
      %v7425 = vpop.permute.xlu0 %7424
      %7426 = vrot.lane.b32.xlu0 %v7410, 90
      %v7427 = vpop.permute.xlu0 %7426
      %7428 = vrot.lane.b32.xlu0 %v7411, 90
      %v7429 = vpop.permute.xlu0 %7428
      %v7430 = vsel %vm2436, %v7419, %v7421
      %v7431 = vsel %vm2436, %v7421, %v7423
      %v7432 = vsel %vm2436, %v7423, %v7425
      %v7433 = vsel %vm2436, %v7425, %v7427
      %v7434 = vsel %vm2436, %v7427, %v7429
      %v7441 = vadd.f32 %v6844, %v7419
      %v7442 = vadd.f32 %v6845, %v7430
      %v7443 = vadd.f32 %v6846, %v7431
      %v7444 = vadd.f32 %v6847, %v7432
      %v7445 = vadd.f32 %v6848, %v7433
      %v7446 = vadd.f32 %v6849, %v7434
      %v7447 = vlaneseq
      %v7448 = vshrl.u32 %v7447, 7
      %v7449 = vsub.s32 5, %v7448
      %v7450 = vrot.slane %v7076, %v7449
      %v7451 = vlaneseq
      %v7452 = vshrl.u32 %v7451, 7
      %v7453 = vsub.s32 5, %v7452
      %v7454 = vrot.slane %v7078, %v7453
      %v7455 = vlaneseq
      %v7456 = vshrl.u32 %v7455, 7
      %v7457 = vsub.s32 5, %v7456
      %v7458 = vrot.slane %v7080, %v7457
      %v7459 = vlaneseq
      %v7460 = vshrl.u32 %v7459, 7
      %v7461 = vsub.s32 5, %v7460
      %v7462 = vrot.slane %v7082, %v7461
      %v7463 = vlaneseq
      %v7464 = vshrl.u32 %v7463, 7
      %v7465 = vsub.s32 5, %v7464
      %v7466 = vrot.slane %v7084, %v7465
      %v7467 = vlaneseq
      %v7468 = vshrl.u32 %v7467, 7
      %v7469 = vsub.s32 5, %v7468
      %v7470 = vrot.slane %v7086, %v7469
      %v7471 = vmul.f32 %v7450, %v2485
      %v7472 = vmul.f32 %v7454, %v2486
      %v7473 = vmul.f32 %v7458, %v2487
      %v7474 = vmul.f32 %v7462, %v2488
      %v7475 = vmul.f32 %v7466, %v2489
      %v7476 = vmul.f32 %v7470, %v4064
      %7483 = vrot.lane.b32.xlu0 %v7471, 90
      %v7484 = vpop.permute.xlu0 %7483
      %7485 = vrot.lane.b32.xlu0 %v7472, 90
      %v7486 = vpop.permute.xlu0 %7485
      %7487 = vrot.lane.b32.xlu0 %v7473, 90
      %v7488 = vpop.permute.xlu0 %7487
      %7489 = vrot.lane.b32.xlu0 %v7474, 90
      %v7490 = vpop.permute.xlu0 %7489
      %7491 = vrot.lane.b32.xlu0 %v7475, 90
      %v7492 = vpop.permute.xlu0 %7491
      %7493 = vrot.lane.b32.xlu0 %v7476, 90
      %v7494 = vpop.permute.xlu0 %7493
      %v7495 = vsel %vm2436, %v7484, %v7486
      %v7496 = vsel %vm2436, %v7486, %v7488
      %v7497 = vsel %vm2436, %v7488, %v7490
      %v7498 = vsel %vm2436, %v7490, %v7492
      %v7499 = vsel %vm2436, %v7492, %v7494
      %v7506 = vadd.f32 %v6909, %v7484
      %v7507 = vadd.f32 %v6910, %v7495
      %v7508 = vadd.f32 %v6911, %v7496
      %v7509 = vadd.f32 %v6912, %v7497
      %v7510 = vadd.f32 %v6913, %v7498
      %v7511 = vadd.f32 %v6914, %v7499
      %v7512 = vlaneseq
      %v7513 = vshrl.u32 %v7512, 7
      %v7514 = vsub.s32 6, %v7513
      %v7515 = vrot.slane %v7076, %v7514
      %v7516 = vlaneseq
      %v7517 = vshrl.u32 %v7516, 7
      %v7518 = vsub.s32 6, %v7517
      %v7519 = vrot.slane %v7078, %v7518
      %v7520 = vlaneseq
      %v7521 = vshrl.u32 %v7520, 7
      %v7522 = vsub.s32 6, %v7521
      %v7523 = vrot.slane %v7080, %v7522
      %v7524 = vlaneseq
      %v7525 = vshrl.u32 %v7524, 7
      %v7526 = vsub.s32 6, %v7525
      %v7527 = vrot.slane %v7082, %v7526
      %v7528 = vlaneseq
      %v7529 = vshrl.u32 %v7528, 7
      %v7530 = vsub.s32 6, %v7529
      %v7531 = vrot.slane %v7084, %v7530
      %v7532 = vlaneseq
      %v7533 = vshrl.u32 %v7532, 7
      %v7534 = vsub.s32 6, %v7533
      %v7535 = vrot.slane %v7086, %v7534
      %v7536 = vmul.f32 %v7515, %v2485
      %v7537 = vmul.f32 %v7519, %v2486
      %v7538 = vmul.f32 %v7523, %v2487
      %v7539 = vmul.f32 %v7527, %v2488
      %v7540 = vmul.f32 %v7531, %v2489
      %v7541 = vmul.f32 %v7535, %v4064
      %7548 = vrot.lane.b32.xlu0 %v7536, 90
      %v7549 = vpop.permute.xlu0 %7548
      %7550 = vrot.lane.b32.xlu0 %v7537, 90
      %v7551 = vpop.permute.xlu0 %7550
      %7552 = vrot.lane.b32.xlu0 %v7538, 90
      %v7553 = vpop.permute.xlu0 %7552
      %7554 = vrot.lane.b32.xlu0 %v7539, 90
      %v7555 = vpop.permute.xlu0 %7554
      %7556 = vrot.lane.b32.xlu0 %v7540, 90
      %v7557 = vpop.permute.xlu0 %7556
      %7558 = vrot.lane.b32.xlu0 %v7541, 90
      %v7559 = vpop.permute.xlu0 %7558
      %v7560 = vsel %vm2436, %v7549, %v7551
      %v7561 = vsel %vm2436, %v7551, %v7553
      %v7562 = vsel %vm2436, %v7553, %v7555
      %v7563 = vsel %vm2436, %v7555, %v7557
      %v7564 = vsel %vm2436, %v7557, %v7559
      %v7571 = vadd.f32 %v6974, %v7549
      %v7572 = vadd.f32 %v6975, %v7560
      %v7573 = vadd.f32 %v6976, %v7561
      %v7574 = vadd.f32 %v6977, %v7562
      %v7575 = vadd.f32 %v6978, %v7563
      %v7576 = vadd.f32 %v6979, %v7564
      %v7577 = vlaneseq
      %v7578 = vshrl.u32 %v7577, 7
      %v7579 = vsub.s32 7, %v7578
      %v7580 = vrot.slane %v7076, %v7579
      %v7581 = vlaneseq
      %v7582 = vshrl.u32 %v7581, 7
      %v7583 = vsub.s32 7, %v7582
      %v7584 = vrot.slane %v7078, %v7583
      %v7585 = vlaneseq
      %v7586 = vshrl.u32 %v7585, 7
      %v7587 = vsub.s32 7, %v7586
      %v7588 = vrot.slane %v7080, %v7587
      %v7589 = vlaneseq
      %v7590 = vshrl.u32 %v7589, 7
      %v7591 = vsub.s32 7, %v7590
      %v7592 = vrot.slane %v7082, %v7591
      %v7593 = vlaneseq
      %v7594 = vshrl.u32 %v7593, 7
      %v7595 = vsub.s32 7, %v7594
      %v7596 = vrot.slane %v7084, %v7595
      %v7597 = vlaneseq
      %v7598 = vshrl.u32 %v7597, 7
      %v7599 = vsub.s32 7, %v7598
      %v7600 = vrot.slane %v7086, %v7599
      %v7601 = vmul.f32 %v7580, %v2485
      %v7602 = vmul.f32 %v7584, %v2486
      %v7603 = vmul.f32 %v7588, %v2487
      %v7604 = vmul.f32 %v7592, %v2488
      %v7605 = vmul.f32 %v7596, %v2489
      %v7606 = vmul.f32 %v7600, %v4064
      %7613 = vrot.lane.b32.xlu0 %v7601, 90
      %v7614 = vpop.permute.xlu0 %7613
      %7615 = vrot.lane.b32.xlu0 %v7602, 90
      %v7616 = vpop.permute.xlu0 %7615
      %7617 = vrot.lane.b32.xlu0 %v7603, 90
      %v7618 = vpop.permute.xlu0 %7617
      %7619 = vrot.lane.b32.xlu0 %v7604, 90
      %v7620 = vpop.permute.xlu0 %7619
      %7621 = vrot.lane.b32.xlu0 %v7605, 90
      %v7622 = vpop.permute.xlu0 %7621
      %7623 = vrot.lane.b32.xlu0 %v7606, 90
      %v7624 = vpop.permute.xlu0 %7623
      %v7625 = vsel %vm2436, %v7614, %v7616
      %v7626 = vsel %vm2436, %v7616, %v7618
      %v7627 = vsel %vm2436, %v7618, %v7620
      %v7628 = vsel %vm2436, %v7620, %v7622
      %v7629 = vsel %vm2436, %v7622, %v7624
      %v7636 = vadd.f32 %v7039, %v7614
      %v7637 = vadd.f32 %v7040, %v7625
      %v7638 = vadd.f32 %v7041, %v7626
      %v7639 = vadd.f32 %v7042, %v7627
      %v7640 = vadd.f32 %v7043, %v7628
      %v7641 = vadd.f32 %v7044, %v7629
      %v7642 = vrcp.pop %v7116
      %v7643 = vrcp.pop %v7117
      %v7644 = vrcp.pop %v7118
      %v7645 = vrcp.pop %v7119
      %v7646 = vrcp.pop %v7120
      %v7647 = vrcp.pop %v7121
      %v7648 = vlaneseq
      %v7649 = vshrl.u32 %v7648, 7
      %v7650 = vsub.s32 0, %v7649
      %v7651 = vrot.slane %v7642, %v7650
      %v7652 = vlaneseq
      %v7653 = vshrl.u32 %v7652, 7
      %v7654 = vsub.s32 0, %v7653
      %v7655 = vrot.slane %v7643, %v7654
      %v7656 = vlaneseq
      %v7657 = vshrl.u32 %v7656, 7
      %v7658 = vsub.s32 0, %v7657
      %v7659 = vrot.slane %v7644, %v7658
      %v7660 = vlaneseq
      %v7661 = vshrl.u32 %v7660, 7
      %v7662 = vsub.s32 0, %v7661
      %v7663 = vrot.slane %v7645, %v7662
      %v7664 = vlaneseq
      %v7665 = vshrl.u32 %v7664, 7
      %v7666 = vsub.s32 0, %v7665
      %v7667 = vrot.slane %v7646, %v7666
      %v7668 = vlaneseq
      %v7669 = vshrl.u32 %v7668, 7
      %v7670 = vsub.s32 0, %v7669
      %v7671 = vrot.slane %v7647, %v7670
      %v7672 = vmul.f32 %v7181, %v7651
      %v7673 = vmul.f32 %v7182, %v7655
      %v7674 = vmul.f32 %v7183, %v7659
      %v7675 = vmul.f32 %v7184, %v7663
      %v7676 = vmul.f32 %v7185, %v7667
      %v7677 = vmul.f32 %v7186, %v7671
      %v7678 = vlaneseq
      %v7679 = vshrl.u32 %v7678, 7
      %v7680 = vsub.s32 1, %v7679
      %v7681 = vrot.slane %v7642, %v7680
      %v7682 = vlaneseq
      %v7683 = vshrl.u32 %v7682, 7
      %v7684 = vsub.s32 1, %v7683
      %v7685 = vrot.slane %v7643, %v7684
      %v7686 = vlaneseq
      %v7687 = vshrl.u32 %v7686, 7
      %v7688 = vsub.s32 1, %v7687
      %v7689 = vrot.slane %v7644, %v7688
      %v7690 = vlaneseq
      %v7691 = vshrl.u32 %v7690, 7
      %v7692 = vsub.s32 1, %v7691
      %v7693 = vrot.slane %v7645, %v7692
      %v7694 = vlaneseq
      %v7695 = vshrl.u32 %v7694, 7
      %v7696 = vsub.s32 1, %v7695
      %v7697 = vrot.slane %v7646, %v7696
      %v7698 = vlaneseq
      %v7699 = vshrl.u32 %v7698, 7
      %v7700 = vsub.s32 1, %v7699
      %v7701 = vrot.slane %v7647, %v7700
      %v7702 = vmul.f32 %v7246, %v7681
      %v7703 = vmul.f32 %v7247, %v7685
      %v7704 = vmul.f32 %v7248, %v7689
      %v7705 = vmul.f32 %v7249, %v7693
      %v7706 = vmul.f32 %v7250, %v7697
      %v7707 = vmul.f32 %v7251, %v7701
      %v7708 = vlaneseq
      %v7709 = vshrl.u32 %v7708, 7
      %v7710 = vsub.s32 2, %v7709
      %v7711 = vrot.slane %v7642, %v7710
      %v7712 = vlaneseq
      %v7713 = vshrl.u32 %v7712, 7
      %v7714 = vsub.s32 2, %v7713
      %v7715 = vrot.slane %v7643, %v7714
      %v7716 = vlaneseq
      %v7717 = vshrl.u32 %v7716, 7
      %v7718 = vsub.s32 2, %v7717
      %v7719 = vrot.slane %v7644, %v7718
      %v7720 = vlaneseq
      %v7721 = vshrl.u32 %v7720, 7
      %v7722 = vsub.s32 2, %v7721
      %v7723 = vrot.slane %v7645, %v7722
      %v7724 = vlaneseq
      %v7725 = vshrl.u32 %v7724, 7
      %v7726 = vsub.s32 2, %v7725
      %v7727 = vrot.slane %v7646, %v7726
      %v7728 = vlaneseq
      %v7729 = vshrl.u32 %v7728, 7
      %v7730 = vsub.s32 2, %v7729
      %v7731 = vrot.slane %v7647, %v7730
      %v7732 = vmul.f32 %v7311, %v7711
      %v7733 = vmul.f32 %v7312, %v7715
      %v7734 = vmul.f32 %v7313, %v7719
      %v7735 = vmul.f32 %v7314, %v7723
      %v7736 = vmul.f32 %v7315, %v7727
      %v7737 = vmul.f32 %v7316, %v7731
      %v7738 = vlaneseq
      %v7739 = vshrl.u32 %v7738, 7
      %v7740 = vsub.s32 3, %v7739
      %v7741 = vrot.slane %v7642, %v7740
      %v7742 = vlaneseq
      %v7743 = vshrl.u32 %v7742, 7
      %v7744 = vsub.s32 3, %v7743
      %v7745 = vrot.slane %v7643, %v7744
      %v7746 = vlaneseq
      %v7747 = vshrl.u32 %v7746, 7
      %v7748 = vsub.s32 3, %v7747
      %v7749 = vrot.slane %v7644, %v7748
      %v7750 = vlaneseq
      %v7751 = vshrl.u32 %v7750, 7
      %v7752 = vsub.s32 3, %v7751
      %v7753 = vrot.slane %v7645, %v7752
      %v7754 = vlaneseq
      %v7755 = vshrl.u32 %v7754, 7
      %v7756 = vsub.s32 3, %v7755
      %v7757 = vrot.slane %v7646, %v7756
      %v7758 = vlaneseq
      %v7759 = vshrl.u32 %v7758, 7
      %v7760 = vsub.s32 3, %v7759
      %v7761 = vrot.slane %v7647, %v7760
      %v7762 = vmul.f32 %v7376, %v7741
      %v7763 = vmul.f32 %v7377, %v7745
      %v7764 = vmul.f32 %v7378, %v7749
      %v7765 = vmul.f32 %v7379, %v7753
      %v7766 = vmul.f32 %v7380, %v7757
      %v7767 = vmul.f32 %v7381, %v7761
      %v7768 = vlaneseq
      %v7769 = vshrl.u32 %v7768, 7
      %v7770 = vsub.s32 4, %v7769
      %v7771 = vrot.slane %v7642, %v7770
      %v7772 = vlaneseq
      %v7773 = vshrl.u32 %v7772, 7
      %v7774 = vsub.s32 4, %v7773
      %v7775 = vrot.slane %v7643, %v7774
      %v7776 = vlaneseq
      %v7777 = vshrl.u32 %v7776, 7
      %v7778 = vsub.s32 4, %v7777
      %v7779 = vrot.slane %v7644, %v7778
      %v7780 = vlaneseq
      %v7781 = vshrl.u32 %v7780, 7
      %v7782 = vsub.s32 4, %v7781
      %v7783 = vrot.slane %v7645, %v7782
      %v7784 = vlaneseq
      %v7785 = vshrl.u32 %v7784, 7
      %v7786 = vsub.s32 4, %v7785
      %v7787 = vrot.slane %v7646, %v7786
      %v7788 = vlaneseq
      %v7789 = vshrl.u32 %v7788, 7
      %v7790 = vsub.s32 4, %v7789
      %v7791 = vrot.slane %v7647, %v7790
      %v7792 = vmul.f32 %v7441, %v7771
      %v7793 = vmul.f32 %v7442, %v7775
      %v7794 = vmul.f32 %v7443, %v7779
      %v7795 = vmul.f32 %v7444, %v7783
      %v7796 = vmul.f32 %v7445, %v7787
      %v7797 = vmul.f32 %v7446, %v7791
      %v7798 = vlaneseq
      %v7799 = vshrl.u32 %v7798, 7
      %v7800 = vsub.s32 5, %v7799
      %v7801 = vrot.slane %v7642, %v7800
      %v7802 = vlaneseq
      %v7803 = vshrl.u32 %v7802, 7
      %v7804 = vsub.s32 5, %v7803
      %v7805 = vrot.slane %v7643, %v7804
      %v7806 = vlaneseq
      %v7807 = vshrl.u32 %v7806, 7
      %v7808 = vsub.s32 5, %v7807
      %v7809 = vrot.slane %v7644, %v7808
      %v7810 = vlaneseq
      %v7811 = vshrl.u32 %v7810, 7
      %v7812 = vsub.s32 5, %v7811
      %v7813 = vrot.slane %v7645, %v7812
      %v7814 = vlaneseq
      %v7815 = vshrl.u32 %v7814, 7
      %v7816 = vsub.s32 5, %v7815
      %v7817 = vrot.slane %v7646, %v7816
      %v7818 = vlaneseq
      %v7819 = vshrl.u32 %v7818, 7
      %v7820 = vsub.s32 5, %v7819
      %v7821 = vrot.slane %v7647, %v7820
      %v7822 = vmul.f32 %v7506, %v7801
      %v7823 = vmul.f32 %v7507, %v7805
      %v7824 = vmul.f32 %v7508, %v7809
      %v7825 = vmul.f32 %v7509, %v7813
      %v7826 = vmul.f32 %v7510, %v7817
      %v7827 = vmul.f32 %v7511, %v7821
      %v7828 = vlaneseq
      %v7829 = vshrl.u32 %v7828, 7
      %v7830 = vsub.s32 6, %v7829
      %v7831 = vrot.slane %v7642, %v7830
      %v7832 = vlaneseq
      %v7833 = vshrl.u32 %v7832, 7
      %v7834 = vsub.s32 6, %v7833
      %v7835 = vrot.slane %v7643, %v7834
      %v7836 = vlaneseq
      %v7837 = vshrl.u32 %v7836, 7
      %v7838 = vsub.s32 6, %v7837
      %v7839 = vrot.slane %v7644, %v7838
      %v7840 = vlaneseq
      %v7841 = vshrl.u32 %v7840, 7
      %v7842 = vsub.s32 6, %v7841
      %v7843 = vrot.slane %v7645, %v7842
      %v7844 = vlaneseq
      %v7845 = vshrl.u32 %v7844, 7
      %v7846 = vsub.s32 6, %v7845
      %v7847 = vrot.slane %v7646, %v7846
      %v7848 = vlaneseq
      %v7849 = vshrl.u32 %v7848, 7
      %v7850 = vsub.s32 6, %v7849
      %v7851 = vrot.slane %v7647, %v7850
      %v7852 = vmul.f32 %v7571, %v7831
      %v7853 = vmul.f32 %v7572, %v7835
      %v7854 = vmul.f32 %v7573, %v7839
      %v7855 = vmul.f32 %v7574, %v7843
      %v7856 = vmul.f32 %v7575, %v7847
      %v7857 = vmul.f32 %v7576, %v7851
      %v7858 = vlaneseq
      %v7859 = vshrl.u32 %v7858, 7
      %v7860 = vsub.s32 7, %v7859
      %v7861 = vrot.slane %v7642, %v7860
      %v7862 = vlaneseq
      %v7863 = vshrl.u32 %v7862, 7
      %v7864 = vsub.s32 7, %v7863
      %v7865 = vrot.slane %v7643, %v7864
      %v7866 = vlaneseq
      %v7867 = vshrl.u32 %v7866, 7
      %v7868 = vsub.s32 7, %v7867
      %v7869 = vrot.slane %v7644, %v7868
      %v7870 = vlaneseq
      %v7871 = vshrl.u32 %v7870, 7
      %v7872 = vsub.s32 7, %v7871
      %v7873 = vrot.slane %v7645, %v7872
      %v7874 = vlaneseq
      %v7875 = vshrl.u32 %v7874, 7
      %v7876 = vsub.s32 7, %v7875
      %v7877 = vrot.slane %v7646, %v7876
      %v7878 = vlaneseq
      %v7879 = vshrl.u32 %v7878, 7
      %v7880 = vsub.s32 7, %v7879
      %v7881 = vrot.slane %v7647, %v7880
      %v7882 = vmul.f32 %v7636, %v7861
      %v7883 = vmul.f32 %v7637, %v7865
      %v7884 = vmul.f32 %v7638, %v7869
      %v7885 = vmul.f32 %v7639, %v7873
      %v7886 = vmul.f32 %v7640, %v7877
      %v7887 = vmul.f32 %v7641, %v7881
      %v7888 = vpack.c.bf16 %v7702, %v7672
      %v7889 = vpack.c.bf16 %v7703, %v7673
      %v7890 = vpack.c.bf16 %v7704, %v7674
      %v7891 = vpack.c.bf16 %v7705, %v7675
      %v7892 = vpack.c.bf16 %v7706, %v7676
      %v7893 = vpack.c.bf16 %v7707, %v7677
      %v7894 = vpack.c.bf16 %v7762, %v7732
      %v7895 = vpack.c.bf16 %v7763, %v7733
      %v7896 = vpack.c.bf16 %v7764, %v7734
      %v7897 = vpack.c.bf16 %v7765, %v7735
      %v7898 = vpack.c.bf16 %v7766, %v7736
      %v7899 = vpack.c.bf16 %v7767, %v7737
      %v7900 = vpack.c.bf16 %v7822, %v7792
      %v7901 = vpack.c.bf16 %v7823, %v7793
      %v7902 = vpack.c.bf16 %v7824, %v7794
      %v7903 = vpack.c.bf16 %v7825, %v7795
      %v7904 = vpack.c.bf16 %v7826, %v7796
      %v7905 = vpack.c.bf16 %v7827, %v7797
      %v7906 = vpack.c.bf16 %v7882, %v7852
      %v7907 = vpack.c.bf16 %v7883, %v7853
      %v7908 = vpack.c.bf16 %v7884, %v7854
      %v7909 = vpack.c.bf16 %v7885, %v7855
      %v7910 = vpack.c.bf16 %v7886, %v7856
      %v7911 = vpack.c.bf16 %v7887, %v7857
      %v7912 = vld [vmem:[%s12] sm:$0xf]
      %v7913 = vld [vmem:[%s12 + $0x4] sm:$0xf]
      %v7916 = vunpack.c.l.b16 %v7912
      %v7917 = vunpack.c.l.b16 %v7913
      %v7918 = vpack.c.b16 %v7917, %v7916
      %7943 = vrot.lane.b32.xlu0 %v7888, 19
      %v7944 = vpop.permute.xlu0 %7943
      %7945 = vrot.lane.b32.xlu0 %v7889, 19
      %v7946 = vpop.permute.xlu0 %7945
      %7947 = vrot.lane.b32.xlu0 %v7890, 19
      %v7948 = vpop.permute.xlu0 %7947
      %7949 = vrot.lane.b32.xlu0 %v7891, 19
      %v7950 = vpop.permute.xlu0 %7949
      %7951 = vrot.lane.b32.xlu0 %v7892, 19
      %v7952 = vpop.permute.xlu0 %7951
      %7953 = vrot.lane.b32.xlu0 %v7893, 19
      %v7954 = vpop.permute.xlu0 %7953
      %7955 = vrot.lane.b32.xlu0 %v7894, 19
      %v7956 = vpop.permute.xlu0 %7955
      %7957 = vrot.lane.b32.xlu0 %v7895, 19
      %v7958 = vpop.permute.xlu0 %7957
      %7959 = vrot.lane.b32.xlu0 %v7896, 19
      %v7960 = vpop.permute.xlu0 %7959
      %7961 = vrot.lane.b32.xlu0 %v7897, 19
      %v7962 = vpop.permute.xlu0 %7961
      %7963 = vrot.lane.b32.xlu0 %v7898, 19
      %v7964 = vpop.permute.xlu0 %7963
      %7965 = vrot.lane.b32.xlu0 %v7899, 19
      %v7966 = vpop.permute.xlu0 %7965
      %7967 = vrot.lane.b32.xlu0 %v7900, 19
      %v7968 = vpop.permute.xlu0 %7967
      %7969 = vrot.lane.b32.xlu0 %v7901, 19
      %v7970 = vpop.permute.xlu0 %7969
      %7971 = vrot.lane.b32.xlu0 %v7902, 19
      %v7972 = vpop.permute.xlu0 %7971
      %7973 = vrot.lane.b32.xlu0 %v7903, 19
      %v7974 = vpop.permute.xlu0 %7973
      %7975 = vrot.lane.b32.xlu0 %v7904, 19
      %v7976 = vpop.permute.xlu0 %7975
      %7977 = vrot.lane.b32.xlu0 %v7905, 19
      %v7978 = vpop.permute.xlu0 %7977
      %7979 = vrot.lane.b32.xlu0 %v7906, 19
      %v7980 = vpop.permute.xlu0 %7979
      %7981 = vrot.lane.b32.xlu0 %v7907, 19
      %v7982 = vpop.permute.xlu0 %7981
      %7983 = vrot.lane.b32.xlu0 %v7908, 19
      %v7984 = vpop.permute.xlu0 %7983
      %7985 = vrot.lane.b32.xlu0 %v7909, 19
      %v7986 = vpop.permute.xlu0 %7985
      %7987 = vrot.lane.b32.xlu0 %v7910, 19
      %v7988 = vpop.permute.xlu0 %7987
      %7989 = vrot.lane.b32.xlu0 %v7911, 19
      %v7990 = vpop.permute.xlu0 %7989
      %v7991 = vsel %vm921, %v7944, %v7946
      %v7992 = vsel %vm921, %v7946, %v7948
      %v7993 = vsel %vm921, %v7948, %v7950
      %v7994 = vsel %vm921, %v7950, %v7952
      %v7995 = vsel %vm921, %v7952, %v7954
      %v7996 = vsel %vm921, %v7956, %v7958
      %v7997 = vsel %vm921, %v7958, %v7960
      %v7998 = vsel %vm921, %v7960, %v7962
      %v7999 = vsel %vm921, %v7962, %v7964
      %v8000 = vsel %vm921, %v7964, %v7966
      %v8001 = vsel %vm921, %v7968, %v7970
      %v8002 = vsel %vm921, %v7970, %v7972
      %v8003 = vsel %vm921, %v7972, %v7974
      %v8004 = vsel %vm921, %v7974, %v7976
      %v8005 = vsel %vm921, %v7976, %v7978
      %v8006 = vsel %vm921, %v7980, %v7982
      %v8007 = vsel %vm921, %v7982, %v7984
      %v8008 = vsel %vm921, %v7984, %v7986
      %v8009 = vsel %vm921, %v7986, %v7988
      %v8010 = vsel %vm921, %v7988, %v7990
      %vm8035 = vcmask 523264
      %v8037 = vsel %vm8035, %v7918, 0
      %8039 = vmatprep.subr.bf16.mxu0 %v7992
      %8040 = vmatpush1.bf16.msra.mxu0 %v7991
      %8041 = vmatprep.subr.bf16.mxu0 %v7997
      %8042 = vmatpush1.bf16.msra.mxu0 %v7996
      %8043 = vmatprep.subr.bf16.mxu0 %v8002
      %8044 = vmatpush1.bf16.msra.mxu0 %v8001
      %8045 = vmatprep.subr.bf16.mxu0 %v8007
      %8046 = vmatpush1.bf16.msra.mxu0 %v8006
      %8047 = vmatprep.subr.bf16.mxu0 0
      %8048 = vmatpush1.bf16.msra.mxu0 0
      %8049 = vmatprep.subr.bf16.mxu0 0
      %8050 = vmatpush1.bf16.msra.mxu0 0
      %8051 = vmatprep.subr.bf16.mxu0 0
      %8052 = vmatpush1.bf16.msra.mxu0 0
      %8053 = vmatprep.subr.bf16.mxu0 0
      %8054 = vmatpush1.bf16.msra.mxu0 0
      %8055 = vmatprep.subr.bf16.mxu0 0
      %8056 = vmatpush1.bf16.msra.mxu0 0
      %8057 = vmatprep.subr.bf16.mxu0 0
      %8058 = vmatpush1.bf16.msra.mxu0 0
      %8059 = vmatprep.subr.bf16.mxu0 0
      %8060 = vmatpush1.bf16.msra.mxu0 0
      %8061 = vmatprep.subr.bf16.mxu0 0
      %8062 = vmatpush1.bf16.msra.mxu0 0
      %8063 = vmatprep.subr.bf16.mxu0 0
      %8064 = vmatpush1.bf16.msra.mxu0 0
      %8065 = vmatprep.subr.bf16.mxu0 0
      %8066 = vmatpush1.bf16.msra.mxu0 0
      %8067 = vmatprep.subr.bf16.mxu0 0
      %8068 = vmatpush1.bf16.msra.mxu0 0
      %8069 = vmatprep.subr.bf16.mxu0 0
      %8070 = vmatpush1.bf16.msra.mxu0 0
      %8071 = vmatprep.mubr.bf16.mxu0 0
      %8072 = vmatmul.mubr.bf16.gmra.mrb[0].mxu0 %v8037
      %v8073 = vpop.f32.mrb[0].mxu0
      %v8074 = vadd.f32 %v1707, %v8073
      %v8075 = vpop.f32.mrb[0].mxu0
      %v8076 = vadd.f32 %v1709, %v8075
      %v8077 = vpop.f32.mrb[0].mxu0
      %v8078 = vadd.f32 %v1711, %v8077
      %v8079 = vpop.f32.mrb[0].mxu0
      %v8080 = vadd.f32 %v1713, %v8079
      %8081 = vdwg.mxu0
      %8082 = vmatprep.subr.bf16.mxu0 %v7994
      %8083 = vmatpush1.bf16.msra.mxu0 %v7993
      %8084 = vmatprep.subr.bf16.mxu0 %v7999
      %8085 = vmatpush1.bf16.msra.mxu0 %v7998
      %8086 = vmatprep.subr.bf16.mxu0 %v8004
      %8087 = vmatpush1.bf16.msra.mxu0 %v8003
      %8088 = vmatprep.subr.bf16.mxu0 %v8009
      %8089 = vmatpush1.bf16.msra.mxu0 %v8008
      %8090 = vmatprep.subr.bf16.mxu0 0
      %8091 = vmatpush1.bf16.msra.mxu0 0
      %8092 = vmatprep.subr.bf16.mxu0 0
      %8093 = vmatpush1.bf16.msra.mxu0 0
      %8094 = vmatprep.subr.bf16.mxu0 0
      %8095 = vmatpush1.bf16.msra.mxu0 0
      %8096 = vmatprep.subr.bf16.mxu0 0
      %8097 = vmatpush1.bf16.msra.mxu0 0
      %8098 = vmatprep.subr.bf16.mxu0 0
      %8099 = vmatpush1.bf16.msra.mxu0 0
      %8100 = vmatprep.subr.bf16.mxu0 0
      %8101 = vmatpush1.bf16.msra.mxu0 0
      %8102 = vmatprep.subr.bf16.mxu0 0
      %8103 = vmatpush1.bf16.msra.mxu0 0
      %8104 = vmatprep.subr.bf16.mxu0 0
      %8105 = vmatpush1.bf16.msra.mxu0 0
      %8106 = vmatprep.subr.bf16.mxu0 0
      %8107 = vmatpush1.bf16.msra.mxu0 0
      %8108 = vmatprep.subr.bf16.mxu0 0
      %8109 = vmatpush1.bf16.msra.mxu0 0
      %8110 = vmatprep.subr.bf16.mxu0 0
      %8111 = vmatpush1.bf16.msra.mxu0 0
      %8112 = vmatprep.subr.bf16.mxu0 0
      %8113 = vmatpush1.bf16.msra.mxu0 0
      %8114 = vmatprep.mubr.bf16.mxu0 0
      %8115 = vmatmul.mubr.bf16.gmra.mrb[0].mxu0 %v8037
      %v8116 = vpop.f32.mrb[0].mxu0
      %v8117 = vadd.f32 %v1750, %v8116
      %v8118 = vpop.f32.mrb[0].mxu0
      %v8119 = vadd.f32 %v1752, %v8118
      %v8120 = vpop.f32.mrb[0].mxu0
      %v8121 = vadd.f32 %v1754, %v8120
      %v8122 = vpop.f32.mrb[0].mxu0
      %v8123 = vadd.f32 %v1756, %v8122
      %8124 = vdwg.mxu0
      %8125 = vmatprep.subr.bf16.mxu0 %v7954
      %8126 = vmatpush1.bf16.msra.mxu0 %v7995
      %8127 = vmatprep.subr.bf16.mxu0 %v7966
      %8128 = vmatpush1.bf16.msra.mxu0 %v8000
      %8129 = vmatprep.subr.bf16.mxu0 %v7978
      %8130 = vmatpush1.bf16.msra.mxu0 %v8005
      %8131 = vmatprep.subr.bf16.mxu0 %v7990
      %8132 = vmatpush1.bf16.msra.mxu0 %v8010
      %8133 = vmatprep.subr.bf16.mxu0 0
      %8134 = vmatpush1.bf16.msra.mxu0 0
      %8135 = vmatprep.subr.bf16.mxu0 0
      %8136 = vmatpush1.bf16.msra.mxu0 0
      %8137 = vmatprep.subr.bf16.mxu0 0
      %8138 = vmatpush1.bf16.msra.mxu0 0
      %8139 = vmatprep.subr.bf16.mxu0 0
      %8140 = vmatpush1.bf16.msra.mxu0 0
      %8141 = vmatprep.subr.bf16.mxu0 0
      %8142 = vmatpush1.bf16.msra.mxu0 0
      %8143 = vmatprep.subr.bf16.mxu0 0
      %8144 = vmatpush1.bf16.msra.mxu0 0
      %8145 = vmatprep.subr.bf16.mxu0 0
      %8146 = vmatpush1.bf16.msra.mxu0 0
      %8147 = vmatprep.subr.bf16.mxu0 0
      %8148 = vmatpush1.bf16.msra.mxu0 0
      %8149 = vmatprep.subr.bf16.mxu0 0
      %8150 = vmatpush1.bf16.msra.mxu0 0
      %8151 = vmatprep.subr.bf16.mxu0 0
      %8152 = vmatpush1.bf16.msra.mxu0 0
      %8153 = vmatprep.subr.bf16.mxu0 0
      %8154 = vmatpush1.bf16.msra.mxu0 0
      %8155 = vmatprep.subr.bf16.mxu0 0
      %8156 = vmatpush1.bf16.msra.mxu0 0
      %8157 = vmatprep.mubr.bf16.mxu0 0
      %8158 = vmatmul.mubr.bf16.gmra.mrb[0].mxu0 %v8037
      %v8159 = vpop.f32.mrb[0].mxu0
      %v8160 = vadd.f32 %v1793, %v8159
      %v8161 = vpop.f32.mrb[0].mxu0
      %v8162 = vadd.f32 %v1795, %v8161
      %v8163 = vpop.f32.mrb[0].mxu0
      %v8164 = vadd.f32 %v1797, %v8163
      %v8165 = vpop.f32.mrb[0].mxu0
      %v8166 = vadd.f32 %v1799, %v8165
      %8167 = vdwg.mxu0
      %8168 = vst [vmem:[%s440] sm:$0xff] %v8074
      %8169 = vst [vmem:[%s440 + $0x8] sm:$0xff] %v8076
      %8170 = vst [vmem:[%s440 + $0x10] sm:$0xff] %v8117
      %8171 = vst [vmem:[%s440 + $0x18] sm:$0xff] %v8119
      %8172 = vst [vmem:[%s440 + $0x20] sm:$0xff] %v8160
      %8173 = vst.msk [vmem:[%s440 + $0x28] sm:$0xff] %vm639, %v8162
      %8174 = vst [vmem:[%s440 + $0x30] sm:$0xff] %v8078
      %8175 = vst [vmem:[%s440 + $0x38] sm:$0xff] %v8080
      %8176 = vst [vmem:[%s440 + $0x40] sm:$0xff] %v8121
      %8177 = vst [vmem:[%s440 + $0x48] sm:$0xff] %v8123
      %8178 = vst [vmem:[%s440 + $0x50] sm:$0xff] %v8164
      %8179 = vst.msk [vmem:[%s440 + $0x58] sm:$0xff] %vm639, %v8166
      %p8180 = scmp.lt.s32.totalorder %s24, 1
      %s8181 = scalar_select %p8180, %s24, 1
      %s8182 = smul.addr %s8181, 12
      %s8183 = smul.addr %s8182, 8
      %s8184 = scalar_lea.vmem %s13, %s8183
      // Predicated region
      $region73: #{residual_local_attention_block.1} parent=71 // pred_check
        %p8185 = pneg %p320
      $region74: #{residual_local_attention_block.1} parent=71 // pred_check_branch
        %8187 = sbr.rel (%p8185) target = $region76
      $region75: #{residual_local_attention_block.1} parent=71 // pred_region
        _
      $region76: #{residual_local_attention_block.1} parent=71 // pred_fallthru
        _
    $region72: #{residual_local_attention_block.1} parent=5 // pred_fallthru
      _
    %p8188 = scmp.le.s32.totalorder 2, %s19
    // Predicated region
    $region77: #{residual_local_attention_block.1} parent=5 // pred_check
      %p8189 = pneg %p8188
    $region78: #{residual_local_attention_block.1} parent=5 // pred_check_branch
      %8191 = sbr.rel (%p8189) target = $region80
    $region79: #{residual_local_attention_block.1} parent=5 // pred_region
      %s8192 = ssub.s32 %s19, 2
      // Predicated region
      $region81: #{residual_local_attention_block.1} parent=79 // pred_check
        %p8193 = pneg %p326
      $region82: #{residual_local_attention_block.1} parent=79 // pred_check_branch
        %8195 = sbr.rel (%p8193) target = $region84
      $region83: #{residual_local_attention_block.1} parent=79 // pred_region
        %p8196 = scmp.lt.s32.totalorder %s25, 1
        %s8197 = scalar_select %p8196, %s25, 1
        %s8198 = smul.addr %s8197, 12
        %s8199 = smul.addr %s8198, 8
        %s8200 = scalar_lea.vmem %s13, %s8199
      $region84: #{residual_local_attention_block.1} parent=79 // pred_fallthru
        _
    $region80: #{residual_local_attention_block.1} parent=5 // pred_fallthru
      _
  $region6: #{residual_local_attention_block.1} parent=0 // loop_footer
    %s23 = sadd.s32 1, %s19
  $region7: #{residual_local_attention_block.1} parent=0 // loop_footer_branch
    %18 = sbr.rel target = $region3
  $region8: #{residual_local_attention_block.1} parent=0 // loop_exit
    _

</llo_original>
